<compile_context>
chip_gen: v6e
topology: v6e:2x2x1
jax: 0.10.0
libtpu: 0.0.40
codegen_flags: <defaults>
</compile_context>

<pallas_src>
import functools
import math

import numpy as np
import jax
import jax.numpy as jnp
from jax.experimental import pallas as pl
from jax.experimental.pallas import tpu as pltpu


INPUT_SIZE = 28 * 28     # 784, fixed by nn.Unflatten(1, (1, 28, 28))
HIDDEN = 300
LATENT = 15

HIDDEN_PAD = 384         # 300 -> 3*128
LATENT_PAD = 128         # 15  -> 128 (lane-dense stores / clean MXU dims)


def _detect_batch_shards():
    """2 shards only on multi-TensorCore chips (v7x); 1 elsewhere."""
    try:
        kind = jax.devices()[0].device_kind.lower()
    except Exception:
        return 1
    return 2 if ("v7" in kind or "7x" in kind) else 1


_NUM_BATCH_SHARDS = _detect_batch_shards()


# ------------------------------ fused kernel ------------------------------- #
def _vae_kernel(x_ref, w1_ref, b1_ref, w2_ref, b2_ref, w3_ref, b3_ref,
                wml_ref, bml_ref, eps_ref,
                dw1_ref, db1_ref, dw2_ref, db2_ref, dw3_ref, db3_ref,
                dw4_ref, db4_ref,
                xhat_ref, z_ref, mu_ref, lv_ref, *, n_valid, n_pad):
    f32 = jnp.float32

    def mm(a, w_ref):
        # bf16 MXU matmul, f32 accumulation.
        return jnp.dot(a.astype(jnp.bfloat16), w_ref[...],
                       preferred_element_type=f32)

    # --------------- encoder (tiny N-row batch; recomputed per shard) -------
    x = x_ref[...]                                              # (n_pad, 784) f32
    h = jnp.maximum(mm(x, w1_ref) + b1_ref[...], 0.0)
    h = jnp.maximum(mm(h, w2_ref) + b2_ref[...], 0.0)
    h = jnp.maximum(mm(h, w3_ref) + b3_ref[...], 0.0)
    # fused mu/logvar head: mu in lanes [0,128), logvar in lanes [128,256)
    ml = mm(h, wml_ref) + bml_ref[...]                          # (n_pad, 256) f32

    # ------- replicate mu/logvar k times in-kernel (torch .repeat(k, 1)) ----
    bm_tile = eps_ref.shape[0]
    row0 = pl.program_id(0) * bm_tile
    rows = row0 + jax.lax.broadcasted_iota(jnp.int32, (bm_tile, 2 * LATENT_PAD), 0)
    row_mod = rows % n_valid                                    # encoder row per decoder row
    if n_valid <= 16:
        # small encoder batch: unrolled lane-wise selects (exact, VPU only)
        ml_b = jnp.zeros((bm_tile, 2 * LATENT_PAD), f32)
        for j in range(n_valid):
            ml_b = jnp.where(row_mod == j, ml[j:j + 1, :], ml_b)
    else:
        # general case: one-hot gather matrix on the MXU
        r2 = row0 + jax.lax.broadcasted_iota(jnp.int32, (bm_tile, n_pad), 0)
        c2 = jax.lax.broadcasted_iota(jnp.int32, (bm_tile, n_pad), 1)
        sel = ((r2 % n_valid) == c2).astype(f32)
        ml_b = jnp.dot(sel, ml, preferred_element_type=f32)

    mu_b = ml_b[:, :LATENT_PAD]                                 # (bm_tile, 128)
    lv_b = ml_b[:, LATENT_PAD:]                                 # (bm_tile, 128)
    mu_ref[...] = mu_b
    lv_ref[...] = lv_b

    # ----------------------------- reparametrize ----------------------------
    z = mu_b + jnp.exp(0.5 * lv_b) * eps_ref[...]               # f32
    z_ref[...] = z

    # -------------------------------- decoder -------------------------------
    h = jnp.maximum(mm(z, dw1_ref) + db1_ref[...], 0.0)
    h = jnp.maximum(mm(h, dw2_ref) + db2_ref[...], 0.0)
    h = jnp.maximum(mm(h, dw3_ref) + db3_ref[...], 0.0)
    xhat_ref[...] = jax.nn.sigmoid(mm(h, dw4_ref) + db4_ref[...])


# ------------------------------- parameters -------------------------------- #
def init_vae_params(key, input_size=INPUT_SIZE, hidden=HIDDEN, latent=LATENT):
    """PyTorch-style uniform(-1/sqrt(fan_in), 1/sqrt(fan_in)), logical shapes."""
    def init_linear(k, fan_in, fan_out):
        kw, kb = jax.random.split(k)
        bound = 1.0 / math.sqrt(fan_in)
        w = jax.random.uniform(kw, (fan_in, fan_out), jnp.float32, -bound, bound)
        b = jax.random.uniform(kb, (fan_out,), jnp.float32, -bound, bound)
        return w, b

    ks = jax.random.split(key, 9)
    return {
        "enc1": init_linear(ks[0], input_size, hidden),
        "enc2": init_linear(ks[1], hidden, hidden),
        "enc3": init_linear(ks[2], hidden, hidden),
        "mu": init_linear(ks[3], hidden, latent),
        "logvar": init_linear(ks[4], hidden, latent),
        "dec1": init_linear(ks[5], latent, hidden),
        "dec2": init_linear(ks[6], hidden, hidden),
        "dec3": init_linear(ks[7], hidden, hidden),
        "dec4": init_linear(ks[8], hidden, input_size),
    }


def pack_params(params):
    """Zero-pad to lane-aligned shapes, fuse mu/logvar heads, cast weights bf16."""
    bf16 = jnp.bfloat16

    def pad_w(w, shape):
        out = jnp.zeros(shape, jnp.float32)
        return out.at[: w.shape[0], : w.shape[1]].set(w).astype(bf16)

    def pad_b(b, width):
        out = jnp.zeros((1, width), jnp.float32)
        return out.at[0, : b.shape[0]].set(b)            # biases stay f32

    w1, b1 = params["enc1"]; w2, b2 = params["enc2"]; w3, b3 = params["enc3"]
    wmu, bmu = params["mu"]; wlv, blv = params["logvar"]
    dw1, db1 = params["dec1"]; dw2, db2 = params["dec2"]
    dw3, db3 = params["dec3"]; dw4, db4 = params["dec4"]

    wml = jnp.zeros((HIDDEN_PAD, 2 * LATENT_PAD), jnp.float32)
    wml = wml.at[:HIDDEN, :LATENT].set(wmu)
    wml = wml.at[:HIDDEN, LATENT_PAD:LATENT_PAD + LATENT].set(wlv)
    bml = jnp.zeros((1, 2 * LATENT_PAD), jnp.float32)
    bml = bml.at[0, :LATENT].set(bmu)
    bml = bml.at[0, LATENT_PAD:LATENT_PAD + LATENT].set(blv)

    return {
        "w1": pad_w(w1, (INPUT_SIZE, HIDDEN_PAD)), "b1": pad_b(b1, HIDDEN_PAD),
        "w2": pad_w(w2, (HIDDEN_PAD, HIDDEN_PAD)), "b2": pad_b(b2, HIDDEN_PAD),
        "w3": pad_w(w3, (HIDDEN_PAD, HIDDEN_PAD)), "b3": pad_b(b3, HIDDEN_PAD),
        "wml": wml.astype(bf16),                   "bml": bml,
        "dw1": pad_w(dw1, (LATENT_PAD, HIDDEN_PAD)), "db1": pad_b(db1, HIDDEN_PAD),
        "dw2": pad_w(dw2, (HIDDEN_PAD, HIDDEN_PAD)), "db2": pad_b(db2, HIDDEN_PAD),
        "dw3": pad_w(dw3, (HIDDEN_PAD, HIDDEN_PAD)), "db3": pad_b(db3, HIDDEN_PAD),
        "dw4": pad_w(dw4, (HIDDEN_PAD, INPUT_SIZE)), "db4": pad_b(db4, INPUT_SIZE),
    }


# -------------------------------- wrapper ----------------------------------- #
@functools.partial(jax.jit, static_argnames=("k",))
def vae_forward(packed, x, eps, k=50):
    """x: (N,1,28,28) f32, eps: (k*N, LATENT) f32 -> (x_hat, mu, logvar, z)."""
    n = x.shape[0]
    n_pad = max(8, ((n + 7) // 8) * 8)
    bm = k * n
    bm_pad = ((bm + 127) // 128) * 128
    num_shards = _NUM_BATCH_SHARDS if bm_pad % (_NUM_BATCH_SHARDS * 8) == 0 else 1
    bm_tile = bm_pad // num_shards

    x_flat = x.reshape(n, -1).astype(jnp.float32)             # nn.Flatten
    x_pad = jnp.zeros((n_pad, INPUT_SIZE), jnp.float32).at[:n].set(x_flat)
    eps_pad = jnp.zeros((bm_pad, LATENT_PAD), jnp.float32)
    eps_pad = eps_pad.at[:bm, :LATENT].set(eps.astype(jnp.float32))

    p = packed
    inputs = (x_pad, p["w1"], p["b1"], p["w2"], p["b2"], p["w3"], p["b3"],
              p["wml"], p["bml"], eps_pad,
              p["dw1"], p["db1"], p["dw2"], p["db2"], p["dw3"], p["db3"],
              p["dw4"], p["db4"])

    full = lambda i: (0, 0)      # same (whole-array) block every grid step
    shard = lambda i: (i, 0)     # batch-sharded block

    in_specs = [pl.BlockSpec(a.shape, full) for a in inputs]
    in_specs[9] = pl.BlockSpec((bm_tile, LATENT_PAD), shard)   # eps

    out_shape = (
        jax.ShapeDtypeStruct((bm_pad, INPUT_SIZE), jnp.float32),   # x_hat (flat)
        jax.ShapeDtypeStruct((bm_pad, LATENT_PAD), jnp.float32),   # z
        jax.ShapeDtypeStruct((bm_pad, LATENT_PAD), jnp.float32),   # mu (repeated)
        jax.ShapeDtypeStruct((bm_pad, LATENT_PAD), jnp.float32),   # logvar (repeated)
    )
    out_specs = (
        pl.BlockSpec((bm_tile, INPUT_SIZE), shard),
        pl.BlockSpec((bm_tile, LATENT_PAD), shard),
        pl.BlockSpec((bm_tile, LATENT_PAD), shard),
        pl.BlockSpec((bm_tile, LATENT_PAD), shard),
    )

    enc_flops = 2 * n_pad * num_shards * (
        INPUT_SIZE * HIDDEN_PAD + 2 * HIDDEN_PAD * HIDDEN_PAD
        + HIDDEN_PAD * 2 * LATENT_PAD)
    dec_flops = 2 * bm_pad * (
        LATENT_PAD * HIDDEN_PAD + 2 * HIDDEN_PAD * HIDDEN_PAD
        + HIDDEN_PAD * INPUT_SIZE)
    bytes_accessed = sum(int(a.size) * a.dtype.itemsize for a in inputs)
    bytes_accessed += sum(int(np.prod(s.shape)) * 4 for s in out_shape)
    cost = pl.CostEstimate(
        flops=int(enc_flops + dec_flops),
        transcendentals=int(bm_pad * (LATENT_PAD + INPUT_SIZE)),
        bytes_accessed=int(bytes_accessed),
    )

    kernel = functools.partial(_vae_kernel, n_valid=n, n_pad=n_pad)

    xhat_pad, z_pad, mu_pad, lv_pad = pl.pallas_call(
        kernel,
        out_shape=out_shape,
        grid=(num_shards,),
        in_specs=in_specs,
        out_specs=out_specs,
        compiler_params=pltpu.CompilerParams(
            dimension_semantics=("parallel",)),
        cost_estimate=cost,
    )(*inputs)

    x_hat = xhat_pad[:bm].reshape(bm, 1, 28, 28)               # nn.Unflatten
    mu_rep = mu_pad[:bm, :LATENT]
    logvar_rep = lv_pad[:bm, :LATENT]
    z = z_pad[:bm, :LATENT]
    return x_hat, mu_rep, logvar_rep, z


# ------------------------------ pure-JAX reference -------------------------- #
def vae_reference(params, x, eps, k=50):
    n = x.shape[0]
    xf = x.reshape(n, -1).astype(jnp.float32)

    def lin(p, a):
        w, b = p
        return a @ w + b

    h = jax.nn.relu(lin(params["enc1"], xf))
    h = jax.nn.relu(lin(params["enc2"], h))
    h = jax.nn.relu(lin(params["enc3"], h))
    mu = lin(params["mu"], h)
    lv = lin(params["logvar"], h)
    mu_r = jnp.tile(mu, (k, 1))
    lv_r = jnp.tile(lv, (k, 1))
    z = mu_r + jnp.exp(0.5 * lv_r) * eps
    h = jax.nn.relu(lin(params["dec1"], z))
    h = jax.nn.relu(lin(params["dec2"], h))
    h = jax.nn.relu(lin(params["dec3"], h))
    xh = jax.nn.sigmoid(lin(params["dec4"], h)).reshape(k * n, 1, 28, 28)
    return xh, mu_r, lv_r, z


if __name__ == "__main__":
    key = jax.random.PRNGKey(0)
    k_params, k_x, k_eps = jax.random.split(key, 3)

    N, K = 2, 50
    params = init_vae_params(k_params)
    packed = pack_params(params)
    x = jax.random.uniform(k_x, (N, 1, 28, 28), jnp.float32)
    eps = jax.random.normal(k_eps, (K * N, LATENT), jnp.float32)   # randn_like(std)

    out = vae_forward(packed, x, eps, k=K)
    jax.block_until_ready(out)
    x_hat, mu, logvar, z = out

    assert x_hat.shape == (K * N, 1, 28, 28)
    assert mu.shape == (K * N, LATENT)
    assert logvar.shape == (K * N, LATENT)
    assert z.shape == (K * N, LATENT)

    # Correctness vs. f32 reference (kernel uses bf16 matmul operands -> loose tol).
    ref = vae_reference(params, x, eps, k=K)
    for got, want in zip(out, ref):
        np.testing.assert_allclose(np.asarray(got), np.asarray(want),
                                   rtol=0.0, atol=5e-2)

    print("KERNEL_OK")
</pallas_src>

<mosaic_0001>
module attributes {stable_mosaic.version = 11 : i64} {
  func.func @_vae_kernel(%arg0: i32, %arg1: memref<8x784xf32, #tpu.memory_space<vmem>>, %arg2: memref<784x384xbf16, #tpu.memory_space<vmem>>, %arg3: memref<1x384xf32, #tpu.memory_space<vmem>>, %arg4: memref<384x384xbf16, #tpu.memory_space<vmem>>, %arg5: memref<1x384xf32, #tpu.memory_space<vmem>>, %arg6: memref<384x384xbf16, #tpu.memory_space<vmem>>, %arg7: memref<1x384xf32, #tpu.memory_space<vmem>>, %arg8: memref<384x256xbf16, #tpu.memory_space<vmem>>, %arg9: memref<1x256xf32, #tpu.memory_space<vmem>>, %arg10: memref<128x128xf32, #tpu.memory_space<vmem>>, %arg11: memref<128x384xbf16, #tpu.memory_space<vmem>>, %arg12: memref<1x384xf32, #tpu.memory_space<vmem>>, %arg13: memref<384x384xbf16, #tpu.memory_space<vmem>>, %arg14: memref<1x384xf32, #tpu.memory_space<vmem>>, %arg15: memref<384x384xbf16, #tpu.memory_space<vmem>>, %arg16: memref<1x384xf32, #tpu.memory_space<vmem>>, %arg17: memref<384x784xbf16, #tpu.memory_space<vmem>>, %arg18: memref<1x784xf32, #tpu.memory_space<vmem>>, %arg19: memref<128x784xf32, #tpu.memory_space<vmem>>, %arg20: memref<128x128xf32, #tpu.memory_space<vmem>>, %arg21: memref<128x128xf32, #tpu.memory_space<vmem>>, %arg22: memref<128x128xf32, #tpu.memory_space<vmem>>) attributes {dimension_semantics = [#tpu.dimension_semantics<parallel>], iteration_bounds = array<i64: 1>, scalar_prefetch = 0 : i64, scratch_operands = 0 : i64, tpu.core_type = #tpu.core_type<tc>, window_params = [{pipeline_mode = #tpu.pipeline_mode<synchronous>, transform_indices = @transform_0, window_bounds = array<i64: 8, 784>}, {pipeline_mode = #tpu.pipeline_mode<synchronous>, transform_indices = @transform_1, window_bounds = array<i64: 784, 384>}, {pipeline_mode = #tpu.pipeline_mode<synchronous>, transform_indices = @transform_2, window_bounds = array<i64: 1, 384>}, {pipeline_mode = #tpu.pipeline_mode<synchronous>, transform_indices = @transform_3, window_bounds = array<i64: 384, 384>}, {pipeline_mode = #tpu.pipeline_mode<synchronous>, transform_indices = @transform_4, window_bounds = array<i64: 1, 384>}, {pipeline_mode = #tpu.pipeline_mode<synchronous>, transform_indices = @transform_5, window_bounds = array<i64: 384, 384>}, {pipeline_mode = #tpu.pipeline_mode<synchronous>, transform_indices = @transform_6, window_bounds = array<i64: 1, 384>}, {pipeline_mode = #tpu.pipeline_mode<synchronous>, transform_indices = @transform_7, window_bounds = array<i64: 384, 256>}, {pipeline_mode = #tpu.pipeline_mode<synchronous>, transform_indices = @transform_8, window_bounds = array<i64: 1, 256>}, {transform_indices = @transform_9, window_bounds = array<i64: 128, 128>}, {pipeline_mode = #tpu.pipeline_mode<synchronous>, transform_indices = @transform_10, window_bounds = array<i64: 128, 384>}, {pipeline_mode = #tpu.pipeline_mode<synchronous>, transform_indices = @transform_11, window_bounds = array<i64: 1, 384>}, {pipeline_mode = #tpu.pipeline_mode<synchronous>, transform_indices = @transform_12, window_bounds = array<i64: 384, 384>}, {pipeline_mode = #tpu.pipeline_mode<synchronous>, transform_indices = @transform_13, window_bounds = array<i64: 1, 384>}, {pipeline_mode = #tpu.pipeline_mode<synchronous>, transform_indices = @transform_14, window_bounds = array<i64: 384, 384>}, {pipeline_mode = #tpu.pipeline_mode<synchronous>, transform_indices = @transform_15, window_bounds = array<i64: 1, 384>}, {pipeline_mode = #tpu.pipeline_mode<synchronous>, transform_indices = @transform_16, window_bounds = array<i64: 384, 784>}, {pipeline_mode = #tpu.pipeline_mode<synchronous>, transform_indices = @transform_17, window_bounds = array<i64: 1, 784>}, {transform_indices = @transform_18, window_bounds = array<i64: 128, 784>}, {transform_indices = @transform_19, window_bounds = array<i64: 128, 128>}, {transform_indices = @transform_20, window_bounds = array<i64: 128, 128>}, {transform_indices = @transform_21, window_bounds = array<i64: 128, 128>}]} {
    %c0 = arith.constant 0 : index
    %c0_0 = arith.constant 0 : index
    %0 = vector.load %arg1[%c0, %c0_0] : memref<8x784xf32, #tpu.memory_space<vmem>>, vector<8x784xf32>
    %1 = arith.truncf %0 : vector<8x784xf32> to vector<8x784xbf16>
    %c0_1 = arith.constant 0 : index
    %c0_2 = arith.constant 0 : index
    %2 = vector.load %arg2[%c0_1, %c0_2] : memref<784x384xbf16, #tpu.memory_space<vmem>>, vector<784x384xbf16>
    %cst = arith.constant dense<0.000000e+00> : vector<8x384xf32>
    %3 = tpu.matmul %1, %2, %cst {dimension_numbers = #tpu.dot_dimension_numbers<[1], [0], [0], [1], [0, 0, 1, 1], [], []>} : vector<8x784xbf16>, vector<784x384xbf16>, vector<8x384xf32> -> vector<8x384xf32>
    %c0_3 = arith.constant 0 : index
    %c0_4 = arith.constant 0 : index
    %4 = vector.load %arg3[%c0_3, %c0_4] : memref<1x384xf32, #tpu.memory_space<vmem>>, vector<1x384xf32>
    %5 = vector.broadcast %4 : vector<1x384xf32> to vector<8x384xf32>
    %6 = arith.addf %3, %5 : vector<8x384xf32>
    %cst_5 = arith.constant 0.000000e+00 : f32
    %7 = vector.broadcast %cst_5 : f32 to vector<8x384xf32>
    %8 = arith.maximumf %6, %7 : vector<8x384xf32>
    %9 = arith.truncf %8 : vector<8x384xf32> to vector<8x384xbf16>
    %c0_6 = arith.constant 0 : index
    %c0_7 = arith.constant 0 : index
    %10 = vector.load %arg4[%c0_6, %c0_7] : memref<384x384xbf16, #tpu.memory_space<vmem>>, vector<384x384xbf16>
    %cst_8 = arith.constant dense<0.000000e+00> : vector<8x384xf32>
    %11 = tpu.matmul %9, %10, %cst_8 {dimension_numbers = #tpu.dot_dimension_numbers<[1], [0], [0], [1], [0, 0, 1, 1], [], []>} : vector<8x384xbf16>, vector<384x384xbf16>, vector<8x384xf32> -> vector<8x384xf32>
    %c0_9 = arith.constant 0 : index
    %c0_10 = arith.constant 0 : index
    %12 = vector.load %arg5[%c0_9, %c0_10] : memref<1x384xf32, #tpu.memory_space<vmem>>, vector<1x384xf32>
    %13 = vector.broadcast %12 : vector<1x384xf32> to vector<8x384xf32>
    %14 = arith.addf %11, %13 : vector<8x384xf32>
    %cst_11 = arith.constant 0.000000e+00 : f32
    %15 = vector.broadcast %cst_11 : f32 to vector<8x384xf32>
    %16 = arith.maximumf %14, %15 : vector<8x384xf32>
    %17 = arith.truncf %16 : vector<8x384xf32> to vector<8x384xbf16>
    %c0_12 = arith.constant 0 : index
    %c0_13 = arith.constant 0 : index
    %18 = vector.load %arg6[%c0_12, %c0_13] : memref<384x384xbf16, #tpu.memory_space<vmem>>, vector<384x384xbf16>
    %cst_14 = arith.constant dense<0.000000e+00> : vector<8x384xf32>
    %19 = tpu.matmul %17, %18, %cst_14 {dimension_numbers = #tpu.dot_dimension_numbers<[1], [0], [0], [1], [0, 0, 1, 1], [], []>} : vector<8x384xbf16>, vector<384x384xbf16>, vector<8x384xf32> -> vector<8x384xf32>
    %c0_15 = arith.constant 0 : index
    %c0_16 = arith.constant 0 : index
    %20 = vector.load %arg7[%c0_15, %c0_16] : memref<1x384xf32, #tpu.memory_space<vmem>>, vector<1x384xf32>
    %21 = vector.broadcast %20 : vector<1x384xf32> to vector<8x384xf32>
    %22 = arith.addf %19, %21 : vector<8x384xf32>
    %cst_17 = arith.constant 0.000000e+00 : f32
    %23 = vector.broadcast %cst_17 : f32 to vector<8x384xf32>
    %24 = arith.maximumf %22, %23 : vector<8x384xf32>
    %25 = arith.truncf %24 : vector<8x384xf32> to vector<8x384xbf16>
    %c0_18 = arith.constant 0 : index
    %c0_19 = arith.constant 0 : index
    %26 = vector.load %arg8[%c0_18, %c0_19] : memref<384x256xbf16, #tpu.memory_space<vmem>>, vector<384x256xbf16>
    %cst_20 = arith.constant dense<0.000000e+00> : vector<8x256xf32>
    %27 = tpu.matmul %25, %26, %cst_20 {dimension_numbers = #tpu.dot_dimension_numbers<[1], [0], [0], [1], [0, 0, 1, 1], [], []>} : vector<8x384xbf16>, vector<384x256xbf16>, vector<8x256xf32> -> vector<8x256xf32>
    %c0_21 = arith.constant 0 : index
    %c0_22 = arith.constant 0 : index
    %28 = vector.load %arg9[%c0_21, %c0_22] : memref<1x256xf32, #tpu.memory_space<vmem>>, vector<1x256xf32>
    %29 = vector.broadcast %28 : vector<1x256xf32> to vector<8x256xf32>
    %30 = arith.addf %27, %29 : vector<8x256xf32>
    %c128_i32 = arith.constant 128 : i32
    %31 = arith.muli %arg0, %c128_i32 : i32
    %32 = tpu.iota {dimensions = array<i32: 0>} : vector<128x256xi32>
    %33 = vector.broadcast %31 : i32 to vector<128x256xi32>
    %34 = arith.addi %33, %32 : vector<128x256xi32>
    %c2_i32 = arith.constant 2 : i32
    %c0_i32 = arith.constant 0 : i32
    %35 = arith.cmpi eq, %c2_i32, %c0_i32 : i32
    %c1_i32 = arith.constant 1 : i32
    %36 = arith.select %35, %c1_i32, %c2_i32 : i32
    %37 = vector.broadcast %36 : i32 to vector<128x256xi32>
    %38 = arith.remsi %34, %37 : vector<128x256xi32>
    %c0_i32_23 = arith.constant 0 : i32
    %39 = vector.broadcast %c0_i32_23 : i32 to vector<128x256xi32>
    %40 = arith.cmpi ne, %38, %39 : vector<128x256xi32>
    %c0_i32_24 = arith.constant 0 : i32
    %41 = vector.broadcast %c0_i32_24 : i32 to vector<128x256xi32>
    %42 = arith.cmpi slt, %38, %41 : vector<128x256xi32>
    %c0_i32_25 = arith.constant 0 : i32
    %43 = arith.cmpi slt, %36, %c0_i32_25 : i32
    %44 = vector.broadcast %43 : i1 to vector<128x256xi1>
    %45 = vector.broadcast %44 : vector<128x256xi1> to vector<128x256xi1>
    %46 = arith.xori %42, %45 : vector<128x256xi1>
    %47 = arith.andi %46, %40 : vector<128x256xi1>
    %48 = vector.broadcast %36 : i32 to vector<128x256xi32>
    %49 = arith.addi %38, %48 : vector<128x256xi32>
    %50 = arith.select %47, %49, %38 : vector<128x256xi1>, vector<128x256xi32>
    %cst_26 = arith.constant 0.000000e+00 : f32
    %51 = vector.broadcast %cst_26 : f32 to vector<128x256xf32>
    %c0_i32_27 = arith.constant 0 : i32
    %52 = vector.broadcast %c0_i32_27 : i32 to vector<128x256xi32>
    %53 = arith.cmpi eq, %50, %52 : vector<128x256xi32>
    %54 = vector.extract_strided_slice %30 {offsets = [0, 0], sizes = [1, 256], strides = [1, 1]} : vector<8x256xf32> to vector<1x256xf32>
    %55 = vector.shape_cast %54 : vector<1x256xf32> to vector<1x256xf32>
    %56 = vector.broadcast %55 : vector<1x256xf32> to vector<128x256xf32>
    %57 = arith.select %53, %56, %51 : vector<128x256xi1>, vector<128x256xf32>
    %c1_i32_28 = arith.constant 1 : i32
    %58 = vector.broadcast %c1_i32_28 : i32 to vector<128x256xi32>
    %59 = arith.cmpi eq, %50, %58 : vector<128x256xi32>
    %60 = vector.extract_strided_slice %30 {offsets = [1, 0], sizes = [1, 256], strides = [1, 1]} : vector<8x256xf32> to vector<1x256xf32>
    %61 = vector.shape_cast %60 : vector<1x256xf32> to vector<1x256xf32>
    %62 = vector.broadcast %61 : vector<1x256xf32> to vector<128x256xf32>
    %63 = arith.select %59, %62, %57 : vector<128x256xi1>, vector<128x256xf32>
    %64 = vector.extract_strided_slice %63 {offsets = [0, 0], sizes = [128, 128], strides = [1, 1]} : vector<128x256xf32> to vector<128x128xf32>
    %65 = vector.extract_strided_slice %63 {offsets = [0, 128], sizes = [128, 128], strides = [1, 1]} : vector<128x256xf32> to vector<128x128xf32>
    %c0_29 = arith.constant 0 : index
    %c0_30 = arith.constant 0 : index
    %66 = vector.load %arg21[%c0_29, %c0_30] : memref<128x128xf32, #tpu.memory_space<vmem>>, vector<128x128xf32>
    tpu.vector_store %arg21[%c0_29, %c0_30], %64 {strides = array<i32>} : memref<128x128xf32, #tpu.memory_space<vmem>>, vector<128x128xf32>,
    %c0_31 = arith.constant 0 : index
    %c0_32 = arith.constant 0 : index
    %67 = vector.load %arg22[%c0_31, %c0_32] : memref<128x128xf32, #tpu.memory_space<vmem>>, vector<128x128xf32>
    tpu.vector_store %arg22[%c0_31, %c0_32], %65 {strides = array<i32>} : memref<128x128xf32, #tpu.memory_space<vmem>>, vector<128x128xf32>,
    %cst_33 = arith.constant 5.000000e-01 : f32
    %68 = vector.broadcast %cst_33 : f32 to vector<128x128xf32>
    %69 = arith.mulf %68, %65 : vector<128x128xf32>
    %70 = math.exp %69 : vector<128x128xf32>
    %c0_34 = arith.constant 0 : index
    %c0_35 = arith.constant 0 : index
    %71 = vector.load %arg10[%c0_34, %c0_35] : memref<128x128xf32, #tpu.memory_space<vmem>>, vector<128x128xf32>
    %72 = arith.mulf %70, %71 : vector<128x128xf32>
    %73 = arith.addf %64, %72 : vector<128x128xf32>
    %c0_36 = arith.constant 0 : index
    %c0_37 = arith.constant 0 : index
    %74 = vector.load %arg20[%c0_36, %c0_37] : memref<128x128xf32, #tpu.memory_space<vmem>>, vector<128x128xf32>
    tpu.vector_store %arg20[%c0_36, %c0_37], %73 {strides = array<i32>} : memref<128x128xf32, #tpu.memory_space<vmem>>, vector<128x128xf32>,
    %75 = arith.truncf %73 : vector<128x128xf32> to vector<128x128xbf16>
    %c0_38 = arith.constant 0 : index
    %c0_39 = arith.constant 0 : index
    %76 = vector.load %arg11[%c0_38, %c0_39] : memref<128x384xbf16, #tpu.memory_space<vmem>>, vector<128x384xbf16>
    %cst_40 = arith.constant dense<0.000000e+00> : vector<128x384xf32>
    %77 = tpu.matmul %75, %76, %cst_40 {dimension_numbers = #tpu.dot_dimension_numbers<[1], [0], [0], [1], [0, 0, 1, 1], [], []>} : vector<128x128xbf16>, vector<128x384xbf16>, vector<128x384xf32> -> vector<128x384xf32>
    %c0_41 = arith.constant 0 : index
    %c0_42 = arith.constant 0 : index
    %78 = vector.load %arg12[%c0_41, %c0_42] : memref<1x384xf32, #tpu.memory_space<vmem>>, vector<1x384xf32>
    %79 = vector.broadcast %78 : vector<1x384xf32> to vector<128x384xf32>
    %80 = arith.addf %77, %79 : vector<128x384xf32>
    %cst_43 = arith.constant 0.000000e+00 : f32
    %81 = vector.broadcast %cst_43 : f32 to vector<128x384xf32>
    %82 = arith.maximumf %80, %81 : vector<128x384xf32>
    %83 = arith.truncf %82 : vector<128x384xf32> to vector<128x384xbf16>
    %c0_44 = arith.constant 0 : index
    %c0_45 = arith.constant 0 : index
    %84 = vector.load %arg13[%c0_44, %c0_45] : memref<384x384xbf16, #tpu.memory_space<vmem>>, vector<384x384xbf16>
    %cst_46 = arith.constant dense<0.000000e+00> : vector<128x384xf32>
    %85 = tpu.matmul %83, %84, %cst_46 {dimension_numbers = #tpu.dot_dimension_numbers<[1], [0], [0], [1], [0, 0, 1, 1], [], []>} : vector<128x384xbf16>, vector<384x384xbf16>, vector<128x384xf32> -> vector<128x384xf32>
    %c0_47 = arith.constant 0 : index
    %c0_48 = arith.constant 0 : index
    %86 = vector.load %arg14[%c0_47, %c0_48] : memref<1x384xf32, #tpu.memory_space<vmem>>, vector<1x384xf32>
    %87 = vector.broadcast %86 : vector<1x384xf32> to vector<128x384xf32>
    %88 = arith.addf %85, %87 : vector<128x384xf32>
    %cst_49 = arith.constant 0.000000e+00 : f32
    %89 = vector.broadcast %cst_49 : f32 to vector<128x384xf32>
    %90 = arith.maximumf %88, %89 : vector<128x384xf32>
    %91 = arith.truncf %90 : vector<128x384xf32> to vector<128x384xbf16>
    %c0_50 = arith.constant 0 : index
    %c0_51 = arith.constant 0 : index
    %92 = vector.load %arg15[%c0_50, %c0_51] : memref<384x384xbf16, #tpu.memory_space<vmem>>, vector<384x384xbf16>
    %cst_52 = arith.constant dense<0.000000e+00> : vector<128x384xf32>
    %93 = tpu.matmul %91, %92, %cst_52 {dimension_numbers = #tpu.dot_dimension_numbers<[1], [0], [0], [1], [0, 0, 1, 1], [], []>} : vector<128x384xbf16>, vector<384x384xbf16>, vector<128x384xf32> -> vector<128x384xf32>
    %c0_53 = arith.constant 0 : index
    %c0_54 = arith.constant 0 : index
    %94 = vector.load %arg16[%c0_53, %c0_54] : memref<1x384xf32, #tpu.memory_space<vmem>>, vector<1x384xf32>
    %95 = vector.broadcast %94 : vector<1x384xf32> to vector<128x384xf32>
    %96 = arith.addf %93, %95 : vector<128x384xf32>
    %cst_55 = arith.constant 0.000000e+00 : f32
    %97 = vector.broadcast %cst_55 : f32 to vector<128x384xf32>
    %98 = arith.maximumf %96, %97 : vector<128x384xf32>
    %99 = arith.truncf %98 : vector<128x384xf32> to vector<128x384xbf16>
    %c0_56 = arith.constant 0 : index
    %c0_57 = arith.constant 0 : index
    %100 = vector.load %arg17[%c0_56, %c0_57] : memref<384x784xbf16, #tpu.memory_space<vmem>>, vector<384x784xbf16>
    %cst_58 = arith.constant dense<0.000000e+00> : vector<128x784xf32>
    %101 = tpu.matmul %99, %100, %cst_58 {dimension_numbers = #tpu.dot_dimension_numbers<[1], [0], [0], [1], [0, 0, 1, 1], [], []>} : vector<128x384xbf16>, vector<384x784xbf16>, vector<128x784xf32> -> vector<128x784xf32>
    %c0_59 = arith.constant 0 : index
    %c0_60 = arith.constant 0 : index
    %102 = vector.load %arg18[%c0_59, %c0_60] : memref<1x784xf32, #tpu.memory_space<vmem>>, vector<1x784xf32>
    %103 = vector.broadcast %102 : vector<1x784xf32> to vector<128x784xf32>
    %104 = arith.addf %101, %103 : vector<128x784xf32>
    %105 = arith.negf %104 : vector<128x784xf32>
    %106 = math.exp %105 : vector<128x784xf32>
    %cst_61 = arith.constant 1.000000e+00 : f32
    %107 = vector.broadcast %cst_61 : f32 to vector<128x784xf32>
    %108 = arith.addf %107, %106 : vector<128x784xf32>
    %109 = arith.divf %107, %108 : vector<128x784xf32>
    %c0_62 = arith.constant 0 : index
    %c0_63 = arith.constant 0 : index
    %110 = vector.load %arg19[%c0_62, %c0_63] : memref<128x784xf32, #tpu.memory_space<vmem>>, vector<128x784xf32>
    tpu.vector_store %arg19[%c0_62, %c0_63], %109 {strides = array<i32>} : memref<128x784xf32, #tpu.memory_space<vmem>>, vector<128x784xf32>,
    return
  }
  func.func @transform_0(%arg0: i32) -> (i32, i32) {
    %c0_i32 = arith.constant 0 : i32
    %c0_i32_0 = arith.constant 0 : i32
    %c0_i32_1 = arith.constant 0 : i32
    return %c0_i32, %c0_i32_0 : i32, i32
  }
  func.func @transform_1(%arg0: i32) -> (i32, i32) {
    %c0_i32 = arith.constant 0 : i32
    %c0_i32_0 = arith.constant 0 : i32
    %c0_i32_1 = arith.constant 0 : i32
    return %c0_i32, %c0_i32_0 : i32, i32
  }
  func.func @transform_2(%arg0: i32) -> (i32, i32) {
    %c0_i32 = arith.constant 0 : i32
    %c0_i32_0 = arith.constant 0 : i32
    %c0_i32_1 = arith.constant 0 : i32
    return %c0_i32, %c0_i32_0 : i32, i32
  }
  func.func @transform_3(%arg0: i32) -> (i32, i32) {
    %c0_i32 = arith.constant 0 : i32
    %c0_i32_0 = arith.constant 0 : i32
    %c0_i32_1 = arith.constant 0 : i32
    return %c0_i32, %c0_i32_0 : i32, i32
  }
  func.func @transform_4(%arg0: i32) -> (i32, i32) {
    %c0_i32 = arith.constant 0 : i32
    %c0_i32_0 = arith.constant 0 : i32
    %c0_i32_1 = arith.constant 0 : i32
    return %c0_i32, %c0_i32_0 : i32, i32
  }
  func.func @transform_5(%arg0: i32) -> (i32, i32) {
    %c0_i32 = arith.constant 0 : i32
    %c0_i32_0 = arith.constant 0 : i32
    %c0_i32_1 = arith.constant 0 : i32
    return %c0_i32, %c0_i32_0 : i32, i32
  }
  func.func @transform_6(%arg0: i32) -> (i32, i32) {
    %c0_i32 = arith.constant 0 : i32
    %c0_i32_0 = arith.constant 0 : i32
    %c0_i32_1 = arith.constant 0 : i32
    return %c0_i32, %c0_i32_0 : i32, i32
  }
  func.func @transform_7(%arg0: i32) -> (i32, i32) {
    %c0_i32 = arith.constant 0 : i32
    %c0_i32_0 = arith.constant 0 : i32
    %c0_i32_1 = arith.constant 0 : i32
    return %c0_i32, %c0_i32_0 : i32, i32
  }
  func.func @transform_8(%arg0: i32) -> (i32, i32) {
    %c0_i32 = arith.constant 0 : i32
    %c0_i32_0 = arith.constant 0 : i32
    %c0_i32_1 = arith.constant 0 : i32
    return %c0_i32, %c0_i32_0 : i32, i32
  }
  func.func @transform_9(%arg0: i32) -> (i32, i32) {
    %c0_i32 = arith.constant 0 : i32
    %c0_i32_0 = arith.constant 0 : i32
    return %arg0, %c0_i32 : i32, i32
  }
  func.func @transform_10(%arg0: i32) -> (i32, i32) {
    %c0_i32 = arith.constant 0 : i32
    %c0_i32_0 = arith.constant 0 : i32
    %c0_i32_1 = arith.constant 0 : i32
    return %c0_i32, %c0_i32_0 : i32, i32
  }
  func.func @transform_11(%arg0: i32) -> (i32, i32) {
    %c0_i32 = arith.constant 0 : i32
    %c0_i32_0 = arith.constant 0 : i32
    %c0_i32_1 = arith.constant 0 : i32
    return %c0_i32, %c0_i32_0 : i32, i32
  }
  func.func @transform_12(%arg0: i32) -> (i32, i32) {
    %c0_i32 = arith.constant 0 : i32
    %c0_i32_0 = arith.constant 0 : i32
    %c0_i32_1 = arith.constant 0 : i32
    return %c0_i32, %c0_i32_0 : i32, i32
  }
  func.func @transform_13(%arg0: i32) -> (i32, i32) {
    %c0_i32 = arith.constant 0 : i32
    %c0_i32_0 = arith.constant 0 : i32
    %c0_i32_1 = arith.constant 0 : i32
    return %c0_i32, %c0_i32_0 : i32, i32
  }
  func.func @transform_14(%arg0: i32) -> (i32, i32) {
    %c0_i32 = arith.constant 0 : i32
    %c0_i32_0 = arith.constant 0 : i32
    %c0_i32_1 = arith.constant 0 : i32
    return %c0_i32, %c0_i32_0 : i32, i32
  }
  func.func @transform_15(%arg0: i32) -> (i32, i32) {
    %c0_i32 = arith.constant 0 : i32
    %c0_i32_0 = arith.constant 0 : i32
    %c0_i32_1 = arith.constant 0 : i32
    return %c0_i32, %c0_i32_0 : i32, i32
  }
  func.func @transform_16(%arg0: i32) -> (i32, i32) {
    %c0_i32 = arith.constant 0 : i32
    %c0_i32_0 = arith.constant 0 : i32
    %c0_i32_1 = arith.constant 0 : i32
    return %c0_i32, %c0_i32_0 : i32, i32
  }
  func.func @transform_17(%arg0: i32) -> (i32, i32) {
    %c0_i32 = arith.constant 0 : i32
    %c0_i32_0 = arith.constant 0 : i32
    %c0_i32_1 = arith.constant 0 : i32
    return %c0_i32, %c0_i32_0 : i32, i32
  }
  func.func @transform_18(%arg0: i32) -> (i32, i32) {
    %c0_i32 = arith.constant 0 : i32
    %c0_i32_0 = arith.constant 0 : i32
    return %arg0, %c0_i32 : i32, i32
  }
  func.func @transform_19(%arg0: i32) -> (i32, i32) {
    %c0_i32 = arith.constant 0 : i32
    %c0_i32_0 = arith.constant 0 : i32
    return %arg0, %c0_i32 : i32, i32
  }
  func.func @transform_20(%arg0: i32) -> (i32, i32) {
    %c0_i32 = arith.constant 0 : i32
    %c0_i32_0 = arith.constant 0 : i32
    return %arg0, %c0_i32 : i32, i32
  }
  func.func @transform_21(%arg0: i32) -> (i32, i32) {
    %c0_i32 = arith.constant 0 : i32
    %c0_i32_0 = arith.constant 0 : i32
    return %arg0, %c0_i32 : i32, i32
  }
}

</mosaic_0001>

<llo_original>
// kernel: vae_forward.1
$region0: #{vae_forward.1}
  #allocation0 [shape = 'u32[]', space=smem, size = 0x4, offset = 0x4, fixed_abs, tag = 'smem constant byte address 0x4 - core index']
  #allocation1 [shape = 'u32[144,128]{1,0:T(1,128)}', space=vmem, size = 0x12000, scoped, tag = 'internal scratch']
  %s0 = inlined_call_operand.vmem [shape: f32[8,784], index: 0, kind: input, shape index: {}]
  %s1 = inlined_call_operand.vmem [shape: bf16[784,384], index: 1, kind: input, shape index: {}]
  %s2 = inlined_call_operand.vmem [shape: f32[1,384], index: 2, kind: input, shape index: {}]
  %s3 = inlined_call_operand.vmem [shape: bf16[384,384], index: 3, kind: input, shape index: {}]
  %s4 = inlined_call_operand.vmem [shape: f32[1,384], index: 4, kind: input, shape index: {}]
  %s5 = inlined_call_operand.vmem [shape: bf16[384,384], index: 5, kind: input, shape index: {}]
  %s6 = inlined_call_operand.vmem [shape: f32[1,384], index: 6, kind: input, shape index: {}]
  %s7 = inlined_call_operand.hbm [shape: bf16[384,256], index: 7, kind: input, shape index: {}]
  %s8 = inlined_call_operand.vmem [shape: f32[1,256], index: 8, kind: input, shape index: {}]
  %s9 = inlined_call_operand.vmem [shape: f32[128,128], index: 9, kind: input, shape index: {}]
  %s10 = inlined_call_operand.vmem [shape: bf16[128,384], index: 10, kind: input, shape index: {}]
  %s11 = inlined_call_operand.vmem [shape: f32[1,384], index: 11, kind: input, shape index: {}]
  %s12 = inlined_call_operand.vmem [shape: bf16[384,384], index: 12, kind: input, shape index: {}]
  %s13 = inlined_call_operand.vmem [shape: f32[1,384], index: 13, kind: input, shape index: {}]
  %s14 = inlined_call_operand.hbm [shape: bf16[384,384], index: 14, kind: input, shape index: {}]
  %s15 = inlined_call_operand.vmem [shape: f32[1,384], index: 15, kind: input, shape index: {}]
  %s16 = inlined_call_operand.vmem [shape: bf16[384,784], index: 16, kind: input, shape index: {}]
  %s17 = inlined_call_operand.vmem [shape: f32[1,784], index: 17, kind: input, shape index: {}]
  %s18 = inlined_call_operand.vmem [shape: f32[128,784], index: 18, kind: output, shape index: {0}]
  %s19 = inlined_call_operand.vmem [shape: f32[128,128], index: 19, kind: output, shape index: {1}]
  %s20 = inlined_call_operand.vmem [shape: f32[128,128], index: 20, kind: output, shape index: {2}]
  %s21 = inlined_call_operand.vmem [shape: f32[128,128], index: 21, kind: output, shape index: {3}]
  %22 = xla_tuple %s18, %s19, %s20, %s21
  %s23 = sld [smem:[#allocation0]]
  $region114: #{vae_forward.1} parent=0
    _
  %s25 = ssub.s32 1, %s23
  %s26 = scalar_select 0, %s25, %s23
  $region1: #{vae_forward.1} parent=0
    #allocation2 [shape = 'u8[196608]{0}', space=vmem, size = 0x30000, scoped, tag = 'input window, operand 7, single buffered']
    #allocation3 [shape = 's32[1]{0}', space=sflag, size = 0x4, scoped, tag = 'scoped memory for vae_forward.1']
    #allocation4 [shape = 'u8[294912]{0}', space=vmem, size = 0x48000, scoped, tag = 'input window, operand 14, single buffered']
    #allocation5 [shape = 's32[1]{0}', space=sflag, size = 0x4, scoped, tag = 'scoped memory for vae_forward.1']
    %27 = vsyncpa [#allocation3], 0
    %28 = vsyncpa [#allocation5], 0
    // Predicated region
    $region2: #{vae_forward.1} parent=1 // pred_check
      _
    $region3: #{vae_forward.1} parent=1 // pred_check_branch
      %30 = sbr.rel (0) target = $region5
    $region4: #{vae_forward.1} parent=1 // pred_region
      _
    $region5: #{vae_forward.1} parent=1 // pred_fallthru
      _
    // Predicated region
    $region6: #{vae_forward.1} parent=1 // pred_check
      _
    $region7: #{vae_forward.1} parent=1 // pred_check_branch
      %32 = sbr.rel (0) target = $region9
    $region8: #{vae_forward.1} parent=1 // pred_region
      _
    $region9: #{vae_forward.1} parent=1 // pred_fallthru
      _
    // Predicated region
    $region10: #{vae_forward.1} parent=1 // pred_check
      _
    $region11: #{vae_forward.1} parent=1 // pred_check_branch
      %34 = sbr.rel (0) target = $region13
    $region12: #{vae_forward.1} parent=1 // pred_region
      _
    $region13: #{vae_forward.1} parent=1 // pred_fallthru
      _
    // Predicated region
    $region14: #{vae_forward.1} parent=1 // pred_check
      _
    $region15: #{vae_forward.1} parent=1 // pred_check_branch
      %36 = sbr.rel (0) target = $region17
    $region16: #{vae_forward.1} parent=1 // pred_region
      _
    $region17: #{vae_forward.1} parent=1 // pred_fallthru
      _
    // Predicated region
    $region18: #{vae_forward.1} parent=1 // pred_check
      _
    $region19: #{vae_forward.1} parent=1 // pred_check_branch
      %38 = sbr.rel (0) target = $region21
    $region20: #{vae_forward.1} parent=1 // pred_region
      _
    $region21: #{vae_forward.1} parent=1 // pred_fallthru
      _
    // Predicated region
    $region22: #{vae_forward.1} parent=1 // pred_check
      _
    $region23: #{vae_forward.1} parent=1 // pred_check_branch
      %40 = sbr.rel (0) target = $region25
    $region24: #{vae_forward.1} parent=1 // pred_region
      _
    $region25: #{vae_forward.1} parent=1 // pred_fallthru
      _
    // Predicated region
    $region26: #{vae_forward.1} parent=1 // pred_check
      _
    $region27: #{vae_forward.1} parent=1 // pred_check_branch
      %42 = sbr.rel (0) target = $region29
    $region28: #{vae_forward.1} parent=1 // pred_region
      _
    $region29: #{vae_forward.1} parent=1 // pred_fallthru
      _
    // Predicated region
    $region30: #{vae_forward.1} parent=1 // pred_check
      _
    $region31: #{vae_forward.1} parent=1 // pred_check_branch
      %44 = sbr.rel (0) target = $region33
    $region32: #{vae_forward.1} parent=1 // pred_region
      %s46 = ssub.s32 6144, 6144
      %47 = vsyncadd [#allocation3], %s46
      %s48 = sshll.u32 [#allocation2], 4
      %s49 = int_to_ptr.vmem [resolvable:$true] %s48
      %54 = dma.hbm_to_vmem [thread:$0]  %s7, 6144, %s49, [#allocation3], 128, 128, 8
    $region33: #{vae_forward.1} parent=1 // pred_fallthru
      _
    // Predicated region
    $region34: #{vae_forward.1} parent=1 // pred_check
      _
    $region35: #{vae_forward.1} parent=1 // pred_check_branch
      %56 = sbr.rel (0) target = $region37
    $region36: #{vae_forward.1} parent=1 // pred_region
      _
    $region37: #{vae_forward.1} parent=1 // pred_fallthru
      _
    // Predicated region
    $region38: #{vae_forward.1} parent=1 // pred_check
      _
    $region39: #{vae_forward.1} parent=1 // pred_check_branch
      %58 = sbr.rel (0) target = $region41
    $region40: #{vae_forward.1} parent=1 // pred_region
      _
    $region41: #{vae_forward.1} parent=1 // pred_fallthru
      _
    // Predicated region
    $region42: #{vae_forward.1} parent=1 // pred_check
      _
    $region43: #{vae_forward.1} parent=1 // pred_check_branch
      %60 = sbr.rel (0) target = $region45
    $region44: #{vae_forward.1} parent=1 // pred_region
      _
    $region45: #{vae_forward.1} parent=1 // pred_fallthru
      _
    // Predicated region
    $region46: #{vae_forward.1} parent=1 // pred_check
      _
    $region47: #{vae_forward.1} parent=1 // pred_check_branch
      %62 = sbr.rel (0) target = $region49
    $region48: #{vae_forward.1} parent=1 // pred_region
      _
    $region49: #{vae_forward.1} parent=1 // pred_fallthru
      _
    // Predicated region
    $region50: #{vae_forward.1} parent=1 // pred_check
      _
    $region51: #{vae_forward.1} parent=1 // pred_check_branch
      %64 = sbr.rel (0) target = $region53
    $region52: #{vae_forward.1} parent=1 // pred_region
      _
    $region53: #{vae_forward.1} parent=1 // pred_fallthru
      _
    // Predicated region
    $region54: #{vae_forward.1} parent=1 // pred_check
      _
    $region55: #{vae_forward.1} parent=1 // pred_check_branch
      %66 = sbr.rel (0) target = $region57
    $region56: #{vae_forward.1} parent=1 // pred_region
      _
    $region57: #{vae_forward.1} parent=1 // pred_fallthru
      _
    // Predicated region
    $region58: #{vae_forward.1} parent=1 // pred_check
      _
    $region59: #{vae_forward.1} parent=1 // pred_check_branch
      %68 = sbr.rel (0) target = $region61
    $region60: #{vae_forward.1} parent=1 // pred_region
      %s70 = ssub.s32 9216, 9216
      %71 = vsyncadd [#allocation5], %s70
      %s72 = sshll.u32 [#allocation4], 4
      %s73 = int_to_ptr.vmem [resolvable:$true] %s72
      %78 = dma.hbm_to_vmem [thread:$0]  %s14, 9216, %s73, [#allocation5], 192, 192, 12
    $region61: #{vae_forward.1} parent=1 // pred_fallthru
      _
    // Predicated region
    $region62: #{vae_forward.1} parent=1 // pred_check
      _
    $region63: #{vae_forward.1} parent=1 // pred_check_branch
      %80 = sbr.rel (0) target = $region65
    $region64: #{vae_forward.1} parent=1 // pred_region
      _
    $region65: #{vae_forward.1} parent=1 // pred_fallthru
      _
    // Predicated region
    $region66: #{vae_forward.1} parent=1 // pred_check
      _
    $region67: #{vae_forward.1} parent=1 // pred_check_branch
      %82 = sbr.rel (0) target = $region69
    $region68: #{vae_forward.1} parent=1 // pred_region
      _
    $region69: #{vae_forward.1} parent=1 // pred_fallthru
      _
    // Predicated region
    $region70: #{vae_forward.1} parent=1 // pred_check
      _
    $region71: #{vae_forward.1} parent=1 // pred_check_branch
      %84 = sbr.rel (0) target = $region73
    $region72: #{vae_forward.1} parent=1 // pred_region
      _
    $region73: #{vae_forward.1} parent=1 // pred_fallthru
      _
    // Predicated region
    $region74: #{vae_forward.1} parent=1 // pred_check
      _
    $region75: #{vae_forward.1} parent=1 // pred_check_branch
      %86 = sbr.rel (0) target = $region77
    $region76: #{vae_forward.1} parent=1 // pred_region
      %87 = dma.done [#allocation3], 6144
    $region77: #{vae_forward.1} parent=1 // pred_fallthru
      _
    // Predicated region
    $region78: #{vae_forward.1} parent=1 // pred_check
      _
    $region79: #{vae_forward.1} parent=1 // pred_check_branch
      %89 = sbr.rel (0) target = $region81
    $region80: #{vae_forward.1} parent=1 // pred_region
      %90 = dma.done [#allocation5], 9216
    $region81: #{vae_forward.1} parent=1 // pred_fallthru
      _
    %v92 = vld [vmem:[%s0] sm:$0xff]
    %v93 = vld [vmem:[%s0 + $0x8] sm:$0xff]
    %v94 = vld [vmem:[%s0 + $0x10] sm:$0xff]
    %v95 = vld [vmem:[%s0 + $0x18] sm:$0xff]
    %v96 = vld [vmem:[%s0 + $0x20] sm:$0xff]
    %v97 = vld [vmem:[%s0 + $0x28] sm:$0xff]
    %v98 = vld [vmem:[%s0 + $0x30] sm:$0xff]
    %v99 = vpack.c.bf16 %v92, %v92
    %v100 = vpack.c.bf16 %v93, %v93
    %v101 = vpack.c.bf16 %v94, %v94
    %v102 = vpack.c.bf16 %v95, %v95
    %v103 = vpack.c.bf16 %v96, %v96
    %v104 = vpack.c.bf16 %v97, %v97
    %v105 = vpack.c.bf16 %v98, %v98
    %v106 = vld [vmem:[%s1] sm:$0xff]
    %v107 = vld [vmem:[%s1 + $0x8] sm:$0xf]
    %v108 = vld [vmem:[%s1 + $0xc] sm:$0xff]
    %v109 = vld [vmem:[%s1 + $0x14] sm:$0xf]
    %v110 = vld [vmem:[%s1 + $0x18] sm:$0xff]
    %v111 = vld [vmem:[%s1 + $0x20] sm:$0xf]
    %v112 = vld [vmem:[%s1 + $0x24] sm:$0xff]
    %v113 = vld [vmem:[%s1 + $0x2c] sm:$0xf]
    %v114 = vld [vmem:[%s1 + $0x30] sm:$0xff]
    %v115 = vld [vmem:[%s1 + $0x38] sm:$0xf]
    %v116 = vld [vmem:[%s1 + $0x3c] sm:$0xff]
    %v117 = vld [vmem:[%s1 + $0x44] sm:$0xf]
    %v118 = vld [vmem:[%s1 + $0x48] sm:$0xff]
    %v119 = vld [vmem:[%s1 + $0x50] sm:$0xf]
    %v120 = vld [vmem:[%s1 + $0x54] sm:$0xff]
    %v121 = vld [vmem:[%s1 + $0x5c] sm:$0xf]
    %v122 = vld [vmem:[%s1 + $0x60] sm:$0xff]
    %v123 = vld [vmem:[%s1 + $0x68] sm:$0xf]
    %v124 = vld [vmem:[%s1 + $0x6c] sm:$0xff]
    %v125 = vld [vmem:[%s1 + $0x74] sm:$0xf]
    %v126 = vld [vmem:[%s1 + $0x78] sm:$0xff]
    %v127 = vld [vmem:[%s1 + $0x80] sm:$0xf]
    %v128 = vld [vmem:[%s1 + $0x84] sm:$0xff]
    %v129 = vld [vmem:[%s1 + $0x8c] sm:$0xf]
    %v130 = vld [vmem:[%s1 + $0x90] sm:$0xff]
    %v131 = vld [vmem:[%s1 + $0x98] sm:$0xf]
    %v132 = vld [vmem:[%s1 + $0x9c] sm:$0xff]
    %v133 = vld [vmem:[%s1 + $0xa4] sm:$0xf]
    %v134 = vld [vmem:[%s1 + $0xa8] sm:$0xff]
    %v135 = vld [vmem:[%s1 + $0xb0] sm:$0xf]
    %v136 = vld [vmem:[%s1 + $0xb4] sm:$0xff]
    %v137 = vld [vmem:[%s1 + $0xbc] sm:$0xf]
    %v138 = vld [vmem:[%s1 + $0xc0] sm:$0xff]
    %v139 = vld [vmem:[%s1 + $0xc8] sm:$0xf]
    %v140 = vld [vmem:[%s1 + $0xcc] sm:$0xff]
    %v141 = vld [vmem:[%s1 + $0xd4] sm:$0xf]
    %v142 = vld [vmem:[%s1 + $0xd8] sm:$0xff]
    %v143 = vld [vmem:[%s1 + $0xe0] sm:$0xf]
    %v144 = vld [vmem:[%s1 + $0xe4] sm:$0xff]
    %v145 = vld [vmem:[%s1 + $0xec] sm:$0xf]
    %v146 = vld [vmem:[%s1 + $0xf0] sm:$0xff]
    %v147 = vld [vmem:[%s1 + $0xf8] sm:$0xf]
    %v148 = vld [vmem:[%s1 + $0xfc] sm:$0xff]
    %v149 = vld [vmem:[%s1 + $0x104] sm:$0xf]
    %v150 = vld [vmem:[%s1 + $0x108] sm:$0xff]
    %v151 = vld [vmem:[%s1 + $0x110] sm:$0xf]
    %v152 = vld [vmem:[%s1 + $0x114] sm:$0xff]
    %v153 = vld [vmem:[%s1 + $0x11c] sm:$0xf]
    %v154 = vld [vmem:[%s1 + $0x120] sm:$0xff]
    %v155 = vld [vmem:[%s1 + $0x128] sm:$0xf]
    %v156 = vld [vmem:[%s1 + $0x12c] sm:$0xff]
    %v157 = vld [vmem:[%s1 + $0x134] sm:$0xf]
    %v158 = vld [vmem:[%s1 + $0x138] sm:$0xff]
    %v159 = vld [vmem:[%s1 + $0x140] sm:$0xf]
    %v160 = vld [vmem:[%s1 + $0x144] sm:$0xff]
    %v161 = vld [vmem:[%s1 + $0x14c] sm:$0xf]
    %v162 = vld [vmem:[%s1 + $0x150] sm:$0xff]
    %v163 = vld [vmem:[%s1 + $0x158] sm:$0xf]
    %v164 = vld [vmem:[%s1 + $0x15c] sm:$0xff]
    %v165 = vld [vmem:[%s1 + $0x164] sm:$0xf]
    %v166 = vld [vmem:[%s1 + $0x168] sm:$0xff]
    %v167 = vld [vmem:[%s1 + $0x170] sm:$0xf]
    %v168 = vld [vmem:[%s1 + $0x174] sm:$0xff]
    %v169 = vld [vmem:[%s1 + $0x17c] sm:$0xf]
    %v170 = vld [vmem:[%s1 + $0x180] sm:$0xff]
    %v171 = vld [vmem:[%s1 + $0x188] sm:$0xf]
    %v172 = vld [vmem:[%s1 + $0x18c] sm:$0xff]
    %v173 = vld [vmem:[%s1 + $0x194] sm:$0xf]
    %v174 = vld [vmem:[%s1 + $0x198] sm:$0xff]
    %v175 = vld [vmem:[%s1 + $0x1a0] sm:$0xf]
    %v176 = vld [vmem:[%s1 + $0x1a4] sm:$0xff]
    %v177 = vld [vmem:[%s1 + $0x1ac] sm:$0xf]
    %v178 = vld [vmem:[%s1 + $0x1b0] sm:$0xff]
    %v179 = vld [vmem:[%s1 + $0x1b8] sm:$0xf]
    %v180 = vld [vmem:[%s1 + $0x1bc] sm:$0xff]
    %v181 = vld [vmem:[%s1 + $0x1c4] sm:$0xf]
    %v182 = vld [vmem:[%s1 + $0x1c8] sm:$0xff]
    %v183 = vld [vmem:[%s1 + $0x1d0] sm:$0xf]
    %v184 = vld [vmem:[%s1 + $0x1d4] sm:$0xff]
    %v185 = vld [vmem:[%s1 + $0x1dc] sm:$0xf]
    %v186 = vld [vmem:[%s1 + $0x1e0] sm:$0xff]
    %v187 = vld [vmem:[%s1 + $0x1e8] sm:$0xf]
    %v188 = vld [vmem:[%s1 + $0x1ec] sm:$0xff]
    %v189 = vld [vmem:[%s1 + $0x1f4] sm:$0xf]
    %v190 = vld [vmem:[%s1 + $0x1f8] sm:$0xff]
    %v191 = vld [vmem:[%s1 + $0x200] sm:$0xf]
    %v192 = vld [vmem:[%s1 + $0x204] sm:$0xff]
    %v193 = vld [vmem:[%s1 + $0x20c] sm:$0xf]
    %v194 = vld [vmem:[%s1 + $0x210] sm:$0xff]
    %v195 = vld [vmem:[%s1 + $0x218] sm:$0xf]
    %v196 = vld [vmem:[%s1 + $0x21c] sm:$0xff]
    %v197 = vld [vmem:[%s1 + $0x224] sm:$0xf]
    %v198 = vld [vmem:[%s1 + $0x228] sm:$0xff]
    %v199 = vld [vmem:[%s1 + $0x230] sm:$0xf]
    %v200 = vld [vmem:[%s1 + $0x234] sm:$0xff]
    %v201 = vld [vmem:[%s1 + $0x23c] sm:$0xf]
    %v202 = vld [vmem:[%s1 + $0x240] sm:$0xff]
    %v203 = vld [vmem:[%s1 + $0x248] sm:$0xf]
    %v204 = vld [vmem:[%s1 + $0x24c] sm:$0xff]
    %v205 = vld [vmem:[%s1 + $0x254] sm:$0xf]
    %v206 = vld [vmem:[%s1 + $0x258] sm:$0xff]
    %v207 = vld [vmem:[%s1 + $0x260] sm:$0xf]
    %v208 = vld [vmem:[%s1 + $0x264] sm:$0xff]
    %v209 = vld [vmem:[%s1 + $0x26c] sm:$0xf]
    %v210 = vld [vmem:[%s1 + $0x270] sm:$0xff]
    %v211 = vld [vmem:[%s1 + $0x278] sm:$0xf]
    %v212 = vld [vmem:[%s1 + $0x27c] sm:$0xff]
    %v213 = vld [vmem:[%s1 + $0x284] sm:$0xf]
    %v214 = vld [vmem:[%s1 + $0x288] sm:$0xff]
    %v215 = vld [vmem:[%s1 + $0x290] sm:$0xf]
    %v216 = vld [vmem:[%s1 + $0x294] sm:$0xff]
    %v217 = vld [vmem:[%s1 + $0x29c] sm:$0xf]
    %v218 = vld [vmem:[%s1 + $0x2a0] sm:$0xff]
    %v219 = vld [vmem:[%s1 + $0x2a8] sm:$0xf]
    %v220 = vld [vmem:[%s1 + $0x2ac] sm:$0xff]
    %v221 = vld [vmem:[%s1 + $0x2b4] sm:$0xf]
    %v222 = vld [vmem:[%s1 + $0x2b8] sm:$0xff]
    %v223 = vld [vmem:[%s1 + $0x2c0] sm:$0xf]
    %v224 = vld [vmem:[%s1 + $0x2c4] sm:$0xff]
    %v225 = vld [vmem:[%s1 + $0x2cc] sm:$0xf]
    %v226 = vld [vmem:[%s1 + $0x2d0] sm:$0xff]
    %v227 = vld [vmem:[%s1 + $0x2d8] sm:$0xf]
    %v228 = vld [vmem:[%s1 + $0x2dc] sm:$0xff]
    %v229 = vld [vmem:[%s1 + $0x2e4] sm:$0xf]
    %v230 = vld [vmem:[%s1 + $0x2e8] sm:$0xff]
    %v231 = vld [vmem:[%s1 + $0x2f0] sm:$0xf]
    %v232 = vld [vmem:[%s1 + $0x2f4] sm:$0xff]
    %v233 = vld [vmem:[%s1 + $0x2fc] sm:$0xf]
    %v234 = vld [vmem:[%s1 + $0x300] sm:$0xff]
    %v235 = vld [vmem:[%s1 + $0x308] sm:$0xf]
    %v236 = vld [vmem:[%s1 + $0x30c] sm:$0xff]
    %v237 = vld [vmem:[%s1 + $0x314] sm:$0xf]
    %v238 = vld [vmem:[%s1 + $0x318] sm:$0xff]
    %v239 = vld [vmem:[%s1 + $0x320] sm:$0xf]
    %v240 = vld [vmem:[%s1 + $0x324] sm:$0xff]
    %v241 = vld [vmem:[%s1 + $0x32c] sm:$0xf]
    %v242 = vld [vmem:[%s1 + $0x330] sm:$0xff]
    %v243 = vld [vmem:[%s1 + $0x338] sm:$0xf]
    %v244 = vld [vmem:[%s1 + $0x33c] sm:$0xff]
    %v245 = vld [vmem:[%s1 + $0x344] sm:$0xf]
    %v246 = vld [vmem:[%s1 + $0x348] sm:$0xff]
    %v247 = vld [vmem:[%s1 + $0x350] sm:$0xf]
    %v248 = vld [vmem:[%s1 + $0x354] sm:$0xff]
    %v249 = vld [vmem:[%s1 + $0x35c] sm:$0xf]
    %v250 = vld [vmem:[%s1 + $0x360] sm:$0xff]
    %v251 = vld [vmem:[%s1 + $0x368] sm:$0xf]
    %v252 = vld [vmem:[%s1 + $0x36c] sm:$0xff]
    %v253 = vld [vmem:[%s1 + $0x374] sm:$0xf]
    %v254 = vld [vmem:[%s1 + $0x378] sm:$0xff]
    %v255 = vld [vmem:[%s1 + $0x380] sm:$0xf]
    %v256 = vld [vmem:[%s1 + $0x384] sm:$0xff]
    %v257 = vld [vmem:[%s1 + $0x38c] sm:$0xf]
    %v258 = vld [vmem:[%s1 + $0x390] sm:$0xff]
    %v259 = vld [vmem:[%s1 + $0x398] sm:$0xf]
    %v260 = vld [vmem:[%s1 + $0x39c] sm:$0xff]
    %v261 = vld [vmem:[%s1 + $0x3a4] sm:$0xf]
    %v262 = vld [vmem:[%s1 + $0x3a8] sm:$0xff]
    %v263 = vld [vmem:[%s1 + $0x3b0] sm:$0xf]
    %v264 = vld [vmem:[%s1 + $0x3b4] sm:$0xff]
    %v265 = vld [vmem:[%s1 + $0x3bc] sm:$0xf]
    %v266 = vld [vmem:[%s1 + $0x3c0] sm:$0xff]
    %v267 = vld [vmem:[%s1 + $0x3c8] sm:$0xf]
    %v268 = vld [vmem:[%s1 + $0x3cc] sm:$0xff]
    %v269 = vld [vmem:[%s1 + $0x3d4] sm:$0xf]
    %v270 = vld [vmem:[%s1 + $0x3d8] sm:$0xff]
    %v271 = vld [vmem:[%s1 + $0x3e0] sm:$0xf]
    %v272 = vld [vmem:[%s1 + $0x3e4] sm:$0xff]
    %v273 = vld [vmem:[%s1 + $0x3ec] sm:$0xf]
    %v274 = vld [vmem:[%s1 + $0x3f0] sm:$0xff]
    %v275 = vld [vmem:[%s1 + $0x3f8] sm:$0xf]
    %v276 = vld [vmem:[%s1 + $0x3fc] sm:$0xff]
    %v277 = vld [vmem:[%s1 + $0x404] sm:$0xf]
    %v278 = vld [vmem:[%s1 + $0x408] sm:$0xff]
    %v279 = vld [vmem:[%s1 + $0x410] sm:$0xf]
    %v280 = vld [vmem:[%s1 + $0x414] sm:$0xff]
    %v281 = vld [vmem:[%s1 + $0x41c] sm:$0xf]
    %v282 = vld [vmem:[%s1 + $0x420] sm:$0xff]
    %v283 = vld [vmem:[%s1 + $0x428] sm:$0xf]
    %v284 = vld [vmem:[%s1 + $0x42c] sm:$0xff]
    %v285 = vld [vmem:[%s1 + $0x434] sm:$0xf]
    %v286 = vld [vmem:[%s1 + $0x438] sm:$0xff]
    %v287 = vld [vmem:[%s1 + $0x440] sm:$0xf]
    %v288 = vld [vmem:[%s1 + $0x444] sm:$0xff]
    %v289 = vld [vmem:[%s1 + $0x44c] sm:$0xf]
    %v290 = vld [vmem:[%s1 + $0x450] sm:$0xff]
    %v291 = vld [vmem:[%s1 + $0x458] sm:$0xf]
    %v292 = vld [vmem:[%s1 + $0x45c] sm:$0xff]
    %v293 = vld [vmem:[%s1 + $0x464] sm:$0xf]
    %v294 = vld [vmem:[%s1 + $0x468] sm:$0xff]
    %v295 = vld [vmem:[%s1 + $0x470] sm:$0xf]
    %v296 = vld [vmem:[%s1 + $0x474] sm:$0xff]
    %v297 = vld [vmem:[%s1 + $0x47c] sm:$0xf]
    %v298 = vld [vmem:[%s1 + $0x480] sm:$0xff]
    %v299 = vld [vmem:[%s1 + $0x488] sm:$0xf]
    %v300 = vld [vmem:[%s1 + $0x48c] sm:$0xff]
    %v301 = vld [vmem:[%s1 + $0x494] sm:$0xf]
    %v302 = vld [vmem:[%s2] sm:$0x7]
    %v304 = vlaneseq
    %v305 = vshrl.u32 %v304, 7
    %v306 = vsub.s32 0, %v305
    %v307 = vrot.slane %v302, %v306
    %v308 = vlaneseq
    %v309 = vshrl.u32 %v308, 7
    %v310 = vsub.s32 1, %v309
    %v311 = vrot.slane %v302, %v310
    %v312 = vlaneseq
    %v313 = vshrl.u32 %v312, 7
    %v314 = vsub.s32 2, %v313
    %v315 = vrot.slane %v302, %v314
    %v515 = vunpack.c.l.b16 %v106
    %v516 = vunpack.c.h.b16 %v106
    %v517 = vunpack.c.l.b16 %v107
    %v518 = vunpack.c.l.b16 %v108
    %v519 = vunpack.c.h.b16 %v108
    %v520 = vunpack.c.l.b16 %v109
    %v521 = vunpack.c.l.b16 %v110
    %v522 = vunpack.c.h.b16 %v110
    %v523 = vunpack.c.l.b16 %v111
    %v524 = vunpack.c.l.b16 %v112
    %v525 = vunpack.c.h.b16 %v112
    %v526 = vunpack.c.l.b16 %v113
    %v527 = vunpack.c.l.b16 %v114
    %v528 = vunpack.c.h.b16 %v114
    %v529 = vunpack.c.l.b16 %v115
    %v530 = vunpack.c.l.b16 %v116
    %v531 = vunpack.c.h.b16 %v116
    %v532 = vunpack.c.l.b16 %v117
    %v533 = vunpack.c.l.b16 %v118
    %v534 = vunpack.c.h.b16 %v118
    %v535 = vunpack.c.l.b16 %v119
    %v536 = vunpack.c.l.b16 %v120
    %v537 = vunpack.c.h.b16 %v120
    %v538 = vunpack.c.l.b16 %v121
    %v539 = vunpack.c.l.b16 %v122
    %v540 = vunpack.c.h.b16 %v122
    %v541 = vunpack.c.l.b16 %v123
    %v542 = vunpack.c.l.b16 %v124
    %v543 = vunpack.c.h.b16 %v124
    %v544 = vunpack.c.l.b16 %v125
    %v545 = vunpack.c.l.b16 %v126
    %v546 = vunpack.c.h.b16 %v126
    %v547 = vunpack.c.l.b16 %v127
    %v548 = vunpack.c.l.b16 %v128
    %v549 = vunpack.c.h.b16 %v128
    %v550 = vunpack.c.l.b16 %v129
    %v551 = vunpack.c.l.b16 %v130
    %v552 = vunpack.c.h.b16 %v130
    %v553 = vunpack.c.l.b16 %v131
    %v554 = vunpack.c.l.b16 %v132
    %v555 = vunpack.c.h.b16 %v132
    %v556 = vunpack.c.l.b16 %v133
    %v557 = vunpack.c.l.b16 %v134
    %v558 = vunpack.c.h.b16 %v134
    %v559 = vunpack.c.l.b16 %v135
    %v560 = vunpack.c.l.b16 %v136
    %v561 = vunpack.c.h.b16 %v136
    %v562 = vunpack.c.l.b16 %v137
    %v563 = vunpack.c.l.b16 %v138
    %v564 = vunpack.c.h.b16 %v138
    %v565 = vunpack.c.l.b16 %v139
    %v566 = vunpack.c.l.b16 %v140
    %v567 = vunpack.c.h.b16 %v140
    %v568 = vunpack.c.l.b16 %v141
    %v569 = vunpack.c.l.b16 %v142
    %v570 = vunpack.c.h.b16 %v142
    %v571 = vunpack.c.l.b16 %v143
    %v572 = vunpack.c.l.b16 %v144
    %v573 = vunpack.c.h.b16 %v144
    %v574 = vunpack.c.l.b16 %v145
    %v575 = vunpack.c.l.b16 %v146
    %v576 = vunpack.c.h.b16 %v146
    %v577 = vunpack.c.l.b16 %v147
    %v578 = vunpack.c.l.b16 %v148
    %v579 = vunpack.c.h.b16 %v148
    %v580 = vunpack.c.l.b16 %v149
    %v581 = vunpack.c.l.b16 %v150
    %v582 = vunpack.c.h.b16 %v150
    %v583 = vunpack.c.l.b16 %v151
    %v584 = vunpack.c.l.b16 %v152
    %v585 = vunpack.c.h.b16 %v152
    %v586 = vunpack.c.l.b16 %v153
    %v587 = vunpack.c.l.b16 %v154
    %v588 = vunpack.c.h.b16 %v154
    %v589 = vunpack.c.l.b16 %v155
    %v590 = vunpack.c.l.b16 %v156
    %v591 = vunpack.c.h.b16 %v156
    %v592 = vunpack.c.l.b16 %v157
    %v593 = vunpack.c.l.b16 %v158
    %v594 = vunpack.c.h.b16 %v158
    %v595 = vunpack.c.l.b16 %v159
    %v596 = vunpack.c.l.b16 %v160
    %v597 = vunpack.c.h.b16 %v160
    %v598 = vunpack.c.l.b16 %v161
    %v599 = vunpack.c.l.b16 %v162
    %v600 = vunpack.c.h.b16 %v162
    %v601 = vunpack.c.l.b16 %v163
    %v602 = vunpack.c.l.b16 %v164
    %v603 = vunpack.c.h.b16 %v164
    %v604 = vunpack.c.l.b16 %v165
    %v605 = vunpack.c.l.b16 %v166
    %v606 = vunpack.c.h.b16 %v166
    %v607 = vunpack.c.l.b16 %v167
    %v608 = vunpack.c.l.b16 %v168
    %v609 = vunpack.c.h.b16 %v168
    %v610 = vunpack.c.l.b16 %v169
    %v611 = vunpack.c.l.b16 %v170
    %v612 = vunpack.c.h.b16 %v170
    %v613 = vunpack.c.l.b16 %v171
    %v614 = vunpack.c.l.b16 %v172
    %v615 = vunpack.c.h.b16 %v172
    %v616 = vunpack.c.l.b16 %v173
    %v617 = vunpack.c.l.b16 %v174
    %v618 = vunpack.c.h.b16 %v174
    %v619 = vunpack.c.l.b16 %v175
    %v620 = vunpack.c.l.b16 %v176
    %v621 = vunpack.c.h.b16 %v176
    %v622 = vunpack.c.l.b16 %v177
    %v623 = vunpack.c.l.b16 %v178
    %v624 = vunpack.c.h.b16 %v178
    %v625 = vunpack.c.l.b16 %v179
    %v626 = vunpack.c.l.b16 %v180
    %v627 = vunpack.c.h.b16 %v180
    %v628 = vunpack.c.l.b16 %v181
    %v629 = vunpack.c.l.b16 %v182
    %v630 = vunpack.c.h.b16 %v182
    %v631 = vunpack.c.l.b16 %v183
    %v632 = vunpack.c.l.b16 %v184
    %v633 = vunpack.c.h.b16 %v184
    %v634 = vunpack.c.l.b16 %v185
    %v635 = vunpack.c.l.b16 %v186
    %v636 = vunpack.c.h.b16 %v186
    %v637 = vunpack.c.l.b16 %v187
    %v638 = vunpack.c.l.b16 %v188
    %v639 = vunpack.c.h.b16 %v188
    %v640 = vunpack.c.l.b16 %v189
    %v641 = vunpack.c.l.b16 %v190
    %v642 = vunpack.c.h.b16 %v190
    %v643 = vunpack.c.l.b16 %v191
    %v644 = vunpack.c.l.b16 %v192
    %v645 = vunpack.c.h.b16 %v192
    %v646 = vunpack.c.l.b16 %v193
    %v647 = vunpack.c.l.b16 %v194
    %v648 = vunpack.c.h.b16 %v194
    %v649 = vunpack.c.l.b16 %v195
    %v650 = vunpack.c.l.b16 %v196
    %v651 = vunpack.c.h.b16 %v196
    %v652 = vunpack.c.l.b16 %v197
    %v653 = vunpack.c.l.b16 %v198
    %v654 = vunpack.c.h.b16 %v198
    %v655 = vunpack.c.l.b16 %v199
    %v656 = vunpack.c.l.b16 %v200
    %v657 = vunpack.c.h.b16 %v200
    %v658 = vunpack.c.l.b16 %v201
    %v659 = vunpack.c.l.b16 %v202
    %v660 = vunpack.c.h.b16 %v202
    %v661 = vunpack.c.l.b16 %v203
    %v662 = vunpack.c.l.b16 %v204
    %v663 = vunpack.c.h.b16 %v204
    %v664 = vunpack.c.l.b16 %v205
    %v665 = vunpack.c.l.b16 %v206
    %v666 = vunpack.c.h.b16 %v206
    %v667 = vunpack.c.l.b16 %v207
    %v668 = vunpack.c.l.b16 %v208
    %v669 = vunpack.c.h.b16 %v208
    %v670 = vunpack.c.l.b16 %v209
    %v671 = vunpack.c.l.b16 %v210
    %v672 = vunpack.c.h.b16 %v210
    %v673 = vunpack.c.l.b16 %v211
    %v674 = vunpack.c.l.b16 %v212
    %v675 = vunpack.c.h.b16 %v212
    %v676 = vunpack.c.l.b16 %v213
    %v677 = vunpack.c.l.b16 %v214
    %v678 = vunpack.c.h.b16 %v214
    %v679 = vunpack.c.l.b16 %v215
    %v680 = vunpack.c.l.b16 %v216
    %v681 = vunpack.c.h.b16 %v216
    %v682 = vunpack.c.l.b16 %v217
    %v683 = vunpack.c.l.b16 %v218
    %v684 = vunpack.c.h.b16 %v218
    %v685 = vunpack.c.l.b16 %v219
    %v686 = vunpack.c.l.b16 %v220
    %v687 = vunpack.c.h.b16 %v220
    %v688 = vunpack.c.l.b16 %v221
    %v689 = vunpack.c.l.b16 %v222
    %v690 = vunpack.c.h.b16 %v222
    %v691 = vunpack.c.l.b16 %v223
    %v692 = vunpack.c.l.b16 %v224
    %v693 = vunpack.c.h.b16 %v224
    %v694 = vunpack.c.l.b16 %v225
    %v695 = vunpack.c.l.b16 %v226
    %v696 = vunpack.c.h.b16 %v226
    %v697 = vunpack.c.l.b16 %v227
    %v698 = vunpack.c.l.b16 %v228
    %v699 = vunpack.c.h.b16 %v228
    %v700 = vunpack.c.l.b16 %v229
    %v701 = vunpack.c.l.b16 %v230
    %v702 = vunpack.c.h.b16 %v230
    %v703 = vunpack.c.l.b16 %v231
    %v704 = vunpack.c.l.b16 %v232
    %v705 = vunpack.c.h.b16 %v232
    %v706 = vunpack.c.l.b16 %v233
    %v707 = vunpack.c.l.b16 %v234
    %v708 = vunpack.c.h.b16 %v234
    %v709 = vunpack.c.l.b16 %v235
    %v710 = vunpack.c.l.b16 %v236
    %v711 = vunpack.c.h.b16 %v236
    %v712 = vunpack.c.l.b16 %v237
    %v713 = vunpack.c.l.b16 %v238
    %v714 = vunpack.c.h.b16 %v238
    %v715 = vunpack.c.l.b16 %v239
    %v716 = vunpack.c.l.b16 %v240
    %v717 = vunpack.c.h.b16 %v240
    %v718 = vunpack.c.l.b16 %v241
    %v719 = vunpack.c.l.b16 %v242
    %v720 = vunpack.c.h.b16 %v242
    %v721 = vunpack.c.l.b16 %v243
    %v722 = vunpack.c.l.b16 %v244
    %v723 = vunpack.c.h.b16 %v244
    %v724 = vunpack.c.l.b16 %v245
    %v725 = vunpack.c.l.b16 %v246
    %v726 = vunpack.c.h.b16 %v246
    %v727 = vunpack.c.l.b16 %v247
    %v728 = vunpack.c.l.b16 %v248
    %v729 = vunpack.c.h.b16 %v248
    %v730 = vunpack.c.l.b16 %v249
    %v731 = vunpack.c.l.b16 %v250
    %v732 = vunpack.c.h.b16 %v250
    %v733 = vunpack.c.l.b16 %v251
    %v734 = vunpack.c.l.b16 %v252
    %v735 = vunpack.c.h.b16 %v252
    %v736 = vunpack.c.l.b16 %v253
    %v737 = vunpack.c.l.b16 %v254
    %v738 = vunpack.c.h.b16 %v254
    %v739 = vunpack.c.l.b16 %v255
    %v740 = vunpack.c.l.b16 %v256
    %v741 = vunpack.c.h.b16 %v256
    %v742 = vunpack.c.l.b16 %v257
    %v743 = vunpack.c.l.b16 %v258
    %v744 = vunpack.c.h.b16 %v258
    %v745 = vunpack.c.l.b16 %v259
    %v746 = vunpack.c.l.b16 %v260
    %v747 = vunpack.c.h.b16 %v260
    %v748 = vunpack.c.l.b16 %v261
    %v749 = vunpack.c.l.b16 %v262
    %v750 = vunpack.c.h.b16 %v262
    %v751 = vunpack.c.l.b16 %v263
    %v752 = vunpack.c.l.b16 %v264
    %v753 = vunpack.c.h.b16 %v264
    %v754 = vunpack.c.l.b16 %v265
    %v755 = vunpack.c.l.b16 %v266
    %v756 = vunpack.c.h.b16 %v266
    %v757 = vunpack.c.l.b16 %v267
    %v758 = vunpack.c.l.b16 %v268
    %v759 = vunpack.c.h.b16 %v268
    %v760 = vunpack.c.l.b16 %v269
    %v761 = vunpack.c.l.b16 %v270
    %v762 = vunpack.c.h.b16 %v270
    %v763 = vunpack.c.l.b16 %v271
    %v764 = vunpack.c.l.b16 %v272
    %v765 = vunpack.c.h.b16 %v272
    %v766 = vunpack.c.l.b16 %v273
    %v767 = vunpack.c.l.b16 %v274
    %v768 = vunpack.c.h.b16 %v274
    %v769 = vunpack.c.l.b16 %v275
    %v770 = vunpack.c.l.b16 %v276
    %v771 = vunpack.c.h.b16 %v276
    %v772 = vunpack.c.l.b16 %v277
    %v773 = vunpack.c.l.b16 %v278
    %v774 = vunpack.c.h.b16 %v278
    %v775 = vunpack.c.l.b16 %v279
    %v776 = vunpack.c.l.b16 %v280
    %v777 = vunpack.c.h.b16 %v280
    %v778 = vunpack.c.l.b16 %v281
    %v779 = vunpack.c.l.b16 %v282
    %v780 = vunpack.c.h.b16 %v282
    %v781 = vunpack.c.l.b16 %v283
    %v782 = vunpack.c.l.b16 %v284
    %v783 = vunpack.c.h.b16 %v284
    %v784 = vunpack.c.l.b16 %v285
    %v785 = vunpack.c.l.b16 %v286
    %v786 = vunpack.c.h.b16 %v286
    %v787 = vunpack.c.l.b16 %v287
    %v788 = vunpack.c.l.b16 %v288
    %v789 = vunpack.c.h.b16 %v288
    %v790 = vunpack.c.l.b16 %v289
    %v791 = vunpack.c.l.b16 %v290
    %v792 = vunpack.c.h.b16 %v290
    %v793 = vunpack.c.l.b16 %v291
    %v794 = vunpack.c.l.b16 %v292
    %v795 = vunpack.c.h.b16 %v292
    %v796 = vunpack.c.l.b16 %v293
    %v797 = vunpack.c.l.b16 %v294
    %v798 = vunpack.c.h.b16 %v294
    %v799 = vunpack.c.l.b16 %v295
    %v800 = vunpack.c.l.b16 %v296
    %v801 = vunpack.c.h.b16 %v296
    %v802 = vunpack.c.l.b16 %v297
    %v803 = vunpack.c.l.b16 %v298
    %v804 = vunpack.c.h.b16 %v298
    %v805 = vunpack.c.l.b16 %v299
    %v806 = vunpack.c.l.b16 %v300
    %v807 = vunpack.c.h.b16 %v300
    %v808 = vunpack.c.l.b16 %v301
    %v809 = vpack.c.b16 %v518, %v515
    %v810 = vpack.c.b16 %v519, %v516
    %v811 = vpack.c.b16 %v520, %v517
    %v812 = vpack.c.b16 %v524, %v521
    %v813 = vpack.c.b16 %v525, %v522
    %v814 = vpack.c.b16 %v526, %v523
    %v815 = vpack.c.b16 %v530, %v527
    %v816 = vpack.c.b16 %v531, %v528
    %v817 = vpack.c.b16 %v532, %v529
    %v818 = vpack.c.b16 %v536, %v533
    %v819 = vpack.c.b16 %v537, %v534
    %v820 = vpack.c.b16 %v538, %v535
    %v821 = vpack.c.b16 %v542, %v539
    %v822 = vpack.c.b16 %v543, %v540
    %v823 = vpack.c.b16 %v544, %v541
    %v824 = vpack.c.b16 %v548, %v545
    %v825 = vpack.c.b16 %v549, %v546
    %v826 = vpack.c.b16 %v550, %v547
    %v827 = vpack.c.b16 %v554, %v551
    %v828 = vpack.c.b16 %v555, %v552
    %v829 = vpack.c.b16 %v556, %v553
    %v830 = vpack.c.b16 %v560, %v557
    %v831 = vpack.c.b16 %v561, %v558
    %v832 = vpack.c.b16 %v562, %v559
    %v833 = vpack.c.b16 %v566, %v563
    %v834 = vpack.c.b16 %v567, %v564
    %v835 = vpack.c.b16 %v568, %v565
    %v836 = vpack.c.b16 %v572, %v569
    %v837 = vpack.c.b16 %v573, %v570
    %v838 = vpack.c.b16 %v574, %v571
    %v839 = vpack.c.b16 %v578, %v575
    %v840 = vpack.c.b16 %v579, %v576
    %v841 = vpack.c.b16 %v580, %v577
    %v842 = vpack.c.b16 %v584, %v581
    %v843 = vpack.c.b16 %v585, %v582
    %v844 = vpack.c.b16 %v586, %v583
    %v845 = vpack.c.b16 %v590, %v587
    %v846 = vpack.c.b16 %v591, %v588
    %v847 = vpack.c.b16 %v592, %v589
    %v848 = vpack.c.b16 %v596, %v593
    %v849 = vpack.c.b16 %v597, %v594
    %v850 = vpack.c.b16 %v598, %v595
    %v851 = vpack.c.b16 %v602, %v599
    %v852 = vpack.c.b16 %v603, %v600
    %v853 = vpack.c.b16 %v604, %v601
    %v854 = vpack.c.b16 %v608, %v605
    %v855 = vpack.c.b16 %v609, %v606
    %v856 = vpack.c.b16 %v610, %v607
    %v857 = vpack.c.b16 %v614, %v611
    %v858 = vpack.c.b16 %v615, %v612
    %v859 = vpack.c.b16 %v616, %v613
    %v860 = vpack.c.b16 %v620, %v617
    %v861 = vpack.c.b16 %v621, %v618
    %v862 = vpack.c.b16 %v622, %v619
    %v863 = vpack.c.b16 %v626, %v623
    %v864 = vpack.c.b16 %v627, %v624
    %v865 = vpack.c.b16 %v628, %v625
    %v866 = vpack.c.b16 %v632, %v629
    %v867 = vpack.c.b16 %v633, %v630
    %v868 = vpack.c.b16 %v634, %v631
    %v869 = vpack.c.b16 %v638, %v635
    %v870 = vpack.c.b16 %v639, %v636
    %v871 = vpack.c.b16 %v640, %v637
    %v872 = vpack.c.b16 %v644, %v641
    %v873 = vpack.c.b16 %v645, %v642
    %v874 = vpack.c.b16 %v646, %v643
    %v875 = vpack.c.b16 %v650, %v647
    %v876 = vpack.c.b16 %v651, %v648
    %v877 = vpack.c.b16 %v652, %v649
    %v878 = vpack.c.b16 %v656, %v653
    %v879 = vpack.c.b16 %v657, %v654
    %v880 = vpack.c.b16 %v658, %v655
    %v881 = vpack.c.b16 %v662, %v659
    %v882 = vpack.c.b16 %v663, %v660
    %v883 = vpack.c.b16 %v664, %v661
    %v884 = vpack.c.b16 %v668, %v665
    %v885 = vpack.c.b16 %v669, %v666
    %v886 = vpack.c.b16 %v670, %v667
    %v887 = vpack.c.b16 %v674, %v671
    %v888 = vpack.c.b16 %v675, %v672
    %v889 = vpack.c.b16 %v676, %v673
    %v890 = vpack.c.b16 %v680, %v677
    %v891 = vpack.c.b16 %v681, %v678
    %v892 = vpack.c.b16 %v682, %v679
    %v893 = vpack.c.b16 %v686, %v683
    %v894 = vpack.c.b16 %v687, %v684
    %v895 = vpack.c.b16 %v688, %v685
    %v896 = vpack.c.b16 %v692, %v689
    %v897 = vpack.c.b16 %v693, %v690
    %v898 = vpack.c.b16 %v694, %v691
    %v899 = vpack.c.b16 %v698, %v695
    %v900 = vpack.c.b16 %v699, %v696
    %v901 = vpack.c.b16 %v700, %v697
    %v902 = vpack.c.b16 %v704, %v701
    %v903 = vpack.c.b16 %v705, %v702
    %v904 = vpack.c.b16 %v706, %v703
    %v905 = vpack.c.b16 %v710, %v707
    %v906 = vpack.c.b16 %v711, %v708
    %v907 = vpack.c.b16 %v712, %v709
    %v908 = vpack.c.b16 %v716, %v713
    %v909 = vpack.c.b16 %v717, %v714
    %v910 = vpack.c.b16 %v718, %v715
    %v911 = vpack.c.b16 %v722, %v719
    %v912 = vpack.c.b16 %v723, %v720
    %v913 = vpack.c.b16 %v724, %v721
    %v914 = vpack.c.b16 %v728, %v725
    %v915 = vpack.c.b16 %v729, %v726
    %v916 = vpack.c.b16 %v730, %v727
    %v917 = vpack.c.b16 %v734, %v731
    %v918 = vpack.c.b16 %v735, %v732
    %v919 = vpack.c.b16 %v736, %v733
    %v920 = vpack.c.b16 %v740, %v737
    %v921 = vpack.c.b16 %v741, %v738
    %v922 = vpack.c.b16 %v742, %v739
    %v923 = vpack.c.b16 %v746, %v743
    %v924 = vpack.c.b16 %v747, %v744
    %v925 = vpack.c.b16 %v748, %v745
    %v926 = vpack.c.b16 %v752, %v749
    %v927 = vpack.c.b16 %v753, %v750
    %v928 = vpack.c.b16 %v754, %v751
    %v929 = vpack.c.b16 %v758, %v755
    %v930 = vpack.c.b16 %v759, %v756
    %v931 = vpack.c.b16 %v760, %v757
    %v932 = vpack.c.b16 %v764, %v761
    %v933 = vpack.c.b16 %v765, %v762
    %v934 = vpack.c.b16 %v766, %v763
    %v935 = vpack.c.b16 %v770, %v767
    %v936 = vpack.c.b16 %v771, %v768
    %v937 = vpack.c.b16 %v772, %v769
    %v938 = vpack.c.b16 %v776, %v773
    %v939 = vpack.c.b16 %v777, %v774
    %v940 = vpack.c.b16 %v778, %v775
    %v941 = vpack.c.b16 %v782, %v779
    %v942 = vpack.c.b16 %v783, %v780
    %v943 = vpack.c.b16 %v784, %v781
    %v944 = vpack.c.b16 %v788, %v785
    %v945 = vpack.c.b16 %v789, %v786
    %v946 = vpack.c.b16 %v790, %v787
    %v947 = vpack.c.b16 %v794, %v791
    %v948 = vpack.c.b16 %v795, %v792
    %v949 = vpack.c.b16 %v796, %v793
    %v950 = vpack.c.b16 %v800, %v797
    %v951 = vpack.c.b16 %v801, %v798
    %v952 = vpack.c.b16 %v802, %v799
    %v953 = vpack.c.b16 %v806, %v803
    %v954 = vpack.c.b16 %v807, %v804
    %v955 = vpack.c.b16 %v808, %v805
    %vm1103 = vcmask 130048
    %v1105 = vsel %vm1103, %v105, 0
    %1107 = vmatprep.subr.bf16.mxu0 %v831
    %1108 = vmatpush1.bf16.msra.mxu0 %v830
    %1109 = vmatprep.subr.bf16.mxu0 %v828
    %1110 = vmatpush1.bf16.msra.mxu0 %v827
    %1111 = vmatprep.subr.bf16.mxu0 %v825
    %1112 = vmatpush1.bf16.msra.mxu0 %v824
    %1113 = vmatprep.subr.bf16.mxu0 %v822
    %1114 = vmatpush1.bf16.msra.mxu0 %v821
    %1115 = vmatprep.subr.bf16.mxu0 %v819
    %1116 = vmatpush1.bf16.msra.mxu0 %v818
    %1117 = vmatprep.subr.bf16.mxu0 %v816
    %1118 = vmatpush1.bf16.msra.mxu0 %v815
    %1119 = vmatprep.subr.bf16.mxu0 %v813
    %1120 = vmatpush1.bf16.msra.mxu0 %v812
    %1121 = vmatprep.subr.bf16.mxu0 %v810
    %1122 = vmatpush1.bf16.msra.mxu0 %v809
    %1123 = vmatprep.subr.bf16.mxu0 %v855
    %1124 = vmatpush2.bf16.msra.mxu0 %v854
    %1125 = vmatprep.subr.bf16.mxu0 %v852
    %1126 = vmatpush2.bf16.msra.mxu0 %v851
    %1127 = vmatprep.subr.bf16.mxu0 %v849
    %1128 = vmatpush2.bf16.msra.mxu0 %v848
    %1129 = vmatprep.subr.bf16.mxu0 %v846
    %1130 = vmatpush2.bf16.msra.mxu0 %v845
    %1131 = vmatprep.subr.bf16.mxu0 %v843
    %1132 = vmatpush2.bf16.msra.mxu0 %v842
    %1133 = vmatprep.subr.bf16.mxu0 %v840
    %1134 = vmatpush2.bf16.msra.mxu0 %v839
    %1135 = vmatprep.subr.bf16.mxu0 %v837
    %1136 = vmatpush2.bf16.msra.mxu0 %v836
    %1137 = vmatprep.subr.bf16.mxu0 %v834
    %1138 = vmatpush2.bf16.msra.mxu0 %v833
    %1139 = vmatprep.mubr.bf16.mxu0 %v100
    %1140 = vmatmul.mubr.bf16.gmra.mxu0 %v99
    %v1141 = vpop.f32.mrf.mxu0
    %v1142 = vadd.f32 %v307, %v1141
    %v1143 = vpop.f32.mrf.mxu0
    %v1144 = vadd.f32 %v311, %v1143
    %v1145 = vpop.f32.mrf.mxu0
    %v1146 = vpop.f32.mrf.mxu0
    %1147 = vdwg.mxu0
    %1148 = vmatprep.subr.bf16.mxu0 %v879
    %1149 = vmatpush1.bf16.msra.mxu0 %v878
    %1150 = vmatprep.subr.bf16.mxu0 %v876
    %1151 = vmatpush1.bf16.msra.mxu0 %v875
    %1152 = vmatprep.subr.bf16.mxu0 %v873
    %1153 = vmatpush1.bf16.msra.mxu0 %v872
    %1154 = vmatprep.subr.bf16.mxu0 %v870
    %1155 = vmatpush1.bf16.msra.mxu0 %v869
    %1156 = vmatprep.subr.bf16.mxu0 %v867
    %1157 = vmatpush1.bf16.msra.mxu0 %v866
    %1158 = vmatprep.subr.bf16.mxu0 %v864
    %1159 = vmatpush1.bf16.msra.mxu0 %v863
    %1160 = vmatprep.subr.bf16.mxu0 %v861
    %1161 = vmatpush1.bf16.msra.mxu0 %v860
    %1162 = vmatprep.subr.bf16.mxu0 %v858
    %1163 = vmatpush1.bf16.msra.mxu0 %v857
    %1164 = vmatprep.subr.bf16.mxu0 %v903
    %1165 = vmatpush2.bf16.msra.mxu0 %v902
    %1166 = vmatprep.subr.bf16.mxu0 %v900
    %1167 = vmatpush2.bf16.msra.mxu0 %v899
    %1168 = vmatprep.subr.bf16.mxu0 %v897
    %1169 = vmatpush2.bf16.msra.mxu0 %v896
    %1170 = vmatprep.subr.bf16.mxu0 %v894
    %1171 = vmatpush2.bf16.msra.mxu0 %v893
    %1172 = vmatprep.subr.bf16.mxu0 %v891
    %1173 = vmatpush2.bf16.msra.mxu0 %v890
    %1174 = vmatprep.subr.bf16.mxu0 %v888
    %1175 = vmatpush2.bf16.msra.mxu0 %v887
    %1176 = vmatprep.subr.bf16.mxu0 %v885
    %1177 = vmatpush2.bf16.msra.mxu0 %v884
    %1178 = vmatprep.subr.bf16.mxu0 %v882
    %1179 = vmatpush2.bf16.msra.mxu0 %v881
    %1180 = vmatprep.mubr.bf16.mxu0 %v102
    %1181 = vmatmul.mubr.bf16.gmra.mxu0 %v101
    %v1182 = vpop.f32.mrf.mxu0
    %v1183 = vadd.f32 %v1142, %v1182
    %v1184 = vpop.f32.mrf.mxu0
    %v1185 = vadd.f32 %v1144, %v1184
    %v1186 = vpop.f32.mrf.mxu0
    %v1187 = vpop.f32.mrf.mxu0
    %1188 = vdwg.mxu0
    %1189 = vmatprep.subr.bf16.mxu0 %v927
    %1190 = vmatpush1.bf16.msra.mxu0 %v926
    %1191 = vmatprep.subr.bf16.mxu0 %v924
    %1192 = vmatpush1.bf16.msra.mxu0 %v923
    %1193 = vmatprep.subr.bf16.mxu0 %v921
    %1194 = vmatpush1.bf16.msra.mxu0 %v920
    %1195 = vmatprep.subr.bf16.mxu0 %v918
    %1196 = vmatpush1.bf16.msra.mxu0 %v917
    %1197 = vmatprep.subr.bf16.mxu0 %v915
    %1198 = vmatpush1.bf16.msra.mxu0 %v914
    %1199 = vmatprep.subr.bf16.mxu0 %v912
    %1200 = vmatpush1.bf16.msra.mxu0 %v911
    %1201 = vmatprep.subr.bf16.mxu0 %v909
    %1202 = vmatpush1.bf16.msra.mxu0 %v908
    %1203 = vmatprep.subr.bf16.mxu0 %v906
    %1204 = vmatpush1.bf16.msra.mxu0 %v905
    %1205 = vmatprep.subr.bf16.mxu0 %v951
    %1206 = vmatpush2.bf16.msra.mxu0 %v950
    %1207 = vmatprep.subr.bf16.mxu0 %v948
    %1208 = vmatpush2.bf16.msra.mxu0 %v947
    %1209 = vmatprep.subr.bf16.mxu0 %v945
    %1210 = vmatpush2.bf16.msra.mxu0 %v944
    %1211 = vmatprep.subr.bf16.mxu0 %v942
    %1212 = vmatpush2.bf16.msra.mxu0 %v941
    %1213 = vmatprep.subr.bf16.mxu0 %v939
    %1214 = vmatpush2.bf16.msra.mxu0 %v938
    %1215 = vmatprep.subr.bf16.mxu0 %v936
    %1216 = vmatpush2.bf16.msra.mxu0 %v935
    %1217 = vmatprep.subr.bf16.mxu0 %v933
    %1218 = vmatpush2.bf16.msra.mxu0 %v932
    %1219 = vmatprep.subr.bf16.mxu0 %v930
    %1220 = vmatpush2.bf16.msra.mxu0 %v929
    %1221 = vmatprep.mubr.bf16.mxu0 %v104
    %1222 = vmatmul.mubr.bf16.gmra.mxu0 %v103
    %v1223 = vpop.f32.mrf.mxu0
    %v1224 = vadd.f32 %v1183, %v1223
    %v1225 = vpop.f32.mrf.mxu0
    %v1226 = vadd.f32 %v1185, %v1225
    %v1227 = vpop.f32.mrf.mxu0
    %v1228 = vpop.f32.mrf.mxu0
    %1229 = vdwg.mxu0
    %1230 = vmatprep.subr.bf16.mxu0 0
    %1231 = vmatpush1.bf16.msra.mxu0 0
    %1232 = vmatprep.subr.bf16.mxu0 0
    %1233 = vmatpush1.bf16.msra.mxu0 0
    %1234 = vmatprep.subr.bf16.mxu0 0
    %1235 = vmatpush1.bf16.msra.mxu0 0
    %1236 = vmatprep.subr.bf16.mxu0 0
    %1237 = vmatpush1.bf16.msra.mxu0 0
    %1238 = vmatprep.subr.bf16.mxu0 0
    %1239 = vmatpush1.bf16.msra.mxu0 0
    %1240 = vmatprep.subr.bf16.mxu0 0
    %1241 = vmatpush1.bf16.msra.mxu0 0
    %1242 = vmatprep.subr.bf16.mxu0 0
    %1243 = vmatpush1.bf16.msra.mxu0 0
    %1244 = vmatprep.subr.bf16.mxu0 %v954
    %1245 = vmatpush1.bf16.msra.mxu0 %v953
    %1246 = vmatprep.subr.bf16.mxu0 0
    %1247 = vmatpush2.bf16.msra.mxu0 0
    %1248 = vmatprep.subr.bf16.mxu0 0
    %1249 = vmatpush2.bf16.msra.mxu0 0
    %1250 = vmatprep.subr.bf16.mxu0 0
    %1251 = vmatpush2.bf16.msra.mxu0 0
    %1252 = vmatprep.subr.bf16.mxu0 0
    %1253 = vmatpush2.bf16.msra.mxu0 0
    %1254 = vmatprep.subr.bf16.mxu0 0
    %1255 = vmatpush2.bf16.msra.mxu0 0
    %1256 = vmatprep.subr.bf16.mxu0 0
    %1257 = vmatpush2.bf16.msra.mxu0 0
    %1258 = vmatprep.subr.bf16.mxu0 0
    %1259 = vmatpush2.bf16.msra.mxu0 0
    %1260 = vmatprep.subr.bf16.mxu0 0
    %1261 = vmatpush2.bf16.msra.mxu0 0
    %1262 = vmatprep.mubr.bf16.mxu0 0
    %1263 = vmatmul.mubr.bf16.gmra.mxu0 %v1105
    %v1264 = vpop.f32.mrf.mxu0
    %v1265 = vadd.f32 %v1224, %v1264
    %v1266 = vpop.f32.mrf.mxu0
    %v1267 = vadd.f32 %v1226, %v1266
    %v1268 = vpop.f32.mrf.mxu0
    %v1269 = vpop.f32.mrf.mxu0
    %1270 = vdwg.mxu0
    %1271 = vmatprep.subr.bf16.mxu0 0
    %1272 = vmatpush1.bf16.msra.mxu0 %v832
    %1273 = vmatprep.subr.bf16.mxu0 0
    %1274 = vmatpush1.bf16.msra.mxu0 %v829
    %1275 = vmatprep.subr.bf16.mxu0 0
    %1276 = vmatpush1.bf16.msra.mxu0 %v826
    %1277 = vmatprep.subr.bf16.mxu0 0
    %1278 = vmatpush1.bf16.msra.mxu0 %v823
    %1279 = vmatprep.subr.bf16.mxu0 0
    %1280 = vmatpush1.bf16.msra.mxu0 %v820
    %1281 = vmatprep.subr.bf16.mxu0 0
    %1282 = vmatpush1.bf16.msra.mxu0 %v817
    %1283 = vmatprep.subr.bf16.mxu0 0
    %1284 = vmatpush1.bf16.msra.mxu0 %v814
    %1285 = vmatprep.subr.bf16.mxu0 0
    %1286 = vmatpush1.bf16.msra.mxu0 %v811
    %1287 = vmatprep.subr.bf16.mxu0 0
    %1288 = vmatpush2.bf16.msra.mxu0 %v856
    %1289 = vmatprep.subr.bf16.mxu0 0
    %1290 = vmatpush2.bf16.msra.mxu0 %v853
    %1291 = vmatprep.subr.bf16.mxu0 0
    %1292 = vmatpush2.bf16.msra.mxu0 %v850
    %1293 = vmatprep.subr.bf16.mxu0 0
    %1294 = vmatpush2.bf16.msra.mxu0 %v847
    %1295 = vmatprep.subr.bf16.mxu0 0
    %1296 = vmatpush2.bf16.msra.mxu0 %v844
    %1297 = vmatprep.subr.bf16.mxu0 0
    %1298 = vmatpush2.bf16.msra.mxu0 %v841
    %1299 = vmatprep.subr.bf16.mxu0 0
    %1300 = vmatpush2.bf16.msra.mxu0 %v838
    %1301 = vmatprep.subr.bf16.mxu0 0
    %1302 = vmatpush2.bf16.msra.mxu0 %v835
    %1303 = vmatprep.mubr.bf16.mxu0 %v100
    %1304 = vmatmul.mubr.bf16.gmra.mxu0 %v99
    %v1305 = vpop.f32.mrf.mxu0
    %v1306 = vadd.f32 %v315, %v1305
    %v1307 = vpop.f32.mrf.mxu0
    %v1308 = vpop.f32.mrf.mxu0
    %v1309 = vpop.f32.mrf.mxu0
    %1310 = vdwg.mxu0
    %1311 = vmatprep.subr.bf16.mxu0 0
    %1312 = vmatpush1.bf16.msra.mxu0 %v880
    %1313 = vmatprep.subr.bf16.mxu0 0
    %1314 = vmatpush1.bf16.msra.mxu0 %v877
    %1315 = vmatprep.subr.bf16.mxu0 0
    %1316 = vmatpush1.bf16.msra.mxu0 %v874
    %1317 = vmatprep.subr.bf16.mxu0 0
    %1318 = vmatpush1.bf16.msra.mxu0 %v871
    %1319 = vmatprep.subr.bf16.mxu0 0
    %1320 = vmatpush1.bf16.msra.mxu0 %v868
    %1321 = vmatprep.subr.bf16.mxu0 0
    %1322 = vmatpush1.bf16.msra.mxu0 %v865
    %1323 = vmatprep.subr.bf16.mxu0 0
    %1324 = vmatpush1.bf16.msra.mxu0 %v862
    %1325 = vmatprep.subr.bf16.mxu0 0
    %1326 = vmatpush1.bf16.msra.mxu0 %v859
    %1327 = vmatprep.subr.bf16.mxu0 0
    %1328 = vmatpush2.bf16.msra.mxu0 %v904
    %1329 = vmatprep.subr.bf16.mxu0 0
    %1330 = vmatpush2.bf16.msra.mxu0 %v901
    %1331 = vmatprep.subr.bf16.mxu0 0
    %1332 = vmatpush2.bf16.msra.mxu0 %v898
    %1333 = vmatprep.subr.bf16.mxu0 0
    %1334 = vmatpush2.bf16.msra.mxu0 %v895
    %1335 = vmatprep.subr.bf16.mxu0 0
    %1336 = vmatpush2.bf16.msra.mxu0 %v892
    %1337 = vmatprep.subr.bf16.mxu0 0
    %1338 = vmatpush2.bf16.msra.mxu0 %v889
    %1339 = vmatprep.subr.bf16.mxu0 0
    %1340 = vmatpush2.bf16.msra.mxu0 %v886
    %1341 = vmatprep.subr.bf16.mxu0 0
    %1342 = vmatpush2.bf16.msra.mxu0 %v883
    %1343 = vmatprep.mubr.bf16.mxu0 %v102
    %1344 = vmatmul.mubr.bf16.gmra.mxu0 %v101
    %v1345 = vpop.f32.mrf.mxu0
    %v1346 = vadd.f32 %v1306, %v1345
    %v1347 = vpop.f32.mrf.mxu0
    %v1348 = vpop.f32.mrf.mxu0
    %v1349 = vpop.f32.mrf.mxu0
    %1350 = vdwg.mxu0
    %1351 = vmatprep.subr.bf16.mxu0 0
    %1352 = vmatpush1.bf16.msra.mxu0 %v928
    %1353 = vmatprep.subr.bf16.mxu0 0
    %1354 = vmatpush1.bf16.msra.mxu0 %v925
    %1355 = vmatprep.subr.bf16.mxu0 0
    %1356 = vmatpush1.bf16.msra.mxu0 %v922
    %1357 = vmatprep.subr.bf16.mxu0 0
    %1358 = vmatpush1.bf16.msra.mxu0 %v919
    %1359 = vmatprep.subr.bf16.mxu0 0
    %1360 = vmatpush1.bf16.msra.mxu0 %v916
    %1361 = vmatprep.subr.bf16.mxu0 0
    %1362 = vmatpush1.bf16.msra.mxu0 %v913
    %1363 = vmatprep.subr.bf16.mxu0 0
    %1364 = vmatpush1.bf16.msra.mxu0 %v910
    %1365 = vmatprep.subr.bf16.mxu0 0
    %1366 = vmatpush1.bf16.msra.mxu0 %v907
    %1367 = vmatprep.subr.bf16.mxu0 0
    %1368 = vmatpush2.bf16.msra.mxu0 %v952
    %1369 = vmatprep.subr.bf16.mxu0 0
    %1370 = vmatpush2.bf16.msra.mxu0 %v949
    %1371 = vmatprep.subr.bf16.mxu0 0
    %1372 = vmatpush2.bf16.msra.mxu0 %v946
    %1373 = vmatprep.subr.bf16.mxu0 0
    %1374 = vmatpush2.bf16.msra.mxu0 %v943
    %1375 = vmatprep.subr.bf16.mxu0 0
    %1376 = vmatpush2.bf16.msra.mxu0 %v940
    %1377 = vmatprep.subr.bf16.mxu0 0
    %1378 = vmatpush2.bf16.msra.mxu0 %v937
    %1379 = vmatprep.subr.bf16.mxu0 0
    %1380 = vmatpush2.bf16.msra.mxu0 %v934
    %1381 = vmatprep.subr.bf16.mxu0 0
    %1382 = vmatpush2.bf16.msra.mxu0 %v931
    %1383 = vmatprep.mubr.bf16.mxu0 %v104
    %1384 = vmatmul.mubr.bf16.gmra.mxu0 %v103
    %v1385 = vpop.f32.mrf.mxu0
    %v1386 = vadd.f32 %v1346, %v1385
    %v1387 = vpop.f32.mrf.mxu0
    %v1388 = vpop.f32.mrf.mxu0
    %v1389 = vpop.f32.mrf.mxu0
    %1390 = vdwg.mxu0
    %1391 = vmatprep.subr.bf16.mxu0 0
    %1392 = vmatpush1.bf16.msra.mxu0 0
    %1393 = vmatprep.subr.bf16.mxu0 0
    %1394 = vmatpush1.bf16.msra.mxu0 0
    %1395 = vmatprep.subr.bf16.mxu0 0
    %1396 = vmatpush1.bf16.msra.mxu0 0
    %1397 = vmatprep.subr.bf16.mxu0 0
    %1398 = vmatpush1.bf16.msra.mxu0 0
    %1399 = vmatprep.subr.bf16.mxu0 0
    %1400 = vmatpush1.bf16.msra.mxu0 0
    %1401 = vmatprep.subr.bf16.mxu0 0
    %1402 = vmatpush1.bf16.msra.mxu0 0
    %1403 = vmatprep.subr.bf16.mxu0 0
    %1404 = vmatpush1.bf16.msra.mxu0 0
    %1405 = vmatprep.subr.bf16.mxu0 0
    %1406 = vmatpush1.bf16.msra.mxu0 %v955
    %1407 = vmatprep.subr.bf16.mxu0 0
    %1408 = vmatpush2.bf16.msra.mxu0 0
    %1409 = vmatprep.subr.bf16.mxu0 0
    %1410 = vmatpush2.bf16.msra.mxu0 0
    %1411 = vmatprep.subr.bf16.mxu0 0
    %1412 = vmatpush2.bf16.msra.mxu0 0
    %1413 = vmatprep.subr.bf16.mxu0 0
    %1414 = vmatpush2.bf16.msra.mxu0 0
    %1415 = vmatprep.subr.bf16.mxu0 0
    %1416 = vmatpush2.bf16.msra.mxu0 0
    %1417 = vmatprep.subr.bf16.mxu0 0
    %1418 = vmatpush2.bf16.msra.mxu0 0
    %1419 = vmatprep.subr.bf16.mxu0 0
    %1420 = vmatpush2.bf16.msra.mxu0 0
    %1421 = vmatprep.subr.bf16.mxu0 0
    %1422 = vmatpush2.bf16.msra.mxu0 0
    %1423 = vmatprep.mubr.bf16.mxu0 0
    %1424 = vmatmul.mubr.bf16.gmra.mxu0 %v1105
    %v1425 = vpop.f32.mrf.mxu0
    %v1426 = vadd.f32 %v1386, %v1425
    %v1427 = vpop.f32.mrf.mxu0
    %v1428 = vpop.f32.mrf.mxu0
    %v1429 = vpop.f32.mrf.mxu0
    %1430 = vdwg.mxu0
    %v1431 = vmax.f32 %v1265, 0.0
    %v1432 = vmax.f32 %v1267, 0.0
    %v1433 = vmax.f32 %v1426, 0.0
    %v1434 = vpack.c.bf16 %v1431, %v1431
    %v1435 = vpack.c.bf16 %v1432, %v1432
    %v1436 = vpack.c.bf16 %v1433, %v1433
    %v1437 = vld [vmem:[%s3] sm:$0xff]
    %v1438 = vld [vmem:[%s3 + $0x8] sm:$0xf]
    %v1439 = vld [vmem:[%s3 + $0xc] sm:$0xff]
    %v1440 = vld [vmem:[%s3 + $0x14] sm:$0xf]
    %v1441 = vld [vmem:[%s3 + $0x18] sm:$0xff]
    %v1442 = vld [vmem:[%s3 + $0x20] sm:$0xf]
    %v1443 = vld [vmem:[%s3 + $0x24] sm:$0xff]
    %v1444 = vld [vmem:[%s3 + $0x2c] sm:$0xf]
    %v1445 = vld [vmem:[%s3 + $0x30] sm:$0xff]
    %v1446 = vld [vmem:[%s3 + $0x38] sm:$0xf]
    %v1447 = vld [vmem:[%s3 + $0x3c] sm:$0xff]
    %v1448 = vld [vmem:[%s3 + $0x44] sm:$0xf]
    %v1449 = vld [vmem:[%s3 + $0x48] sm:$0xff]
    %v1450 = vld [vmem:[%s3 + $0x50] sm:$0xf]
    %v1451 = vld [vmem:[%s3 + $0x54] sm:$0xff]
    %v1452 = vld [vmem:[%s3 + $0x5c] sm:$0xf]
    %v1453 = vld [vmem:[%s3 + $0x60] sm:$0xff]
    %v1454 = vld [vmem:[%s3 + $0x68] sm:$0xf]
    %v1455 = vld [vmem:[%s3 + $0x6c] sm:$0xff]
    %v1456 = vld [vmem:[%s3 + $0x74] sm:$0xf]
    %v1457 = vld [vmem:[%s3 + $0x78] sm:$0xff]
    %v1458 = vld [vmem:[%s3 + $0x80] sm:$0xf]
    %v1459 = vld [vmem:[%s3 + $0x84] sm:$0xff]
    %v1460 = vld [vmem:[%s3 + $0x8c] sm:$0xf]
    %v1461 = vld [vmem:[%s3 + $0x90] sm:$0xff]
    %v1462 = vld [vmem:[%s3 + $0x98] sm:$0xf]
    %v1463 = vld [vmem:[%s3 + $0x9c] sm:$0xff]
    %v1464 = vld [vmem:[%s3 + $0xa4] sm:$0xf]
    %v1465 = vld [vmem:[%s3 + $0xa8] sm:$0xff]
    %v1466 = vld [vmem:[%s3 + $0xb0] sm:$0xf]
    %v1467 = vld [vmem:[%s3 + $0xb4] sm:$0xff]
    %v1468 = vld [vmem:[%s3 + $0xbc] sm:$0xf]
    %v1469 = vld [vmem:[%s3 + $0xc0] sm:$0xff]
    %v1470 = vld [vmem:[%s3 + $0xc8] sm:$0xf]
    %v1471 = vld [vmem:[%s3 + $0xcc] sm:$0xff]
    %v1472 = vld [vmem:[%s3 + $0xd4] sm:$0xf]
    %v1473 = vld [vmem:[%s3 + $0xd8] sm:$0xff]
    %v1474 = vld [vmem:[%s3 + $0xe0] sm:$0xf]
    %v1475 = vld [vmem:[%s3 + $0xe4] sm:$0xff]
    %v1476 = vld [vmem:[%s3 + $0xec] sm:$0xf]
    %v1477 = vld [vmem:[%s3 + $0xf0] sm:$0xff]
    %v1478 = vld [vmem:[%s3 + $0xf8] sm:$0xf]
    %v1479 = vld [vmem:[%s3 + $0xfc] sm:$0xff]
    %v1480 = vld [vmem:[%s3 + $0x104] sm:$0xf]
    %v1481 = vld [vmem:[%s3 + $0x108] sm:$0xff]
    %v1482 = vld [vmem:[%s3 + $0x110] sm:$0xf]
    %v1483 = vld [vmem:[%s3 + $0x114] sm:$0xff]
    %v1484 = vld [vmem:[%s3 + $0x11c] sm:$0xf]
    %v1485 = vld [vmem:[%s3 + $0x120] sm:$0xff]
    %v1486 = vld [vmem:[%s3 + $0x128] sm:$0xf]
    %v1487 = vld [vmem:[%s3 + $0x12c] sm:$0xff]
    %v1488 = vld [vmem:[%s3 + $0x134] sm:$0xf]
    %v1489 = vld [vmem:[%s3 + $0x138] sm:$0xff]
    %v1490 = vld [vmem:[%s3 + $0x140] sm:$0xf]
    %v1491 = vld [vmem:[%s3 + $0x144] sm:$0xff]
    %v1492 = vld [vmem:[%s3 + $0x14c] sm:$0xf]
    %v1493 = vld [vmem:[%s3 + $0x150] sm:$0xff]
    %v1494 = vld [vmem:[%s3 + $0x158] sm:$0xf]
    %v1495 = vld [vmem:[%s3 + $0x15c] sm:$0xff]
    %v1496 = vld [vmem:[%s3 + $0x164] sm:$0xf]
    %v1497 = vld [vmem:[%s3 + $0x168] sm:$0xff]
    %v1498 = vld [vmem:[%s3 + $0x170] sm:$0xf]
    %v1499 = vld [vmem:[%s3 + $0x174] sm:$0xff]
    %v1500 = vld [vmem:[%s3 + $0x17c] sm:$0xf]
    %v1501 = vld [vmem:[%s3 + $0x180] sm:$0xff]
    %v1502 = vld [vmem:[%s3 + $0x188] sm:$0xf]
    %v1503 = vld [vmem:[%s3 + $0x18c] sm:$0xff]
    %v1504 = vld [vmem:[%s3 + $0x194] sm:$0xf]
    %v1505 = vld [vmem:[%s3 + $0x198] sm:$0xff]
    %v1506 = vld [vmem:[%s3 + $0x1a0] sm:$0xf]
    %v1507 = vld [vmem:[%s3 + $0x1a4] sm:$0xff]
    %v1508 = vld [vmem:[%s3 + $0x1ac] sm:$0xf]
    %v1509 = vld [vmem:[%s3 + $0x1b0] sm:$0xff]
    %v1510 = vld [vmem:[%s3 + $0x1b8] sm:$0xf]
    %v1511 = vld [vmem:[%s3 + $0x1bc] sm:$0xff]
    %v1512 = vld [vmem:[%s3 + $0x1c4] sm:$0xf]
    %v1513 = vld [vmem:[%s3 + $0x1c8] sm:$0xff]
    %v1514 = vld [vmem:[%s3 + $0x1d0] sm:$0xf]
    %v1515 = vld [vmem:[%s3 + $0x1d4] sm:$0xff]
    %v1516 = vld [vmem:[%s3 + $0x1dc] sm:$0xf]
    %v1517 = vld [vmem:[%s3 + $0x1e0] sm:$0xff]
    %v1518 = vld [vmem:[%s3 + $0x1e8] sm:$0xf]
    %v1519 = vld [vmem:[%s3 + $0x1ec] sm:$0xff]
    %v1520 = vld [vmem:[%s3 + $0x1f4] sm:$0xf]
    %v1521 = vld [vmem:[%s3 + $0x1f8] sm:$0xff]
    %v1522 = vld [vmem:[%s3 + $0x200] sm:$0xf]
    %v1523 = vld [vmem:[%s3 + $0x204] sm:$0xff]
    %v1524 = vld [vmem:[%s3 + $0x20c] sm:$0xf]
    %v1525 = vld [vmem:[%s3 + $0x210] sm:$0xff]
    %v1526 = vld [vmem:[%s3 + $0x218] sm:$0xf]
    %v1527 = vld [vmem:[%s3 + $0x21c] sm:$0xff]
    %v1528 = vld [vmem:[%s3 + $0x224] sm:$0xf]
    %v1529 = vld [vmem:[%s3 + $0x228] sm:$0xff]
    %v1530 = vld [vmem:[%s3 + $0x230] sm:$0xf]
    %v1531 = vld [vmem:[%s3 + $0x234] sm:$0xff]
    %v1532 = vld [vmem:[%s3 + $0x23c] sm:$0xf]
    %v1533 = vld [vmem:[%s4] sm:$0x7]
    %v1535 = vlaneseq
    %v1536 = vshrl.u32 %v1535, 7
    %v1537 = vsub.s32 0, %v1536
    %v1538 = vrot.slane %v1533, %v1537
    %v1539 = vlaneseq
    %v1540 = vshrl.u32 %v1539, 7
    %v1541 = vsub.s32 1, %v1540
    %v1542 = vrot.slane %v1533, %v1541
    %v1543 = vlaneseq
    %v1544 = vshrl.u32 %v1543, 7
    %v1545 = vsub.s32 2, %v1544
    %v1546 = vrot.slane %v1533, %v1545
    %v1646 = vunpack.c.l.b16 %v1437
    %v1647 = vunpack.c.h.b16 %v1437
    %v1648 = vunpack.c.l.b16 %v1438
    %v1649 = vunpack.c.l.b16 %v1439
    %v1650 = vunpack.c.h.b16 %v1439
    %v1651 = vunpack.c.l.b16 %v1440
    %v1652 = vunpack.c.l.b16 %v1441
    %v1653 = vunpack.c.h.b16 %v1441
    %v1654 = vunpack.c.l.b16 %v1442
    %v1655 = vunpack.c.l.b16 %v1443
    %v1656 = vunpack.c.h.b16 %v1443
    %v1657 = vunpack.c.l.b16 %v1444
    %v1658 = vunpack.c.l.b16 %v1445
    %v1659 = vunpack.c.h.b16 %v1445
    %v1660 = vunpack.c.l.b16 %v1446
    %v1661 = vunpack.c.l.b16 %v1447
    %v1662 = vunpack.c.h.b16 %v1447
    %v1663 = vunpack.c.l.b16 %v1448
    %v1664 = vunpack.c.l.b16 %v1449
    %v1665 = vunpack.c.h.b16 %v1449
    %v1666 = vunpack.c.l.b16 %v1450
    %v1667 = vunpack.c.l.b16 %v1451
    %v1668 = vunpack.c.h.b16 %v1451
    %v1669 = vunpack.c.l.b16 %v1452
    %v1670 = vunpack.c.l.b16 %v1453
    %v1671 = vunpack.c.h.b16 %v1453
    %v1672 = vunpack.c.l.b16 %v1454
    %v1673 = vunpack.c.l.b16 %v1455
    %v1674 = vunpack.c.h.b16 %v1455
    %v1675 = vunpack.c.l.b16 %v1456
    %v1676 = vunpack.c.l.b16 %v1457
    %v1677 = vunpack.c.h.b16 %v1457
    %v1678 = vunpack.c.l.b16 %v1458
    %v1679 = vunpack.c.l.b16 %v1459
    %v1680 = vunpack.c.h.b16 %v1459
    %v1681 = vunpack.c.l.b16 %v1460
    %v1682 = vunpack.c.l.b16 %v1461
    %v1683 = vunpack.c.h.b16 %v1461
    %v1684 = vunpack.c.l.b16 %v1462
    %v1685 = vunpack.c.l.b16 %v1463
    %v1686 = vunpack.c.h.b16 %v1463
    %v1687 = vunpack.c.l.b16 %v1464
    %v1688 = vunpack.c.l.b16 %v1465
    %v1689 = vunpack.c.h.b16 %v1465
    %v1690 = vunpack.c.l.b16 %v1466
    %v1691 = vunpack.c.l.b16 %v1467
    %v1692 = vunpack.c.h.b16 %v1467
    %v1693 = vunpack.c.l.b16 %v1468
    %v1694 = vunpack.c.l.b16 %v1469
    %v1695 = vunpack.c.h.b16 %v1469
    %v1696 = vunpack.c.l.b16 %v1470
    %v1697 = vunpack.c.l.b16 %v1471
    %v1698 = vunpack.c.h.b16 %v1471
    %v1699 = vunpack.c.l.b16 %v1472
    %v1700 = vunpack.c.l.b16 %v1473
    %v1701 = vunpack.c.h.b16 %v1473
    %v1702 = vunpack.c.l.b16 %v1474
    %v1703 = vunpack.c.l.b16 %v1475
    %v1704 = vunpack.c.h.b16 %v1475
    %v1705 = vunpack.c.l.b16 %v1476
    %v1706 = vunpack.c.l.b16 %v1477
    %v1707 = vunpack.c.h.b16 %v1477
    %v1708 = vunpack.c.l.b16 %v1478
    %v1709 = vunpack.c.l.b16 %v1479
    %v1710 = vunpack.c.h.b16 %v1479
    %v1711 = vunpack.c.l.b16 %v1480
    %v1712 = vunpack.c.l.b16 %v1481
    %v1713 = vunpack.c.h.b16 %v1481
    %v1714 = vunpack.c.l.b16 %v1482
    %v1715 = vunpack.c.l.b16 %v1483
    %v1716 = vunpack.c.h.b16 %v1483
    %v1717 = vunpack.c.l.b16 %v1484
    %v1718 = vunpack.c.l.b16 %v1485
    %v1719 = vunpack.c.h.b16 %v1485
    %v1720 = vunpack.c.l.b16 %v1486
    %v1721 = vunpack.c.l.b16 %v1487
    %v1722 = vunpack.c.h.b16 %v1487
    %v1723 = vunpack.c.l.b16 %v1488
    %v1724 = vunpack.c.l.b16 %v1489
    %v1725 = vunpack.c.h.b16 %v1489
    %v1726 = vunpack.c.l.b16 %v1490
    %v1727 = vunpack.c.l.b16 %v1491
    %v1728 = vunpack.c.h.b16 %v1491
    %v1729 = vunpack.c.l.b16 %v1492
    %v1730 = vunpack.c.l.b16 %v1493
    %v1731 = vunpack.c.h.b16 %v1493
    %v1732 = vunpack.c.l.b16 %v1494
    %v1733 = vunpack.c.l.b16 %v1495
    %v1734 = vunpack.c.h.b16 %v1495
    %v1735 = vunpack.c.l.b16 %v1496
    %v1736 = vunpack.c.l.b16 %v1497
    %v1737 = vunpack.c.h.b16 %v1497
    %v1738 = vunpack.c.l.b16 %v1498
    %v1739 = vunpack.c.l.b16 %v1499
    %v1740 = vunpack.c.h.b16 %v1499
    %v1741 = vunpack.c.l.b16 %v1500
    %v1742 = vunpack.c.l.b16 %v1501
    %v1743 = vunpack.c.h.b16 %v1501
    %v1744 = vunpack.c.l.b16 %v1502
    %v1745 = vunpack.c.l.b16 %v1503
    %v1746 = vunpack.c.h.b16 %v1503
    %v1747 = vunpack.c.l.b16 %v1504
    %v1748 = vunpack.c.l.b16 %v1505
    %v1749 = vunpack.c.h.b16 %v1505
    %v1750 = vunpack.c.l.b16 %v1506
    %v1751 = vunpack.c.l.b16 %v1507
    %v1752 = vunpack.c.h.b16 %v1507
    %v1753 = vunpack.c.l.b16 %v1508
    %v1754 = vunpack.c.l.b16 %v1509
    %v1755 = vunpack.c.h.b16 %v1509
    %v1756 = vunpack.c.l.b16 %v1510
    %v1757 = vunpack.c.l.b16 %v1511
    %v1758 = vunpack.c.h.b16 %v1511
    %v1759 = vunpack.c.l.b16 %v1512
    %v1760 = vunpack.c.l.b16 %v1513
    %v1761 = vunpack.c.h.b16 %v1513
    %v1762 = vunpack.c.l.b16 %v1514
    %v1763 = vunpack.c.l.b16 %v1515
    %v1764 = vunpack.c.h.b16 %v1515
    %v1765 = vunpack.c.l.b16 %v1516
    %v1766 = vunpack.c.l.b16 %v1517
    %v1767 = vunpack.c.h.b16 %v1517
    %v1768 = vunpack.c.l.b16 %v1518
    %v1769 = vunpack.c.l.b16 %v1519
    %v1770 = vunpack.c.h.b16 %v1519
    %v1771 = vunpack.c.l.b16 %v1520
    %v1772 = vunpack.c.l.b16 %v1521
    %v1773 = vunpack.c.h.b16 %v1521
    %v1774 = vunpack.c.l.b16 %v1522
    %v1775 = vunpack.c.l.b16 %v1523
    %v1776 = vunpack.c.h.b16 %v1523
    %v1777 = vunpack.c.l.b16 %v1524
    %v1778 = vunpack.c.l.b16 %v1525
    %v1779 = vunpack.c.h.b16 %v1525
    %v1780 = vunpack.c.l.b16 %v1526
    %v1781 = vunpack.c.l.b16 %v1527
    %v1782 = vunpack.c.h.b16 %v1527
    %v1783 = vunpack.c.l.b16 %v1528
    %v1784 = vunpack.c.l.b16 %v1529
    %v1785 = vunpack.c.h.b16 %v1529
    %v1786 = vunpack.c.l.b16 %v1530
    %v1787 = vunpack.c.l.b16 %v1531
    %v1788 = vunpack.c.h.b16 %v1531
    %v1789 = vunpack.c.l.b16 %v1532
    %v1790 = vpack.c.b16 %v1649, %v1646
    %v1791 = vpack.c.b16 %v1650, %v1647
    %v1792 = vpack.c.b16 %v1651, %v1648
    %v1793 = vpack.c.b16 %v1655, %v1652
    %v1794 = vpack.c.b16 %v1656, %v1653
    %v1795 = vpack.c.b16 %v1657, %v1654
    %v1796 = vpack.c.b16 %v1661, %v1658
    %v1797 = vpack.c.b16 %v1662, %v1659
    %v1798 = vpack.c.b16 %v1663, %v1660
    %v1799 = vpack.c.b16 %v1667, %v1664
    %v1800 = vpack.c.b16 %v1668, %v1665
    %v1801 = vpack.c.b16 %v1669, %v1666
    %v1802 = vpack.c.b16 %v1673, %v1670
    %v1803 = vpack.c.b16 %v1674, %v1671
    %v1804 = vpack.c.b16 %v1675, %v1672
    %v1805 = vpack.c.b16 %v1679, %v1676
    %v1806 = vpack.c.b16 %v1680, %v1677
    %v1807 = vpack.c.b16 %v1681, %v1678
    %v1808 = vpack.c.b16 %v1685, %v1682
    %v1809 = vpack.c.b16 %v1686, %v1683
    %v1810 = vpack.c.b16 %v1687, %v1684
    %v1811 = vpack.c.b16 %v1691, %v1688
    %v1812 = vpack.c.b16 %v1692, %v1689
    %v1813 = vpack.c.b16 %v1693, %v1690
    %v1814 = vpack.c.b16 %v1697, %v1694
    %v1815 = vpack.c.b16 %v1698, %v1695
    %v1816 = vpack.c.b16 %v1699, %v1696
    %v1817 = vpack.c.b16 %v1703, %v1700
    %v1818 = vpack.c.b16 %v1704, %v1701
    %v1819 = vpack.c.b16 %v1705, %v1702
    %v1820 = vpack.c.b16 %v1709, %v1706
    %v1821 = vpack.c.b16 %v1710, %v1707
    %v1822 = vpack.c.b16 %v1711, %v1708
    %v1823 = vpack.c.b16 %v1715, %v1712
    %v1824 = vpack.c.b16 %v1716, %v1713
    %v1825 = vpack.c.b16 %v1717, %v1714
    %v1826 = vpack.c.b16 %v1721, %v1718
    %v1827 = vpack.c.b16 %v1722, %v1719
    %v1828 = vpack.c.b16 %v1723, %v1720
    %v1829 = vpack.c.b16 %v1727, %v1724
    %v1830 = vpack.c.b16 %v1728, %v1725
    %v1831 = vpack.c.b16 %v1729, %v1726
    %v1832 = vpack.c.b16 %v1733, %v1730
    %v1833 = vpack.c.b16 %v1734, %v1731
    %v1834 = vpack.c.b16 %v1735, %v1732
    %v1835 = vpack.c.b16 %v1739, %v1736
    %v1836 = vpack.c.b16 %v1740, %v1737
    %v1837 = vpack.c.b16 %v1741, %v1738
    %v1838 = vpack.c.b16 %v1745, %v1742
    %v1839 = vpack.c.b16 %v1746, %v1743
    %v1840 = vpack.c.b16 %v1747, %v1744
    %v1841 = vpack.c.b16 %v1751, %v1748
    %v1842 = vpack.c.b16 %v1752, %v1749
    %v1843 = vpack.c.b16 %v1753, %v1750
    %v1844 = vpack.c.b16 %v1757, %v1754
    %v1845 = vpack.c.b16 %v1758, %v1755
    %v1846 = vpack.c.b16 %v1759, %v1756
    %v1847 = vpack.c.b16 %v1763, %v1760
    %v1848 = vpack.c.b16 %v1764, %v1761
    %v1849 = vpack.c.b16 %v1765, %v1762
    %v1850 = vpack.c.b16 %v1769, %v1766
    %v1851 = vpack.c.b16 %v1770, %v1767
    %v1852 = vpack.c.b16 %v1771, %v1768
    %v1853 = vpack.c.b16 %v1775, %v1772
    %v1854 = vpack.c.b16 %v1776, %v1773
    %v1855 = vpack.c.b16 %v1777, %v1774
    %v1856 = vpack.c.b16 %v1781, %v1778
    %v1857 = vpack.c.b16 %v1782, %v1779
    %v1858 = vpack.c.b16 %v1783, %v1780
    %v1859 = vpack.c.b16 %v1787, %v1784
    %v1860 = vpack.c.b16 %v1788, %v1785
    %v1861 = vpack.c.b16 %v1789, %v1786
    %1934 = vmatprep.subr.bf16.mxu0 %v1812
    %1935 = vmatpush1.bf16.msra.mxu0 %v1811
    %1936 = vmatprep.subr.bf16.mxu0 %v1809
    %1937 = vmatpush1.bf16.msra.mxu0 %v1808
    %1938 = vmatprep.subr.bf16.mxu0 %v1806
    %1939 = vmatpush1.bf16.msra.mxu0 %v1805
    %1940 = vmatprep.subr.bf16.mxu0 %v1803
    %1941 = vmatpush1.bf16.msra.mxu0 %v1802
    %1942 = vmatprep.subr.bf16.mxu0 %v1800
    %1943 = vmatpush1.bf16.msra.mxu0 %v1799
    %1944 = vmatprep.subr.bf16.mxu0 %v1797
    %1945 = vmatpush1.bf16.msra.mxu0 %v1796
    %1946 = vmatprep.subr.bf16.mxu0 %v1794
    %1947 = vmatpush1.bf16.msra.mxu0 %v1793
    %1948 = vmatprep.subr.bf16.mxu0 %v1791
    %1949 = vmatpush1.bf16.msra.mxu0 %v1790
    %1950 = vmatprep.subr.bf16.mxu0 %v1836
    %1951 = vmatpush2.bf16.msra.mxu0 %v1835
    %1952 = vmatprep.subr.bf16.mxu0 %v1833
    %1953 = vmatpush2.bf16.msra.mxu0 %v1832
    %1954 = vmatprep.subr.bf16.mxu0 %v1830
    %1955 = vmatpush2.bf16.msra.mxu0 %v1829
    %1956 = vmatprep.subr.bf16.mxu0 %v1827
    %1957 = vmatpush2.bf16.msra.mxu0 %v1826
    %1958 = vmatprep.subr.bf16.mxu0 %v1824
    %1959 = vmatpush2.bf16.msra.mxu0 %v1823
    %1960 = vmatprep.subr.bf16.mxu0 %v1821
    %1961 = vmatpush2.bf16.msra.mxu0 %v1820
    %1962 = vmatprep.subr.bf16.mxu0 %v1818
    %1963 = vmatpush2.bf16.msra.mxu0 %v1817
    %1964 = vmatprep.subr.bf16.mxu0 %v1815
    %1965 = vmatpush2.bf16.msra.mxu0 %v1814
    %1966 = vmatprep.mubr.bf16.mxu0 %v1435
    %1967 = vmatmul.mubr.bf16.gmra.mxu0 %v1434
    %v1968 = vpop.f32.mrf.mxu0
    %v1969 = vadd.f32 %v1538, %v1968
    %v1970 = vpop.f32.mrf.mxu0
    %v1971 = vadd.f32 %v1542, %v1970
    %v1972 = vpop.f32.mrf.mxu0
    %v1973 = vpop.f32.mrf.mxu0
    %1974 = vdwg.mxu0
    %1975 = vmatprep.subr.bf16.mxu0 %v1860
    %1976 = vmatpush1.bf16.msra.mxu0 %v1859
    %1977 = vmatprep.subr.bf16.mxu0 %v1857
    %1978 = vmatpush1.bf16.msra.mxu0 %v1856
    %1979 = vmatprep.subr.bf16.mxu0 %v1854
    %1980 = vmatpush1.bf16.msra.mxu0 %v1853
    %1981 = vmatprep.subr.bf16.mxu0 %v1851
    %1982 = vmatpush1.bf16.msra.mxu0 %v1850
    %1983 = vmatprep.subr.bf16.mxu0 %v1848
    %1984 = vmatpush1.bf16.msra.mxu0 %v1847
    %1985 = vmatprep.subr.bf16.mxu0 %v1845
    %1986 = vmatpush1.bf16.msra.mxu0 %v1844
    %1987 = vmatprep.subr.bf16.mxu0 %v1842
    %1988 = vmatpush1.bf16.msra.mxu0 %v1841
    %1989 = vmatprep.subr.bf16.mxu0 %v1839
    %1990 = vmatpush1.bf16.msra.mxu0 %v1838
    %1991 = vmatprep.subr.bf16.mxu0 0
    %1992 = vmatpush2.bf16.msra.mxu0 0
    %1993 = vmatprep.subr.bf16.mxu0 0
    %1994 = vmatpush2.bf16.msra.mxu0 0
    %1995 = vmatprep.subr.bf16.mxu0 0
    %1996 = vmatpush2.bf16.msra.mxu0 0
    %1997 = vmatprep.subr.bf16.mxu0 0
    %1998 = vmatpush2.bf16.msra.mxu0 0
    %1999 = vmatprep.subr.bf16.mxu0 0
    %2000 = vmatpush2.bf16.msra.mxu0 0
    %2001 = vmatprep.subr.bf16.mxu0 0
    %2002 = vmatpush2.bf16.msra.mxu0 0
    %2003 = vmatprep.subr.bf16.mxu0 0
    %2004 = vmatpush2.bf16.msra.mxu0 0
    %2005 = vmatprep.subr.bf16.mxu0 0
    %2006 = vmatpush2.bf16.msra.mxu0 0
    %2007 = vmatprep.mubr.bf16.mxu0 0
    %2008 = vmatmul.mubr.bf16.gmra.mxu0 %v1436
    %v2009 = vpop.f32.mrf.mxu0
    %v2010 = vadd.f32 %v1969, %v2009
    %v2011 = vpop.f32.mrf.mxu0
    %v2012 = vadd.f32 %v1971, %v2011
    %v2013 = vpop.f32.mrf.mxu0
    %v2014 = vpop.f32.mrf.mxu0
    %2015 = vdwg.mxu0
    %2016 = vmatprep.subr.bf16.mxu0 0
    %2017 = vmatpush1.bf16.msra.mxu0 %v1813
    %2018 = vmatprep.subr.bf16.mxu0 0
    %2019 = vmatpush1.bf16.msra.mxu0 %v1810
    %2020 = vmatprep.subr.bf16.mxu0 0
    %2021 = vmatpush1.bf16.msra.mxu0 %v1807
    %2022 = vmatprep.subr.bf16.mxu0 0
    %2023 = vmatpush1.bf16.msra.mxu0 %v1804
    %2024 = vmatprep.subr.bf16.mxu0 0
    %2025 = vmatpush1.bf16.msra.mxu0 %v1801
    %2026 = vmatprep.subr.bf16.mxu0 0
    %2027 = vmatpush1.bf16.msra.mxu0 %v1798
    %2028 = vmatprep.subr.bf16.mxu0 0
    %2029 = vmatpush1.bf16.msra.mxu0 %v1795
    %2030 = vmatprep.subr.bf16.mxu0 0
    %2031 = vmatpush1.bf16.msra.mxu0 %v1792
    %2032 = vmatprep.subr.bf16.mxu0 0
    %2033 = vmatpush2.bf16.msra.mxu0 %v1837
    %2034 = vmatprep.subr.bf16.mxu0 0
    %2035 = vmatpush2.bf16.msra.mxu0 %v1834
    %2036 = vmatprep.subr.bf16.mxu0 0
    %2037 = vmatpush2.bf16.msra.mxu0 %v1831
    %2038 = vmatprep.subr.bf16.mxu0 0
    %2039 = vmatpush2.bf16.msra.mxu0 %v1828
    %2040 = vmatprep.subr.bf16.mxu0 0
    %2041 = vmatpush2.bf16.msra.mxu0 %v1825
    %2042 = vmatprep.subr.bf16.mxu0 0
    %2043 = vmatpush2.bf16.msra.mxu0 %v1822
    %2044 = vmatprep.subr.bf16.mxu0 0
    %2045 = vmatpush2.bf16.msra.mxu0 %v1819
    %2046 = vmatprep.subr.bf16.mxu0 0
    %2047 = vmatpush2.bf16.msra.mxu0 %v1816
    %2048 = vmatprep.mubr.bf16.mxu0 %v1435
    %2049 = vmatmul.mubr.bf16.gmra.mxu0 %v1434
    %v2050 = vpop.f32.mrf.mxu0
    %v2051 = vadd.f32 %v1546, %v2050
    %v2052 = vpop.f32.mrf.mxu0
    %v2053 = vpop.f32.mrf.mxu0
    %v2054 = vpop.f32.mrf.mxu0
    %2055 = vdwg.mxu0
    %2056 = vmatprep.subr.bf16.mxu0 0
    %2057 = vmatpush1.bf16.msra.mxu0 %v1861
    %2058 = vmatprep.subr.bf16.mxu0 0
    %2059 = vmatpush1.bf16.msra.mxu0 %v1858
    %2060 = vmatprep.subr.bf16.mxu0 0
    %2061 = vmatpush1.bf16.msra.mxu0 %v1855
    %2062 = vmatprep.subr.bf16.mxu0 0
    %2063 = vmatpush1.bf16.msra.mxu0 %v1852
    %2064 = vmatprep.subr.bf16.mxu0 0
    %2065 = vmatpush1.bf16.msra.mxu0 %v1849
    %2066 = vmatprep.subr.bf16.mxu0 0
    %2067 = vmatpush1.bf16.msra.mxu0 %v1846
    %2068 = vmatprep.subr.bf16.mxu0 0
    %2069 = vmatpush1.bf16.msra.mxu0 %v1843
    %2070 = vmatprep.subr.bf16.mxu0 0
    %2071 = vmatpush1.bf16.msra.mxu0 %v1840
    %2072 = vmatprep.subr.bf16.mxu0 0
    %2073 = vmatpush2.bf16.msra.mxu0 0
    %2074 = vmatprep.subr.bf16.mxu0 0
    %2075 = vmatpush2.bf16.msra.mxu0 0
    %2076 = vmatprep.subr.bf16.mxu0 0
    %2077 = vmatpush2.bf16.msra.mxu0 0
    %2078 = vmatprep.subr.bf16.mxu0 0
    %2079 = vmatpush2.bf16.msra.mxu0 0
    %2080 = vmatprep.subr.bf16.mxu0 0
    %2081 = vmatpush2.bf16.msra.mxu0 0
    %2082 = vmatprep.subr.bf16.mxu0 0
    %2083 = vmatpush2.bf16.msra.mxu0 0
    %2084 = vmatprep.subr.bf16.mxu0 0
    %2085 = vmatpush2.bf16.msra.mxu0 0
    %2086 = vmatprep.subr.bf16.mxu0 0
    %2087 = vmatpush2.bf16.msra.mxu0 0
    %2088 = vmatprep.mubr.bf16.mxu0 0
    %2089 = vmatmul.mubr.bf16.gmra.mxu0 %v1436
    %v2090 = vpop.f32.mrf.mxu0
    %v2091 = vadd.f32 %v2051, %v2090
    %v2092 = vpop.f32.mrf.mxu0
    %v2093 = vpop.f32.mrf.mxu0
    %v2094 = vpop.f32.mrf.mxu0
    %2095 = vdwg.mxu0
    %v2096 = vmax.f32 %v2010, 0.0
    %v2097 = vmax.f32 %v2012, 0.0
    %v2098 = vmax.f32 %v2091, 0.0
    %v2099 = vpack.c.bf16 %v2096, %v2096
    %v2100 = vpack.c.bf16 %v2097, %v2097
    %v2101 = vpack.c.bf16 %v2098, %v2098
    %v2102 = vld [vmem:[%s5] sm:$0xff]
    %v2103 = vld [vmem:[%s5 + $0x8] sm:$0xf]
    %v2104 = vld [vmem:[%s5 + $0xc] sm:$0xff]
    %v2105 = vld [vmem:[%s5 + $0x14] sm:$0xf]
    %v2106 = vld [vmem:[%s5 + $0x18] sm:$0xff]
    %v2107 = vld [vmem:[%s5 + $0x20] sm:$0xf]
    %v2108 = vld [vmem:[%s5 + $0x24] sm:$0xff]
    %v2109 = vld [vmem:[%s5 + $0x2c] sm:$0xf]
    %v2110 = vld [vmem:[%s5 + $0x30] sm:$0xff]
    %v2111 = vld [vmem:[%s5 + $0x38] sm:$0xf]
    %v2112 = vld [vmem:[%s5 + $0x3c] sm:$0xff]
    %v2113 = vld [vmem:[%s5 + $0x44] sm:$0xf]
    %v2114 = vld [vmem:[%s5 + $0x48] sm:$0xff]
    %v2115 = vld [vmem:[%s5 + $0x50] sm:$0xf]
    %v2116 = vld [vmem:[%s5 + $0x54] sm:$0xff]
    %v2117 = vld [vmem:[%s5 + $0x5c] sm:$0xf]
    %v2118 = vld [vmem:[%s5 + $0x60] sm:$0xff]
    %v2119 = vld [vmem:[%s5 + $0x68] sm:$0xf]
    %v2120 = vld [vmem:[%s5 + $0x6c] sm:$0xff]
    %v2121 = vld [vmem:[%s5 + $0x74] sm:$0xf]
    %v2122 = vld [vmem:[%s5 + $0x78] sm:$0xff]
    %v2123 = vld [vmem:[%s5 + $0x80] sm:$0xf]
    %v2124 = vld [vmem:[%s5 + $0x84] sm:$0xff]
    %v2125 = vld [vmem:[%s5 + $0x8c] sm:$0xf]
    %v2126 = vld [vmem:[%s5 + $0x90] sm:$0xff]
    %v2127 = vld [vmem:[%s5 + $0x98] sm:$0xf]
    %v2128 = vld [vmem:[%s5 + $0x9c] sm:$0xff]
    %v2129 = vld [vmem:[%s5 + $0xa4] sm:$0xf]
    %v2130 = vld [vmem:[%s5 + $0xa8] sm:$0xff]
    %v2131 = vld [vmem:[%s5 + $0xb0] sm:$0xf]
    %v2132 = vld [vmem:[%s5 + $0xb4] sm:$0xff]
    %v2133 = vld [vmem:[%s5 + $0xbc] sm:$0xf]
    %v2134 = vld [vmem:[%s5 + $0xc0] sm:$0xff]
    %v2135 = vld [vmem:[%s5 + $0xc8] sm:$0xf]
    %v2136 = vld [vmem:[%s5 + $0xcc] sm:$0xff]
    %v2137 = vld [vmem:[%s5 + $0xd4] sm:$0xf]
    %v2138 = vld [vmem:[%s5 + $0xd8] sm:$0xff]
    %v2139 = vld [vmem:[%s5 + $0xe0] sm:$0xf]
    %v2140 = vld [vmem:[%s5 + $0xe4] sm:$0xff]
    %v2141 = vld [vmem:[%s5 + $0xec] sm:$0xf]
    %v2142 = vld [vmem:[%s5 + $0xf0] sm:$0xff]
    %v2143 = vld [vmem:[%s5 + $0xf8] sm:$0xf]
    %v2144 = vld [vmem:[%s5 + $0xfc] sm:$0xff]
    %v2145 = vld [vmem:[%s5 + $0x104] sm:$0xf]
    %v2146 = vld [vmem:[%s5 + $0x108] sm:$0xff]
    %v2147 = vld [vmem:[%s5 + $0x110] sm:$0xf]
    %v2148 = vld [vmem:[%s5 + $0x114] sm:$0xff]
    %v2149 = vld [vmem:[%s5 + $0x11c] sm:$0xf]
    %v2150 = vld [vmem:[%s5 + $0x120] sm:$0xff]
    %v2151 = vld [vmem:[%s5 + $0x128] sm:$0xf]
    %v2152 = vld [vmem:[%s5 + $0x12c] sm:$0xff]
    %v2153 = vld [vmem:[%s5 + $0x134] sm:$0xf]
    %v2154 = vld [vmem:[%s5 + $0x138] sm:$0xff]
    %v2155 = vld [vmem:[%s5 + $0x140] sm:$0xf]
    %v2156 = vld [vmem:[%s5 + $0x144] sm:$0xff]
    %v2157 = vld [vmem:[%s5 + $0x14c] sm:$0xf]
    %v2158 = vld [vmem:[%s5 + $0x150] sm:$0xff]
    %v2159 = vld [vmem:[%s5 + $0x158] sm:$0xf]
    %v2160 = vld [vmem:[%s5 + $0x15c] sm:$0xff]
    %v2161 = vld [vmem:[%s5 + $0x164] sm:$0xf]
    %v2162 = vld [vmem:[%s5 + $0x168] sm:$0xff]
    %v2163 = vld [vmem:[%s5 + $0x170] sm:$0xf]
    %v2164 = vld [vmem:[%s5 + $0x174] sm:$0xff]
    %v2165 = vld [vmem:[%s5 + $0x17c] sm:$0xf]
    %v2166 = vld [vmem:[%s5 + $0x180] sm:$0xff]
    %v2167 = vld [vmem:[%s5 + $0x188] sm:$0xf]
    %v2168 = vld [vmem:[%s5 + $0x18c] sm:$0xff]
    %v2169 = vld [vmem:[%s5 + $0x194] sm:$0xf]
    %v2170 = vld [vmem:[%s5 + $0x198] sm:$0xff]
    %v2171 = vld [vmem:[%s5 + $0x1a0] sm:$0xf]
    %v2172 = vld [vmem:[%s5 + $0x1a4] sm:$0xff]
    %v2173 = vld [vmem:[%s5 + $0x1ac] sm:$0xf]
    %v2174 = vld [vmem:[%s5 + $0x1b0] sm:$0xff]
    %v2175 = vld [vmem:[%s5 + $0x1b8] sm:$0xf]
    %v2176 = vld [vmem:[%s5 + $0x1bc] sm:$0xff]
    %v2177 = vld [vmem:[%s5 + $0x1c4] sm:$0xf]
    %v2178 = vld [vmem:[%s5 + $0x1c8] sm:$0xff]
    %v2179 = vld [vmem:[%s5 + $0x1d0] sm:$0xf]
    %v2180 = vld [vmem:[%s5 + $0x1d4] sm:$0xff]
    %v2181 = vld [vmem:[%s5 + $0x1dc] sm:$0xf]
    %v2182 = vld [vmem:[%s5 + $0x1e0] sm:$0xff]
    %v2183 = vld [vmem:[%s5 + $0x1e8] sm:$0xf]
    %v2184 = vld [vmem:[%s5 + $0x1ec] sm:$0xff]
    %v2185 = vld [vmem:[%s5 + $0x1f4] sm:$0xf]
    %v2186 = vld [vmem:[%s5 + $0x1f8] sm:$0xff]
    %v2187 = vld [vmem:[%s5 + $0x200] sm:$0xf]
    %v2188 = vld [vmem:[%s5 + $0x204] sm:$0xff]
    %v2189 = vld [vmem:[%s5 + $0x20c] sm:$0xf]
    %v2190 = vld [vmem:[%s5 + $0x210] sm:$0xff]
    %v2191 = vld [vmem:[%s5 + $0x218] sm:$0xf]
    %v2192 = vld [vmem:[%s5 + $0x21c] sm:$0xff]
    %v2193 = vld [vmem:[%s5 + $0x224] sm:$0xf]
    %v2194 = vld [vmem:[%s5 + $0x228] sm:$0xff]
    %v2195 = vld [vmem:[%s5 + $0x230] sm:$0xf]
    %v2196 = vld [vmem:[%s5 + $0x234] sm:$0xff]
    %v2197 = vld [vmem:[%s5 + $0x23c] sm:$0xf]
    %v2198 = vld [vmem:[%s6] sm:$0x7]
    %v2200 = vlaneseq
    %v2201 = vshrl.u32 %v2200, 7
    %v2202 = vsub.s32 0, %v2201
    %v2203 = vrot.slane %v2198, %v2202
    %v2204 = vlaneseq
    %v2205 = vshrl.u32 %v2204, 7
    %v2206 = vsub.s32 1, %v2205
    %v2207 = vrot.slane %v2198, %v2206
    %v2208 = vlaneseq
    %v2209 = vshrl.u32 %v2208, 7
    %v2210 = vsub.s32 2, %v2209
    %v2211 = vrot.slane %v2198, %v2210
    %v2311 = vunpack.c.l.b16 %v2102
    %v2312 = vunpack.c.h.b16 %v2102
    %v2313 = vunpack.c.l.b16 %v2103
    %v2314 = vunpack.c.l.b16 %v2104
    %v2315 = vunpack.c.h.b16 %v2104
    %v2316 = vunpack.c.l.b16 %v2105
    %v2317 = vunpack.c.l.b16 %v2106
    %v2318 = vunpack.c.h.b16 %v2106
    %v2319 = vunpack.c.l.b16 %v2107
    %v2320 = vunpack.c.l.b16 %v2108
    %v2321 = vunpack.c.h.b16 %v2108
    %v2322 = vunpack.c.l.b16 %v2109
    %v2323 = vunpack.c.l.b16 %v2110
    %v2324 = vunpack.c.h.b16 %v2110
    %v2325 = vunpack.c.l.b16 %v2111
    %v2326 = vunpack.c.l.b16 %v2112
    %v2327 = vunpack.c.h.b16 %v2112
    %v2328 = vunpack.c.l.b16 %v2113
    %v2329 = vunpack.c.l.b16 %v2114
    %v2330 = vunpack.c.h.b16 %v2114
    %v2331 = vunpack.c.l.b16 %v2115
    %v2332 = vunpack.c.l.b16 %v2116
    %v2333 = vunpack.c.h.b16 %v2116
    %v2334 = vunpack.c.l.b16 %v2117
    %v2335 = vunpack.c.l.b16 %v2118
    %v2336 = vunpack.c.h.b16 %v2118
    %v2337 = vunpack.c.l.b16 %v2119
    %v2338 = vunpack.c.l.b16 %v2120
    %v2339 = vunpack.c.h.b16 %v2120
    %v2340 = vunpack.c.l.b16 %v2121
    %v2341 = vunpack.c.l.b16 %v2122
    %v2342 = vunpack.c.h.b16 %v2122
    %v2343 = vunpack.c.l.b16 %v2123
    %v2344 = vunpack.c.l.b16 %v2124
    %v2345 = vunpack.c.h.b16 %v2124
    %v2346 = vunpack.c.l.b16 %v2125
    %v2347 = vunpack.c.l.b16 %v2126
    %v2348 = vunpack.c.h.b16 %v2126
    %v2349 = vunpack.c.l.b16 %v2127
    %v2350 = vunpack.c.l.b16 %v2128
    %v2351 = vunpack.c.h.b16 %v2128
    %v2352 = vunpack.c.l.b16 %v2129
    %v2353 = vunpack.c.l.b16 %v2130
    %v2354 = vunpack.c.h.b16 %v2130
    %v2355 = vunpack.c.l.b16 %v2131
    %v2356 = vunpack.c.l.b16 %v2132
    %v2357 = vunpack.c.h.b16 %v2132
    %v2358 = vunpack.c.l.b16 %v2133
    %v2359 = vunpack.c.l.b16 %v2134
    %v2360 = vunpack.c.h.b16 %v2134
    %v2361 = vunpack.c.l.b16 %v2135
    %v2362 = vunpack.c.l.b16 %v2136
    %v2363 = vunpack.c.h.b16 %v2136
    %v2364 = vunpack.c.l.b16 %v2137
    %v2365 = vunpack.c.l.b16 %v2138
    %v2366 = vunpack.c.h.b16 %v2138
    %v2367 = vunpack.c.l.b16 %v2139
    %v2368 = vunpack.c.l.b16 %v2140
    %v2369 = vunpack.c.h.b16 %v2140
    %v2370 = vunpack.c.l.b16 %v2141
    %v2371 = vunpack.c.l.b16 %v2142
    %v2372 = vunpack.c.h.b16 %v2142
    %v2373 = vunpack.c.l.b16 %v2143
    %v2374 = vunpack.c.l.b16 %v2144
    %v2375 = vunpack.c.h.b16 %v2144
    %v2376 = vunpack.c.l.b16 %v2145
    %v2377 = vunpack.c.l.b16 %v2146
    %v2378 = vunpack.c.h.b16 %v2146
    %v2379 = vunpack.c.l.b16 %v2147
    %v2380 = vunpack.c.l.b16 %v2148
    %v2381 = vunpack.c.h.b16 %v2148
    %v2382 = vunpack.c.l.b16 %v2149
    %v2383 = vunpack.c.l.b16 %v2150
    %v2384 = vunpack.c.h.b16 %v2150
    %v2385 = vunpack.c.l.b16 %v2151
    %v2386 = vunpack.c.l.b16 %v2152
    %v2387 = vunpack.c.h.b16 %v2152
    %v2388 = vunpack.c.l.b16 %v2153
    %v2389 = vunpack.c.l.b16 %v2154
    %v2390 = vunpack.c.h.b16 %v2154
    %v2391 = vunpack.c.l.b16 %v2155
    %v2392 = vunpack.c.l.b16 %v2156
    %v2393 = vunpack.c.h.b16 %v2156
    %v2394 = vunpack.c.l.b16 %v2157
    %v2395 = vunpack.c.l.b16 %v2158
    %v2396 = vunpack.c.h.b16 %v2158
    %v2397 = vunpack.c.l.b16 %v2159
    %v2398 = vunpack.c.l.b16 %v2160
    %v2399 = vunpack.c.h.b16 %v2160
    %v2400 = vunpack.c.l.b16 %v2161
    %v2401 = vunpack.c.l.b16 %v2162
    %v2402 = vunpack.c.h.b16 %v2162
    %v2403 = vunpack.c.l.b16 %v2163
    %v2404 = vunpack.c.l.b16 %v2164
    %v2405 = vunpack.c.h.b16 %v2164
    %v2406 = vunpack.c.l.b16 %v2165
    %v2407 = vunpack.c.l.b16 %v2166
    %v2408 = vunpack.c.h.b16 %v2166
    %v2409 = vunpack.c.l.b16 %v2167
    %v2410 = vunpack.c.l.b16 %v2168
    %v2411 = vunpack.c.h.b16 %v2168
    %v2412 = vunpack.c.l.b16 %v2169
    %v2413 = vunpack.c.l.b16 %v2170
    %v2414 = vunpack.c.h.b16 %v2170
    %v2415 = vunpack.c.l.b16 %v2171
    %v2416 = vunpack.c.l.b16 %v2172
    %v2417 = vunpack.c.h.b16 %v2172
    %v2418 = vunpack.c.l.b16 %v2173
    %v2419 = vunpack.c.l.b16 %v2174
    %v2420 = vunpack.c.h.b16 %v2174
    %v2421 = vunpack.c.l.b16 %v2175
    %v2422 = vunpack.c.l.b16 %v2176
    %v2423 = vunpack.c.h.b16 %v2176
    %v2424 = vunpack.c.l.b16 %v2177
    %v2425 = vunpack.c.l.b16 %v2178
    %v2426 = vunpack.c.h.b16 %v2178
    %v2427 = vunpack.c.l.b16 %v2179
    %v2428 = vunpack.c.l.b16 %v2180
    %v2429 = vunpack.c.h.b16 %v2180
    %v2430 = vunpack.c.l.b16 %v2181
    %v2431 = vunpack.c.l.b16 %v2182
    %v2432 = vunpack.c.h.b16 %v2182
    %v2433 = vunpack.c.l.b16 %v2183
    %v2434 = vunpack.c.l.b16 %v2184
    %v2435 = vunpack.c.h.b16 %v2184
    %v2436 = vunpack.c.l.b16 %v2185
    %v2437 = vunpack.c.l.b16 %v2186
    %v2438 = vunpack.c.h.b16 %v2186
    %v2439 = vunpack.c.l.b16 %v2187
    %v2440 = vunpack.c.l.b16 %v2188
    %v2441 = vunpack.c.h.b16 %v2188
    %v2442 = vunpack.c.l.b16 %v2189
    %v2443 = vunpack.c.l.b16 %v2190
    %v2444 = vunpack.c.h.b16 %v2190
    %v2445 = vunpack.c.l.b16 %v2191
    %v2446 = vunpack.c.l.b16 %v2192
    %v2447 = vunpack.c.h.b16 %v2192
    %v2448 = vunpack.c.l.b16 %v2193
    %v2449 = vunpack.c.l.b16 %v2194
    %v2450 = vunpack.c.h.b16 %v2194
    %v2451 = vunpack.c.l.b16 %v2195
    %v2452 = vunpack.c.l.b16 %v2196
    %v2453 = vunpack.c.h.b16 %v2196
    %v2454 = vunpack.c.l.b16 %v2197
    %v2455 = vpack.c.b16 %v2314, %v2311
    %v2456 = vpack.c.b16 %v2315, %v2312
    %v2457 = vpack.c.b16 %v2316, %v2313
    %v2458 = vpack.c.b16 %v2320, %v2317
    %v2459 = vpack.c.b16 %v2321, %v2318
    %v2460 = vpack.c.b16 %v2322, %v2319
    %v2461 = vpack.c.b16 %v2326, %v2323
    %v2462 = vpack.c.b16 %v2327, %v2324
    %v2463 = vpack.c.b16 %v2328, %v2325
    %v2464 = vpack.c.b16 %v2332, %v2329
    %v2465 = vpack.c.b16 %v2333, %v2330
    %v2466 = vpack.c.b16 %v2334, %v2331
    %v2467 = vpack.c.b16 %v2338, %v2335
    %v2468 = vpack.c.b16 %v2339, %v2336
    %v2469 = vpack.c.b16 %v2340, %v2337
    %v2470 = vpack.c.b16 %v2344, %v2341
    %v2471 = vpack.c.b16 %v2345, %v2342
    %v2472 = vpack.c.b16 %v2346, %v2343
    %v2473 = vpack.c.b16 %v2350, %v2347
    %v2474 = vpack.c.b16 %v2351, %v2348
    %v2475 = vpack.c.b16 %v2352, %v2349
    %v2476 = vpack.c.b16 %v2356, %v2353
    %v2477 = vpack.c.b16 %v2357, %v2354
    %v2478 = vpack.c.b16 %v2358, %v2355
    %v2479 = vpack.c.b16 %v2362, %v2359
    %v2480 = vpack.c.b16 %v2363, %v2360
    %v2481 = vpack.c.b16 %v2364, %v2361
    %v2482 = vpack.c.b16 %v2368, %v2365
    %v2483 = vpack.c.b16 %v2369, %v2366
    %v2484 = vpack.c.b16 %v2370, %v2367
    %v2485 = vpack.c.b16 %v2374, %v2371
    %v2486 = vpack.c.b16 %v2375, %v2372
    %v2487 = vpack.c.b16 %v2376, %v2373
    %v2488 = vpack.c.b16 %v2380, %v2377
    %v2489 = vpack.c.b16 %v2381, %v2378
    %v2490 = vpack.c.b16 %v2382, %v2379
    %v2491 = vpack.c.b16 %v2386, %v2383
    %v2492 = vpack.c.b16 %v2387, %v2384
    %v2493 = vpack.c.b16 %v2388, %v2385
    %v2494 = vpack.c.b16 %v2392, %v2389
    %v2495 = vpack.c.b16 %v2393, %v2390
    %v2496 = vpack.c.b16 %v2394, %v2391
    %v2497 = vpack.c.b16 %v2398, %v2395
    %v2498 = vpack.c.b16 %v2399, %v2396
    %v2499 = vpack.c.b16 %v2400, %v2397
    %v2500 = vpack.c.b16 %v2404, %v2401
    %v2501 = vpack.c.b16 %v2405, %v2402
    %v2502 = vpack.c.b16 %v2406, %v2403
    %v2503 = vpack.c.b16 %v2410, %v2407
    %v2504 = vpack.c.b16 %v2411, %v2408
    %v2505 = vpack.c.b16 %v2412, %v2409
    %v2506 = vpack.c.b16 %v2416, %v2413
    %v2507 = vpack.c.b16 %v2417, %v2414
    %v2508 = vpack.c.b16 %v2418, %v2415
    %v2509 = vpack.c.b16 %v2422, %v2419
    %v2510 = vpack.c.b16 %v2423, %v2420
    %v2511 = vpack.c.b16 %v2424, %v2421
    %v2512 = vpack.c.b16 %v2428, %v2425
    %v2513 = vpack.c.b16 %v2429, %v2426
    %v2514 = vpack.c.b16 %v2430, %v2427
    %v2515 = vpack.c.b16 %v2434, %v2431
    %v2516 = vpack.c.b16 %v2435, %v2432
    %v2517 = vpack.c.b16 %v2436, %v2433
    %v2518 = vpack.c.b16 %v2440, %v2437
    %v2519 = vpack.c.b16 %v2441, %v2438
    %v2520 = vpack.c.b16 %v2442, %v2439
    %v2521 = vpack.c.b16 %v2446, %v2443
    %v2522 = vpack.c.b16 %v2447, %v2444
    %v2523 = vpack.c.b16 %v2448, %v2445
    %v2524 = vpack.c.b16 %v2452, %v2449
    %v2525 = vpack.c.b16 %v2453, %v2450
    %v2526 = vpack.c.b16 %v2454, %v2451
    %2599 = vmatprep.subr.bf16.mxu0 %v2477
    %2600 = vmatpush1.bf16.msra.mxu0 %v2476
    %2601 = vmatprep.subr.bf16.mxu0 %v2474
    %2602 = vmatpush1.bf16.msra.mxu0 %v2473
    %2603 = vmatprep.subr.bf16.mxu0 %v2471
    %2604 = vmatpush1.bf16.msra.mxu0 %v2470
    %2605 = vmatprep.subr.bf16.mxu0 %v2468
    %2606 = vmatpush1.bf16.msra.mxu0 %v2467
    %2607 = vmatprep.subr.bf16.mxu0 %v2465
    %2608 = vmatpush1.bf16.msra.mxu0 %v2464
    %2609 = vmatprep.subr.bf16.mxu0 %v2462
    %2610 = vmatpush1.bf16.msra.mxu0 %v2461
    %2611 = vmatprep.subr.bf16.mxu0 %v2459
    %2612 = vmatpush1.bf16.msra.mxu0 %v2458
    %2613 = vmatprep.subr.bf16.mxu0 %v2456
    %2614 = vmatpush1.bf16.msra.mxu0 %v2455
    %2615 = vmatprep.subr.bf16.mxu0 %v2501
    %2616 = vmatpush2.bf16.msra.mxu0 %v2500
    %2617 = vmatprep.subr.bf16.mxu0 %v2498
    %2618 = vmatpush2.bf16.msra.mxu0 %v2497
    %2619 = vmatprep.subr.bf16.mxu0 %v2495
    %2620 = vmatpush2.bf16.msra.mxu0 %v2494
    %2621 = vmatprep.subr.bf16.mxu0 %v2492
    %2622 = vmatpush2.bf16.msra.mxu0 %v2491
    %2623 = vmatprep.subr.bf16.mxu0 %v2489
    %2624 = vmatpush2.bf16.msra.mxu0 %v2488
    %2625 = vmatprep.subr.bf16.mxu0 %v2486
    %2626 = vmatpush2.bf16.msra.mxu0 %v2485
    %2627 = vmatprep.subr.bf16.mxu0 %v2483
    %2628 = vmatpush2.bf16.msra.mxu0 %v2482
    %2629 = vmatprep.subr.bf16.mxu0 %v2480
    %2630 = vmatpush2.bf16.msra.mxu0 %v2479
    %2631 = vmatprep.mubr.bf16.mxu0 %v2100
    %2632 = vmatmul.mubr.bf16.gmra.mxu0 %v2099
    %v2633 = vpop.f32.mrf.mxu0
    %v2634 = vadd.f32 %v2203, %v2633
    %v2635 = vpop.f32.mrf.mxu0
    %v2636 = vadd.f32 %v2207, %v2635
    %v2637 = vpop.f32.mrf.mxu0
    %v2638 = vpop.f32.mrf.mxu0
    %2639 = vdwg.mxu0
    %2640 = vmatprep.subr.bf16.mxu0 %v2525
    %2641 = vmatpush1.bf16.msra.mxu0 %v2524
    %2642 = vmatprep.subr.bf16.mxu0 %v2522
    %2643 = vmatpush1.bf16.msra.mxu0 %v2521
    %2644 = vmatprep.subr.bf16.mxu0 %v2519
    %2645 = vmatpush1.bf16.msra.mxu0 %v2518
    %2646 = vmatprep.subr.bf16.mxu0 %v2516
    %2647 = vmatpush1.bf16.msra.mxu0 %v2515
    %2648 = vmatprep.subr.bf16.mxu0 %v2513
    %2649 = vmatpush1.bf16.msra.mxu0 %v2512
    %2650 = vmatprep.subr.bf16.mxu0 %v2510
    %2651 = vmatpush1.bf16.msra.mxu0 %v2509
    %2652 = vmatprep.subr.bf16.mxu0 %v2507
    %2653 = vmatpush1.bf16.msra.mxu0 %v2506
    %2654 = vmatprep.subr.bf16.mxu0 %v2504
    %2655 = vmatpush1.bf16.msra.mxu0 %v2503
    %2656 = vmatprep.subr.bf16.mxu0 0
    %2657 = vmatpush2.bf16.msra.mxu0 0
    %2658 = vmatprep.subr.bf16.mxu0 0
    %2659 = vmatpush2.bf16.msra.mxu0 0
    %2660 = vmatprep.subr.bf16.mxu0 0
    %2661 = vmatpush2.bf16.msra.mxu0 0
    %2662 = vmatprep.subr.bf16.mxu0 0
    %2663 = vmatpush2.bf16.msra.mxu0 0
    %2664 = vmatprep.subr.bf16.mxu0 0
    %2665 = vmatpush2.bf16.msra.mxu0 0
    %2666 = vmatprep.subr.bf16.mxu0 0
    %2667 = vmatpush2.bf16.msra.mxu0 0
    %2668 = vmatprep.subr.bf16.mxu0 0
    %2669 = vmatpush2.bf16.msra.mxu0 0
    %2670 = vmatprep.subr.bf16.mxu0 0
    %2671 = vmatpush2.bf16.msra.mxu0 0
    %2672 = vmatprep.mubr.bf16.mxu0 0
    %2673 = vmatmul.mubr.bf16.gmra.mxu0 %v2101
    %v2674 = vpop.f32.mrf.mxu0
    %v2675 = vadd.f32 %v2634, %v2674
    %v2676 = vpop.f32.mrf.mxu0
    %v2677 = vadd.f32 %v2636, %v2676
    %v2678 = vpop.f32.mrf.mxu0
    %v2679 = vpop.f32.mrf.mxu0
    %2680 = vdwg.mxu0
    %2681 = vmatprep.subr.bf16.mxu0 0
    %2682 = vmatpush1.bf16.msra.mxu0 %v2478
    %2683 = vmatprep.subr.bf16.mxu0 0
    %2684 = vmatpush1.bf16.msra.mxu0 %v2475
    %2685 = vmatprep.subr.bf16.mxu0 0
    %2686 = vmatpush1.bf16.msra.mxu0 %v2472
    %2687 = vmatprep.subr.bf16.mxu0 0
    %2688 = vmatpush1.bf16.msra.mxu0 %v2469
    %2689 = vmatprep.subr.bf16.mxu0 0
    %2690 = vmatpush1.bf16.msra.mxu0 %v2466
    %2691 = vmatprep.subr.bf16.mxu0 0
    %2692 = vmatpush1.bf16.msra.mxu0 %v2463
    %2693 = vmatprep.subr.bf16.mxu0 0
    %2694 = vmatpush1.bf16.msra.mxu0 %v2460
    %2695 = vmatprep.subr.bf16.mxu0 0
    %2696 = vmatpush1.bf16.msra.mxu0 %v2457
    %2697 = vmatprep.subr.bf16.mxu0 0
    %2698 = vmatpush2.bf16.msra.mxu0 %v2502
    %2699 = vmatprep.subr.bf16.mxu0 0
    %2700 = vmatpush2.bf16.msra.mxu0 %v2499
    %2701 = vmatprep.subr.bf16.mxu0 0
    %2702 = vmatpush2.bf16.msra.mxu0 %v2496
    %2703 = vmatprep.subr.bf16.mxu0 0
    %2704 = vmatpush2.bf16.msra.mxu0 %v2493
    %2705 = vmatprep.subr.bf16.mxu0 0
    %2706 = vmatpush2.bf16.msra.mxu0 %v2490
    %2707 = vmatprep.subr.bf16.mxu0 0
    %2708 = vmatpush2.bf16.msra.mxu0 %v2487
    %2709 = vmatprep.subr.bf16.mxu0 0
    %2710 = vmatpush2.bf16.msra.mxu0 %v2484
    %2711 = vmatprep.subr.bf16.mxu0 0
    %2712 = vmatpush2.bf16.msra.mxu0 %v2481
    %2713 = vmatprep.mubr.bf16.mxu0 %v2100
    %2714 = vmatmul.mubr.bf16.gmra.mxu0 %v2099
    %v2715 = vpop.f32.mrf.mxu0
    %v2716 = vadd.f32 %v2211, %v2715
    %v2717 = vpop.f32.mrf.mxu0
    %v2718 = vpop.f32.mrf.mxu0
    %v2719 = vpop.f32.mrf.mxu0
    %2720 = vdwg.mxu0
    %2721 = vmatprep.subr.bf16.mxu0 0
    %2722 = vmatpush1.bf16.msra.mxu0 %v2526
    %2723 = vmatprep.subr.bf16.mxu0 0
    %2724 = vmatpush1.bf16.msra.mxu0 %v2523
    %2725 = vmatprep.subr.bf16.mxu0 0
    %2726 = vmatpush1.bf16.msra.mxu0 %v2520
    %2727 = vmatprep.subr.bf16.mxu0 0
    %2728 = vmatpush1.bf16.msra.mxu0 %v2517
    %2729 = vmatprep.subr.bf16.mxu0 0
    %2730 = vmatpush1.bf16.msra.mxu0 %v2514
    %2731 = vmatprep.subr.bf16.mxu0 0
    %2732 = vmatpush1.bf16.msra.mxu0 %v2511
    %2733 = vmatprep.subr.bf16.mxu0 0
    %2734 = vmatpush1.bf16.msra.mxu0 %v2508
    %2735 = vmatprep.subr.bf16.mxu0 0
    %2736 = vmatpush1.bf16.msra.mxu0 %v2505
    %2737 = vmatprep.subr.bf16.mxu0 0
    %2738 = vmatpush2.bf16.msra.mxu0 0
    %2739 = vmatprep.subr.bf16.mxu0 0
    %2740 = vmatpush2.bf16.msra.mxu0 0
    %2741 = vmatprep.subr.bf16.mxu0 0
    %2742 = vmatpush2.bf16.msra.mxu0 0
    %2743 = vmatprep.subr.bf16.mxu0 0
    %2744 = vmatpush2.bf16.msra.mxu0 0
    %2745 = vmatprep.subr.bf16.mxu0 0
    %2746 = vmatpush2.bf16.msra.mxu0 0
    %2747 = vmatprep.subr.bf16.mxu0 0
    %2748 = vmatpush2.bf16.msra.mxu0 0
    %2749 = vmatprep.subr.bf16.mxu0 0
    %2750 = vmatpush2.bf16.msra.mxu0 0
    %2751 = vmatprep.subr.bf16.mxu0 0
    %2752 = vmatpush2.bf16.msra.mxu0 0
    %2753 = vmatprep.mubr.bf16.mxu0 0
    %2754 = vmatmul.mubr.bf16.gmra.mxu0 %v2101
    %v2755 = vpop.f32.mrf.mxu0
    %v2756 = vadd.f32 %v2716, %v2755
    %v2757 = vpop.f32.mrf.mxu0
    %v2758 = vpop.f32.mrf.mxu0
    %v2759 = vpop.f32.mrf.mxu0
    %2760 = vdwg.mxu0
    %v2761 = vmax.f32 %v2675, 0.0
    %v2762 = vmax.f32 %v2677, 0.0
    %v2763 = vmax.f32 %v2756, 0.0
    %v2764 = vpack.c.bf16 %v2761, %v2761
    %v2765 = vpack.c.bf16 %v2762, %v2762
    %v2766 = vpack.c.bf16 %v2763, %v2763
    %v2767 = vld [vmem:[#allocation2] sm:$0xff]
    %v2768 = vld [vmem:[#allocation2 + $0x8] sm:$0xff]
    %v2769 = vld [vmem:[#allocation2 + $0x10] sm:$0xff]
    %v2770 = vld [vmem:[#allocation2 + $0x18] sm:$0xff]
    %v2771 = vld [vmem:[#allocation2 + $0x20] sm:$0xff]
    %v2772 = vld [vmem:[#allocation2 + $0x28] sm:$0xff]
    %v2773 = vld [vmem:[#allocation2 + $0x30] sm:$0xff]
    %v2774 = vld [vmem:[#allocation2 + $0x38] sm:$0xff]
    %v2775 = vld [vmem:[#allocation2 + $0x40] sm:$0xff]
    %v2776 = vld [vmem:[#allocation2 + $0x48] sm:$0xff]
    %v2777 = vld [vmem:[#allocation2 + $0x50] sm:$0xff]
    %v2778 = vld [vmem:[#allocation2 + $0x58] sm:$0xff]
    %v2779 = vld [vmem:[#allocation2 + $0x60] sm:$0xff]
    %v2780 = vld [vmem:[#allocation2 + $0x68] sm:$0xff]
    %v2781 = vld [vmem:[#allocation2 + $0x70] sm:$0xff]
    %v2782 = vld [vmem:[#allocation2 + $0x78] sm:$0xff]
    %v2783 = vld [vmem:[#allocation2 + $0x80] sm:$0xff]
    %v2784 = vld [vmem:[#allocation2 + $0x88] sm:$0xff]
    %v2785 = vld [vmem:[#allocation2 + $0x90] sm:$0xff]
    %v2786 = vld [vmem:[#allocation2 + $0x98] sm:$0xff]
    %v2787 = vld [vmem:[#allocation2 + $0xa0] sm:$0xff]
    %v2788 = vld [vmem:[#allocation2 + $0xa8] sm:$0xff]
    %v2789 = vld [vmem:[#allocation2 + $0xb0] sm:$0xff]
    %v2790 = vld [vmem:[#allocation2 + $0xb8] sm:$0xff]
    %v2791 = vld [vmem:[#allocation2 + $0xc0] sm:$0xff]
    %v2792 = vld [vmem:[#allocation2 + $0xc8] sm:$0xff]
    %v2793 = vld [vmem:[#allocation2 + $0xd0] sm:$0xff]
    %v2794 = vld [vmem:[#allocation2 + $0xd8] sm:$0xff]
    %v2795 = vld [vmem:[#allocation2 + $0xe0] sm:$0xff]
    %v2796 = vld [vmem:[#allocation2 + $0xe8] sm:$0xff]
    %v2797 = vld [vmem:[#allocation2 + $0xf0] sm:$0xff]
    %v2798 = vld [vmem:[#allocation2 + $0xf8] sm:$0xff]
    %v2799 = vld [vmem:[#allocation2 + $0x100] sm:$0xff]
    %v2800 = vld [vmem:[#allocation2 + $0x108] sm:$0xff]
    %v2801 = vld [vmem:[#allocation2 + $0x110] sm:$0xff]
    %v2802 = vld [vmem:[#allocation2 + $0x118] sm:$0xff]
    %v2803 = vld [vmem:[#allocation2 + $0x120] sm:$0xff]
    %v2804 = vld [vmem:[#allocation2 + $0x128] sm:$0xff]
    %v2805 = vld [vmem:[#allocation2 + $0x130] sm:$0xff]
    %v2806 = vld [vmem:[#allocation2 + $0x138] sm:$0xff]
    %v2807 = vld [vmem:[#allocation2 + $0x140] sm:$0xff]
    %v2808 = vld [vmem:[#allocation2 + $0x148] sm:$0xff]
    %v2809 = vld [vmem:[#allocation2 + $0x150] sm:$0xff]
    %v2810 = vld [vmem:[#allocation2 + $0x158] sm:$0xff]
    %v2811 = vld [vmem:[#allocation2 + $0x160] sm:$0xff]
    %v2812 = vld [vmem:[#allocation2 + $0x168] sm:$0xff]
    %v2813 = vld [vmem:[#allocation2 + $0x170] sm:$0xff]
    %v2814 = vld [vmem:[#allocation2 + $0x178] sm:$0xff]
    %v2815 = vld [vmem:[%s8] sm:$0x3]
    %v2817 = vlaneseq
    %v2818 = vshrl.u32 %v2817, 7
    %v2819 = vsub.s32 0, %v2818
    %v2820 = vrot.slane %v2815, %v2819
    %v2821 = vlaneseq
    %v2822 = vshrl.u32 %v2821, 7
    %v2823 = vsub.s32 1, %v2822
    %v2824 = vrot.slane %v2815, %v2823
    %v2875 = vunpack.c.l.b16 %v2767
    %v2876 = vunpack.c.h.b16 %v2767
    %v2877 = vunpack.c.l.b16 %v2768
    %v2878 = vunpack.c.h.b16 %v2768
    %v2879 = vunpack.c.l.b16 %v2769
    %v2880 = vunpack.c.h.b16 %v2769
    %v2881 = vunpack.c.l.b16 %v2770
    %v2882 = vunpack.c.h.b16 %v2770
    %v2883 = vunpack.c.l.b16 %v2771
    %v2884 = vunpack.c.h.b16 %v2771
    %v2885 = vunpack.c.l.b16 %v2772
    %v2886 = vunpack.c.h.b16 %v2772
    %v2887 = vunpack.c.l.b16 %v2773
    %v2888 = vunpack.c.h.b16 %v2773
    %v2889 = vunpack.c.l.b16 %v2774
    %v2890 = vunpack.c.h.b16 %v2774
    %v2891 = vunpack.c.l.b16 %v2775
    %v2892 = vunpack.c.h.b16 %v2775
    %v2893 = vunpack.c.l.b16 %v2776
    %v2894 = vunpack.c.h.b16 %v2776
    %v2895 = vunpack.c.l.b16 %v2777
    %v2896 = vunpack.c.h.b16 %v2777
    %v2897 = vunpack.c.l.b16 %v2778
    %v2898 = vunpack.c.h.b16 %v2778
    %v2899 = vunpack.c.l.b16 %v2779
    %v2900 = vunpack.c.h.b16 %v2779
    %v2901 = vunpack.c.l.b16 %v2780
    %v2902 = vunpack.c.h.b16 %v2780
    %v2903 = vunpack.c.l.b16 %v2781
    %v2904 = vunpack.c.h.b16 %v2781
    %v2905 = vunpack.c.l.b16 %v2782
    %v2906 = vunpack.c.h.b16 %v2782
    %v2907 = vunpack.c.l.b16 %v2783
    %v2908 = vunpack.c.h.b16 %v2783
    %v2909 = vunpack.c.l.b16 %v2784
    %v2910 = vunpack.c.h.b16 %v2784
    %v2911 = vunpack.c.l.b16 %v2785
    %v2912 = vunpack.c.h.b16 %v2785
    %v2913 = vunpack.c.l.b16 %v2786
    %v2914 = vunpack.c.h.b16 %v2786
    %v2915 = vunpack.c.l.b16 %v2787
    %v2916 = vunpack.c.h.b16 %v2787
    %v2917 = vunpack.c.l.b16 %v2788
    %v2918 = vunpack.c.h.b16 %v2788
    %v2919 = vunpack.c.l.b16 %v2789
    %v2920 = vunpack.c.h.b16 %v2789
    %v2921 = vunpack.c.l.b16 %v2790
    %v2922 = vunpack.c.h.b16 %v2790
    %v2923 = vunpack.c.l.b16 %v2791
    %v2924 = vunpack.c.h.b16 %v2791
    %v2925 = vunpack.c.l.b16 %v2792
    %v2926 = vunpack.c.h.b16 %v2792
    %v2927 = vunpack.c.l.b16 %v2793
    %v2928 = vunpack.c.h.b16 %v2793
    %v2929 = vunpack.c.l.b16 %v2794
    %v2930 = vunpack.c.h.b16 %v2794
    %v2931 = vunpack.c.l.b16 %v2795
    %v2932 = vunpack.c.h.b16 %v2795
    %v2933 = vunpack.c.l.b16 %v2796
    %v2934 = vunpack.c.h.b16 %v2796
    %v2935 = vunpack.c.l.b16 %v2797
    %v2936 = vunpack.c.h.b16 %v2797
    %v2937 = vunpack.c.l.b16 %v2798
    %v2938 = vunpack.c.h.b16 %v2798
    %v2939 = vunpack.c.l.b16 %v2799
    %v2940 = vunpack.c.h.b16 %v2799
    %v2941 = vunpack.c.l.b16 %v2800
    %v2942 = vunpack.c.h.b16 %v2800
    %v2943 = vunpack.c.l.b16 %v2801
    %v2944 = vunpack.c.h.b16 %v2801
    %v2945 = vunpack.c.l.b16 %v2802
    %v2946 = vunpack.c.h.b16 %v2802
    %v2947 = vunpack.c.l.b16 %v2803
    %v2948 = vunpack.c.h.b16 %v2803
    %v2949 = vunpack.c.l.b16 %v2804
    %v2950 = vunpack.c.h.b16 %v2804
    %v2951 = vunpack.c.l.b16 %v2805
    %v2952 = vunpack.c.h.b16 %v2805
    %v2953 = vunpack.c.l.b16 %v2806
    %v2954 = vunpack.c.h.b16 %v2806
    %v2955 = vunpack.c.l.b16 %v2807
    %v2956 = vunpack.c.h.b16 %v2807
    %v2957 = vunpack.c.l.b16 %v2808
    %v2958 = vunpack.c.h.b16 %v2808
    %v2959 = vunpack.c.l.b16 %v2809
    %v2960 = vunpack.c.h.b16 %v2809
    %v2961 = vunpack.c.l.b16 %v2810
    %v2962 = vunpack.c.h.b16 %v2810
    %v2963 = vunpack.c.l.b16 %v2811
    %v2964 = vunpack.c.h.b16 %v2811
    %v2965 = vunpack.c.l.b16 %v2812
    %v2966 = vunpack.c.h.b16 %v2812
    %v2967 = vunpack.c.l.b16 %v2813
    %v2968 = vunpack.c.h.b16 %v2813
    %v2969 = vunpack.c.l.b16 %v2814
    %v2970 = vunpack.c.h.b16 %v2814
    %v2971 = vpack.c.b16 %v2877, %v2875
    %v2972 = vpack.c.b16 %v2878, %v2876
    %v2973 = vpack.c.b16 %v2881, %v2879
    %v2974 = vpack.c.b16 %v2882, %v2880
    %v2975 = vpack.c.b16 %v2885, %v2883
    %v2976 = vpack.c.b16 %v2886, %v2884
    %v2977 = vpack.c.b16 %v2889, %v2887
    %v2978 = vpack.c.b16 %v2890, %v2888
    %v2979 = vpack.c.b16 %v2893, %v2891
    %v2980 = vpack.c.b16 %v2894, %v2892
    %v2981 = vpack.c.b16 %v2897, %v2895
    %v2982 = vpack.c.b16 %v2898, %v2896
    %v2983 = vpack.c.b16 %v2901, %v2899
    %v2984 = vpack.c.b16 %v2902, %v2900
    %v2985 = vpack.c.b16 %v2905, %v2903
    %v2986 = vpack.c.b16 %v2906, %v2904
    %v2987 = vpack.c.b16 %v2909, %v2907
    %v2988 = vpack.c.b16 %v2910, %v2908
    %v2989 = vpack.c.b16 %v2913, %v2911
    %v2990 = vpack.c.b16 %v2914, %v2912
    %v2991 = vpack.c.b16 %v2917, %v2915
    %v2992 = vpack.c.b16 %v2918, %v2916
    %v2993 = vpack.c.b16 %v2921, %v2919
    %v2994 = vpack.c.b16 %v2922, %v2920
    %v2995 = vpack.c.b16 %v2925, %v2923
    %v2996 = vpack.c.b16 %v2926, %v2924
    %v2997 = vpack.c.b16 %v2929, %v2927
    %v2998 = vpack.c.b16 %v2930, %v2928
    %v2999 = vpack.c.b16 %v2933, %v2931
    %v3000 = vpack.c.b16 %v2934, %v2932
    %v3001 = vpack.c.b16 %v2937, %v2935
    %v3002 = vpack.c.b16 %v2938, %v2936
    %v3003 = vpack.c.b16 %v2941, %v2939
    %v3004 = vpack.c.b16 %v2942, %v2940
    %v3005 = vpack.c.b16 %v2945, %v2943
    %v3006 = vpack.c.b16 %v2946, %v2944
    %v3007 = vpack.c.b16 %v2949, %v2947
    %v3008 = vpack.c.b16 %v2950, %v2948
    %v3009 = vpack.c.b16 %v2953, %v2951
    %v3010 = vpack.c.b16 %v2954, %v2952
    %v3011 = vpack.c.b16 %v2957, %v2955
    %v3012 = vpack.c.b16 %v2958, %v2956
    %v3013 = vpack.c.b16 %v2961, %v2959
    %v3014 = vpack.c.b16 %v2962, %v2960
    %v3015 = vpack.c.b16 %v2965, %v2963
    %v3016 = vpack.c.b16 %v2966, %v2964
    %v3017 = vpack.c.b16 %v2969, %v2967
    %v3018 = vpack.c.b16 %v2970, %v2968
    %3067 = vmatprep.subr.bf16.mxu0 %v2986
    %3068 = vmatpush1.bf16.msra.mxu0 %v2985
    %3069 = vmatprep.subr.bf16.mxu0 %v2984
    %3070 = vmatpush1.bf16.msra.mxu0 %v2983
    %3071 = vmatprep.subr.bf16.mxu0 %v2982
    %3072 = vmatpush1.bf16.msra.mxu0 %v2981
    %3073 = vmatprep.subr.bf16.mxu0 %v2980
    %3074 = vmatpush1.bf16.msra.mxu0 %v2979
    %3075 = vmatprep.subr.bf16.mxu0 %v2978
    %3076 = vmatpush1.bf16.msra.mxu0 %v2977
    %3077 = vmatprep.subr.bf16.mxu0 %v2976
    %3078 = vmatpush1.bf16.msra.mxu0 %v2975
    %3079 = vmatprep.subr.bf16.mxu0 %v2974
    %3080 = vmatpush1.bf16.msra.mxu0 %v2973
    %3081 = vmatprep.subr.bf16.mxu0 %v2972
    %3082 = vmatpush1.bf16.msra.mxu0 %v2971
    %3083 = vmatprep.subr.bf16.mxu0 %v3002
    %3084 = vmatpush2.bf16.msra.mxu0 %v3001
    %3085 = vmatprep.subr.bf16.mxu0 %v3000
    %3086 = vmatpush2.bf16.msra.mxu0 %v2999
    %3087 = vmatprep.subr.bf16.mxu0 %v2998
    %3088 = vmatpush2.bf16.msra.mxu0 %v2997
    %3089 = vmatprep.subr.bf16.mxu0 %v2996
    %3090 = vmatpush2.bf16.msra.mxu0 %v2995
    %3091 = vmatprep.subr.bf16.mxu0 %v2994
    %3092 = vmatpush2.bf16.msra.mxu0 %v2993
    %3093 = vmatprep.subr.bf16.mxu0 %v2992
    %3094 = vmatpush2.bf16.msra.mxu0 %v2991
    %3095 = vmatprep.subr.bf16.mxu0 %v2990
    %3096 = vmatpush2.bf16.msra.mxu0 %v2989
    %3097 = vmatprep.subr.bf16.mxu0 %v2988
    %3098 = vmatpush2.bf16.msra.mxu0 %v2987
    %3099 = vmatprep.mubr.bf16.mxu0 %v2765
    %3100 = vmatmul.mubr.bf16.gmra.mxu0 %v2764
    %v3101 = vpop.f32.mrf.mxu0
    %v3102 = vadd.f32 %v2820, %v3101
    %v3103 = vpop.f32.mrf.mxu0
    %v3104 = vadd.f32 %v2824, %v3103
    %v3105 = vpop.f32.mrf.mxu0
    %v3106 = vpop.f32.mrf.mxu0
    %3107 = vdwg.mxu0
    %3108 = vmatprep.subr.bf16.mxu0 %v3018
    %3109 = vmatpush1.bf16.msra.mxu0 %v3017
    %3110 = vmatprep.subr.bf16.mxu0 %v3016
    %3111 = vmatpush1.bf16.msra.mxu0 %v3015
    %3112 = vmatprep.subr.bf16.mxu0 %v3014
    %3113 = vmatpush1.bf16.msra.mxu0 %v3013
    %3114 = vmatprep.subr.bf16.mxu0 %v3012
    %3115 = vmatpush1.bf16.msra.mxu0 %v3011
    %3116 = vmatprep.subr.bf16.mxu0 %v3010
    %3117 = vmatpush1.bf16.msra.mxu0 %v3009
    %3118 = vmatprep.subr.bf16.mxu0 %v3008
    %3119 = vmatpush1.bf16.msra.mxu0 %v3007
    %3120 = vmatprep.subr.bf16.mxu0 %v3006
    %3121 = vmatpush1.bf16.msra.mxu0 %v3005
    %3122 = vmatprep.subr.bf16.mxu0 %v3004
    %3123 = vmatpush1.bf16.msra.mxu0 %v3003
    %3124 = vmatprep.subr.bf16.mxu0 0
    %3125 = vmatpush2.bf16.msra.mxu0 0
    %3126 = vmatprep.subr.bf16.mxu0 0
    %3127 = vmatpush2.bf16.msra.mxu0 0
    %3128 = vmatprep.subr.bf16.mxu0 0
    %3129 = vmatpush2.bf16.msra.mxu0 0
    %3130 = vmatprep.subr.bf16.mxu0 0
    %3131 = vmatpush2.bf16.msra.mxu0 0
    %3132 = vmatprep.subr.bf16.mxu0 0
    %3133 = vmatpush2.bf16.msra.mxu0 0
    %3134 = vmatprep.subr.bf16.mxu0 0
    %3135 = vmatpush2.bf16.msra.mxu0 0
    %3136 = vmatprep.subr.bf16.mxu0 0
    %3137 = vmatpush2.bf16.msra.mxu0 0
    %3138 = vmatprep.subr.bf16.mxu0 0
    %3139 = vmatpush2.bf16.msra.mxu0 0
    %3140 = vmatprep.mubr.bf16.mxu0 0
    %3141 = vmatmul.mubr.bf16.gmra.mxu0 %v2766
    %v3142 = vpop.f32.mrf.mxu0
    %v3143 = vadd.f32 %v3102, %v3142
    %v3144 = vpop.f32.mrf.mxu0
    %v3145 = vadd.f32 %v3104, %v3144
    %v3146 = vpop.f32.mrf.mxu0
    %v3147 = vpop.f32.mrf.mxu0
    %3148 = vdwg.mxu0
    %s3149 = smul.u32 0, 128
    %v3150 = vlaneseq
    %v3151 = vshrl.u32 %v3150, 7
    %v3152 = vadd.s32 %v3151, 8
    %v3153 = vadd.s32 %v3151, 16
    %v3154 = vadd.s32 %v3151, 24
    %v3155 = vadd.s32 %v3151, 32
    %v3156 = vadd.s32 %v3151, 40
    %v3157 = vadd.s32 %v3151, 48
    %v3158 = vadd.s32 %v3151, 56
    %v3159 = vadd.s32 %v3151, 64
    %v3160 = vadd.s32 %v3151, 72
    %v3161 = vadd.s32 %v3151, 80
    %v3162 = vadd.s32 %v3151, 88
    %v3163 = vadd.s32 %v3151, 96
    %v3164 = vadd.s32 %v3151, 104
    %v3165 = vadd.s32 %v3151, 112
    %v3166 = vadd.s32 %v3151, 120
    %v3167 = vstv %s3149
    %v3168 = vadd.s32 %v3167, %v3151
    %v3169 = vadd.s32 %v3167, %v3152
    %v3170 = vadd.s32 %v3167, %v3153
    %v3171 = vadd.s32 %v3167, %v3154
    %v3172 = vadd.s32 %v3167, %v3155
    %v3173 = vadd.s32 %v3167, %v3156
    %v3174 = vadd.s32 %v3167, %v3157
    %v3175 = vadd.s32 %v3167, %v3158
    %v3176 = vadd.s32 %v3167, %v3159
    %v3177 = vadd.s32 %v3167, %v3160
    %v3178 = vadd.s32 %v3167, %v3161
    %v3179 = vadd.s32 %v3167, %v3162
    %v3180 = vadd.s32 %v3167, %v3163
    %v3181 = vadd.s32 %v3167, %v3164
    %v3182 = vadd.s32 %v3167, %v3165
    %v3183 = vadd.s32 %v3167, %v3166
    %vm3184 = vcmp.lt.s32.totalorder %v3168, 0
    %v3185 = vsub.s32 0, %v3168
    %v3186 = vsel %vm3184, %v3185, %v3168
    %v3187 = vshrl.u32 %v3186, 1
    %v3188 = vand.u32 %v3186, 1
    %v3189 = vsub.s32 0, %v3188
    %v3190 = vsel %vm3184, %v3189, %v3188
    %vm3191 = vcmp.lt.s32.totalorder %v3169, 0
    %v3192 = vsub.s32 0, %v3169
    %v3193 = vsel %vm3191, %v3192, %v3169
    %v3194 = vshrl.u32 %v3193, 1
    %v3195 = vand.u32 %v3193, 1
    %v3196 = vsub.s32 0, %v3195
    %v3197 = vsel %vm3191, %v3196, %v3195
    %vm3198 = vcmp.lt.s32.totalorder %v3170, 0
    %v3199 = vsub.s32 0, %v3170
    %v3200 = vsel %vm3198, %v3199, %v3170
    %v3201 = vshrl.u32 %v3200, 1
    %v3202 = vand.u32 %v3200, 1
    %v3203 = vsub.s32 0, %v3202
    %v3204 = vsel %vm3198, %v3203, %v3202
    %vm3205 = vcmp.lt.s32.totalorder %v3171, 0
    %v3206 = vsub.s32 0, %v3171
    %v3207 = vsel %vm3205, %v3206, %v3171
    %v3208 = vshrl.u32 %v3207, 1
    %v3209 = vand.u32 %v3207, 1
    %v3210 = vsub.s32 0, %v3209
    %v3211 = vsel %vm3205, %v3210, %v3209
    %vm3212 = vcmp.lt.s32.totalorder %v3172, 0
    %v3213 = vsub.s32 0, %v3172
    %v3214 = vsel %vm3212, %v3213, %v3172
    %v3215 = vshrl.u32 %v3214, 1
    %v3216 = vand.u32 %v3214, 1
    %v3217 = vsub.s32 0, %v3216
    %v3218 = vsel %vm3212, %v3217, %v3216
    %vm3219 = vcmp.lt.s32.totalorder %v3173, 0
    %v3220 = vsub.s32 0, %v3173
    %v3221 = vsel %vm3219, %v3220, %v3173
    %v3222 = vshrl.u32 %v3221, 1
    %v3223 = vand.u32 %v3221, 1
    %v3224 = vsub.s32 0, %v3223
    %v3225 = vsel %vm3219, %v3224, %v3223
    %vm3226 = vcmp.lt.s32.totalorder %v3174, 0
    %v3227 = vsub.s32 0, %v3174
    %v3228 = vsel %vm3226, %v3227, %v3174
    %v3229 = vshrl.u32 %v3228, 1
    %v3230 = vand.u32 %v3228, 1
    %v3231 = vsub.s32 0, %v3230
    %v3232 = vsel %vm3226, %v3231, %v3230
    %vm3233 = vcmp.lt.s32.totalorder %v3175, 0
    %v3234 = vsub.s32 0, %v3175
    %v3235 = vsel %vm3233, %v3234, %v3175
    %v3236 = vshrl.u32 %v3235, 1
    %v3237 = vand.u32 %v3235, 1
    %v3238 = vsub.s32 0, %v3237
    %v3239 = vsel %vm3233, %v3238, %v3237
    %vm3240 = vcmp.lt.s32.totalorder %v3176, 0
    %v3241 = vsub.s32 0, %v3176
    %v3242 = vsel %vm3240, %v3241, %v3176
    %v3243 = vshrl.u32 %v3242, 1
    %v3244 = vand.u32 %v3242, 1
    %v3245 = vsub.s32 0, %v3244
    %v3246 = vsel %vm3240, %v3245, %v3244
    %vm3247 = vcmp.lt.s32.totalorder %v3177, 0
    %v3248 = vsub.s32 0, %v3177
    %v3249 = vsel %vm3247, %v3248, %v3177
    %v3250 = vshrl.u32 %v3249, 1
    %v3251 = vand.u32 %v3249, 1
    %v3252 = vsub.s32 0, %v3251
    %v3253 = vsel %vm3247, %v3252, %v3251
    %vm3254 = vcmp.lt.s32.totalorder %v3178, 0
    %v3255 = vsub.s32 0, %v3178
    %v3256 = vsel %vm3254, %v3255, %v3178
    %v3257 = vshrl.u32 %v3256, 1
    %v3258 = vand.u32 %v3256, 1
    %v3259 = vsub.s32 0, %v3258
    %v3260 = vsel %vm3254, %v3259, %v3258
    %vm3261 = vcmp.lt.s32.totalorder %v3179, 0
    %v3262 = vsub.s32 0, %v3179
    %v3263 = vsel %vm3261, %v3262, %v3179
    %v3264 = vshrl.u32 %v3263, 1
    %v3265 = vand.u32 %v3263, 1
    %v3266 = vsub.s32 0, %v3265
    %v3267 = vsel %vm3261, %v3266, %v3265
    %vm3268 = vcmp.lt.s32.totalorder %v3180, 0
    %v3269 = vsub.s32 0, %v3180
    %v3270 = vsel %vm3268, %v3269, %v3180
    %v3271 = vshrl.u32 %v3270, 1
    %v3272 = vand.u32 %v3270, 1
    %v3273 = vsub.s32 0, %v3272
    %v3274 = vsel %vm3268, %v3273, %v3272
    %vm3275 = vcmp.lt.s32.totalorder %v3181, 0
    %v3276 = vsub.s32 0, %v3181
    %v3277 = vsel %vm3275, %v3276, %v3181
    %v3278 = vshrl.u32 %v3277, 1
    %v3279 = vand.u32 %v3277, 1
    %v3280 = vsub.s32 0, %v3279
    %v3281 = vsel %vm3275, %v3280, %v3279
    %vm3282 = vcmp.lt.s32.totalorder %v3182, 0
    %v3283 = vsub.s32 0, %v3182
    %v3284 = vsel %vm3282, %v3283, %v3182
    %v3285 = vshrl.u32 %v3284, 1
    %v3286 = vand.u32 %v3284, 1
    %v3287 = vsub.s32 0, %v3286
    %v3288 = vsel %vm3282, %v3287, %v3286
    %vm3289 = vcmp.lt.s32.totalorder %v3183, 0
    %v3290 = vsub.s32 0, %v3183
    %v3291 = vsel %vm3289, %v3290, %v3183
    %v3292 = vshrl.u32 %v3291, 1
    %v3293 = vand.u32 %v3291, 1
    %v3294 = vsub.s32 0, %v3293
    %v3295 = vsel %vm3289, %v3294, %v3293
    %vm3296 = vcmp.ne.s32.totalorder %v3190, 0
    %vm3297 = vcmp.ne.s32.totalorder %v3197, 0
    %vm3298 = vcmp.ne.s32.totalorder %v3204, 0
    %vm3299 = vcmp.ne.s32.totalorder %v3211, 0
    %vm3300 = vcmp.ne.s32.totalorder %v3218, 0
    %vm3301 = vcmp.ne.s32.totalorder %v3225, 0
    %vm3302 = vcmp.ne.s32.totalorder %v3232, 0
    %vm3303 = vcmp.ne.s32.totalorder %v3239, 0
    %vm3304 = vcmp.ne.s32.totalorder %v3246, 0
    %vm3305 = vcmp.ne.s32.totalorder %v3253, 0
    %vm3306 = vcmp.ne.s32.totalorder %v3260, 0
    %vm3307 = vcmp.ne.s32.totalorder %v3267, 0
    %vm3308 = vcmp.ne.s32.totalorder %v3274, 0
    %vm3309 = vcmp.ne.s32.totalorder %v3281, 0
    %vm3310 = vcmp.ne.s32.totalorder %v3288, 0
    %vm3311 = vcmp.ne.s32.totalorder %v3295, 0
    %vm3312 = vcmp.lt.s32.totalorder %v3190, 0
    %vm3313 = vcmp.lt.s32.totalorder %v3197, 0
    %vm3314 = vcmp.lt.s32.totalorder %v3204, 0
    %vm3315 = vcmp.lt.s32.totalorder %v3211, 0
    %vm3316 = vcmp.lt.s32.totalorder %v3218, 0
    %vm3317 = vcmp.lt.s32.totalorder %v3225, 0
    %vm3318 = vcmp.lt.s32.totalorder %v3232, 0
    %vm3319 = vcmp.lt.s32.totalorder %v3239, 0
    %vm3320 = vcmp.lt.s32.totalorder %v3246, 0
    %vm3321 = vcmp.lt.s32.totalorder %v3253, 0
    %vm3322 = vcmp.lt.s32.totalorder %v3260, 0
    %vm3323 = vcmp.lt.s32.totalorder %v3267, 0
    %vm3324 = vcmp.lt.s32.totalorder %v3274, 0
    %vm3325 = vcmp.lt.s32.totalorder %v3281, 0
    %vm3326 = vcmp.lt.s32.totalorder %v3288, 0
    %vm3327 = vcmp.lt.s32.totalorder %v3295, 0
    %vm3328 = vmand %vm3312, %vm3296
    %vm3329 = vmand %vm3313, %vm3297
    %vm3330 = vmand %vm3314, %vm3298
    %vm3331 = vmand %vm3315, %vm3299
    %vm3332 = vmand %vm3316, %vm3300
    %vm3333 = vmand %vm3317, %vm3301
    %vm3334 = vmand %vm3318, %vm3302
    %vm3335 = vmand %vm3319, %vm3303
    %vm3336 = vmand %vm3320, %vm3304
    %vm3337 = vmand %vm3321, %vm3305
    %vm3338 = vmand %vm3322, %vm3306
    %vm3339 = vmand %vm3323, %vm3307
    %vm3340 = vmand %vm3324, %vm3308
    %vm3341 = vmand %vm3325, %vm3309
    %vm3342 = vmand %vm3326, %vm3310
    %vm3343 = vmand %vm3327, %vm3311
    %v3344 = vadd.s32 %v3190, 2
    %v3345 = vadd.s32 %v3197, 2
    %v3346 = vadd.s32 %v3204, 2
    %v3347 = vadd.s32 %v3211, 2
    %v3348 = vadd.s32 %v3218, 2
    %v3349 = vadd.s32 %v3225, 2
    %v3350 = vadd.s32 %v3232, 2
    %v3351 = vadd.s32 %v3239, 2
    %v3352 = vadd.s32 %v3246, 2
    %v3353 = vadd.s32 %v3253, 2
    %v3354 = vadd.s32 %v3260, 2
    %v3355 = vadd.s32 %v3267, 2
    %v3356 = vadd.s32 %v3274, 2
    %v3357 = vadd.s32 %v3281, 2
    %v3358 = vadd.s32 %v3288, 2
    %v3359 = vadd.s32 %v3295, 2
    %v3360 = vsel %vm3328, %v3344, %v3190
    %v3361 = vsel %vm3329, %v3345, %v3197
    %v3362 = vsel %vm3330, %v3346, %v3204
    %v3363 = vsel %vm3331, %v3347, %v3211
    %v3364 = vsel %vm3332, %v3348, %v3218
    %v3365 = vsel %vm3333, %v3349, %v3225
    %v3366 = vsel %vm3334, %v3350, %v3232
    %v3367 = vsel %vm3335, %v3351, %v3239
    %v3368 = vsel %vm3336, %v3352, %v3246
    %v3369 = vsel %vm3337, %v3353, %v3253
    %v3370 = vsel %vm3338, %v3354, %v3260
    %v3371 = vsel %vm3339, %v3355, %v3267
    %v3372 = vsel %vm3340, %v3356, %v3274
    %v3373 = vsel %vm3341, %v3357, %v3281
    %v3374 = vsel %vm3342, %v3358, %v3288
    %v3375 = vsel %vm3343, %v3359, %v3295
    %vm3376 = vcmp.eq.s32.totalorder %v3360, 0
    %vm3377 = vcmp.eq.s32.totalorder %v3361, 0
    %vm3378 = vcmp.eq.s32.totalorder %v3362, 0
    %vm3379 = vcmp.eq.s32.totalorder %v3363, 0
    %vm3380 = vcmp.eq.s32.totalorder %v3364, 0
    %vm3381 = vcmp.eq.s32.totalorder %v3365, 0
    %vm3382 = vcmp.eq.s32.totalorder %v3366, 0
    %vm3383 = vcmp.eq.s32.totalorder %v3367, 0
    %vm3384 = vcmp.eq.s32.totalorder %v3368, 0
    %vm3385 = vcmp.eq.s32.totalorder %v3369, 0
    %vm3386 = vcmp.eq.s32.totalorder %v3370, 0
    %vm3387 = vcmp.eq.s32.totalorder %v3371, 0
    %vm3388 = vcmp.eq.s32.totalorder %v3372, 0
    %vm3389 = vcmp.eq.s32.totalorder %v3373, 0
    %vm3390 = vcmp.eq.s32.totalorder %v3374, 0
    %vm3391 = vcmp.eq.s32.totalorder %v3375, 0
    %v3392 = vlaneseq
    %v3393 = vshrl.u32 %v3392, 7
    %v3394 = vsub.s32 0, %v3393
    %v3395 = vrot.slane %v3143, %v3394
    %v3396 = vlaneseq
    %v3397 = vshrl.u32 %v3396, 7
    %v3398 = vsub.s32 0, %v3397
    %v3399 = vrot.slane %v3145, %v3398
    %v3400 = vsel %vm3376, %v3395, 0.0
    %v3401 = vsel %vm3376, %v3399, 0.0
    %v3402 = vsel %vm3377, %v3395, 0.0
    %v3403 = vsel %vm3377, %v3399, 0.0
    %v3404 = vsel %vm3378, %v3395, 0.0
    %v3405 = vsel %vm3378, %v3399, 0.0
    %v3406 = vsel %vm3379, %v3395, 0.0
    %v3407 = vsel %vm3379, %v3399, 0.0
    %v3408 = vsel %vm3380, %v3395, 0.0
    %v3409 = vsel %vm3380, %v3399, 0.0
    %v3410 = vsel %vm3381, %v3395, 0.0
    %v3411 = vsel %vm3381, %v3399, 0.0
    %v3412 = vsel %vm3382, %v3395, 0.0
    %v3413 = vsel %vm3382, %v3399, 0.0
    %v3414 = vsel %vm3383, %v3395, 0.0
    %v3415 = vsel %vm3383, %v3399, 0.0
    %v3416 = vsel %vm3384, %v3395, 0.0
    %v3417 = vsel %vm3384, %v3399, 0.0
    %v3418 = vsel %vm3385, %v3395, 0.0
    %v3419 = vsel %vm3385, %v3399, 0.0
    %v3420 = vsel %vm3386, %v3395, 0.0
    %v3421 = vsel %vm3386, %v3399, 0.0
    %v3422 = vsel %vm3387, %v3395, 0.0
    %v3423 = vsel %vm3387, %v3399, 0.0
    %v3424 = vsel %vm3388, %v3395, 0.0
    %v3425 = vsel %vm3388, %v3399, 0.0
    %v3426 = vsel %vm3389, %v3395, 0.0
    %v3427 = vsel %vm3389, %v3399, 0.0
    %v3428 = vsel %vm3390, %v3395, 0.0
    %v3429 = vsel %vm3390, %v3399, 0.0
    %v3430 = vsel %vm3391, %v3395, 0.0
    %v3431 = vsel %vm3391, %v3399, 0.0
    %vm3432 = vcmp.eq.s32.totalorder %v3360, 1
    %vm3433 = vcmp.eq.s32.totalorder %v3361, 1
    %vm3434 = vcmp.eq.s32.totalorder %v3362, 1
    %vm3435 = vcmp.eq.s32.totalorder %v3363, 1
    %vm3436 = vcmp.eq.s32.totalorder %v3364, 1
    %vm3437 = vcmp.eq.s32.totalorder %v3365, 1
    %vm3438 = vcmp.eq.s32.totalorder %v3366, 1
    %vm3439 = vcmp.eq.s32.totalorder %v3367, 1
    %vm3440 = vcmp.eq.s32.totalorder %v3368, 1
    %vm3441 = vcmp.eq.s32.totalorder %v3369, 1
    %vm3442 = vcmp.eq.s32.totalorder %v3370, 1
    %vm3443 = vcmp.eq.s32.totalorder %v3371, 1
    %vm3444 = vcmp.eq.s32.totalorder %v3372, 1
    %vm3445 = vcmp.eq.s32.totalorder %v3373, 1
    %vm3446 = vcmp.eq.s32.totalorder %v3374, 1
    %vm3447 = vcmp.eq.s32.totalorder %v3375, 1
    %v3448 = vlaneseq
    %v3449 = vshrl.u32 %v3448, 7
    %v3450 = vsub.s32 1, %v3449
    %v3451 = vrot.slane %v3143, %v3450
    %v3452 = vlaneseq
    %v3453 = vshrl.u32 %v3452, 7
    %v3454 = vsub.s32 1, %v3453
    %v3455 = vrot.slane %v3145, %v3454
    %v3456 = vsel %vm3432, %v3451, %v3400
    %v3457 = vsel %vm3432, %v3455, %v3401
    %v3458 = vsel %vm3433, %v3451, %v3402
    %v3459 = vsel %vm3433, %v3455, %v3403
    %v3460 = vsel %vm3434, %v3451, %v3404
    %v3461 = vsel %vm3434, %v3455, %v3405
    %v3462 = vsel %vm3435, %v3451, %v3406
    %v3463 = vsel %vm3435, %v3455, %v3407
    %v3464 = vsel %vm3436, %v3451, %v3408
    %v3465 = vsel %vm3436, %v3455, %v3409
    %v3466 = vsel %vm3437, %v3451, %v3410
    %v3467 = vsel %vm3437, %v3455, %v3411
    %v3468 = vsel %vm3438, %v3451, %v3412
    %v3469 = vsel %vm3438, %v3455, %v3413
    %v3470 = vsel %vm3439, %v3451, %v3414
    %v3471 = vsel %vm3439, %v3455, %v3415
    %v3472 = vsel %vm3440, %v3451, %v3416
    %v3473 = vsel %vm3440, %v3455, %v3417
    %v3474 = vsel %vm3441, %v3451, %v3418
    %v3475 = vsel %vm3441, %v3455, %v3419
    %v3476 = vsel %vm3442, %v3451, %v3420
    %v3477 = vsel %vm3442, %v3455, %v3421
    %v3478 = vsel %vm3443, %v3451, %v3422
    %v3479 = vsel %vm3443, %v3455, %v3423
    %v3480 = vsel %vm3444, %v3451, %v3424
    %v3481 = vsel %vm3444, %v3455, %v3425
    %v3482 = vsel %vm3445, %v3451, %v3426
    %v3483 = vsel %vm3445, %v3455, %v3427
    %v3484 = vsel %vm3446, %v3451, %v3428
    %v3485 = vsel %vm3446, %v3455, %v3429
    %v3486 = vsel %vm3447, %v3451, %v3430
    %v3487 = vsel %vm3447, %v3455, %v3431
    %3488 = vst [vmem:[%s20] sm:$0xff] %v3456
    %3489 = vst [vmem:[%s20 + $0x8] sm:$0xff] %v3458
    %3490 = vst [vmem:[%s20 + $0x10] sm:$0xff] %v3460
    %3491 = vst [vmem:[%s20 + $0x18] sm:$0xff] %v3462
    %3492 = vst [vmem:[%s20 + $0x20] sm:$0xff] %v3464
    %3493 = vst [vmem:[%s20 + $0x28] sm:$0xff] %v3466
    %3494 = vst [vmem:[%s20 + $0x30] sm:$0xff] %v3468
    %3495 = vst [vmem:[%s20 + $0x38] sm:$0xff] %v3470
    %3496 = vst [vmem:[%s20 + $0x40] sm:$0xff] %v3472
    %3497 = vst [vmem:[%s20 + $0x48] sm:$0xff] %v3474
    %3498 = vst [vmem:[%s20 + $0x50] sm:$0xff] %v3476
    %3499 = vst [vmem:[%s20 + $0x58] sm:$0xff] %v3478
    %3500 = vst [vmem:[%s20 + $0x60] sm:$0xff] %v3480
    %3501 = vst [vmem:[%s20 + $0x68] sm:$0xff] %v3482
    %3502 = vst [vmem:[%s20 + $0x70] sm:$0xff] %v3484
    %3503 = vst [vmem:[%s20 + $0x78] sm:$0xff] %v3486
    %3504 = vst [vmem:[%s21] sm:$0xff] %v3457
    %3505 = vst [vmem:[%s21 + $0x8] sm:$0xff] %v3459
    %3506 = vst [vmem:[%s21 + $0x10] sm:$0xff] %v3461
    %3507 = vst [vmem:[%s21 + $0x18] sm:$0xff] %v3463
    %3508 = vst [vmem:[%s21 + $0x20] sm:$0xff] %v3465
    %3509 = vst [vmem:[%s21 + $0x28] sm:$0xff] %v3467
    %3510 = vst [vmem:[%s21 + $0x30] sm:$0xff] %v3469
    %3511 = vst [vmem:[%s21 + $0x38] sm:$0xff] %v3471
    %3512 = vst [vmem:[%s21 + $0x40] sm:$0xff] %v3473
    %3513 = vst [vmem:[%s21 + $0x48] sm:$0xff] %v3475
    %3514 = vst [vmem:[%s21 + $0x50] sm:$0xff] %v3477
    %3515 = vst [vmem:[%s21 + $0x58] sm:$0xff] %v3479
    %3516 = vst [vmem:[%s21 + $0x60] sm:$0xff] %v3481
    %3517 = vst [vmem:[%s21 + $0x68] sm:$0xff] %v3483
    %3518 = vst [vmem:[%s21 + $0x70] sm:$0xff] %v3485
    %3519 = vst [vmem:[%s21 + $0x78] sm:$0xff] %v3487
    %v3520 = vmul.f32 %v3457, 0.5
    %v3521 = vmul.f32 %v3459, 0.5
    %v3522 = vmul.f32 %v3461, 0.5
    %v3523 = vmul.f32 %v3463, 0.5
    %v3524 = vmul.f32 %v3465, 0.5
    %v3525 = vmul.f32 %v3467, 0.5
    %v3526 = vmul.f32 %v3469, 0.5
    %v3527 = vmul.f32 %v3471, 0.5
    %v3528 = vmul.f32 %v3473, 0.5
    %v3529 = vmul.f32 %v3475, 0.5
    %v3530 = vmul.f32 %v3477, 0.5
    %v3531 = vmul.f32 %v3479, 0.5
    %v3532 = vmul.f32 %v3481, 0.5
    %v3533 = vmul.f32 %v3483, 0.5
    %v3534 = vmul.f32 %v3485, 0.5
    %v3535 = vmul.f32 %v3487, 0.5
    %v3536 = vmul.f32 %v3520, 1.442695
    %v3537 = vpow.pop %v3536
    %v3538 = vmul.f32 %v3521, 1.442695
    %v3539 = vpow.pop %v3538
    %v3540 = vmul.f32 %v3522, 1.442695
    %v3541 = vpow.pop %v3540
    %v3542 = vmul.f32 %v3523, 1.442695
    %v3543 = vpow.pop %v3542
    %v3544 = vmul.f32 %v3524, 1.442695
    %v3545 = vpow.pop %v3544
    %v3546 = vmul.f32 %v3525, 1.442695
    %v3547 = vpow.pop %v3546
    %v3548 = vmul.f32 %v3526, 1.442695
    %v3549 = vpow.pop %v3548
    %v3550 = vmul.f32 %v3527, 1.442695
    %v3551 = vpow.pop %v3550
    %v3552 = vmul.f32 %v3528, 1.442695
    %v3553 = vpow.pop %v3552
    %v3554 = vmul.f32 %v3529, 1.442695
    %v3555 = vpow.pop %v3554
    %v3556 = vmul.f32 %v3530, 1.442695
    %v3557 = vpow.pop %v3556
    %v3558 = vmul.f32 %v3531, 1.442695
    %v3559 = vpow.pop %v3558
    %v3560 = vmul.f32 %v3532, 1.442695
    %v3561 = vpow.pop %v3560
    %v3562 = vmul.f32 %v3533, 1.442695
    %v3563 = vpow.pop %v3562
    %v3564 = vmul.f32 %v3534, 1.442695
    %v3565 = vpow.pop %v3564
    %v3566 = vmul.f32 %v3535, 1.442695
    %v3567 = vpow.pop %v3566
    %v3568 = vld [vmem:[%s9] sm:$0xff]
    %v3569 = vld [vmem:[%s9 + $0x8] sm:$0xff]
    %v3570 = vld [vmem:[%s9 + $0x10] sm:$0xff]
    %v3571 = vld [vmem:[%s9 + $0x18] sm:$0xff]
    %v3572 = vld [vmem:[%s9 + $0x20] sm:$0xff]
    %v3573 = vld [vmem:[%s9 + $0x28] sm:$0xff]
    %v3574 = vld [vmem:[%s9 + $0x30] sm:$0xff]
    %v3575 = vld [vmem:[%s9 + $0x38] sm:$0xff]
    %v3576 = vld [vmem:[%s9 + $0x40] sm:$0xff]
    %v3577 = vld [vmem:[%s9 + $0x48] sm:$0xff]
    %v3578 = vld [vmem:[%s9 + $0x50] sm:$0xff]
    %v3579 = vld [vmem:[%s9 + $0x58] sm:$0xff]
    %v3580 = vld [vmem:[%s9 + $0x60] sm:$0xff]
    %v3581 = vld [vmem:[%s9 + $0x68] sm:$0xff]
    %v3582 = vld [vmem:[%s9 + $0x70] sm:$0xff]
    %v3583 = vld [vmem:[%s9 + $0x78] sm:$0xff]
    %v3584 = vmul.f32 %v3537, %v3568
    %v3585 = vmul.f32 %v3539, %v3569
    %v3586 = vmul.f32 %v3541, %v3570
    %v3587 = vmul.f32 %v3543, %v3571
    %v3588 = vmul.f32 %v3545, %v3572
    %v3589 = vmul.f32 %v3547, %v3573
    %v3590 = vmul.f32 %v3549, %v3574
    %v3591 = vmul.f32 %v3551, %v3575
    %v3592 = vmul.f32 %v3553, %v3576
    %v3593 = vmul.f32 %v3555, %v3577
    %v3594 = vmul.f32 %v3557, %v3578
    %v3595 = vmul.f32 %v3559, %v3579
    %v3596 = vmul.f32 %v3561, %v3580
    %v3597 = vmul.f32 %v3563, %v3581
    %v3598 = vmul.f32 %v3565, %v3582
    %v3599 = vmul.f32 %v3567, %v3583
    %v3600 = vadd.f32 %v3456, %v3584
    %v3601 = vadd.f32 %v3458, %v3585
    %v3602 = vadd.f32 %v3460, %v3586
    %v3603 = vadd.f32 %v3462, %v3587
    %v3604 = vadd.f32 %v3464, %v3588
    %v3605 = vadd.f32 %v3466, %v3589
    %v3606 = vadd.f32 %v3468, %v3590
    %v3607 = vadd.f32 %v3470, %v3591
    %v3608 = vadd.f32 %v3472, %v3592
    %v3609 = vadd.f32 %v3474, %v3593
    %v3610 = vadd.f32 %v3476, %v3594
    %v3611 = vadd.f32 %v3478, %v3595
    %v3612 = vadd.f32 %v3480, %v3596
    %v3613 = vadd.f32 %v3482, %v3597
    %v3614 = vadd.f32 %v3484, %v3598
    %v3615 = vadd.f32 %v3486, %v3599
    %3616 = vst [vmem:[%s19] sm:$0xff] %v3600
    %3617 = vst [vmem:[%s19 + $0x8] sm:$0xff] %v3601
    %3618 = vst [vmem:[%s19 + $0x10] sm:$0xff] %v3602
    %3619 = vst [vmem:[%s19 + $0x18] sm:$0xff] %v3603
    %3620 = vst [vmem:[%s19 + $0x20] sm:$0xff] %v3604
    %3621 = vst [vmem:[%s19 + $0x28] sm:$0xff] %v3605
    %3622 = vst [vmem:[%s19 + $0x30] sm:$0xff] %v3606
    %3623 = vst [vmem:[%s19 + $0x38] sm:$0xff] %v3607
    %3624 = vst [vmem:[%s19 + $0x40] sm:$0xff] %v3608
    %3625 = vst [vmem:[%s19 + $0x48] sm:$0xff] %v3609
    %3626 = vst [vmem:[%s19 + $0x50] sm:$0xff] %v3610
    %3627 = vst [vmem:[%s19 + $0x58] sm:$0xff] %v3611
    %3628 = vst [vmem:[%s19 + $0x60] sm:$0xff] %v3612
    %3629 = vst [vmem:[%s19 + $0x68] sm:$0xff] %v3613
    %3630 = vst [vmem:[%s19 + $0x70] sm:$0xff] %v3614
    %3631 = vst [vmem:[%s19 + $0x78] sm:$0xff] %v3615
    %v3632 = vpack.c.bf16 %v3601, %v3600
    %v3633 = vpack.c.bf16 %v3603, %v3602
    %v3634 = vpack.c.bf16 %v3605, %v3604
    %v3635 = vpack.c.bf16 %v3607, %v3606
    %v3636 = vpack.c.bf16 %v3609, %v3608
    %v3637 = vpack.c.bf16 %v3611, %v3610
    %v3638 = vpack.c.bf16 %v3613, %v3612
    %v3639 = vpack.c.bf16 %v3615, %v3614
    %v3640 = vld [vmem:[%s10] sm:$0xff]
    %v3641 = vld [vmem:[%s10 + $0x8] sm:$0xf]
    %v3642 = vld [vmem:[%s10 + $0xc] sm:$0xff]
    %v3643 = vld [vmem:[%s10 + $0x14] sm:$0xf]
    %v3644 = vld [vmem:[%s10 + $0x18] sm:$0xff]
    %v3645 = vld [vmem:[%s10 + $0x20] sm:$0xf]
    %v3646 = vld [vmem:[%s10 + $0x24] sm:$0xff]
    %v3647 = vld [vmem:[%s10 + $0x2c] sm:$0xf]
    %v3648 = vld [vmem:[%s10 + $0x30] sm:$0xff]
    %v3649 = vld [vmem:[%s10 + $0x38] sm:$0xf]
    %v3650 = vld [vmem:[%s10 + $0x3c] sm:$0xff]
    %v3651 = vld [vmem:[%s10 + $0x44] sm:$0xf]
    %v3652 = vld [vmem:[%s10 + $0x48] sm:$0xff]
    %v3653 = vld [vmem:[%s10 + $0x50] sm:$0xf]
    %v3654 = vld [vmem:[%s10 + $0x54] sm:$0xff]
    %v3655 = vld [vmem:[%s10 + $0x5c] sm:$0xf]
    %v3656 = vld [vmem:[%s10 + $0x60] sm:$0xff]
    %v3657 = vld [vmem:[%s10 + $0x68] sm:$0xf]
    %v3658 = vld [vmem:[%s10 + $0x6c] sm:$0xff]
    %v3659 = vld [vmem:[%s10 + $0x74] sm:$0xf]
    %v3660 = vld [vmem:[%s10 + $0x78] sm:$0xff]
    %v3661 = vld [vmem:[%s10 + $0x80] sm:$0xf]
    %v3662 = vld [vmem:[%s10 + $0x84] sm:$0xff]
    %v3663 = vld [vmem:[%s10 + $0x8c] sm:$0xf]
    %v3664 = vld [vmem:[%s10 + $0x90] sm:$0xff]
    %v3665 = vld [vmem:[%s10 + $0x98] sm:$0xf]
    %v3666 = vld [vmem:[%s10 + $0x9c] sm:$0xff]
    %v3667 = vld [vmem:[%s10 + $0xa4] sm:$0xf]
    %v3668 = vld [vmem:[%s10 + $0xa8] sm:$0xff]
    %v3669 = vld [vmem:[%s10 + $0xb0] sm:$0xf]
    %v3670 = vld [vmem:[%s10 + $0xb4] sm:$0xff]
    %v3671 = vld [vmem:[%s10 + $0xbc] sm:$0xf]
    %v3672 = vld [vmem:[%s11] sm:$0x7]
    %v3674 = vlaneseq
    %v3675 = vshrl.u32 %v3674, 7
    %v3676 = vsub.s32 0, %v3675
    %v3677 = vrot.slane %v3672, %v3676
    %v3678 = vlaneseq
    %v3679 = vshrl.u32 %v3678, 7
    %v3680 = vsub.s32 1, %v3679
    %v3681 = vrot.slane %v3672, %v3680
    %v3682 = vlaneseq
    %v3683 = vshrl.u32 %v3682, 7
    %v3684 = vsub.s32 2, %v3683
    %v3685 = vrot.slane %v3672, %v3684
    %v3721 = vunpack.c.l.b16 %v3640
    %v3722 = vunpack.c.h.b16 %v3640
    %v3723 = vunpack.c.l.b16 %v3641
    %v3724 = vunpack.c.l.b16 %v3642
    %v3725 = vunpack.c.h.b16 %v3642
    %v3726 = vunpack.c.l.b16 %v3643
    %v3727 = vunpack.c.l.b16 %v3644
    %v3728 = vunpack.c.h.b16 %v3644
    %v3729 = vunpack.c.l.b16 %v3645
    %v3730 = vunpack.c.l.b16 %v3646
    %v3731 = vunpack.c.h.b16 %v3646
    %v3732 = vunpack.c.l.b16 %v3647
    %v3733 = vunpack.c.l.b16 %v3648
    %v3734 = vunpack.c.h.b16 %v3648
    %v3735 = vunpack.c.l.b16 %v3649
    %v3736 = vunpack.c.l.b16 %v3650
    %v3737 = vunpack.c.h.b16 %v3650
    %v3738 = vunpack.c.l.b16 %v3651
    %v3739 = vunpack.c.l.b16 %v3652
    %v3740 = vunpack.c.h.b16 %v3652
    %v3741 = vunpack.c.l.b16 %v3653
    %v3742 = vunpack.c.l.b16 %v3654
    %v3743 = vunpack.c.h.b16 %v3654
    %v3744 = vunpack.c.l.b16 %v3655
    %v3745 = vunpack.c.l.b16 %v3656
    %v3746 = vunpack.c.h.b16 %v3656
    %v3747 = vunpack.c.l.b16 %v3657
    %v3748 = vunpack.c.l.b16 %v3658
    %v3749 = vunpack.c.h.b16 %v3658
    %v3750 = vunpack.c.l.b16 %v3659
    %v3751 = vunpack.c.l.b16 %v3660
    %v3752 = vunpack.c.h.b16 %v3660
    %v3753 = vunpack.c.l.b16 %v3661
    %v3754 = vunpack.c.l.b16 %v3662
    %v3755 = vunpack.c.h.b16 %v3662
    %v3756 = vunpack.c.l.b16 %v3663
    %v3757 = vunpack.c.l.b16 %v3664
    %v3758 = vunpack.c.h.b16 %v3664
    %v3759 = vunpack.c.l.b16 %v3665
    %v3760 = vunpack.c.l.b16 %v3666
    %v3761 = vunpack.c.h.b16 %v3666
    %v3762 = vunpack.c.l.b16 %v3667
    %v3763 = vunpack.c.l.b16 %v3668
    %v3764 = vunpack.c.h.b16 %v3668
    %v3765 = vunpack.c.l.b16 %v3669
    %v3766 = vunpack.c.l.b16 %v3670
    %v3767 = vunpack.c.h.b16 %v3670
    %v3768 = vunpack.c.l.b16 %v3671
    %v3769 = vpack.c.b16 %v3724, %v3721
    %v3770 = vpack.c.b16 %v3725, %v3722
    %v3771 = vpack.c.b16 %v3726, %v3723
    %v3772 = vpack.c.b16 %v3730, %v3727
    %v3773 = vpack.c.b16 %v3731, %v3728
    %v3774 = vpack.c.b16 %v3732, %v3729
    %v3775 = vpack.c.b16 %v3736, %v3733
    %v3776 = vpack.c.b16 %v3737, %v3734
    %v3777 = vpack.c.b16 %v3738, %v3735
    %v3778 = vpack.c.b16 %v3742, %v3739
    %v3779 = vpack.c.b16 %v3743, %v3740
    %v3780 = vpack.c.b16 %v3744, %v3741
    %v3781 = vpack.c.b16 %v3748, %v3745
    %v3782 = vpack.c.b16 %v3749, %v3746
    %v3783 = vpack.c.b16 %v3750, %v3747
    %v3784 = vpack.c.b16 %v3754, %v3751
    %v3785 = vpack.c.b16 %v3755, %v3752
    %v3786 = vpack.c.b16 %v3756, %v3753
    %v3787 = vpack.c.b16 %v3760, %v3757
    %v3788 = vpack.c.b16 %v3761, %v3758
    %v3789 = vpack.c.b16 %v3762, %v3759
    %v3790 = vpack.c.b16 %v3766, %v3763
    %v3791 = vpack.c.b16 %v3767, %v3764
    %v3792 = vpack.c.b16 %v3768, %v3765
    %3817 = vmatprep.subr.bf16.mxu0 %v3791
    %3818 = vmatpush1.bf16.msra.mxu0 %v3790
    %3819 = vmatprep.subr.bf16.mxu0 %v3788
    %3820 = vmatpush1.bf16.msra.mxu0 %v3787
    %3821 = vmatprep.subr.bf16.mxu0 %v3785
    %3822 = vmatpush1.bf16.msra.mxu0 %v3784
    %3823 = vmatprep.subr.bf16.mxu0 %v3782
    %3824 = vmatpush1.bf16.msra.mxu0 %v3781
    %3825 = vmatprep.subr.bf16.mxu0 %v3779
    %3826 = vmatpush1.bf16.msra.mxu0 %v3778
    %3827 = vmatprep.subr.bf16.mxu0 %v3776
    %3828 = vmatpush1.bf16.msra.mxu0 %v3775
    %3829 = vmatprep.subr.bf16.mxu0 %v3773
    %3830 = vmatpush1.bf16.msra.mxu0 %v3772
    %3831 = vmatprep.subr.bf16.mxu0 %v3770
    %3832 = vmatpush1.bf16.msra.mxu0 %v3769
    %3833 = vmatprep.subr.bf16.mxu0 0
    %3834 = vmatpush2.bf16.msra.mxu0 0
    %3835 = vmatprep.subr.bf16.mxu0 0
    %3836 = vmatpush2.bf16.msra.mxu0 0
    %3837 = vmatprep.subr.bf16.mxu0 0
    %3838 = vmatpush2.bf16.msra.mxu0 0
    %3839 = vmatprep.subr.bf16.mxu0 0
    %3840 = vmatpush2.bf16.msra.mxu0 0
    %3841 = vmatprep.subr.bf16.mxu0 0
    %3842 = vmatpush2.bf16.msra.mxu0 0
    %3843 = vmatprep.subr.bf16.mxu0 0
    %3844 = vmatpush2.bf16.msra.mxu0 0
    %3845 = vmatprep.subr.bf16.mxu0 0
    %3846 = vmatpush2.bf16.msra.mxu0 0
    %3847 = vmatprep.subr.bf16.mxu0 0
    %3848 = vmatpush2.bf16.msra.mxu0 0
    %3849 = vmatprep.mubr.bf16.mxu0 0
    %3850 = vmatmul.mubr.bf16.gmra.mxu0 %v3632
    %v3851 = vpop.f32.mrf.mxu0
    %v3852 = vadd.f32 %v3677, %v3851
    %v3853 = vpop.f32.mrf.mxu0
    %v3854 = vadd.f32 %v3681, %v3853
    %v3855 = vpop.f32.mrf.mxu0
    %v3856 = vadd.f32 %v3677, %v3855
    %v3857 = vpop.f32.mrf.mxu0
    %v3858 = vadd.f32 %v3681, %v3857
    %3859 = vmatprep.mubr.bf16.mxu0 0
    %3860 = vmatmul.mubr.bf16.gmra.mxu0 %v3633
    %v3861 = vpop.f32.mrf.mxu0
    %v3862 = vadd.f32 %v3677, %v3861
    %v3863 = vpop.f32.mrf.mxu0
    %v3864 = vadd.f32 %v3681, %v3863
    %v3865 = vpop.f32.mrf.mxu0
    %v3866 = vadd.f32 %v3677, %v3865
    %v3867 = vpop.f32.mrf.mxu0
    %v3868 = vadd.f32 %v3681, %v3867
    %3869 = vmatprep.mubr.bf16.mxu0 0
    %3870 = vmatmul.mubr.bf16.gmra.mxu0 %v3634
    %v3871 = vpop.f32.mrf.mxu0
    %v3872 = vadd.f32 %v3677, %v3871
    %v3873 = vpop.f32.mrf.mxu0
    %v3874 = vadd.f32 %v3681, %v3873
    %v3875 = vpop.f32.mrf.mxu0
    %v3876 = vadd.f32 %v3677, %v3875
    %v3877 = vpop.f32.mrf.mxu0
    %v3878 = vadd.f32 %v3681, %v3877
    %3879 = vmatprep.mubr.bf16.mxu0 0
    %3880 = vmatmul.mubr.bf16.gmra.mxu0 %v3635
    %v3881 = vpop.f32.mrf.mxu0
    %v3882 = vadd.f32 %v3677, %v3881
    %v3883 = vpop.f32.mrf.mxu0
    %v3884 = vadd.f32 %v3681, %v3883
    %v3885 = vpop.f32.mrf.mxu0
    %v3886 = vadd.f32 %v3677, %v3885
    %v3887 = vpop.f32.mrf.mxu0
    %v3888 = vadd.f32 %v3681, %v3887
    %3889 = vmatprep.mubr.bf16.mxu0 0
    %3890 = vmatmul.mubr.bf16.gmra.mxu0 %v3636
    %v3891 = vpop.f32.mrf.mxu0
    %v3892 = vadd.f32 %v3677, %v3891
    %v3893 = vpop.f32.mrf.mxu0
    %v3894 = vadd.f32 %v3681, %v3893
    %v3895 = vpop.f32.mrf.mxu0
    %v3896 = vadd.f32 %v3677, %v3895
    %v3897 = vpop.f32.mrf.mxu0
    %v3898 = vadd.f32 %v3681, %v3897
    %3899 = vmatprep.mubr.bf16.mxu0 0
    %3900 = vmatmul.mubr.bf16.gmra.mxu0 %v3637
    %v3901 = vpop.f32.mrf.mxu0
    %v3902 = vadd.f32 %v3677, %v3901
    %v3903 = vpop.f32.mrf.mxu0
    %v3904 = vadd.f32 %v3681, %v3903
    %v3905 = vpop.f32.mrf.mxu0
    %v3906 = vadd.f32 %v3677, %v3905
    %v3907 = vpop.f32.mrf.mxu0
    %v3908 = vadd.f32 %v3681, %v3907
    %3909 = vmatprep.mubr.bf16.mxu0 0
    %3910 = vmatmul.mubr.bf16.gmra.mxu0 %v3638
    %v3911 = vpop.f32.mrf.mxu0
    %v3912 = vadd.f32 %v3677, %v3911
    %v3913 = vpop.f32.mrf.mxu0
    %v3914 = vadd.f32 %v3681, %v3913
    %v3915 = vpop.f32.mrf.mxu0
    %v3916 = vadd.f32 %v3677, %v3915
    %v3917 = vpop.f32.mrf.mxu0
    %v3918 = vadd.f32 %v3681, %v3917
    %3919 = vmatprep.mubr.bf16.mxu0 0
    %3920 = vmatmul.mubr.bf16.gmra.mxu0 %v3639
    %v3921 = vpop.f32.mrf.mxu0
    %v3922 = vadd.f32 %v3677, %v3921
    %v3923 = vpop.f32.mrf.mxu0
    %v3924 = vadd.f32 %v3681, %v3923
    %v3925 = vpop.f32.mrf.mxu0
    %v3926 = vadd.f32 %v3677, %v3925
    %v3927 = vpop.f32.mrf.mxu0
    %v3928 = vadd.f32 %v3681, %v3927
    %3929 = vdwg.mxu0
    %3930 = vmatprep.subr.bf16.mxu0 0
    %3931 = vmatpush1.bf16.msra.mxu0 %v3792
    %3932 = vmatprep.subr.bf16.mxu0 0
    %3933 = vmatpush1.bf16.msra.mxu0 %v3789
    %3934 = vmatprep.subr.bf16.mxu0 0
    %3935 = vmatpush1.bf16.msra.mxu0 %v3786
    %3936 = vmatprep.subr.bf16.mxu0 0
    %3937 = vmatpush1.bf16.msra.mxu0 %v3783
    %3938 = vmatprep.subr.bf16.mxu0 0
    %3939 = vmatpush1.bf16.msra.mxu0 %v3780
    %3940 = vmatprep.subr.bf16.mxu0 0
    %3941 = vmatpush1.bf16.msra.mxu0 %v3777
    %3942 = vmatprep.subr.bf16.mxu0 0
    %3943 = vmatpush1.bf16.msra.mxu0 %v3774
    %3944 = vmatprep.subr.bf16.mxu0 0
    %3945 = vmatpush1.bf16.msra.mxu0 %v3771
    %3946 = vmatprep.subr.bf16.mxu0 0
    %3947 = vmatpush2.bf16.msra.mxu0 0
    %3948 = vmatprep.subr.bf16.mxu0 0
    %3949 = vmatpush2.bf16.msra.mxu0 0
    %3950 = vmatprep.subr.bf16.mxu0 0
    %3951 = vmatpush2.bf16.msra.mxu0 0
    %3952 = vmatprep.subr.bf16.mxu0 0
    %3953 = vmatpush2.bf16.msra.mxu0 0
    %3954 = vmatprep.subr.bf16.mxu0 0
    %3955 = vmatpush2.bf16.msra.mxu0 0
    %3956 = vmatprep.subr.bf16.mxu0 0
    %3957 = vmatpush2.bf16.msra.mxu0 0
    %3958 = vmatprep.subr.bf16.mxu0 0
    %3959 = vmatpush2.bf16.msra.mxu0 0
    %3960 = vmatprep.subr.bf16.mxu0 0
    %3961 = vmatpush2.bf16.msra.mxu0 0
    %3962 = vmatprep.mubr.bf16.mxu0 0
    %3963 = vmatmul.mubr.bf16.gmra.mxu0 %v3632
    %v3964 = vpop.f32.mrf.mxu0
    %v3965 = vadd.f32 %v3685, %v3964
    %v3966 = vpop.f32.mrf.mxu0
    %v3967 = vpop.f32.mrf.mxu0
    %v3968 = vadd.f32 %v3685, %v3967
    %v3969 = vpop.f32.mrf.mxu0
    %3970 = vmatprep.mubr.bf16.mxu0 0
    %3971 = vmatmul.mubr.bf16.gmra.mxu0 %v3633
    %v3972 = vpop.f32.mrf.mxu0
    %v3973 = vadd.f32 %v3685, %v3972
    %v3974 = vpop.f32.mrf.mxu0
    %v3975 = vpop.f32.mrf.mxu0
    %v3976 = vadd.f32 %v3685, %v3975
    %v3977 = vpop.f32.mrf.mxu0
    %3978 = vmatprep.mubr.bf16.mxu0 0
    %3979 = vmatmul.mubr.bf16.gmra.mxu0 %v3634
    %v3980 = vpop.f32.mrf.mxu0
    %v3981 = vadd.f32 %v3685, %v3980
    %v3982 = vpop.f32.mrf.mxu0
    %v3983 = vpop.f32.mrf.mxu0
    %v3984 = vadd.f32 %v3685, %v3983
    %v3985 = vpop.f32.mrf.mxu0
    %3986 = vmatprep.mubr.bf16.mxu0 0
    %3987 = vmatmul.mubr.bf16.gmra.mxu0 %v3635
    %v3988 = vpop.f32.mrf.mxu0
    %v3989 = vadd.f32 %v3685, %v3988
    %v3990 = vpop.f32.mrf.mxu0
    %v3991 = vpop.f32.mrf.mxu0
    %v3992 = vadd.f32 %v3685, %v3991
    %v3993 = vpop.f32.mrf.mxu0
    %3994 = vmatprep.mubr.bf16.mxu0 0
    %3995 = vmatmul.mubr.bf16.gmra.mxu0 %v3636
    %v3996 = vpop.f32.mrf.mxu0
    %v3997 = vadd.f32 %v3685, %v3996
    %v3998 = vpop.f32.mrf.mxu0
    %v3999 = vpop.f32.mrf.mxu0
    %v4000 = vadd.f32 %v3685, %v3999
    %v4001 = vpop.f32.mrf.mxu0
    %4002 = vmatprep.mubr.bf16.mxu0 0
    %4003 = vmatmul.mubr.bf16.gmra.mxu0 %v3637
    %v4004 = vpop.f32.mrf.mxu0
    %v4005 = vadd.f32 %v3685, %v4004
    %v4006 = vpop.f32.mrf.mxu0
    %v4007 = vpop.f32.mrf.mxu0
    %v4008 = vadd.f32 %v3685, %v4007
    %v4009 = vpop.f32.mrf.mxu0
    %4010 = vmatprep.mubr.bf16.mxu0 0
    %4011 = vmatmul.mubr.bf16.gmra.mxu0 %v3638
    %v4012 = vpop.f32.mrf.mxu0
    %v4013 = vadd.f32 %v3685, %v4012
    %v4014 = vpop.f32.mrf.mxu0
    %v4015 = vpop.f32.mrf.mxu0
    %v4016 = vadd.f32 %v3685, %v4015
    %v4017 = vpop.f32.mrf.mxu0
    %4018 = vmatprep.mubr.bf16.mxu0 0
    %4019 = vmatmul.mubr.bf16.gmra.mxu0 %v3639
    %v4020 = vpop.f32.mrf.mxu0
    %v4021 = vadd.f32 %v3685, %v4020
    %v4022 = vpop.f32.mrf.mxu0
    %v4023 = vpop.f32.mrf.mxu0
    %v4024 = vadd.f32 %v3685, %v4023
    %v4025 = vpop.f32.mrf.mxu0
    %4026 = vdwg.mxu0
    %v4027 = vmax.f32 %v3852, 0.0
    %v4028 = vmax.f32 %v3854, 0.0
    %v4029 = vmax.f32 %v3965, 0.0
    %v4030 = vmax.f32 %v3856, 0.0
    %v4031 = vmax.f32 %v3858, 0.0
    %v4032 = vmax.f32 %v3968, 0.0
    %v4033 = vmax.f32 %v3862, 0.0
    %v4034 = vmax.f32 %v3864, 0.0
    %v4035 = vmax.f32 %v3973, 0.0
    %v4036 = vmax.f32 %v3866, 0.0
    %v4037 = vmax.f32 %v3868, 0.0
    %v4038 = vmax.f32 %v3976, 0.0
    %v4039 = vmax.f32 %v3872, 0.0
    %v4040 = vmax.f32 %v3874, 0.0
    %v4041 = vmax.f32 %v3981, 0.0
    %v4042 = vmax.f32 %v3876, 0.0
    %v4043 = vmax.f32 %v3878, 0.0
    %v4044 = vmax.f32 %v3984, 0.0
    %v4045 = vmax.f32 %v3882, 0.0
    %v4046 = vmax.f32 %v3884, 0.0
    %v4047 = vmax.f32 %v3989, 0.0
    %v4048 = vmax.f32 %v3886, 0.0
    %v4049 = vmax.f32 %v3888, 0.0
    %v4050 = vmax.f32 %v3992, 0.0
    %v4051 = vmax.f32 %v3892, 0.0
    %v4052 = vmax.f32 %v3894, 0.0
    %v4053 = vmax.f32 %v3997, 0.0
    %v4054 = vmax.f32 %v3896, 0.0
    %v4055 = vmax.f32 %v3898, 0.0
    %v4056 = vmax.f32 %v4000, 0.0
    %v4057 = vmax.f32 %v3902, 0.0
    %v4058 = vmax.f32 %v3904, 0.0
    %v4059 = vmax.f32 %v4005, 0.0
    %v4060 = vmax.f32 %v3906, 0.0
    %v4061 = vmax.f32 %v3908, 0.0
    %v4062 = vmax.f32 %v4008, 0.0
    %v4063 = vmax.f32 %v3912, 0.0
    %v4064 = vmax.f32 %v3914, 0.0
    %v4065 = vmax.f32 %v4013, 0.0
    %v4066 = vmax.f32 %v3916, 0.0
    %v4067 = vmax.f32 %v3918, 0.0
    %v4068 = vmax.f32 %v4016, 0.0
    %v4069 = vmax.f32 %v3922, 0.0
    %v4070 = vmax.f32 %v3924, 0.0
    %v4071 = vmax.f32 %v4021, 0.0
    %v4072 = vmax.f32 %v3926, 0.0
    %v4073 = vmax.f32 %v3928, 0.0
    %v4074 = vmax.f32 %v4024, 0.0
    %v4075 = vpack.c.bf16 %v4030, %v4027
    %v4076 = vpack.c.bf16 %v4031, %v4028
    %v4077 = vpack.c.bf16 %v4032, %v4029
    %v4078 = vpack.c.bf16 %v4036, %v4033
    %v4079 = vpack.c.bf16 %v4037, %v4034
    %v4080 = vpack.c.bf16 %v4038, %v4035
    %v4081 = vpack.c.bf16 %v4042, %v4039
    %v4082 = vpack.c.bf16 %v4043, %v4040
    %v4083 = vpack.c.bf16 %v4044, %v4041
    %v4084 = vpack.c.bf16 %v4048, %v4045
    %v4085 = vpack.c.bf16 %v4049, %v4046
    %v4086 = vpack.c.bf16 %v4050, %v4047
    %v4087 = vpack.c.bf16 %v4054, %v4051
    %v4088 = vpack.c.bf16 %v4055, %v4052
    %v4089 = vpack.c.bf16 %v4056, %v4053
    %v4090 = vpack.c.bf16 %v4060, %v4057
    %v4091 = vpack.c.bf16 %v4061, %v4058
    %v4092 = vpack.c.bf16 %v4062, %v4059
    %v4093 = vpack.c.bf16 %v4066, %v4063
    %v4094 = vpack.c.bf16 %v4067, %v4064
    %v4095 = vpack.c.bf16 %v4068, %v4065
    %v4096 = vpack.c.bf16 %v4072, %v4069
    %v4097 = vpack.c.bf16 %v4073, %v4070
    %v4098 = vpack.c.bf16 %v4074, %v4071
    %v4099 = vld [vmem:[%s12] sm:$0xff]
    %v4100 = vld [vmem:[%s12 + $0x8] sm:$0xf]
    %v4101 = vld [vmem:[%s12 + $0xc] sm:$0xff]
    %v4102 = vld [vmem:[%s12 + $0x14] sm:$0xf]
    %v4103 = vld [vmem:[%s12 + $0x18] sm:$0xff]
    %v4104 = vld [vmem:[%s12 + $0x20] sm:$0xf]
    %v4105 = vld [vmem:[%s12 + $0x24] sm:$0xff]
    %v4106 = vld [vmem:[%s12 + $0x2c] sm:$0xf]
    %v4107 = vld [vmem:[%s12 + $0x30] sm:$0xff]
    %v4108 = vld [vmem:[%s12 + $0x38] sm:$0xf]
    %v4109 = vld [vmem:[%s12 + $0x3c] sm:$0xff]
    %v4110 = vld [vmem:[%s12 + $0x44] sm:$0xf]
    %v4111 = vld [vmem:[%s12 + $0x48] sm:$0xff]
    %v4112 = vld [vmem:[%s12 + $0x50] sm:$0xf]
    %v4113 = vld [vmem:[%s12 + $0x54] sm:$0xff]
    %v4114 = vld [vmem:[%s12 + $0x5c] sm:$0xf]
    %v4115 = vld [vmem:[%s12 + $0x60] sm:$0xff]
    %v4116 = vld [vmem:[%s12 + $0x68] sm:$0xf]
    %v4117 = vld [vmem:[%s12 + $0x6c] sm:$0xff]
    %v4118 = vld [vmem:[%s12 + $0x74] sm:$0xf]
    %v4119 = vld [vmem:[%s12 + $0x78] sm:$0xff]
    %v4120 = vld [vmem:[%s12 + $0x80] sm:$0xf]
    %v4121 = vld [vmem:[%s12 + $0x84] sm:$0xff]
    %v4122 = vld [vmem:[%s12 + $0x8c] sm:$0xf]
    %v4123 = vld [vmem:[%s12 + $0x90] sm:$0xff]
    %v4124 = vld [vmem:[%s12 + $0x98] sm:$0xf]
    %v4125 = vld [vmem:[%s12 + $0x9c] sm:$0xff]
    %v4126 = vld [vmem:[%s12 + $0xa4] sm:$0xf]
    %v4127 = vld [vmem:[%s12 + $0xa8] sm:$0xff]
    %v4128 = vld [vmem:[%s12 + $0xb0] sm:$0xf]
    %v4129 = vld [vmem:[%s12 + $0xb4] sm:$0xff]
    %v4130 = vld [vmem:[%s12 + $0xbc] sm:$0xf]
    %v4131 = vld [vmem:[%s12 + $0xc0] sm:$0xff]
    %v4132 = vld [vmem:[%s12 + $0xc8] sm:$0xf]
    %v4133 = vld [vmem:[%s12 + $0xcc] sm:$0xff]
    %v4134 = vld [vmem:[%s12 + $0xd4] sm:$0xf]
    %v4135 = vld [vmem:[%s12 + $0xd8] sm:$0xff]
    %v4136 = vld [vmem:[%s12 + $0xe0] sm:$0xf]
    %v4137 = vld [vmem:[%s12 + $0xe4] sm:$0xff]
    %v4138 = vld [vmem:[%s12 + $0xec] sm:$0xf]
    %v4139 = vld [vmem:[%s12 + $0xf0] sm:$0xff]
    %v4140 = vld [vmem:[%s12 + $0xf8] sm:$0xf]
    %v4141 = vld [vmem:[%s12 + $0xfc] sm:$0xff]
    %v4142 = vld [vmem:[%s12 + $0x104] sm:$0xf]
    %v4143 = vld [vmem:[%s12 + $0x108] sm:$0xff]
    %v4144 = vld [vmem:[%s12 + $0x110] sm:$0xf]
    %v4145 = vld [vmem:[%s12 + $0x114] sm:$0xff]
    %v4146 = vld [vmem:[%s12 + $0x11c] sm:$0xf]
    %v4147 = vld [vmem:[%s12 + $0x120] sm:$0xff]
    %v4148 = vld [vmem:[%s12 + $0x128] sm:$0xf]
    %v4149 = vld [vmem:[%s12 + $0x12c] sm:$0xff]
    %v4150 = vld [vmem:[%s12 + $0x134] sm:$0xf]
    %v4151 = vld [vmem:[%s12 + $0x138] sm:$0xff]
    %v4152 = vld [vmem:[%s12 + $0x140] sm:$0xf]
    %v4153 = vld [vmem:[%s12 + $0x144] sm:$0xff]
    %v4154 = vld [vmem:[%s12 + $0x14c] sm:$0xf]
    %v4155 = vld [vmem:[%s12 + $0x150] sm:$0xff]
    %v4156 = vld [vmem:[%s12 + $0x158] sm:$0xf]
    %v4157 = vld [vmem:[%s12 + $0x15c] sm:$0xff]
    %v4158 = vld [vmem:[%s12 + $0x164] sm:$0xf]
    %v4159 = vld [vmem:[%s12 + $0x168] sm:$0xff]
    %v4160 = vld [vmem:[%s12 + $0x170] sm:$0xf]
    %v4161 = vld [vmem:[%s12 + $0x174] sm:$0xff]
    %v4162 = vld [vmem:[%s12 + $0x17c] sm:$0xf]
    %v4163 = vld [vmem:[%s12 + $0x180] sm:$0xff]
    %v4164 = vld [vmem:[%s12 + $0x188] sm:$0xf]
    %v4165 = vld [vmem:[%s12 + $0x18c] sm:$0xff]
    %v4166 = vld [vmem:[%s12 + $0x194] sm:$0xf]
    %v4167 = vld [vmem:[%s12 + $0x198] sm:$0xff]
    %v4168 = vld [vmem:[%s12 + $0x1a0] sm:$0xf]
    %v4169 = vld [vmem:[%s12 + $0x1a4] sm:$0xff]
    %v4170 = vld [vmem:[%s12 + $0x1ac] sm:$0xf]
    %v4171 = vld [vmem:[%s12 + $0x1b0] sm:$0xff]
    %v4172 = vld [vmem:[%s12 + $0x1b8] sm:$0xf]
    %v4173 = vld [vmem:[%s12 + $0x1bc] sm:$0xff]
    %v4174 = vld [vmem:[%s12 + $0x1c4] sm:$0xf]
    %v4175 = vld [vmem:[%s12 + $0x1c8] sm:$0xff]
    %v4176 = vld [vmem:[%s12 + $0x1d0] sm:$0xf]
    %v4177 = vld [vmem:[%s12 + $0x1d4] sm:$0xff]
    %v4178 = vld [vmem:[%s12 + $0x1dc] sm:$0xf]
    %v4179 = vld [vmem:[%s12 + $0x1e0] sm:$0xff]
    %v4180 = vld [vmem:[%s12 + $0x1e8] sm:$0xf]
    %v4181 = vld [vmem:[%s12 + $0x1ec] sm:$0xff]
    %v4182 = vld [vmem:[%s12 + $0x1f4] sm:$0xf]
    %v4183 = vld [vmem:[%s12 + $0x1f8] sm:$0xff]
    %v4184 = vld [vmem:[%s12 + $0x200] sm:$0xf]
    %v4185 = vld [vmem:[%s12 + $0x204] sm:$0xff]
    %v4186 = vld [vmem:[%s12 + $0x20c] sm:$0xf]
    %v4187 = vld [vmem:[%s12 + $0x210] sm:$0xff]
    %v4188 = vld [vmem:[%s12 + $0x218] sm:$0xf]
    %v4189 = vld [vmem:[%s12 + $0x21c] sm:$0xff]
    %v4190 = vld [vmem:[%s12 + $0x224] sm:$0xf]
    %v4191 = vld [vmem:[%s12 + $0x228] sm:$0xff]
    %v4192 = vld [vmem:[%s12 + $0x230] sm:$0xf]
    %v4193 = vld [vmem:[%s12 + $0x234] sm:$0xff]
    %v4194 = vld [vmem:[%s12 + $0x23c] sm:$0xf]
    %v4195 = vld [vmem:[%s13] sm:$0x7]
    %v4197 = vlaneseq
    %v4198 = vshrl.u32 %v4197, 7
    %v4199 = vsub.s32 0, %v4198
    %v4200 = vrot.slane %v4195, %v4199
    %v4201 = vlaneseq
    %v4202 = vshrl.u32 %v4201, 7
    %v4203 = vsub.s32 1, %v4202
    %v4204 = vrot.slane %v4195, %v4203
    %v4205 = vlaneseq
    %v4206 = vshrl.u32 %v4205, 7
    %v4207 = vsub.s32 2, %v4206
    %v4208 = vrot.slane %v4195, %v4207
    %v4308 = vunpack.c.l.b16 %v4099
    %v4309 = vunpack.c.h.b16 %v4099
    %v4310 = vunpack.c.l.b16 %v4100
    %v4311 = vunpack.c.l.b16 %v4101
    %v4312 = vunpack.c.h.b16 %v4101
    %v4313 = vunpack.c.l.b16 %v4102
    %v4314 = vunpack.c.l.b16 %v4103
    %v4315 = vunpack.c.h.b16 %v4103
    %v4316 = vunpack.c.l.b16 %v4104
    %v4317 = vunpack.c.l.b16 %v4105
    %v4318 = vunpack.c.h.b16 %v4105
    %v4319 = vunpack.c.l.b16 %v4106
    %v4320 = vunpack.c.l.b16 %v4107
    %v4321 = vunpack.c.h.b16 %v4107
    %v4322 = vunpack.c.l.b16 %v4108
    %v4323 = vunpack.c.l.b16 %v4109
    %v4324 = vunpack.c.h.b16 %v4109
    %v4325 = vunpack.c.l.b16 %v4110
    %v4326 = vunpack.c.l.b16 %v4111
    %v4327 = vunpack.c.h.b16 %v4111
    %v4328 = vunpack.c.l.b16 %v4112
    %v4329 = vunpack.c.l.b16 %v4113
    %v4330 = vunpack.c.h.b16 %v4113
    %v4331 = vunpack.c.l.b16 %v4114
    %v4332 = vunpack.c.l.b16 %v4115
    %v4333 = vunpack.c.h.b16 %v4115
    %v4334 = vunpack.c.l.b16 %v4116
    %v4335 = vunpack.c.l.b16 %v4117
    %v4336 = vunpack.c.h.b16 %v4117
    %v4337 = vunpack.c.l.b16 %v4118
    %v4338 = vunpack.c.l.b16 %v4119
    %v4339 = vunpack.c.h.b16 %v4119
    %v4340 = vunpack.c.l.b16 %v4120
    %v4341 = vunpack.c.l.b16 %v4121
    %v4342 = vunpack.c.h.b16 %v4121
    %v4343 = vunpack.c.l.b16 %v4122
    %v4344 = vunpack.c.l.b16 %v4123
    %v4345 = vunpack.c.h.b16 %v4123
    %v4346 = vunpack.c.l.b16 %v4124
    %v4347 = vunpack.c.l.b16 %v4125
    %v4348 = vunpack.c.h.b16 %v4125
    %v4349 = vunpack.c.l.b16 %v4126
    %v4350 = vunpack.c.l.b16 %v4127
    %v4351 = vunpack.c.h.b16 %v4127
    %v4352 = vunpack.c.l.b16 %v4128
    %v4353 = vunpack.c.l.b16 %v4129
    %v4354 = vunpack.c.h.b16 %v4129
    %v4355 = vunpack.c.l.b16 %v4130
    %v4356 = vunpack.c.l.b16 %v4131
    %v4357 = vunpack.c.h.b16 %v4131
    %v4358 = vunpack.c.l.b16 %v4132
    %v4359 = vunpack.c.l.b16 %v4133
    %v4360 = vunpack.c.h.b16 %v4133
    %v4361 = vunpack.c.l.b16 %v4134
    %v4362 = vunpack.c.l.b16 %v4135
    %v4363 = vunpack.c.h.b16 %v4135
    %v4364 = vunpack.c.l.b16 %v4136
    %v4365 = vunpack.c.l.b16 %v4137
    %v4366 = vunpack.c.h.b16 %v4137
    %v4367 = vunpack.c.l.b16 %v4138
    %v4368 = vunpack.c.l.b16 %v4139
    %v4369 = vunpack.c.h.b16 %v4139
    %v4370 = vunpack.c.l.b16 %v4140
    %v4371 = vunpack.c.l.b16 %v4141
    %v4372 = vunpack.c.h.b16 %v4141
    %v4373 = vunpack.c.l.b16 %v4142
    %v4374 = vunpack.c.l.b16 %v4143
    %v4375 = vunpack.c.h.b16 %v4143
    %v4376 = vunpack.c.l.b16 %v4144
    %v4377 = vunpack.c.l.b16 %v4145
    %v4378 = vunpack.c.h.b16 %v4145
    %v4379 = vunpack.c.l.b16 %v4146
    %v4380 = vunpack.c.l.b16 %v4147
    %v4381 = vunpack.c.h.b16 %v4147
    %v4382 = vunpack.c.l.b16 %v4148
    %v4383 = vunpack.c.l.b16 %v4149
    %v4384 = vunpack.c.h.b16 %v4149
    %v4385 = vunpack.c.l.b16 %v4150
    %v4386 = vunpack.c.l.b16 %v4151
    %v4387 = vunpack.c.h.b16 %v4151
    %v4388 = vunpack.c.l.b16 %v4152
    %v4389 = vunpack.c.l.b16 %v4153
    %v4390 = vunpack.c.h.b16 %v4153
    %v4391 = vunpack.c.l.b16 %v4154
    %v4392 = vunpack.c.l.b16 %v4155
    %v4393 = vunpack.c.h.b16 %v4155
    %v4394 = vunpack.c.l.b16 %v4156
    %v4395 = vunpack.c.l.b16 %v4157
    %v4396 = vunpack.c.h.b16 %v4157
    %v4397 = vunpack.c.l.b16 %v4158
    %v4398 = vunpack.c.l.b16 %v4159
    %v4399 = vunpack.c.h.b16 %v4159
    %v4400 = vunpack.c.l.b16 %v4160
    %v4401 = vunpack.c.l.b16 %v4161
    %v4402 = vunpack.c.h.b16 %v4161
    %v4403 = vunpack.c.l.b16 %v4162
    %v4404 = vunpack.c.l.b16 %v4163
    %v4405 = vunpack.c.h.b16 %v4163
    %v4406 = vunpack.c.l.b16 %v4164
    %v4407 = vunpack.c.l.b16 %v4165
    %v4408 = vunpack.c.h.b16 %v4165
    %v4409 = vunpack.c.l.b16 %v4166
    %v4410 = vunpack.c.l.b16 %v4167
    %v4411 = vunpack.c.h.b16 %v4167
    %v4412 = vunpack.c.l.b16 %v4168
    %v4413 = vunpack.c.l.b16 %v4169
    %v4414 = vunpack.c.h.b16 %v4169
    %v4415 = vunpack.c.l.b16 %v4170
    %v4416 = vunpack.c.l.b16 %v4171
    %v4417 = vunpack.c.h.b16 %v4171
    %v4418 = vunpack.c.l.b16 %v4172
    %v4419 = vunpack.c.l.b16 %v4173
    %v4420 = vunpack.c.h.b16 %v4173
    %v4421 = vunpack.c.l.b16 %v4174
    %v4422 = vunpack.c.l.b16 %v4175
    %v4423 = vunpack.c.h.b16 %v4175
    %v4424 = vunpack.c.l.b16 %v4176
    %v4425 = vunpack.c.l.b16 %v4177
    %v4426 = vunpack.c.h.b16 %v4177
    %v4427 = vunpack.c.l.b16 %v4178
    %v4428 = vunpack.c.l.b16 %v4179
    %v4429 = vunpack.c.h.b16 %v4179
    %v4430 = vunpack.c.l.b16 %v4180
    %v4431 = vunpack.c.l.b16 %v4181
    %v4432 = vunpack.c.h.b16 %v4181
    %v4433 = vunpack.c.l.b16 %v4182
    %v4434 = vunpack.c.l.b16 %v4183
    %v4435 = vunpack.c.h.b16 %v4183
    %v4436 = vunpack.c.l.b16 %v4184
    %v4437 = vunpack.c.l.b16 %v4185
    %v4438 = vunpack.c.h.b16 %v4185
    %v4439 = vunpack.c.l.b16 %v4186
    %v4440 = vunpack.c.l.b16 %v4187
    %v4441 = vunpack.c.h.b16 %v4187
    %v4442 = vunpack.c.l.b16 %v4188
    %v4443 = vunpack.c.l.b16 %v4189
    %v4444 = vunpack.c.h.b16 %v4189
    %v4445 = vunpack.c.l.b16 %v4190
    %v4446 = vunpack.c.l.b16 %v4191
    %v4447 = vunpack.c.h.b16 %v4191
    %v4448 = vunpack.c.l.b16 %v4192
    %v4449 = vunpack.c.l.b16 %v4193
    %v4450 = vunpack.c.h.b16 %v4193
    %v4451 = vunpack.c.l.b16 %v4194
    %v4452 = vpack.c.b16 %v4311, %v4308
    %v4453 = vpack.c.b16 %v4312, %v4309
    %v4454 = vpack.c.b16 %v4313, %v4310
    %v4455 = vpack.c.b16 %v4317, %v4314
    %v4456 = vpack.c.b16 %v4318, %v4315
    %v4457 = vpack.c.b16 %v4319, %v4316
    %v4458 = vpack.c.b16 %v4323, %v4320
    %v4459 = vpack.c.b16 %v4324, %v4321
    %v4460 = vpack.c.b16 %v4325, %v4322
    %v4461 = vpack.c.b16 %v4329, %v4326
    %v4462 = vpack.c.b16 %v4330, %v4327
    %v4463 = vpack.c.b16 %v4331, %v4328
    %v4464 = vpack.c.b16 %v4335, %v4332
    %v4465 = vpack.c.b16 %v4336, %v4333
    %v4466 = vpack.c.b16 %v4337, %v4334
    %v4467 = vpack.c.b16 %v4341, %v4338
    %v4468 = vpack.c.b16 %v4342, %v4339
    %v4469 = vpack.c.b16 %v4343, %v4340
    %v4470 = vpack.c.b16 %v4347, %v4344
    %v4471 = vpack.c.b16 %v4348, %v4345
    %v4472 = vpack.c.b16 %v4349, %v4346
    %v4473 = vpack.c.b16 %v4353, %v4350
    %v4474 = vpack.c.b16 %v4354, %v4351
    %v4475 = vpack.c.b16 %v4355, %v4352
    %v4476 = vpack.c.b16 %v4359, %v4356
    %v4477 = vpack.c.b16 %v4360, %v4357
    %v4478 = vpack.c.b16 %v4361, %v4358
    %v4479 = vpack.c.b16 %v4365, %v4362
    %v4480 = vpack.c.b16 %v4366, %v4363
    %v4481 = vpack.c.b16 %v4367, %v4364
    %v4482 = vpack.c.b16 %v4371, %v4368
    %v4483 = vpack.c.b16 %v4372, %v4369
    %v4484 = vpack.c.b16 %v4373, %v4370
    %v4485 = vpack.c.b16 %v4377, %v4374
    %v4486 = vpack.c.b16 %v4378, %v4375
    %v4487 = vpack.c.b16 %v4379, %v4376
    %v4488 = vpack.c.b16 %v4383, %v4380
    %v4489 = vpack.c.b16 %v4384, %v4381
    %v4490 = vpack.c.b16 %v4385, %v4382
    %v4491 = vpack.c.b16 %v4389, %v4386
    %v4492 = vpack.c.b16 %v4390, %v4387
    %v4493 = vpack.c.b16 %v4391, %v4388
    %v4494 = vpack.c.b16 %v4395, %v4392
    %v4495 = vpack.c.b16 %v4396, %v4393
    %v4496 = vpack.c.b16 %v4397, %v4394
    %v4497 = vpack.c.b16 %v4401, %v4398
    %v4498 = vpack.c.b16 %v4402, %v4399
    %v4499 = vpack.c.b16 %v4403, %v4400
    %v4500 = vpack.c.b16 %v4407, %v4404
    %v4501 = vpack.c.b16 %v4408, %v4405
    %v4502 = vpack.c.b16 %v4409, %v4406
    %v4503 = vpack.c.b16 %v4413, %v4410
    %v4504 = vpack.c.b16 %v4414, %v4411
    %v4505 = vpack.c.b16 %v4415, %v4412
    %v4506 = vpack.c.b16 %v4419, %v4416
    %v4507 = vpack.c.b16 %v4420, %v4417
    %v4508 = vpack.c.b16 %v4421, %v4418
    %v4509 = vpack.c.b16 %v4425, %v4422
    %v4510 = vpack.c.b16 %v4426, %v4423
    %v4511 = vpack.c.b16 %v4427, %v4424
    %v4512 = vpack.c.b16 %v4431, %v4428
    %v4513 = vpack.c.b16 %v4432, %v4429
    %v4514 = vpack.c.b16 %v4433, %v4430
    %v4515 = vpack.c.b16 %v4437, %v4434
    %v4516 = vpack.c.b16 %v4438, %v4435
    %v4517 = vpack.c.b16 %v4439, %v4436
    %v4518 = vpack.c.b16 %v4443, %v4440
    %v4519 = vpack.c.b16 %v4444, %v4441
    %v4520 = vpack.c.b16 %v4445, %v4442
    %v4521 = vpack.c.b16 %v4449, %v4446
    %v4522 = vpack.c.b16 %v4450, %v4447
    %v4523 = vpack.c.b16 %v4451, %v4448
    %4596 = vmatprep.subr.bf16.mxu0 %v4474
    %4597 = vmatpush1.bf16.msra.mxu0 %v4473
    %4598 = vmatprep.subr.bf16.mxu0 %v4471
    %4599 = vmatpush1.bf16.msra.mxu0 %v4470
    %4600 = vmatprep.subr.bf16.mxu0 %v4468
    %4601 = vmatpush1.bf16.msra.mxu0 %v4467
    %4602 = vmatprep.subr.bf16.mxu0 %v4465
    %4603 = vmatpush1.bf16.msra.mxu0 %v4464
    %4604 = vmatprep.subr.bf16.mxu0 %v4462
    %4605 = vmatpush1.bf16.msra.mxu0 %v4461
    %4606 = vmatprep.subr.bf16.mxu0 %v4459
    %4607 = vmatpush1.bf16.msra.mxu0 %v4458
    %4608 = vmatprep.subr.bf16.mxu0 %v4456
    %4609 = vmatpush1.bf16.msra.mxu0 %v4455
    %4610 = vmatprep.subr.bf16.mxu0 %v4453
    %4611 = vmatpush1.bf16.msra.mxu0 %v4452
    %4612 = vmatprep.subr.bf16.mxu0 %v4498
    %4613 = vmatpush2.bf16.msra.mxu0 %v4497
    %4614 = vmatprep.subr.bf16.mxu0 %v4495
    %4615 = vmatpush2.bf16.msra.mxu0 %v4494
    %4616 = vmatprep.subr.bf16.mxu0 %v4492
    %4617 = vmatpush2.bf16.msra.mxu0 %v4491
    %4618 = vmatprep.subr.bf16.mxu0 %v4489
    %4619 = vmatpush2.bf16.msra.mxu0 %v4488
    %4620 = vmatprep.subr.bf16.mxu0 %v4486
    %4621 = vmatpush2.bf16.msra.mxu0 %v4485
    %4622 = vmatprep.subr.bf16.mxu0 %v4483
    %4623 = vmatpush2.bf16.msra.mxu0 %v4482
    %4624 = vmatprep.subr.bf16.mxu0 %v4480
    %4625 = vmatpush2.bf16.msra.mxu0 %v4479
    %4626 = vmatprep.subr.bf16.mxu0 %v4477
    %4627 = vmatpush2.bf16.msra.mxu0 %v4476
    %4628 = vmatprep.mubr.bf16.mxu0 %v4076
    %4629 = vmatmul.mubr.bf16.gmra.mxu0 %v4075
    %v4630 = vpop.f32.mrf.mxu0
    %v4631 = vadd.f32 %v4200, %v4630
    %v4632 = vpop.f32.mrf.mxu0
    %v4633 = vadd.f32 %v4204, %v4632
    %v4634 = vpop.f32.mrf.mxu0
    %v4635 = vadd.f32 %v4200, %v4634
    %v4636 = vpop.f32.mrf.mxu0
    %v4637 = vadd.f32 %v4204, %v4636
    %4638 = vmatprep.mubr.bf16.mxu0 %v4079
    %4639 = vmatmul.mubr.bf16.gmra.mxu0 %v4078
    %v4640 = vpop.f32.mrf.mxu0
    %v4641 = vadd.f32 %v4200, %v4640
    %v4642 = vpop.f32.mrf.mxu0
    %v4643 = vadd.f32 %v4204, %v4642
    %v4644 = vpop.f32.mrf.mxu0
    %v4645 = vadd.f32 %v4200, %v4644
    %v4646 = vpop.f32.mrf.mxu0
    %v4647 = vadd.f32 %v4204, %v4646
    %4648 = vmatprep.mubr.bf16.mxu0 %v4082
    %4649 = vmatmul.mubr.bf16.gmra.mxu0 %v4081
    %v4650 = vpop.f32.mrf.mxu0
    %v4651 = vadd.f32 %v4200, %v4650
    %v4652 = vpop.f32.mrf.mxu0
    %v4653 = vadd.f32 %v4204, %v4652
    %v4654 = vpop.f32.mrf.mxu0
    %v4655 = vadd.f32 %v4200, %v4654
    %v4656 = vpop.f32.mrf.mxu0
    %v4657 = vadd.f32 %v4204, %v4656
    %4658 = vmatprep.mubr.bf16.mxu0 %v4085
    %4659 = vmatmul.mubr.bf16.gmra.mxu0 %v4084
    %v4660 = vpop.f32.mrf.mxu0
    %v4661 = vadd.f32 %v4200, %v4660
    %v4662 = vpop.f32.mrf.mxu0
    %v4663 = vadd.f32 %v4204, %v4662
    %v4664 = vpop.f32.mrf.mxu0
    %v4665 = vadd.f32 %v4200, %v4664
    %v4666 = vpop.f32.mrf.mxu0
    %v4667 = vadd.f32 %v4204, %v4666
    %4668 = vmatprep.mubr.bf16.mxu0 %v4088
    %4669 = vmatmul.mubr.bf16.gmra.mxu0 %v4087
    %v4670 = vpop.f32.mrf.mxu0
    %v4671 = vadd.f32 %v4200, %v4670
    %v4672 = vpop.f32.mrf.mxu0
    %v4673 = vadd.f32 %v4204, %v4672
    %v4674 = vpop.f32.mrf.mxu0
    %v4675 = vadd.f32 %v4200, %v4674
    %v4676 = vpop.f32.mrf.mxu0
    %v4677 = vadd.f32 %v4204, %v4676
    %4678 = vmatprep.mubr.bf16.mxu0 %v4091
    %4679 = vmatmul.mubr.bf16.gmra.mxu0 %v4090
    %v4680 = vpop.f32.mrf.mxu0
    %v4681 = vadd.f32 %v4200, %v4680
    %v4682 = vpop.f32.mrf.mxu0
    %v4683 = vadd.f32 %v4204, %v4682
    %v4684 = vpop.f32.mrf.mxu0
    %v4685 = vadd.f32 %v4200, %v4684
    %v4686 = vpop.f32.mrf.mxu0
    %v4687 = vadd.f32 %v4204, %v4686
    %4688 = vmatprep.mubr.bf16.mxu0 %v4094
    %4689 = vmatmul.mubr.bf16.gmra.mxu0 %v4093
    %v4690 = vpop.f32.mrf.mxu0
    %v4691 = vadd.f32 %v4200, %v4690
    %v4692 = vpop.f32.mrf.mxu0
    %v4693 = vadd.f32 %v4204, %v4692
    %v4694 = vpop.f32.mrf.mxu0
    %v4695 = vadd.f32 %v4200, %v4694
    %v4696 = vpop.f32.mrf.mxu0
    %v4697 = vadd.f32 %v4204, %v4696
    %4698 = vmatprep.mubr.bf16.mxu0 %v4097
    %4699 = vmatmul.mubr.bf16.gmra.mxu0 %v4096
    %v4700 = vpop.f32.mrf.mxu0
    %v4701 = vadd.f32 %v4200, %v4700
    %v4702 = vpop.f32.mrf.mxu0
    %v4703 = vadd.f32 %v4204, %v4702
    %v4704 = vpop.f32.mrf.mxu0
    %v4705 = vadd.f32 %v4200, %v4704
    %v4706 = vpop.f32.mrf.mxu0
    %v4707 = vadd.f32 %v4204, %v4706
    %4708 = vdwg.mxu0
    %4709 = vmatprep.subr.bf16.mxu0 %v4522
    %4710 = vmatpush1.bf16.msra.mxu0 %v4521
    %4711 = vmatprep.subr.bf16.mxu0 %v4519
    %4712 = vmatpush1.bf16.msra.mxu0 %v4518
    %4713 = vmatprep.subr.bf16.mxu0 %v4516
    %4714 = vmatpush1.bf16.msra.mxu0 %v4515
    %4715 = vmatprep.subr.bf16.mxu0 %v4513
    %4716 = vmatpush1.bf16.msra.mxu0 %v4512
    %4717 = vmatprep.subr.bf16.mxu0 %v4510
    %4718 = vmatpush1.bf16.msra.mxu0 %v4509
    %4719 = vmatprep.subr.bf16.mxu0 %v4507
    %4720 = vmatpush1.bf16.msra.mxu0 %v4506
    %4721 = vmatprep.subr.bf16.mxu0 %v4504
    %4722 = vmatpush1.bf16.msra.mxu0 %v4503
    %4723 = vmatprep.subr.bf16.mxu0 %v4501
    %4724 = vmatpush1.bf16.msra.mxu0 %v4500
    %4725 = vmatprep.subr.bf16.mxu0 0
    %4726 = vmatpush2.bf16.msra.mxu0 0
    %4727 = vmatprep.subr.bf16.mxu0 0
    %4728 = vmatpush2.bf16.msra.mxu0 0
    %4729 = vmatprep.subr.bf16.mxu0 0
    %4730 = vmatpush2.bf16.msra.mxu0 0
    %4731 = vmatprep.subr.bf16.mxu0 0
    %4732 = vmatpush2.bf16.msra.mxu0 0
    %4733 = vmatprep.subr.bf16.mxu0 0
    %4734 = vmatpush2.bf16.msra.mxu0 0
    %4735 = vmatprep.subr.bf16.mxu0 0
    %4736 = vmatpush2.bf16.msra.mxu0 0
    %4737 = vmatprep.subr.bf16.mxu0 0
    %4738 = vmatpush2.bf16.msra.mxu0 0
    %4739 = vmatprep.subr.bf16.mxu0 0
    %4740 = vmatpush2.bf16.msra.mxu0 0
    %4741 = vmatprep.mubr.bf16.mxu0 0
    %4742 = vmatmul.mubr.bf16.gmra.mxu0 %v4077
    %v4743 = vpop.f32.mrf.mxu0
    %v4744 = vadd.f32 %v4631, %v4743
    %v4745 = vpop.f32.mrf.mxu0
    %v4746 = vadd.f32 %v4633, %v4745
    %v4747 = vpop.f32.mrf.mxu0
    %v4748 = vadd.f32 %v4635, %v4747
    %v4749 = vpop.f32.mrf.mxu0
    %v4750 = vadd.f32 %v4637, %v4749
    %4751 = vmatprep.mubr.bf16.mxu0 0
    %4752 = vmatmul.mubr.bf16.gmra.mxu0 %v4080
    %v4753 = vpop.f32.mrf.mxu0
    %v4754 = vadd.f32 %v4641, %v4753
    %v4755 = vpop.f32.mrf.mxu0
    %v4756 = vadd.f32 %v4643, %v4755
    %v4757 = vpop.f32.mrf.mxu0
    %v4758 = vadd.f32 %v4645, %v4757
    %v4759 = vpop.f32.mrf.mxu0
    %v4760 = vadd.f32 %v4647, %v4759
    %4761 = vmatprep.mubr.bf16.mxu0 0
    %4762 = vmatmul.mubr.bf16.gmra.mxu0 %v4083
    %v4763 = vpop.f32.mrf.mxu0
    %v4764 = vadd.f32 %v4651, %v4763
    %v4765 = vpop.f32.mrf.mxu0
    %v4766 = vadd.f32 %v4653, %v4765
    %v4767 = vpop.f32.mrf.mxu0
    %v4768 = vadd.f32 %v4655, %v4767
    %v4769 = vpop.f32.mrf.mxu0
    %v4770 = vadd.f32 %v4657, %v4769
    %4771 = vmatprep.mubr.bf16.mxu0 0
    %4772 = vmatmul.mubr.bf16.gmra.mxu0 %v4086
    %v4773 = vpop.f32.mrf.mxu0
    %v4774 = vadd.f32 %v4661, %v4773
    %v4775 = vpop.f32.mrf.mxu0
    %v4776 = vadd.f32 %v4663, %v4775
    %v4777 = vpop.f32.mrf.mxu0
    %v4778 = vadd.f32 %v4665, %v4777
    %v4779 = vpop.f32.mrf.mxu0
    %v4780 = vadd.f32 %v4667, %v4779
    %4781 = vmatprep.mubr.bf16.mxu0 0
    %4782 = vmatmul.mubr.bf16.gmra.mxu0 %v4089
    %v4783 = vpop.f32.mrf.mxu0
    %v4784 = vadd.f32 %v4671, %v4783
    %v4785 = vpop.f32.mrf.mxu0
    %v4786 = vadd.f32 %v4673, %v4785
    %v4787 = vpop.f32.mrf.mxu0
    %v4788 = vadd.f32 %v4675, %v4787
    %v4789 = vpop.f32.mrf.mxu0
    %v4790 = vadd.f32 %v4677, %v4789
    %4791 = vmatprep.mubr.bf16.mxu0 0
    %4792 = vmatmul.mubr.bf16.gmra.mxu0 %v4092
    %v4793 = vpop.f32.mrf.mxu0
    %v4794 = vadd.f32 %v4681, %v4793
    %v4795 = vpop.f32.mrf.mxu0
    %v4796 = vadd.f32 %v4683, %v4795
    %v4797 = vpop.f32.mrf.mxu0
    %v4798 = vadd.f32 %v4685, %v4797
    %v4799 = vpop.f32.mrf.mxu0
    %v4800 = vadd.f32 %v4687, %v4799
    %4801 = vmatprep.mubr.bf16.mxu0 0
    %4802 = vmatmul.mubr.bf16.gmra.mxu0 %v4095
    %v4803 = vpop.f32.mrf.mxu0
    %v4804 = vadd.f32 %v4691, %v4803
    %v4805 = vpop.f32.mrf.mxu0
    %v4806 = vadd.f32 %v4693, %v4805
    %v4807 = vpop.f32.mrf.mxu0
    %v4808 = vadd.f32 %v4695, %v4807
    %v4809 = vpop.f32.mrf.mxu0
    %v4810 = vadd.f32 %v4697, %v4809
    %4811 = vmatprep.mubr.bf16.mxu0 0
    %4812 = vmatmul.mubr.bf16.gmra.mxu0 %v4098
    %v4813 = vpop.f32.mrf.mxu0
    %v4814 = vadd.f32 %v4701, %v4813
    %v4815 = vpop.f32.mrf.mxu0
    %v4816 = vadd.f32 %v4703, %v4815
    %v4817 = vpop.f32.mrf.mxu0
    %v4818 = vadd.f32 %v4705, %v4817
    %v4819 = vpop.f32.mrf.mxu0
    %v4820 = vadd.f32 %v4707, %v4819
    %4821 = vdwg.mxu0
    %4822 = vmatprep.subr.bf16.mxu0 0
    %4823 = vmatpush1.bf16.msra.mxu0 %v4475
    %4824 = vmatprep.subr.bf16.mxu0 0
    %4825 = vmatpush1.bf16.msra.mxu0 %v4472
    %4826 = vmatprep.subr.bf16.mxu0 0
    %4827 = vmatpush1.bf16.msra.mxu0 %v4469
    %4828 = vmatprep.subr.bf16.mxu0 0
    %4829 = vmatpush1.bf16.msra.mxu0 %v4466
    %4830 = vmatprep.subr.bf16.mxu0 0
    %4831 = vmatpush1.bf16.msra.mxu0 %v4463
    %4832 = vmatprep.subr.bf16.mxu0 0
    %4833 = vmatpush1.bf16.msra.mxu0 %v4460
    %4834 = vmatprep.subr.bf16.mxu0 0
    %4835 = vmatpush1.bf16.msra.mxu0 %v4457
    %4836 = vmatprep.subr.bf16.mxu0 0
    %4837 = vmatpush1.bf16.msra.mxu0 %v4454
    %4838 = vmatprep.subr.bf16.mxu0 0
    %4839 = vmatpush2.bf16.msra.mxu0 %v4499
    %4840 = vmatprep.subr.bf16.mxu0 0
    %4841 = vmatpush2.bf16.msra.mxu0 %v4496
    %4842 = vmatprep.subr.bf16.mxu0 0
    %4843 = vmatpush2.bf16.msra.mxu0 %v4493
    %4844 = vmatprep.subr.bf16.mxu0 0
    %4845 = vmatpush2.bf16.msra.mxu0 %v4490
    %4846 = vmatprep.subr.bf16.mxu0 0
    %4847 = vmatpush2.bf16.msra.mxu0 %v4487
    %4848 = vmatprep.subr.bf16.mxu0 0
    %4849 = vmatpush2.bf16.msra.mxu0 %v4484
    %4850 = vmatprep.subr.bf16.mxu0 0
    %4851 = vmatpush2.bf16.msra.mxu0 %v4481
    %4852 = vmatprep.subr.bf16.mxu0 0
    %4853 = vmatpush2.bf16.msra.mxu0 %v4478
    %4854 = vmatprep.mubr.bf16.mxu0 %v4076
    %4855 = vmatmul.mubr.bf16.gmra.mxu0 %v4075
    %v4856 = vpop.f32.mrf.mxu0
    %v4857 = vadd.f32 %v4208, %v4856
    %v4858 = vpop.f32.mrf.mxu0
    %v4859 = vpop.f32.mrf.mxu0
    %v4860 = vadd.f32 %v4208, %v4859
    %v4861 = vpop.f32.mrf.mxu0
    %4862 = vmatprep.mubr.bf16.mxu0 %v4079
    %4863 = vmatmul.mubr.bf16.gmra.mxu0 %v4078
    %v4864 = vpop.f32.mrf.mxu0
    %v4865 = vadd.f32 %v4208, %v4864
    %v4866 = vpop.f32.mrf.mxu0
    %v4867 = vpop.f32.mrf.mxu0
    %v4868 = vadd.f32 %v4208, %v4867
    %v4869 = vpop.f32.mrf.mxu0
    %4870 = vmatprep.mubr.bf16.mxu0 %v4082
    %4871 = vmatmul.mubr.bf16.gmra.mxu0 %v4081
    %v4872 = vpop.f32.mrf.mxu0
    %v4873 = vadd.f32 %v4208, %v4872
    %v4874 = vpop.f32.mrf.mxu0
    %v4875 = vpop.f32.mrf.mxu0
    %v4876 = vadd.f32 %v4208, %v4875
    %v4877 = vpop.f32.mrf.mxu0
    %4878 = vmatprep.mubr.bf16.mxu0 %v4085
    %4879 = vmatmul.mubr.bf16.gmra.mxu0 %v4084
    %v4880 = vpop.f32.mrf.mxu0
    %v4881 = vadd.f32 %v4208, %v4880
    %v4882 = vpop.f32.mrf.mxu0
    %v4883 = vpop.f32.mrf.mxu0
    %v4884 = vadd.f32 %v4208, %v4883
    %v4885 = vpop.f32.mrf.mxu0
    %4886 = vmatprep.mubr.bf16.mxu0 %v4088
    %4887 = vmatmul.mubr.bf16.gmra.mxu0 %v4087
    %v4888 = vpop.f32.mrf.mxu0
    %v4889 = vadd.f32 %v4208, %v4888
    %v4890 = vpop.f32.mrf.mxu0
    %v4891 = vpop.f32.mrf.mxu0
    %v4892 = vadd.f32 %v4208, %v4891
    %v4893 = vpop.f32.mrf.mxu0
    %4894 = vmatprep.mubr.bf16.mxu0 %v4091
    %4895 = vmatmul.mubr.bf16.gmra.mxu0 %v4090
    %v4896 = vpop.f32.mrf.mxu0
    %v4897 = vadd.f32 %v4208, %v4896
    %v4898 = vpop.f32.mrf.mxu0
    %v4899 = vpop.f32.mrf.mxu0
    %v4900 = vadd.f32 %v4208, %v4899
    %v4901 = vpop.f32.mrf.mxu0
    %4902 = vmatprep.mubr.bf16.mxu0 %v4094
    %4903 = vmatmul.mubr.bf16.gmra.mxu0 %v4093
    %v4904 = vpop.f32.mrf.mxu0
    %v4905 = vadd.f32 %v4208, %v4904
    %v4906 = vpop.f32.mrf.mxu0
    %v4907 = vpop.f32.mrf.mxu0
    %v4908 = vadd.f32 %v4208, %v4907
    %v4909 = vpop.f32.mrf.mxu0
    %4910 = vmatprep.mubr.bf16.mxu0 %v4097
    %4911 = vmatmul.mubr.bf16.gmra.mxu0 %v4096
    %v4912 = vpop.f32.mrf.mxu0
    %v4913 = vadd.f32 %v4208, %v4912
    %v4914 = vpop.f32.mrf.mxu0
    %v4915 = vpop.f32.mrf.mxu0
    %v4916 = vadd.f32 %v4208, %v4915
    %v4917 = vpop.f32.mrf.mxu0
    %4918 = vdwg.mxu0
    %4919 = vmatprep.subr.bf16.mxu0 0
    %4920 = vmatpush1.bf16.msra.mxu0 %v4523
    %4921 = vmatprep.subr.bf16.mxu0 0
    %4922 = vmatpush1.bf16.msra.mxu0 %v4520
    %4923 = vmatprep.subr.bf16.mxu0 0
    %4924 = vmatpush1.bf16.msra.mxu0 %v4517
    %4925 = vmatprep.subr.bf16.mxu0 0
    %4926 = vmatpush1.bf16.msra.mxu0 %v4514
    %4927 = vmatprep.subr.bf16.mxu0 0
    %4928 = vmatpush1.bf16.msra.mxu0 %v4511
    %4929 = vmatprep.subr.bf16.mxu0 0
    %4930 = vmatpush1.bf16.msra.mxu0 %v4508
    %4931 = vmatprep.subr.bf16.mxu0 0
    %4932 = vmatpush1.bf16.msra.mxu0 %v4505
    %4933 = vmatprep.subr.bf16.mxu0 0
    %4934 = vmatpush1.bf16.msra.mxu0 %v4502
    %4935 = vmatprep.subr.bf16.mxu0 0
    %4936 = vmatpush2.bf16.msra.mxu0 0
    %4937 = vmatprep.subr.bf16.mxu0 0
    %4938 = vmatpush2.bf16.msra.mxu0 0
    %4939 = vmatprep.subr.bf16.mxu0 0
    %4940 = vmatpush2.bf16.msra.mxu0 0
    %4941 = vmatprep.subr.bf16.mxu0 0
    %4942 = vmatpush2.bf16.msra.mxu0 0
    %4943 = vmatprep.subr.bf16.mxu0 0
    %4944 = vmatpush2.bf16.msra.mxu0 0
    %4945 = vmatprep.subr.bf16.mxu0 0
    %4946 = vmatpush2.bf16.msra.mxu0 0
    %4947 = vmatprep.subr.bf16.mxu0 0
    %4948 = vmatpush2.bf16.msra.mxu0 0
    %4949 = vmatprep.subr.bf16.mxu0 0
    %4950 = vmatpush2.bf16.msra.mxu0 0
    %4951 = vmatprep.mubr.bf16.mxu0 0
    %4952 = vmatmul.mubr.bf16.gmra.mxu0 %v4077
    %v4953 = vpop.f32.mrf.mxu0
    %v4954 = vadd.f32 %v4857, %v4953
    %v4955 = vpop.f32.mrf.mxu0
    %v4956 = vpop.f32.mrf.mxu0
    %v4957 = vadd.f32 %v4860, %v4956
    %v4958 = vpop.f32.mrf.mxu0
    %4959 = vmatprep.mubr.bf16.mxu0 0
    %4960 = vmatmul.mubr.bf16.gmra.mxu0 %v4080
    %v4961 = vpop.f32.mrf.mxu0
    %v4962 = vadd.f32 %v4865, %v4961
    %v4963 = vpop.f32.mrf.mxu0
    %v4964 = vpop.f32.mrf.mxu0
    %v4965 = vadd.f32 %v4868, %v4964
    %v4966 = vpop.f32.mrf.mxu0
    %4967 = vmatprep.mubr.bf16.mxu0 0
    %4968 = vmatmul.mubr.bf16.gmra.mxu0 %v4083
    %v4969 = vpop.f32.mrf.mxu0
    %v4970 = vadd.f32 %v4873, %v4969
    %v4971 = vpop.f32.mrf.mxu0
    %v4972 = vpop.f32.mrf.mxu0
    %v4973 = vadd.f32 %v4876, %v4972
    %v4974 = vpop.f32.mrf.mxu0
    %4975 = vmatprep.mubr.bf16.mxu0 0
    %4976 = vmatmul.mubr.bf16.gmra.mxu0 %v4086
    %v4977 = vpop.f32.mrf.mxu0
    %v4978 = vadd.f32 %v4881, %v4977
    %v4979 = vpop.f32.mrf.mxu0
    %v4980 = vpop.f32.mrf.mxu0
    %v4981 = vadd.f32 %v4884, %v4980
    %v4982 = vpop.f32.mrf.mxu0
    %4983 = vmatprep.mubr.bf16.mxu0 0
    %4984 = vmatmul.mubr.bf16.gmra.mxu0 %v4089
    %v4985 = vpop.f32.mrf.mxu0
    %v4986 = vadd.f32 %v4889, %v4985
    %v4987 = vpop.f32.mrf.mxu0
    %v4988 = vpop.f32.mrf.mxu0
    %v4989 = vadd.f32 %v4892, %v4988
    %v4990 = vpop.f32.mrf.mxu0
    %4991 = vmatprep.mubr.bf16.mxu0 0
    %4992 = vmatmul.mubr.bf16.gmra.mxu0 %v4092
    %v4993 = vpop.f32.mrf.mxu0
    %v4994 = vadd.f32 %v4897, %v4993
    %v4995 = vpop.f32.mrf.mxu0
    %v4996 = vpop.f32.mrf.mxu0
    %v4997 = vadd.f32 %v4900, %v4996
    %v4998 = vpop.f32.mrf.mxu0
    %4999 = vmatprep.mubr.bf16.mxu0 0
    %5000 = vmatmul.mubr.bf16.gmra.mxu0 %v4095
    %v5001 = vpop.f32.mrf.mxu0
    %v5002 = vadd.f32 %v4905, %v5001
    %v5003 = vpop.f32.mrf.mxu0
    %v5004 = vpop.f32.mrf.mxu0
    %v5005 = vadd.f32 %v4908, %v5004
    %v5006 = vpop.f32.mrf.mxu0
    %5007 = vmatprep.mubr.bf16.mxu0 0
    %5008 = vmatmul.mubr.bf16.gmra.mxu0 %v4098
    %v5009 = vpop.f32.mrf.mxu0
    %v5010 = vadd.f32 %v4913, %v5009
    %v5011 = vpop.f32.mrf.mxu0
    %v5012 = vpop.f32.mrf.mxu0
    %v5013 = vadd.f32 %v4916, %v5012
    %v5014 = vpop.f32.mrf.mxu0
    %5015 = vdwg.mxu0
    %v5016 = vmax.f32 %v4744, 0.0
    %v5017 = vmax.f32 %v4746, 0.0
    %v5018 = vmax.f32 %v4954, 0.0
    %v5019 = vmax.f32 %v4748, 0.0
    %v5020 = vmax.f32 %v4750, 0.0
    %v5021 = vmax.f32 %v4957, 0.0
    %v5022 = vmax.f32 %v4754, 0.0
    %v5023 = vmax.f32 %v4756, 0.0
    %v5024 = vmax.f32 %v4962, 0.0
    %v5025 = vmax.f32 %v4758, 0.0
    %v5026 = vmax.f32 %v4760, 0.0
    %v5027 = vmax.f32 %v4965, 0.0
    %v5028 = vmax.f32 %v4764, 0.0
    %v5029 = vmax.f32 %v4766, 0.0
    %v5030 = vmax.f32 %v4970, 0.0
    %v5031 = vmax.f32 %v4768, 0.0
    %v5032 = vmax.f32 %v4770, 0.0
    %v5033 = vmax.f32 %v4973, 0.0
    %v5034 = vmax.f32 %v4774, 0.0
    %v5035 = vmax.f32 %v4776, 0.0
    %v5036 = vmax.f32 %v4978, 0.0
    %v5037 = vmax.f32 %v4778, 0.0
    %v5038 = vmax.f32 %v4780, 0.0
    %v5039 = vmax.f32 %v4981, 0.0
    %v5040 = vmax.f32 %v4784, 0.0
    %v5041 = vmax.f32 %v4786, 0.0
    %v5042 = vmax.f32 %v4986, 0.0
    %v5043 = vmax.f32 %v4788, 0.0
    %v5044 = vmax.f32 %v4790, 0.0
    %v5045 = vmax.f32 %v4989, 0.0
    %v5046 = vmax.f32 %v4794, 0.0
    %v5047 = vmax.f32 %v4796, 0.0
    %v5048 = vmax.f32 %v4994, 0.0
    %v5049 = vmax.f32 %v4798, 0.0
    %v5050 = vmax.f32 %v4800, 0.0
    %v5051 = vmax.f32 %v4997, 0.0
    %v5052 = vmax.f32 %v4804, 0.0
    %v5053 = vmax.f32 %v4806, 0.0
    %v5054 = vmax.f32 %v5002, 0.0
    %v5055 = vmax.f32 %v4808, 0.0
    %v5056 = vmax.f32 %v4810, 0.0
    %v5057 = vmax.f32 %v5005, 0.0
    %v5058 = vmax.f32 %v4814, 0.0
    %v5059 = vmax.f32 %v4816, 0.0
    %v5060 = vmax.f32 %v5010, 0.0
    %v5061 = vmax.f32 %v4818, 0.0
    %v5062 = vmax.f32 %v4820, 0.0
    %v5063 = vmax.f32 %v5013, 0.0
    %v5064 = vpack.c.bf16 %v5019, %v5016
    %v5065 = vpack.c.bf16 %v5020, %v5017
    %v5066 = vpack.c.bf16 %v5021, %v5018
    %v5067 = vpack.c.bf16 %v5025, %v5022
    %v5068 = vpack.c.bf16 %v5026, %v5023
    %v5069 = vpack.c.bf16 %v5027, %v5024
    %v5070 = vpack.c.bf16 %v5031, %v5028
    %v5071 = vpack.c.bf16 %v5032, %v5029
    %v5072 = vpack.c.bf16 %v5033, %v5030
    %v5073 = vpack.c.bf16 %v5037, %v5034
    %v5074 = vpack.c.bf16 %v5038, %v5035
    %v5075 = vpack.c.bf16 %v5039, %v5036
    %v5076 = vpack.c.bf16 %v5043, %v5040
    %v5077 = vpack.c.bf16 %v5044, %v5041
    %v5078 = vpack.c.bf16 %v5045, %v5042
    %v5079 = vpack.c.bf16 %v5049, %v5046
    %v5080 = vpack.c.bf16 %v5050, %v5047
    %v5081 = vpack.c.bf16 %v5051, %v5048
    %v5082 = vpack.c.bf16 %v5055, %v5052
    %v5083 = vpack.c.bf16 %v5056, %v5053
    %v5084 = vpack.c.bf16 %v5057, %v5054
    %v5085 = vpack.c.bf16 %v5061, %v5058
    %v5086 = vpack.c.bf16 %v5062, %v5059
    %v5087 = vpack.c.bf16 %v5063, %v5060
    %v5088 = vld [vmem:[#allocation4] sm:$0xff]
    %v5089 = vld [vmem:[#allocation4 + $0x8] sm:$0xf]
    %v5090 = vld [vmem:[#allocation4 + $0xc] sm:$0xff]
    %v5091 = vld [vmem:[#allocation4 + $0x14] sm:$0xf]
    %v5092 = vld [vmem:[#allocation4 + $0x18] sm:$0xff]
    %v5093 = vld [vmem:[#allocation4 + $0x20] sm:$0xf]
    %v5094 = vld [vmem:[#allocation4 + $0x24] sm:$0xff]
    %v5095 = vld [vmem:[#allocation4 + $0x2c] sm:$0xf]
    %v5096 = vld [vmem:[#allocation4 + $0x30] sm:$0xff]
    %v5097 = vld [vmem:[#allocation4 + $0x38] sm:$0xf]
    %v5098 = vld [vmem:[#allocation4 + $0x3c] sm:$0xff]
    %v5099 = vld [vmem:[#allocation4 + $0x44] sm:$0xf]
    %v5100 = vld [vmem:[#allocation4 + $0x48] sm:$0xff]
    %v5101 = vld [vmem:[#allocation4 + $0x50] sm:$0xf]
    %v5102 = vld [vmem:[#allocation4 + $0x54] sm:$0xff]
    %v5103 = vld [vmem:[#allocation4 + $0x5c] sm:$0xf]
    %v5104 = vld [vmem:[#allocation4 + $0x60] sm:$0xff]
    %v5105 = vld [vmem:[#allocation4 + $0x68] sm:$0xf]
    %v5106 = vld [vmem:[#allocation4 + $0x6c] sm:$0xff]
    %v5107 = vld [vmem:[#allocation4 + $0x74] sm:$0xf]
    %v5108 = vld [vmem:[#allocation4 + $0x78] sm:$0xff]
    %v5109 = vld [vmem:[#allocation4 + $0x80] sm:$0xf]
    %v5110 = vld [vmem:[#allocation4 + $0x84] sm:$0xff]
    %v5111 = vld [vmem:[#allocation4 + $0x8c] sm:$0xf]
    %v5112 = vld [vmem:[#allocation4 + $0x90] sm:$0xff]
    %v5113 = vld [vmem:[#allocation4 + $0x98] sm:$0xf]
    %v5114 = vld [vmem:[#allocation4 + $0x9c] sm:$0xff]
    %v5115 = vld [vmem:[#allocation4 + $0xa4] sm:$0xf]
    %v5116 = vld [vmem:[#allocation4 + $0xa8] sm:$0xff]
    %v5117 = vld [vmem:[#allocation4 + $0xb0] sm:$0xf]
    %v5118 = vld [vmem:[#allocation4 + $0xb4] sm:$0xff]
    %v5119 = vld [vmem:[#allocation4 + $0xbc] sm:$0xf]
    %v5120 = vld [vmem:[#allocation4 + $0xc0] sm:$0xff]
    %v5121 = vld [vmem:[#allocation4 + $0xc8] sm:$0xf]
    %v5122 = vld [vmem:[#allocation4 + $0xcc] sm:$0xff]
    %v5123 = vld [vmem:[#allocation4 + $0xd4] sm:$0xf]
    %v5124 = vld [vmem:[#allocation4 + $0xd8] sm:$0xff]
    %v5125 = vld [vmem:[#allocation4 + $0xe0] sm:$0xf]
    %v5126 = vld [vmem:[#allocation4 + $0xe4] sm:$0xff]
    %v5127 = vld [vmem:[#allocation4 + $0xec] sm:$0xf]
    %v5128 = vld [vmem:[#allocation4 + $0xf0] sm:$0xff]
    %v5129 = vld [vmem:[#allocation4 + $0xf8] sm:$0xf]
    %v5130 = vld [vmem:[#allocation4 + $0xfc] sm:$0xff]
    %v5131 = vld [vmem:[#allocation4 + $0x104] sm:$0xf]
    %v5132 = vld [vmem:[#allocation4 + $0x108] sm:$0xff]
    %v5133 = vld [vmem:[#allocation4 + $0x110] sm:$0xf]
    %v5134 = vld [vmem:[#allocation4 + $0x114] sm:$0xff]
    %v5135 = vld [vmem:[#allocation4 + $0x11c] sm:$0xf]
    %v5136 = vld [vmem:[#allocation4 + $0x120] sm:$0xff]
    %v5137 = vld [vmem:[#allocation4 + $0x128] sm:$0xf]
    %v5138 = vld [vmem:[#allocation4 + $0x12c] sm:$0xff]
    %v5139 = vld [vmem:[#allocation4 + $0x134] sm:$0xf]
    %v5140 = vld [vmem:[#allocation4 + $0x138] sm:$0xff]
    %v5141 = vld [vmem:[#allocation4 + $0x140] sm:$0xf]
    %v5142 = vld [vmem:[#allocation4 + $0x144] sm:$0xff]
    %v5143 = vld [vmem:[#allocation4 + $0x14c] sm:$0xf]
    %v5144 = vld [vmem:[#allocation4 + $0x150] sm:$0xff]
    %v5145 = vld [vmem:[#allocation4 + $0x158] sm:$0xf]
    %v5146 = vld [vmem:[#allocation4 + $0x15c] sm:$0xff]
    %v5147 = vld [vmem:[#allocation4 + $0x164] sm:$0xf]
    %v5148 = vld [vmem:[#allocation4 + $0x168] sm:$0xff]
    %v5149 = vld [vmem:[#allocation4 + $0x170] sm:$0xf]
    %v5150 = vld [vmem:[#allocation4 + $0x174] sm:$0xff]
    %v5151 = vld [vmem:[#allocation4 + $0x17c] sm:$0xf]
    %v5152 = vld [vmem:[#allocation4 + $0x180] sm:$0xff]
    %v5153 = vld [vmem:[#allocation4 + $0x188] sm:$0xf]
    %v5154 = vld [vmem:[#allocation4 + $0x18c] sm:$0xff]
    %v5155 = vld [vmem:[#allocation4 + $0x194] sm:$0xf]
    %v5156 = vld [vmem:[#allocation4 + $0x198] sm:$0xff]
    %v5157 = vld [vmem:[#allocation4 + $0x1a0] sm:$0xf]
    %v5158 = vld [vmem:[#allocation4 + $0x1a4] sm:$0xff]
    %v5159 = vld [vmem:[#allocation4 + $0x1ac] sm:$0xf]
    %v5160 = vld [vmem:[#allocation4 + $0x1b0] sm:$0xff]
    %v5161 = vld [vmem:[#allocation4 + $0x1b8] sm:$0xf]
    %v5162 = vld [vmem:[#allocation4 + $0x1bc] sm:$0xff]
    %v5163 = vld [vmem:[#allocation4 + $0x1c4] sm:$0xf]
    %v5164 = vld [vmem:[#allocation4 + $0x1c8] sm:$0xff]
    %v5165 = vld [vmem:[#allocation4 + $0x1d0] sm:$0xf]
    %v5166 = vld [vmem:[#allocation4 + $0x1d4] sm:$0xff]
    %v5167 = vld [vmem:[#allocation4 + $0x1dc] sm:$0xf]
    %v5168 = vld [vmem:[#allocation4 + $0x1e0] sm:$0xff]
    %v5169 = vld [vmem:[#allocation4 + $0x1e8] sm:$0xf]
    %v5170 = vld [vmem:[#allocation4 + $0x1ec] sm:$0xff]
    %v5171 = vld [vmem:[#allocation4 + $0x1f4] sm:$0xf]
    %v5172 = vld [vmem:[#allocation4 + $0x1f8] sm:$0xff]
    %v5173 = vld [vmem:[#allocation4 + $0x200] sm:$0xf]
    %v5174 = vld [vmem:[#allocation4 + $0x204] sm:$0xff]
    %v5175 = vld [vmem:[#allocation4 + $0x20c] sm:$0xf]
    %v5176 = vld [vmem:[#allocation4 + $0x210] sm:$0xff]
    %v5177 = vld [vmem:[#allocation4 + $0x218] sm:$0xf]
    %v5178 = vld [vmem:[#allocation4 + $0x21c] sm:$0xff]
    %v5179 = vld [vmem:[#allocation4 + $0x224] sm:$0xf]
    %v5180 = vld [vmem:[#allocation4 + $0x228] sm:$0xff]
    %v5181 = vld [vmem:[#allocation4 + $0x230] sm:$0xf]
    %v5182 = vld [vmem:[#allocation4 + $0x234] sm:$0xff]
    %v5183 = vld [vmem:[#allocation4 + $0x23c] sm:$0xf]
    %v5184 = vld [vmem:[%s15] sm:$0x7]
    %v5186 = vlaneseq
    %v5187 = vshrl.u32 %v5186, 7
    %v5188 = vsub.s32 0, %v5187
    %v5189 = vrot.slane %v5184, %v5188
    %v5190 = vlaneseq
    %v5191 = vshrl.u32 %v5190, 7
    %v5192 = vsub.s32 1, %v5191
    %v5193 = vrot.slane %v5184, %v5192
    %v5194 = vlaneseq
    %v5195 = vshrl.u32 %v5194, 7
    %v5196 = vsub.s32 2, %v5195
    %v5197 = vrot.slane %v5184, %v5196
    %v5297 = vunpack.c.l.b16 %v5088
    %v5298 = vunpack.c.h.b16 %v5088
    %v5299 = vunpack.c.l.b16 %v5089
    %v5300 = vunpack.c.l.b16 %v5090
    %v5301 = vunpack.c.h.b16 %v5090
    %v5302 = vunpack.c.l.b16 %v5091
    %v5303 = vunpack.c.l.b16 %v5092
    %v5304 = vunpack.c.h.b16 %v5092
    %v5305 = vunpack.c.l.b16 %v5093
    %v5306 = vunpack.c.l.b16 %v5094
    %v5307 = vunpack.c.h.b16 %v5094
    %v5308 = vunpack.c.l.b16 %v5095
    %v5309 = vunpack.c.l.b16 %v5096
    %v5310 = vunpack.c.h.b16 %v5096
    %v5311 = vunpack.c.l.b16 %v5097
    %v5312 = vunpack.c.l.b16 %v5098
    %v5313 = vunpack.c.h.b16 %v5098
    %v5314 = vunpack.c.l.b16 %v5099
    %v5315 = vunpack.c.l.b16 %v5100
    %v5316 = vunpack.c.h.b16 %v5100
    %v5317 = vunpack.c.l.b16 %v5101
    %v5318 = vunpack.c.l.b16 %v5102
    %v5319 = vunpack.c.h.b16 %v5102
    %v5320 = vunpack.c.l.b16 %v5103
    %v5321 = vunpack.c.l.b16 %v5104
    %v5322 = vunpack.c.h.b16 %v5104
    %v5323 = vunpack.c.l.b16 %v5105
    %v5324 = vunpack.c.l.b16 %v5106
    %v5325 = vunpack.c.h.b16 %v5106
    %v5326 = vunpack.c.l.b16 %v5107
    %v5327 = vunpack.c.l.b16 %v5108
    %v5328 = vunpack.c.h.b16 %v5108
    %v5329 = vunpack.c.l.b16 %v5109
    %v5330 = vunpack.c.l.b16 %v5110
    %v5331 = vunpack.c.h.b16 %v5110
    %v5332 = vunpack.c.l.b16 %v5111
    %v5333 = vunpack.c.l.b16 %v5112
    %v5334 = vunpack.c.h.b16 %v5112
    %v5335 = vunpack.c.l.b16 %v5113
    %v5336 = vunpack.c.l.b16 %v5114
    %v5337 = vunpack.c.h.b16 %v5114
    %v5338 = vunpack.c.l.b16 %v5115
    %v5339 = vunpack.c.l.b16 %v5116
    %v5340 = vunpack.c.h.b16 %v5116
    %v5341 = vunpack.c.l.b16 %v5117
    %v5342 = vunpack.c.l.b16 %v5118
    %v5343 = vunpack.c.h.b16 %v5118
    %v5344 = vunpack.c.l.b16 %v5119
    %v5345 = vunpack.c.l.b16 %v5120
    %v5346 = vunpack.c.h.b16 %v5120
    %v5347 = vunpack.c.l.b16 %v5121
    %v5348 = vunpack.c.l.b16 %v5122
    %v5349 = vunpack.c.h.b16 %v5122
    %v5350 = vunpack.c.l.b16 %v5123
    %v5351 = vunpack.c.l.b16 %v5124
    %v5352 = vunpack.c.h.b16 %v5124
    %v5353 = vunpack.c.l.b16 %v5125
    %v5354 = vunpack.c.l.b16 %v5126
    %v5355 = vunpack.c.h.b16 %v5126
    %v5356 = vunpack.c.l.b16 %v5127
    %v5357 = vunpack.c.l.b16 %v5128
    %v5358 = vunpack.c.h.b16 %v5128
    %v5359 = vunpack.c.l.b16 %v5129
    %v5360 = vunpack.c.l.b16 %v5130
    %v5361 = vunpack.c.h.b16 %v5130
    %v5362 = vunpack.c.l.b16 %v5131
    %v5363 = vunpack.c.l.b16 %v5132
    %v5364 = vunpack.c.h.b16 %v5132
    %v5365 = vunpack.c.l.b16 %v5133
    %v5366 = vunpack.c.l.b16 %v5134
    %v5367 = vunpack.c.h.b16 %v5134
    %v5368 = vunpack.c.l.b16 %v5135
    %v5369 = vunpack.c.l.b16 %v5136
    %v5370 = vunpack.c.h.b16 %v5136
    %v5371 = vunpack.c.l.b16 %v5137
    %v5372 = vunpack.c.l.b16 %v5138
    %v5373 = vunpack.c.h.b16 %v5138
    %v5374 = vunpack.c.l.b16 %v5139
    %v5375 = vunpack.c.l.b16 %v5140
    %v5376 = vunpack.c.h.b16 %v5140
    %v5377 = vunpack.c.l.b16 %v5141
    %v5378 = vunpack.c.l.b16 %v5142
    %v5379 = vunpack.c.h.b16 %v5142
    %v5380 = vunpack.c.l.b16 %v5143
    %v5381 = vunpack.c.l.b16 %v5144
    %v5382 = vunpack.c.h.b16 %v5144
    %v5383 = vunpack.c.l.b16 %v5145
    %v5384 = vunpack.c.l.b16 %v5146
    %v5385 = vunpack.c.h.b16 %v5146
    %v5386 = vunpack.c.l.b16 %v5147
    %v5387 = vunpack.c.l.b16 %v5148
    %v5388 = vunpack.c.h.b16 %v5148
    %v5389 = vunpack.c.l.b16 %v5149
    %v5390 = vunpack.c.l.b16 %v5150
    %v5391 = vunpack.c.h.b16 %v5150
    %v5392 = vunpack.c.l.b16 %v5151
    %v5393 = vunpack.c.l.b16 %v5152
    %v5394 = vunpack.c.h.b16 %v5152
    %v5395 = vunpack.c.l.b16 %v5153
    %v5396 = vunpack.c.l.b16 %v5154
    %v5397 = vunpack.c.h.b16 %v5154
    %v5398 = vunpack.c.l.b16 %v5155
    %v5399 = vunpack.c.l.b16 %v5156
    %v5400 = vunpack.c.h.b16 %v5156
    %v5401 = vunpack.c.l.b16 %v5157
    %v5402 = vunpack.c.l.b16 %v5158
    %v5403 = vunpack.c.h.b16 %v5158
    %v5404 = vunpack.c.l.b16 %v5159
    %v5405 = vunpack.c.l.b16 %v5160
    %v5406 = vunpack.c.h.b16 %v5160
    %v5407 = vunpack.c.l.b16 %v5161
    %v5408 = vunpack.c.l.b16 %v5162
    %v5409 = vunpack.c.h.b16 %v5162
    %v5410 = vunpack.c.l.b16 %v5163
    %v5411 = vunpack.c.l.b16 %v5164
    %v5412 = vunpack.c.h.b16 %v5164
    %v5413 = vunpack.c.l.b16 %v5165
    %v5414 = vunpack.c.l.b16 %v5166
    %v5415 = vunpack.c.h.b16 %v5166
    %v5416 = vunpack.c.l.b16 %v5167
    %v5417 = vunpack.c.l.b16 %v5168
    %v5418 = vunpack.c.h.b16 %v5168
    %v5419 = vunpack.c.l.b16 %v5169
    %v5420 = vunpack.c.l.b16 %v5170
    %v5421 = vunpack.c.h.b16 %v5170
    %v5422 = vunpack.c.l.b16 %v5171
    %v5423 = vunpack.c.l.b16 %v5172
    %v5424 = vunpack.c.h.b16 %v5172
    %v5425 = vunpack.c.l.b16 %v5173
    %v5426 = vunpack.c.l.b16 %v5174
    %v5427 = vunpack.c.h.b16 %v5174
    %v5428 = vunpack.c.l.b16 %v5175
    %v5429 = vunpack.c.l.b16 %v5176
    %v5430 = vunpack.c.h.b16 %v5176
    %v5431 = vunpack.c.l.b16 %v5177
    %v5432 = vunpack.c.l.b16 %v5178
    %v5433 = vunpack.c.h.b16 %v5178
    %v5434 = vunpack.c.l.b16 %v5179
    %v5435 = vunpack.c.l.b16 %v5180
    %v5436 = vunpack.c.h.b16 %v5180
    %v5437 = vunpack.c.l.b16 %v5181
    %v5438 = vunpack.c.l.b16 %v5182
    %v5439 = vunpack.c.h.b16 %v5182
    %v5440 = vunpack.c.l.b16 %v5183
    %v5441 = vpack.c.b16 %v5300, %v5297
    %v5442 = vpack.c.b16 %v5301, %v5298
    %v5443 = vpack.c.b16 %v5302, %v5299
    %v5444 = vpack.c.b16 %v5306, %v5303
    %v5445 = vpack.c.b16 %v5307, %v5304
    %v5446 = vpack.c.b16 %v5308, %v5305
    %v5447 = vpack.c.b16 %v5312, %v5309
    %v5448 = vpack.c.b16 %v5313, %v5310
    %v5449 = vpack.c.b16 %v5314, %v5311
    %v5450 = vpack.c.b16 %v5318, %v5315
    %v5451 = vpack.c.b16 %v5319, %v5316
    %v5452 = vpack.c.b16 %v5320, %v5317
    %v5453 = vpack.c.b16 %v5324, %v5321
    %v5454 = vpack.c.b16 %v5325, %v5322
    %v5455 = vpack.c.b16 %v5326, %v5323
    %v5456 = vpack.c.b16 %v5330, %v5327
    %v5457 = vpack.c.b16 %v5331, %v5328
    %v5458 = vpack.c.b16 %v5332, %v5329
    %v5459 = vpack.c.b16 %v5336, %v5333
    %v5460 = vpack.c.b16 %v5337, %v5334
    %v5461 = vpack.c.b16 %v5338, %v5335
    %v5462 = vpack.c.b16 %v5342, %v5339
    %v5463 = vpack.c.b16 %v5343, %v5340
    %v5464 = vpack.c.b16 %v5344, %v5341
    %v5465 = vpack.c.b16 %v5348, %v5345
    %v5466 = vpack.c.b16 %v5349, %v5346
    %v5467 = vpack.c.b16 %v5350, %v5347
    %v5468 = vpack.c.b16 %v5354, %v5351
    %v5469 = vpack.c.b16 %v5355, %v5352
    %v5470 = vpack.c.b16 %v5356, %v5353
    %v5471 = vpack.c.b16 %v5360, %v5357
    %v5472 = vpack.c.b16 %v5361, %v5358
    %v5473 = vpack.c.b16 %v5362, %v5359
    %v5474 = vpack.c.b16 %v5366, %v5363
    %v5475 = vpack.c.b16 %v5367, %v5364
    %v5476 = vpack.c.b16 %v5368, %v5365
    %v5477 = vpack.c.b16 %v5372, %v5369
    %v5478 = vpack.c.b16 %v5373, %v5370
    %v5479 = vpack.c.b16 %v5374, %v5371
    %v5480 = vpack.c.b16 %v5378, %v5375
    %v5481 = vpack.c.b16 %v5379, %v5376
    %v5482 = vpack.c.b16 %v5380, %v5377
    %v5483 = vpack.c.b16 %v5384, %v5381
    %v5484 = vpack.c.b16 %v5385, %v5382
    %v5485 = vpack.c.b16 %v5386, %v5383
    %v5486 = vpack.c.b16 %v5390, %v5387
    %v5487 = vpack.c.b16 %v5391, %v5388
    %v5488 = vpack.c.b16 %v5392, %v5389
    %v5489 = vpack.c.b16 %v5396, %v5393
    %v5490 = vpack.c.b16 %v5397, %v5394
    %v5491 = vpack.c.b16 %v5398, %v5395
    %v5492 = vpack.c.b16 %v5402, %v5399
    %v5493 = vpack.c.b16 %v5403, %v5400
    %v5494 = vpack.c.b16 %v5404, %v5401
    %v5495 = vpack.c.b16 %v5408, %v5405
    %v5496 = vpack.c.b16 %v5409, %v5406
    %v5497 = vpack.c.b16 %v5410, %v5407
    %v5498 = vpack.c.b16 %v5414, %v5411
    %v5499 = vpack.c.b16 %v5415, %v5412
    %v5500 = vpack.c.b16 %v5416, %v5413
    %v5501 = vpack.c.b16 %v5420, %v5417
    %v5502 = vpack.c.b16 %v5421, %v5418
    %v5503 = vpack.c.b16 %v5422, %v5419
    %v5504 = vpack.c.b16 %v5426, %v5423
    %v5505 = vpack.c.b16 %v5427, %v5424
    %v5506 = vpack.c.b16 %v5428, %v5425
    %v5507 = vpack.c.b16 %v5432, %v5429
    %v5508 = vpack.c.b16 %v5433, %v5430
    %v5509 = vpack.c.b16 %v5434, %v5431
    %v5510 = vpack.c.b16 %v5438, %v5435
    %v5511 = vpack.c.b16 %v5439, %v5436
    %v5512 = vpack.c.b16 %v5440, %v5437
    %5585 = vmatprep.subr.bf16.mxu0 %v5463
    %5586 = vmatpush1.bf16.msra.mxu0 %v5462
    %5587 = vmatprep.subr.bf16.mxu0 %v5460
    %5588 = vmatpush1.bf16.msra.mxu0 %v5459
    %5589 = vmatprep.subr.bf16.mxu0 %v5457
    %5590 = vmatpush1.bf16.msra.mxu0 %v5456
    %5591 = vmatprep.subr.bf16.mxu0 %v5454
    %5592 = vmatpush1.bf16.msra.mxu0 %v5453
    %5593 = vmatprep.subr.bf16.mxu0 %v5451
    %5594 = vmatpush1.bf16.msra.mxu0 %v5450
    %5595 = vmatprep.subr.bf16.mxu0 %v5448
    %5596 = vmatpush1.bf16.msra.mxu0 %v5447
    %5597 = vmatprep.subr.bf16.mxu0 %v5445
    %5598 = vmatpush1.bf16.msra.mxu0 %v5444
    %5599 = vmatprep.subr.bf16.mxu0 %v5442
    %5600 = vmatpush1.bf16.msra.mxu0 %v5441
    %5601 = vmatprep.subr.bf16.mxu0 %v5487
    %5602 = vmatpush2.bf16.msra.mxu0 %v5486
    %5603 = vmatprep.subr.bf16.mxu0 %v5484
    %5604 = vmatpush2.bf16.msra.mxu0 %v5483
    %5605 = vmatprep.subr.bf16.mxu0 %v5481
    %5606 = vmatpush2.bf16.msra.mxu0 %v5480
    %5607 = vmatprep.subr.bf16.mxu0 %v5478
    %5608 = vmatpush2.bf16.msra.mxu0 %v5477
    %5609 = vmatprep.subr.bf16.mxu0 %v5475
    %5610 = vmatpush2.bf16.msra.mxu0 %v5474
    %5611 = vmatprep.subr.bf16.mxu0 %v5472
    %5612 = vmatpush2.bf16.msra.mxu0 %v5471
    %5613 = vmatprep.subr.bf16.mxu0 %v5469
    %5614 = vmatpush2.bf16.msra.mxu0 %v5468
    %5615 = vmatprep.subr.bf16.mxu0 %v5466
    %5616 = vmatpush2.bf16.msra.mxu0 %v5465
    %5617 = vmatprep.mubr.bf16.mxu0 %v5065
    %5618 = vmatmul.mubr.bf16.gmra.mxu0 %v5064
    %v5619 = vpop.f32.mrf.mxu0
    %v5620 = vadd.f32 %v5189, %v5619
    %v5621 = vpop.f32.mrf.mxu0
    %v5622 = vadd.f32 %v5193, %v5621
    %v5623 = vpop.f32.mrf.mxu0
    %v5624 = vadd.f32 %v5189, %v5623
    %v5625 = vpop.f32.mrf.mxu0
    %v5626 = vadd.f32 %v5193, %v5625
    %5627 = vmatprep.mubr.bf16.mxu0 %v5068
    %5628 = vmatmul.mubr.bf16.gmra.mxu0 %v5067
    %v5629 = vpop.f32.mrf.mxu0
    %v5630 = vadd.f32 %v5189, %v5629
    %v5631 = vpop.f32.mrf.mxu0
    %v5632 = vadd.f32 %v5193, %v5631
    %v5633 = vpop.f32.mrf.mxu0
    %v5634 = vadd.f32 %v5189, %v5633
    %v5635 = vpop.f32.mrf.mxu0
    %v5636 = vadd.f32 %v5193, %v5635
    %5637 = vmatprep.mubr.bf16.mxu0 %v5071
    %5638 = vmatmul.mubr.bf16.gmra.mxu0 %v5070
    %v5639 = vpop.f32.mrf.mxu0
    %v5640 = vadd.f32 %v5189, %v5639
    %v5641 = vpop.f32.mrf.mxu0
    %v5642 = vadd.f32 %v5193, %v5641
    %v5643 = vpop.f32.mrf.mxu0
    %v5644 = vadd.f32 %v5189, %v5643
    %v5645 = vpop.f32.mrf.mxu0
    %v5646 = vadd.f32 %v5193, %v5645
    %5647 = vmatprep.mubr.bf16.mxu0 %v5074
    %5648 = vmatmul.mubr.bf16.gmra.mxu0 %v5073
    %v5649 = vpop.f32.mrf.mxu0
    %v5650 = vadd.f32 %v5189, %v5649
    %v5651 = vpop.f32.mrf.mxu0
    %v5652 = vadd.f32 %v5193, %v5651
    %v5653 = vpop.f32.mrf.mxu0
    %v5654 = vadd.f32 %v5189, %v5653
    %v5655 = vpop.f32.mrf.mxu0
    %v5656 = vadd.f32 %v5193, %v5655
    %5657 = vmatprep.mubr.bf16.mxu0 %v5077
    %5658 = vmatmul.mubr.bf16.gmra.mxu0 %v5076
    %v5659 = vpop.f32.mrf.mxu0
    %v5660 = vadd.f32 %v5189, %v5659
    %v5661 = vpop.f32.mrf.mxu0
    %v5662 = vadd.f32 %v5193, %v5661
    %v5663 = vpop.f32.mrf.mxu0
    %v5664 = vadd.f32 %v5189, %v5663
    %v5665 = vpop.f32.mrf.mxu0
    %v5666 = vadd.f32 %v5193, %v5665
    %5667 = vmatprep.mubr.bf16.mxu0 %v5080
    %5668 = vmatmul.mubr.bf16.gmra.mxu0 %v5079
    %v5669 = vpop.f32.mrf.mxu0
    %v5670 = vadd.f32 %v5189, %v5669
    %v5671 = vpop.f32.mrf.mxu0
    %v5672 = vadd.f32 %v5193, %v5671
    %v5673 = vpop.f32.mrf.mxu0
    %v5674 = vadd.f32 %v5189, %v5673
    %v5675 = vpop.f32.mrf.mxu0
    %v5676 = vadd.f32 %v5193, %v5675
    %5677 = vmatprep.mubr.bf16.mxu0 %v5083
    %5678 = vmatmul.mubr.bf16.gmra.mxu0 %v5082
    %v5679 = vpop.f32.mrf.mxu0
    %v5680 = vadd.f32 %v5189, %v5679
    %v5681 = vpop.f32.mrf.mxu0
    %v5682 = vadd.f32 %v5193, %v5681
    %v5683 = vpop.f32.mrf.mxu0
    %v5684 = vadd.f32 %v5189, %v5683
    %v5685 = vpop.f32.mrf.mxu0
    %v5686 = vadd.f32 %v5193, %v5685
    %5687 = vmatprep.mubr.bf16.mxu0 %v5086
    %5688 = vmatmul.mubr.bf16.gmra.mxu0 %v5085
    %v5689 = vpop.f32.mrf.mxu0
    %v5690 = vadd.f32 %v5189, %v5689
    %v5691 = vpop.f32.mrf.mxu0
    %v5692 = vadd.f32 %v5193, %v5691
    %v5693 = vpop.f32.mrf.mxu0
    %v5694 = vadd.f32 %v5189, %v5693
    %v5695 = vpop.f32.mrf.mxu0
    %v5696 = vadd.f32 %v5193, %v5695
    %5697 = vdwg.mxu0
    %5698 = vmatprep.subr.bf16.mxu0 %v5511
    %5699 = vmatpush1.bf16.msra.mxu0 %v5510
    %5700 = vmatprep.subr.bf16.mxu0 %v5508
    %5701 = vmatpush1.bf16.msra.mxu0 %v5507
    %5702 = vmatprep.subr.bf16.mxu0 %v5505
    %5703 = vmatpush1.bf16.msra.mxu0 %v5504
    %5704 = vmatprep.subr.bf16.mxu0 %v5502
    %5705 = vmatpush1.bf16.msra.mxu0 %v5501
    %5706 = vmatprep.subr.bf16.mxu0 %v5499
    %5707 = vmatpush1.bf16.msra.mxu0 %v5498
    %5708 = vmatprep.subr.bf16.mxu0 %v5496
    %5709 = vmatpush1.bf16.msra.mxu0 %v5495
    %5710 = vmatprep.subr.bf16.mxu0 %v5493
    %5711 = vmatpush1.bf16.msra.mxu0 %v5492
    %5712 = vmatprep.subr.bf16.mxu0 %v5490
    %5713 = vmatpush1.bf16.msra.mxu0 %v5489
    %5714 = vmatprep.subr.bf16.mxu0 0
    %5715 = vmatpush2.bf16.msra.mxu0 0
    %5716 = vmatprep.subr.bf16.mxu0 0
    %5717 = vmatpush2.bf16.msra.mxu0 0
    %5718 = vmatprep.subr.bf16.mxu0 0
    %5719 = vmatpush2.bf16.msra.mxu0 0
    %5720 = vmatprep.subr.bf16.mxu0 0
    %5721 = vmatpush2.bf16.msra.mxu0 0
    %5722 = vmatprep.subr.bf16.mxu0 0
    %5723 = vmatpush2.bf16.msra.mxu0 0
    %5724 = vmatprep.subr.bf16.mxu0 0
    %5725 = vmatpush2.bf16.msra.mxu0 0
    %5726 = vmatprep.subr.bf16.mxu0 0
    %5727 = vmatpush2.bf16.msra.mxu0 0
    %5728 = vmatprep.subr.bf16.mxu0 0
    %5729 = vmatpush2.bf16.msra.mxu0 0
    %5730 = vmatprep.mubr.bf16.mxu0 0
    %5731 = vmatmul.mubr.bf16.gmra.mxu0 %v5066
    %v5732 = vpop.f32.mrf.mxu0
    %v5733 = vadd.f32 %v5620, %v5732
    %v5734 = vpop.f32.mrf.mxu0
    %v5735 = vadd.f32 %v5622, %v5734
    %v5736 = vpop.f32.mrf.mxu0
    %v5737 = vadd.f32 %v5624, %v5736
    %v5738 = vpop.f32.mrf.mxu0
    %v5739 = vadd.f32 %v5626, %v5738
    %5740 = vmatprep.mubr.bf16.mxu0 0
    %5741 = vmatmul.mubr.bf16.gmra.mxu0 %v5069
    %v5742 = vpop.f32.mrf.mxu0
    %v5743 = vadd.f32 %v5630, %v5742
    %v5744 = vpop.f32.mrf.mxu0
    %v5745 = vadd.f32 %v5632, %v5744
    %v5746 = vpop.f32.mrf.mxu0
    %v5747 = vadd.f32 %v5634, %v5746
    %v5748 = vpop.f32.mrf.mxu0
    %v5749 = vadd.f32 %v5636, %v5748
    %5750 = vmatprep.mubr.bf16.mxu0 0
    %5751 = vmatmul.mubr.bf16.gmra.mxu0 %v5072
    %v5752 = vpop.f32.mrf.mxu0
    %v5753 = vadd.f32 %v5640, %v5752
    %v5754 = vpop.f32.mrf.mxu0
    %v5755 = vadd.f32 %v5642, %v5754
    %v5756 = vpop.f32.mrf.mxu0
    %v5757 = vadd.f32 %v5644, %v5756
    %v5758 = vpop.f32.mrf.mxu0
    %v5759 = vadd.f32 %v5646, %v5758
    %5760 = vmatprep.mubr.bf16.mxu0 0
    %5761 = vmatmul.mubr.bf16.gmra.mxu0 %v5075
    %v5762 = vpop.f32.mrf.mxu0
    %v5763 = vadd.f32 %v5650, %v5762
    %v5764 = vpop.f32.mrf.mxu0
    %v5765 = vadd.f32 %v5652, %v5764
    %v5766 = vpop.f32.mrf.mxu0
    %v5767 = vadd.f32 %v5654, %v5766
    %v5768 = vpop.f32.mrf.mxu0
    %v5769 = vadd.f32 %v5656, %v5768
    %5770 = vmatprep.mubr.bf16.mxu0 0
    %5771 = vmatmul.mubr.bf16.gmra.mxu0 %v5078
    %v5772 = vpop.f32.mrf.mxu0
    %v5773 = vadd.f32 %v5660, %v5772
    %v5774 = vpop.f32.mrf.mxu0
    %v5775 = vadd.f32 %v5662, %v5774
    %v5776 = vpop.f32.mrf.mxu0
    %v5777 = vadd.f32 %v5664, %v5776
    %v5778 = vpop.f32.mrf.mxu0
    %v5779 = vadd.f32 %v5666, %v5778
    %5780 = vmatprep.mubr.bf16.mxu0 0
    %5781 = vmatmul.mubr.bf16.gmra.mxu0 %v5081
    %v5782 = vpop.f32.mrf.mxu0
    %v5783 = vadd.f32 %v5670, %v5782
    %v5784 = vpop.f32.mrf.mxu0
    %v5785 = vadd.f32 %v5672, %v5784
    %v5786 = vpop.f32.mrf.mxu0
    %v5787 = vadd.f32 %v5674, %v5786
    %v5788 = vpop.f32.mrf.mxu0
    %v5789 = vadd.f32 %v5676, %v5788
    %5790 = vmatprep.mubr.bf16.mxu0 0
    %5791 = vmatmul.mubr.bf16.gmra.mxu0 %v5084
    %v5792 = vpop.f32.mrf.mxu0
    %v5793 = vadd.f32 %v5680, %v5792
    %v5794 = vpop.f32.mrf.mxu0
    %v5795 = vadd.f32 %v5682, %v5794
    %v5796 = vpop.f32.mrf.mxu0
    %v5797 = vadd.f32 %v5684, %v5796
    %v5798 = vpop.f32.mrf.mxu0
    %v5799 = vadd.f32 %v5686, %v5798
    %5800 = vmatprep.mubr.bf16.mxu0 0
    %5801 = vmatmul.mubr.bf16.gmra.mxu0 %v5087
    %v5802 = vpop.f32.mrf.mxu0
    %v5803 = vadd.f32 %v5690, %v5802
    %v5804 = vpop.f32.mrf.mxu0
    %v5805 = vadd.f32 %v5692, %v5804
    %v5806 = vpop.f32.mrf.mxu0
    %v5807 = vadd.f32 %v5694, %v5806
    %v5808 = vpop.f32.mrf.mxu0
    %v5809 = vadd.f32 %v5696, %v5808
    %5810 = vdwg.mxu0
    %5811 = vmatprep.subr.bf16.mxu0 0
    %5812 = vmatpush1.bf16.msra.mxu0 %v5464
    %5813 = vmatprep.subr.bf16.mxu0 0
    %5814 = vmatpush1.bf16.msra.mxu0 %v5461
    %5815 = vmatprep.subr.bf16.mxu0 0
    %5816 = vmatpush1.bf16.msra.mxu0 %v5458
    %5817 = vmatprep.subr.bf16.mxu0 0
    %5818 = vmatpush1.bf16.msra.mxu0 %v5455
    %5819 = vmatprep.subr.bf16.mxu0 0
    %5820 = vmatpush1.bf16.msra.mxu0 %v5452
    %5821 = vmatprep.subr.bf16.mxu0 0
    %5822 = vmatpush1.bf16.msra.mxu0 %v5449
    %5823 = vmatprep.subr.bf16.mxu0 0
    %5824 = vmatpush1.bf16.msra.mxu0 %v5446
    %5825 = vmatprep.subr.bf16.mxu0 0
    %5826 = vmatpush1.bf16.msra.mxu0 %v5443
    %5827 = vmatprep.subr.bf16.mxu0 0
    %5828 = vmatpush2.bf16.msra.mxu0 %v5488
    %5829 = vmatprep.subr.bf16.mxu0 0
    %5830 = vmatpush2.bf16.msra.mxu0 %v5485
    %5831 = vmatprep.subr.bf16.mxu0 0
    %5832 = vmatpush2.bf16.msra.mxu0 %v5482
    %5833 = vmatprep.subr.bf16.mxu0 0
    %5834 = vmatpush2.bf16.msra.mxu0 %v5479
    %5835 = vmatprep.subr.bf16.mxu0 0
    %5836 = vmatpush2.bf16.msra.mxu0 %v5476
    %5837 = vmatprep.subr.bf16.mxu0 0
    %5838 = vmatpush2.bf16.msra.mxu0 %v5473
    %5839 = vmatprep.subr.bf16.mxu0 0
    %5840 = vmatpush2.bf16.msra.mxu0 %v5470
    %5841 = vmatprep.subr.bf16.mxu0 0
    %5842 = vmatpush2.bf16.msra.mxu0 %v5467
    %5843 = vmatprep.mubr.bf16.mxu0 %v5065
    %5844 = vmatmul.mubr.bf16.gmra.mxu0 %v5064
    %v5845 = vpop.f32.mrf.mxu0
    %v5846 = vadd.f32 %v5197, %v5845
    %v5847 = vpop.f32.mrf.mxu0
    %v5848 = vpop.f32.mrf.mxu0
    %v5849 = vadd.f32 %v5197, %v5848
    %v5850 = vpop.f32.mrf.mxu0
    %5851 = vmatprep.mubr.bf16.mxu0 %v5068
    %5852 = vmatmul.mubr.bf16.gmra.mxu0 %v5067
    %v5853 = vpop.f32.mrf.mxu0
    %v5854 = vadd.f32 %v5197, %v5853
    %v5855 = vpop.f32.mrf.mxu0
    %v5856 = vpop.f32.mrf.mxu0
    %v5857 = vadd.f32 %v5197, %v5856
    %v5858 = vpop.f32.mrf.mxu0
    %5859 = vmatprep.mubr.bf16.mxu0 %v5071
    %5860 = vmatmul.mubr.bf16.gmra.mxu0 %v5070
    %v5861 = vpop.f32.mrf.mxu0
    %v5862 = vadd.f32 %v5197, %v5861
    %v5863 = vpop.f32.mrf.mxu0
    %v5864 = vpop.f32.mrf.mxu0
    %v5865 = vadd.f32 %v5197, %v5864
    %v5866 = vpop.f32.mrf.mxu0
    %5867 = vmatprep.mubr.bf16.mxu0 %v5074
    %5868 = vmatmul.mubr.bf16.gmra.mxu0 %v5073
    %v5869 = vpop.f32.mrf.mxu0
    %v5870 = vadd.f32 %v5197, %v5869
    %v5871 = vpop.f32.mrf.mxu0
    %v5872 = vpop.f32.mrf.mxu0
    %v5873 = vadd.f32 %v5197, %v5872
    %v5874 = vpop.f32.mrf.mxu0
    %5875 = vmatprep.mubr.bf16.mxu0 %v5077
    %5876 = vmatmul.mubr.bf16.gmra.mxu0 %v5076
    %v5877 = vpop.f32.mrf.mxu0
    %v5878 = vadd.f32 %v5197, %v5877
    %v5879 = vpop.f32.mrf.mxu0
    %v5880 = vpop.f32.mrf.mxu0
    %v5881 = vadd.f32 %v5197, %v5880
    %v5882 = vpop.f32.mrf.mxu0
    %5883 = vmatprep.mubr.bf16.mxu0 %v5080
    %5884 = vmatmul.mubr.bf16.gmra.mxu0 %v5079
    %v5885 = vpop.f32.mrf.mxu0
    %v5886 = vadd.f32 %v5197, %v5885
    %v5887 = vpop.f32.mrf.mxu0
    %v5888 = vpop.f32.mrf.mxu0
    %v5889 = vadd.f32 %v5197, %v5888
    %v5890 = vpop.f32.mrf.mxu0
    %5891 = vmatprep.mubr.bf16.mxu0 %v5083
    %5892 = vmatmul.mubr.bf16.gmra.mxu0 %v5082
    %v5893 = vpop.f32.mrf.mxu0
    %v5894 = vadd.f32 %v5197, %v5893
    %v5895 = vpop.f32.mrf.mxu0
    %v5896 = vpop.f32.mrf.mxu0
    %v5897 = vadd.f32 %v5197, %v5896
    %v5898 = vpop.f32.mrf.mxu0
    %5899 = vmatprep.mubr.bf16.mxu0 %v5086
    %5900 = vmatmul.mubr.bf16.gmra.mxu0 %v5085
    %v5901 = vpop.f32.mrf.mxu0
    %v5902 = vadd.f32 %v5197, %v5901
    %v5903 = vpop.f32.mrf.mxu0
    %v5904 = vpop.f32.mrf.mxu0
    %v5905 = vadd.f32 %v5197, %v5904
    %v5906 = vpop.f32.mrf.mxu0
    %5907 = vdwg.mxu0
    %5908 = vmatprep.subr.bf16.mxu0 0
    %5909 = vmatpush1.bf16.msra.mxu0 %v5512
    %5910 = vmatprep.subr.bf16.mxu0 0
    %5911 = vmatpush1.bf16.msra.mxu0 %v5509
    %5912 = vmatprep.subr.bf16.mxu0 0
    %5913 = vmatpush1.bf16.msra.mxu0 %v5506
    %5914 = vmatprep.subr.bf16.mxu0 0
    %5915 = vmatpush1.bf16.msra.mxu0 %v5503
    %5916 = vmatprep.subr.bf16.mxu0 0
    %5917 = vmatpush1.bf16.msra.mxu0 %v5500
    %5918 = vmatprep.subr.bf16.mxu0 0
    %5919 = vmatpush1.bf16.msra.mxu0 %v5497
    %5920 = vmatprep.subr.bf16.mxu0 0
    %5921 = vmatpush1.bf16.msra.mxu0 %v5494
    %5922 = vmatprep.subr.bf16.mxu0 0
    %5923 = vmatpush1.bf16.msra.mxu0 %v5491
    %5924 = vmatprep.subr.bf16.mxu0 0
    %5925 = vmatpush2.bf16.msra.mxu0 0
    %5926 = vmatprep.subr.bf16.mxu0 0
    %5927 = vmatpush2.bf16.msra.mxu0 0
    %5928 = vmatprep.subr.bf16.mxu0 0
    %5929 = vmatpush2.bf16.msra.mxu0 0
    %5930 = vmatprep.subr.bf16.mxu0 0
    %5931 = vmatpush2.bf16.msra.mxu0 0
    %5932 = vmatprep.subr.bf16.mxu0 0
    %5933 = vmatpush2.bf16.msra.mxu0 0
    %5934 = vmatprep.subr.bf16.mxu0 0
    %5935 = vmatpush2.bf16.msra.mxu0 0
    %5936 = vmatprep.subr.bf16.mxu0 0
    %5937 = vmatpush2.bf16.msra.mxu0 0
    %5938 = vmatprep.subr.bf16.mxu0 0
    %5939 = vmatpush2.bf16.msra.mxu0 0
    %5940 = vmatprep.mubr.bf16.mxu0 0
    %5941 = vmatmul.mubr.bf16.gmra.mxu0 %v5066
    %v5942 = vpop.f32.mrf.mxu0
    %v5943 = vadd.f32 %v5846, %v5942
    %v5944 = vpop.f32.mrf.mxu0
    %v5945 = vpop.f32.mrf.mxu0
    %v5946 = vadd.f32 %v5849, %v5945
    %v5947 = vpop.f32.mrf.mxu0
    %5948 = vmatprep.mubr.bf16.mxu0 0
    %5949 = vmatmul.mubr.bf16.gmra.mxu0 %v5069
    %v5950 = vpop.f32.mrf.mxu0
    %v5951 = vadd.f32 %v5854, %v5950
    %v5952 = vpop.f32.mrf.mxu0
    %v5953 = vpop.f32.mrf.mxu0
    %v5954 = vadd.f32 %v5857, %v5953
    %v5955 = vpop.f32.mrf.mxu0
    %5956 = vmatprep.mubr.bf16.mxu0 0
    %5957 = vmatmul.mubr.bf16.gmra.mxu0 %v5072
    %v5958 = vpop.f32.mrf.mxu0
    %v5959 = vadd.f32 %v5862, %v5958
    %v5960 = vpop.f32.mrf.mxu0
    %v5961 = vpop.f32.mrf.mxu0
    %v5962 = vadd.f32 %v5865, %v5961
    %v5963 = vpop.f32.mrf.mxu0
    %5964 = vmatprep.mubr.bf16.mxu0 0
    %5965 = vmatmul.mubr.bf16.gmra.mxu0 %v5075
    %v5966 = vpop.f32.mrf.mxu0
    %v5967 = vadd.f32 %v5870, %v5966
    %v5968 = vpop.f32.mrf.mxu0
    %v5969 = vpop.f32.mrf.mxu0
    %v5970 = vadd.f32 %v5873, %v5969
    %v5971 = vpop.f32.mrf.mxu0
    %5972 = vmatprep.mubr.bf16.mxu0 0
    %5973 = vmatmul.mubr.bf16.gmra.mxu0 %v5078
    %v5974 = vpop.f32.mrf.mxu0
    %v5975 = vadd.f32 %v5878, %v5974
    %v5976 = vpop.f32.mrf.mxu0
    %v5977 = vpop.f32.mrf.mxu0
    %v5978 = vadd.f32 %v5881, %v5977
    %v5979 = vpop.f32.mrf.mxu0
    %5980 = vmatprep.mubr.bf16.mxu0 0
    %5981 = vmatmul.mubr.bf16.gmra.mxu0 %v5081
    %v5982 = vpop.f32.mrf.mxu0
    %v5983 = vadd.f32 %v5886, %v5982
    %v5984 = vpop.f32.mrf.mxu0
    %v5985 = vpop.f32.mrf.mxu0
    %v5986 = vadd.f32 %v5889, %v5985
    %v5987 = vpop.f32.mrf.mxu0
    %5988 = vmatprep.mubr.bf16.mxu0 0
    %5989 = vmatmul.mubr.bf16.gmra.mxu0 %v5084
    %v5990 = vpop.f32.mrf.mxu0
    %v5991 = vadd.f32 %v5894, %v5990
    %v5992 = vpop.f32.mrf.mxu0
    %v5993 = vpop.f32.mrf.mxu0
    %v5994 = vadd.f32 %v5897, %v5993
    %v5995 = vpop.f32.mrf.mxu0
    %5996 = vmatprep.mubr.bf16.mxu0 0
    %5997 = vmatmul.mubr.bf16.gmra.mxu0 %v5087
    %v5998 = vpop.f32.mrf.mxu0
    %v5999 = vadd.f32 %v5902, %v5998
    %v6000 = vpop.f32.mrf.mxu0
    %v6001 = vpop.f32.mrf.mxu0
    %v6002 = vadd.f32 %v5905, %v6001
    %v6003 = vpop.f32.mrf.mxu0
    %6004 = vdwg.mxu0
    %v6005 = vmax.f32 %v5733, 0.0
    %v6006 = vmax.f32 %v5735, 0.0
    %v6007 = vmax.f32 %v5943, 0.0
    %v6008 = vmax.f32 %v5737, 0.0
    %v6009 = vmax.f32 %v5739, 0.0
    %v6010 = vmax.f32 %v5946, 0.0
    %v6011 = vmax.f32 %v5743, 0.0
    %v6012 = vmax.f32 %v5745, 0.0
    %v6013 = vmax.f32 %v5951, 0.0
    %v6014 = vmax.f32 %v5747, 0.0
    %v6015 = vmax.f32 %v5749, 0.0
    %v6016 = vmax.f32 %v5954, 0.0
    %v6017 = vmax.f32 %v5753, 0.0
    %v6018 = vmax.f32 %v5755, 0.0
    %v6019 = vmax.f32 %v5959, 0.0
    %v6020 = vmax.f32 %v5757, 0.0
    %v6021 = vmax.f32 %v5759, 0.0
    %v6022 = vmax.f32 %v5962, 0.0
    %v6023 = vmax.f32 %v5763, 0.0
    %v6024 = vmax.f32 %v5765, 0.0
    %v6025 = vmax.f32 %v5967, 0.0
    %v6026 = vmax.f32 %v5767, 0.0
    %v6027 = vmax.f32 %v5769, 0.0
    %v6028 = vmax.f32 %v5970, 0.0
    %v6029 = vmax.f32 %v5773, 0.0
    %v6030 = vmax.f32 %v5775, 0.0
    %v6031 = vmax.f32 %v5975, 0.0
    %v6032 = vmax.f32 %v5777, 0.0
    %v6033 = vmax.f32 %v5779, 0.0
    %v6034 = vmax.f32 %v5978, 0.0
    %v6035 = vmax.f32 %v5783, 0.0
    %v6036 = vmax.f32 %v5785, 0.0
    %v6037 = vmax.f32 %v5983, 0.0
    %v6038 = vmax.f32 %v5787, 0.0
    %v6039 = vmax.f32 %v5789, 0.0
    %v6040 = vmax.f32 %v5986, 0.0
    %v6041 = vmax.f32 %v5793, 0.0
    %v6042 = vmax.f32 %v5795, 0.0
    %v6043 = vmax.f32 %v5991, 0.0
    %v6044 = vmax.f32 %v5797, 0.0
    %v6045 = vmax.f32 %v5799, 0.0
    %v6046 = vmax.f32 %v5994, 0.0
    %v6047 = vmax.f32 %v5803, 0.0
    %v6048 = vmax.f32 %v5805, 0.0
    %v6049 = vmax.f32 %v5999, 0.0
    %v6050 = vmax.f32 %v5807, 0.0
    %v6051 = vmax.f32 %v5809, 0.0
    %v6052 = vmax.f32 %v6002, 0.0
    %v6053 = vpack.c.bf16 %v6008, %v6005
    %v6054 = vpack.c.bf16 %v6009, %v6006
    %v6055 = vpack.c.bf16 %v6010, %v6007
    %v6056 = vpack.c.bf16 %v6014, %v6011
    %v6057 = vpack.c.bf16 %v6015, %v6012
    %v6058 = vpack.c.bf16 %v6016, %v6013
    %v6059 = vpack.c.bf16 %v6020, %v6017
    %v6060 = vpack.c.bf16 %v6021, %v6018
    %v6061 = vpack.c.bf16 %v6022, %v6019
    %v6062 = vpack.c.bf16 %v6026, %v6023
    %v6063 = vpack.c.bf16 %v6027, %v6024
    %v6064 = vpack.c.bf16 %v6028, %v6025
    %v6065 = vpack.c.bf16 %v6032, %v6029
    %v6066 = vpack.c.bf16 %v6033, %v6030
    %v6067 = vpack.c.bf16 %v6034, %v6031
    %v6068 = vpack.c.bf16 %v6038, %v6035
    %v6069 = vpack.c.bf16 %v6039, %v6036
    %v6070 = vpack.c.bf16 %v6040, %v6037
    %v6071 = vpack.c.bf16 %v6044, %v6041
    %v6072 = vpack.c.bf16 %v6045, %v6042
    %v6073 = vpack.c.bf16 %v6046, %v6043
    %v6074 = vpack.c.bf16 %v6050, %v6047
    %v6075 = vpack.c.bf16 %v6051, %v6048
    %v6076 = vpack.c.bf16 %v6052, %v6049
    %v6077 = vld [vmem:[%s16] sm:$0xff]
    %v6078 = vld [vmem:[%s16 + $0x8] sm:$0xff]
    %v6079 = vld [vmem:[%s16 + $0x10] sm:$0xff]
    %v6080 = vld [vmem:[%s16 + $0x18] sm:$0xf]
    %v6081 = vld [vmem:[%s16 + $0x1c] sm:$0xff]
    %v6082 = vld [vmem:[%s16 + $0x24] sm:$0xff]
    %v6083 = vld [vmem:[%s16 + $0x2c] sm:$0xff]
    %v6084 = vld [vmem:[%s16 + $0x34] sm:$0xf]
    %v6085 = vld [vmem:[%s16 + $0x38] sm:$0xff]
    %v6086 = vld [vmem:[%s16 + $0x40] sm:$0xff]
    %v6087 = vld [vmem:[%s16 + $0x48] sm:$0xff]
    %v6088 = vld [vmem:[%s16 + $0x50] sm:$0xf]
    %v6089 = vld [vmem:[%s16 + $0x54] sm:$0xff]
    %v6090 = vld [vmem:[%s16 + $0x5c] sm:$0xff]
    %v6091 = vld [vmem:[%s16 + $0x64] sm:$0xff]
    %v6092 = vld [vmem:[%s16 + $0x6c] sm:$0xf]
    %v6093 = vld [vmem:[%s16 + $0x70] sm:$0xff]
    %v6094 = vld [vmem:[%s16 + $0x78] sm:$0xff]
    %v6095 = vld [vmem:[%s16 + $0x80] sm:$0xff]
    %v6096 = vld [vmem:[%s16 + $0x88] sm:$0xf]
    %v6097 = vld [vmem:[%s16 + $0x8c] sm:$0xff]
    %v6098 = vld [vmem:[%s16 + $0x94] sm:$0xff]
    %v6099 = vld [vmem:[%s16 + $0x9c] sm:$0xff]
    %v6100 = vld [vmem:[%s16 + $0xa4] sm:$0xf]
    %v6101 = vld [vmem:[%s16 + $0xa8] sm:$0xff]
    %v6102 = vld [vmem:[%s16 + $0xb0] sm:$0xff]
    %v6103 = vld [vmem:[%s16 + $0xb8] sm:$0xff]
    %v6104 = vld [vmem:[%s16 + $0xc0] sm:$0xf]
    %v6105 = vld [vmem:[%s16 + $0xc4] sm:$0xff]
    %v6106 = vld [vmem:[%s16 + $0xcc] sm:$0xff]
    %v6107 = vld [vmem:[%s16 + $0xd4] sm:$0xff]
    %v6108 = vld [vmem:[%s16 + $0xdc] sm:$0xf]
    %v6109 = vld [vmem:[%s16 + $0xe0] sm:$0xff]
    %v6110 = vld [vmem:[%s16 + $0xe8] sm:$0xff]
    %v6111 = vld [vmem:[%s16 + $0xf0] sm:$0xff]
    %v6112 = vld [vmem:[%s16 + $0xf8] sm:$0xf]
    %v6113 = vld [vmem:[%s16 + $0xfc] sm:$0xff]
    %v6114 = vld [vmem:[%s16 + $0x104] sm:$0xff]
    %v6115 = vld [vmem:[%s16 + $0x10c] sm:$0xff]
    %v6116 = vld [vmem:[%s16 + $0x114] sm:$0xf]
    %v6117 = vld [vmem:[%s16 + $0x118] sm:$0xff]
    %v6118 = vld [vmem:[%s16 + $0x120] sm:$0xff]
    %v6119 = vld [vmem:[%s16 + $0x128] sm:$0xff]
    %v6120 = vld [vmem:[%s16 + $0x130] sm:$0xf]
    %v6121 = vld [vmem:[%s16 + $0x134] sm:$0xff]
    %v6122 = vld [vmem:[%s16 + $0x13c] sm:$0xff]
    %v6123 = vld [vmem:[%s16 + $0x144] sm:$0xff]
    %v6124 = vld [vmem:[%s16 + $0x14c] sm:$0xf]
    %v6125 = vld [vmem:[%s16 + $0x150] sm:$0xff]
    %v6126 = vld [vmem:[%s16 + $0x158] sm:$0xff]
    %v6127 = vld [vmem:[%s16 + $0x160] sm:$0xff]
    %v6128 = vld [vmem:[%s16 + $0x168] sm:$0xf]
    %v6129 = vld [vmem:[%s16 + $0x16c] sm:$0xff]
    %v6130 = vld [vmem:[%s16 + $0x174] sm:$0xff]
    %v6131 = vld [vmem:[%s16 + $0x17c] sm:$0xff]
    %v6132 = vld [vmem:[%s16 + $0x184] sm:$0xf]
    %v6133 = vld [vmem:[%s16 + $0x188] sm:$0xff]
    %v6134 = vld [vmem:[%s16 + $0x190] sm:$0xff]
    %v6135 = vld [vmem:[%s16 + $0x198] sm:$0xff]
    %v6136 = vld [vmem:[%s16 + $0x1a0] sm:$0xf]
    %v6137 = vld [vmem:[%s16 + $0x1a4] sm:$0xff]
    %v6138 = vld [vmem:[%s16 + $0x1ac] sm:$0xff]
    %v6139 = vld [vmem:[%s16 + $0x1b4] sm:$0xff]
    %v6140 = vld [vmem:[%s16 + $0x1bc] sm:$0xf]
    %v6141 = vld [vmem:[%s16 + $0x1c0] sm:$0xff]
    %v6142 = vld [vmem:[%s16 + $0x1c8] sm:$0xff]
    %v6143 = vld [vmem:[%s16 + $0x1d0] sm:$0xff]
    %v6144 = vld [vmem:[%s16 + $0x1d8] sm:$0xf]
    %v6145 = vld [vmem:[%s16 + $0x1dc] sm:$0xff]
    %v6146 = vld [vmem:[%s16 + $0x1e4] sm:$0xff]
    %v6147 = vld [vmem:[%s16 + $0x1ec] sm:$0xff]
    %v6148 = vld [vmem:[%s16 + $0x1f4] sm:$0xf]
    %v6149 = vld [vmem:[%s16 + $0x1f8] sm:$0xff]
    %v6150 = vld [vmem:[%s16 + $0x200] sm:$0xff]
    %v6151 = vld [vmem:[%s16 + $0x208] sm:$0xff]
    %v6152 = vld [vmem:[%s16 + $0x210] sm:$0xf]
    %v6153 = vld [vmem:[%s16 + $0x214] sm:$0xff]
    %v6154 = vld [vmem:[%s16 + $0x21c] sm:$0xff]
    %v6155 = vld [vmem:[%s16 + $0x224] sm:$0xff]
    %v6156 = vld [vmem:[%s16 + $0x22c] sm:$0xf]
    %v6157 = vld [vmem:[%s16 + $0x230] sm:$0xff]
    %v6158 = vld [vmem:[%s16 + $0x238] sm:$0xff]
    %v6159 = vld [vmem:[%s16 + $0x240] sm:$0xff]
    %v6160 = vld [vmem:[%s16 + $0x248] sm:$0xf]
    %v6161 = vld [vmem:[%s16 + $0x24c] sm:$0xff]
    %v6162 = vld [vmem:[%s16 + $0x254] sm:$0xff]
    %v6163 = vld [vmem:[%s16 + $0x25c] sm:$0xff]
    %v6164 = vld [vmem:[%s16 + $0x264] sm:$0xf]
    %v6165 = vld [vmem:[%s16 + $0x268] sm:$0xff]
    %v6166 = vld [vmem:[%s16 + $0x270] sm:$0xff]
    %v6167 = vld [vmem:[%s16 + $0x278] sm:$0xff]
    %v6168 = vld [vmem:[%s16 + $0x280] sm:$0xf]
    %v6169 = vld [vmem:[%s16 + $0x284] sm:$0xff]
    %v6170 = vld [vmem:[%s16 + $0x28c] sm:$0xff]
    %v6171 = vld [vmem:[%s16 + $0x294] sm:$0xff]
    %v6172 = vld [vmem:[%s16 + $0x29c] sm:$0xf]
    %v6173 = vld [vmem:[%s16 + $0x2a0] sm:$0xff]
    %v6174 = vld [vmem:[%s16 + $0x2a8] sm:$0xff]
    %v6175 = vld [vmem:[%s16 + $0x2b0] sm:$0xff]
    %v6176 = vld [vmem:[%s16 + $0x2b8] sm:$0xf]
    %v6177 = vld [vmem:[%s16 + $0x2bc] sm:$0xff]
    %v6178 = vld [vmem:[%s16 + $0x2c4] sm:$0xff]
    %v6179 = vld [vmem:[%s16 + $0x2cc] sm:$0xff]
    %v6180 = vld [vmem:[%s16 + $0x2d4] sm:$0xf]
    %v6181 = vld [vmem:[%s16 + $0x2d8] sm:$0xff]
    %v6182 = vld [vmem:[%s16 + $0x2e0] sm:$0xff]
    %v6183 = vld [vmem:[%s16 + $0x2e8] sm:$0xff]
    %v6184 = vld [vmem:[%s16 + $0x2f0] sm:$0xf]
    %v6185 = vld [vmem:[%s16 + $0x2f4] sm:$0xff]
    %v6186 = vld [vmem:[%s16 + $0x2fc] sm:$0xff]
    %v6187 = vld [vmem:[%s16 + $0x304] sm:$0xff]
    %v6188 = vld [vmem:[%s16 + $0x30c] sm:$0xf]
    %v6189 = vld [vmem:[%s16 + $0x310] sm:$0xff]
    %v6190 = vld [vmem:[%s16 + $0x318] sm:$0xff]
    %v6191 = vld [vmem:[%s16 + $0x320] sm:$0xff]
    %v6192 = vld [vmem:[%s16 + $0x328] sm:$0xf]
    %v6193 = vld [vmem:[%s16 + $0x32c] sm:$0xff]
    %v6194 = vld [vmem:[%s16 + $0x334] sm:$0xff]
    %v6195 = vld [vmem:[%s16 + $0x33c] sm:$0xff]
    %v6196 = vld [vmem:[%s16 + $0x344] sm:$0xf]
    %v6197 = vld [vmem:[%s16 + $0x348] sm:$0xff]
    %v6198 = vld [vmem:[%s16 + $0x350] sm:$0xff]
    %v6199 = vld [vmem:[%s16 + $0x358] sm:$0xff]
    %v6200 = vld [vmem:[%s16 + $0x360] sm:$0xf]
    %v6201 = vld [vmem:[%s16 + $0x364] sm:$0xff]
    %v6202 = vld [vmem:[%s16 + $0x36c] sm:$0xff]
    %v6203 = vld [vmem:[%s16 + $0x374] sm:$0xff]
    %v6204 = vld [vmem:[%s16 + $0x37c] sm:$0xf]
    %v6205 = vld [vmem:[%s16 + $0x380] sm:$0xff]
    %v6206 = vld [vmem:[%s16 + $0x388] sm:$0xff]
    %v6207 = vld [vmem:[%s16 + $0x390] sm:$0xff]
    %v6208 = vld [vmem:[%s16 + $0x398] sm:$0xf]
    %v6209 = vld [vmem:[%s16 + $0x39c] sm:$0xff]
    %v6210 = vld [vmem:[%s16 + $0x3a4] sm:$0xff]
    %v6211 = vld [vmem:[%s16 + $0x3ac] sm:$0xff]
    %v6212 = vld [vmem:[%s16 + $0x3b4] sm:$0xf]
    %v6213 = vld [vmem:[%s16 + $0x3b8] sm:$0xff]
    %v6214 = vld [vmem:[%s16 + $0x3c0] sm:$0xff]
    %v6215 = vld [vmem:[%s16 + $0x3c8] sm:$0xff]
    %v6216 = vld [vmem:[%s16 + $0x3d0] sm:$0xf]
    %v6217 = vld [vmem:[%s16 + $0x3d4] sm:$0xff]
    %v6218 = vld [vmem:[%s16 + $0x3dc] sm:$0xff]
    %v6219 = vld [vmem:[%s16 + $0x3e4] sm:$0xff]
    %v6220 = vld [vmem:[%s16 + $0x3ec] sm:$0xf]
    %v6221 = vld [vmem:[%s16 + $0x3f0] sm:$0xff]
    %v6222 = vld [vmem:[%s16 + $0x3f8] sm:$0xff]
    %v6223 = vld [vmem:[%s16 + $0x400] sm:$0xff]
    %v6224 = vld [vmem:[%s16 + $0x408] sm:$0xf]
    %v6225 = vld [vmem:[%s16 + $0x40c] sm:$0xff]
    %v6226 = vld [vmem:[%s16 + $0x414] sm:$0xff]
    %v6227 = vld [vmem:[%s16 + $0x41c] sm:$0xff]
    %v6228 = vld [vmem:[%s16 + $0x424] sm:$0xf]
    %v6229 = vld [vmem:[%s16 + $0x428] sm:$0xff]
    %v6230 = vld [vmem:[%s16 + $0x430] sm:$0xff]
    %v6231 = vld [vmem:[%s16 + $0x438] sm:$0xff]
    %v6232 = vld [vmem:[%s16 + $0x440] sm:$0xf]
    %v6233 = vld [vmem:[%s16 + $0x444] sm:$0xff]
    %v6234 = vld [vmem:[%s16 + $0x44c] sm:$0xff]
    %v6235 = vld [vmem:[%s16 + $0x454] sm:$0xff]
    %v6236 = vld [vmem:[%s16 + $0x45c] sm:$0xf]
    %v6237 = vld [vmem:[%s16 + $0x460] sm:$0xff]
    %v6238 = vld [vmem:[%s16 + $0x468] sm:$0xff]
    %v6239 = vld [vmem:[%s16 + $0x470] sm:$0xff]
    %v6240 = vld [vmem:[%s16 + $0x478] sm:$0xf]
    %v6241 = vld [vmem:[%s16 + $0x47c] sm:$0xff]
    %v6242 = vld [vmem:[%s16 + $0x484] sm:$0xff]
    %v6243 = vld [vmem:[%s16 + $0x48c] sm:$0xff]
    %v6244 = vld [vmem:[%s16 + $0x494] sm:$0xf]
    %v6245 = vld [vmem:[%s16 + $0x498] sm:$0xff]
    %v6246 = vld [vmem:[%s16 + $0x4a0] sm:$0xff]
    %v6247 = vld [vmem:[%s16 + $0x4a8] sm:$0xff]
    %v6248 = vld [vmem:[%s16 + $0x4b0] sm:$0xf]
    %v6249 = vld [vmem:[%s16 + $0x4b4] sm:$0xff]
    %v6250 = vld [vmem:[%s16 + $0x4bc] sm:$0xff]
    %v6251 = vld [vmem:[%s16 + $0x4c4] sm:$0xff]
    %v6252 = vld [vmem:[%s16 + $0x4cc] sm:$0xf]
    %v6253 = vld [vmem:[%s16 + $0x4d0] sm:$0xff]
    %v6254 = vld [vmem:[%s16 + $0x4d8] sm:$0xff]
    %v6255 = vld [vmem:[%s16 + $0x4e0] sm:$0xff]
    %v6256 = vld [vmem:[%s16 + $0x4e8] sm:$0xf]
    %v6257 = vld [vmem:[%s16 + $0x4ec] sm:$0xff]
    %v6258 = vld [vmem:[%s16 + $0x4f4] sm:$0xff]
    %v6259 = vld [vmem:[%s16 + $0x4fc] sm:$0xff]
    %v6260 = vld [vmem:[%s16 + $0x504] sm:$0xf]
    %v6261 = vld [vmem:[%s16 + $0x508] sm:$0xff]
    %v6262 = vld [vmem:[%s16 + $0x510] sm:$0xff]
    %v6263 = vld [vmem:[%s16 + $0x518] sm:$0xff]
    %v6264 = vld [vmem:[%s16 + $0x520] sm:$0xf]
    %v6265 = vld [vmem:[%s16 + $0x524] sm:$0xff]
    %v6266 = vld [vmem:[%s16 + $0x52c] sm:$0xff]
    %v6267 = vld [vmem:[%s16 + $0x534] sm:$0xff]
    %v6268 = vld [vmem:[%s16 + $0x53c] sm:$0xf]
    %v6269 = vld [vmem:[%s17] sm:$0x7f]
    %v6271 = vlaneseq
    %v6272 = vshrl.u32 %v6271, 7
    %v6273 = vsub.s32 0, %v6272
    %v6274 = vrot.slane %v6269, %v6273
    %v6275 = vlaneseq
    %v6276 = vshrl.u32 %v6275, 7
    %v6277 = vsub.s32 1, %v6276
    %v6278 = vrot.slane %v6269, %v6277
    %v6279 = vlaneseq
    %v6280 = vshrl.u32 %v6279, 7
    %v6281 = vsub.s32 2, %v6280
    %v6282 = vrot.slane %v6269, %v6281
    %v6283 = vlaneseq
    %v6284 = vshrl.u32 %v6283, 7
    %v6285 = vsub.s32 3, %v6284
    %v6286 = vrot.slane %v6269, %v6285
    %v6287 = vlaneseq
    %v6288 = vshrl.u32 %v6287, 7
    %v6289 = vsub.s32 4, %v6288
    %v6290 = vrot.slane %v6269, %v6289
    %v6291 = vlaneseq
    %v6292 = vshrl.u32 %v6291, 7
    %v6293 = vsub.s32 5, %v6292
    %v6294 = vrot.slane %v6269, %v6293
    %v6295 = vlaneseq
    %v6296 = vshrl.u32 %v6295, 7
    %v6297 = vsub.s32 6, %v6296
    %v6298 = vrot.slane %v6269, %v6297
    %v6498 = vunpack.c.l.b16 %v6077
    %v6499 = vunpack.c.h.b16 %v6077
    %v6500 = vunpack.c.l.b16 %v6078
    %v6501 = vunpack.c.h.b16 %v6078
    %v6502 = vunpack.c.l.b16 %v6079
    %v6503 = vunpack.c.h.b16 %v6079
    %v6504 = vunpack.c.l.b16 %v6080
    %v6505 = vunpack.c.l.b16 %v6081
    %v6506 = vunpack.c.h.b16 %v6081
    %v6507 = vunpack.c.l.b16 %v6082
    %v6508 = vunpack.c.h.b16 %v6082
    %v6509 = vunpack.c.l.b16 %v6083
    %v6510 = vunpack.c.h.b16 %v6083
    %v6511 = vunpack.c.l.b16 %v6084
    %v6512 = vunpack.c.l.b16 %v6085
    %v6513 = vunpack.c.h.b16 %v6085
    %v6514 = vunpack.c.l.b16 %v6086
    %v6515 = vunpack.c.h.b16 %v6086
    %v6516 = vunpack.c.l.b16 %v6087
    %v6517 = vunpack.c.h.b16 %v6087
    %v6518 = vunpack.c.l.b16 %v6088
    %v6519 = vunpack.c.l.b16 %v6089
    %v6520 = vunpack.c.h.b16 %v6089
    %v6521 = vunpack.c.l.b16 %v6090
    %v6522 = vunpack.c.h.b16 %v6090
    %v6523 = vunpack.c.l.b16 %v6091
    %v6524 = vunpack.c.h.b16 %v6091
    %v6525 = vunpack.c.l.b16 %v6092
    %v6526 = vunpack.c.l.b16 %v6093
    %v6527 = vunpack.c.h.b16 %v6093
    %v6528 = vunpack.c.l.b16 %v6094
    %v6529 = vunpack.c.h.b16 %v6094
    %v6530 = vunpack.c.l.b16 %v6095
    %v6531 = vunpack.c.h.b16 %v6095
    %v6532 = vunpack.c.l.b16 %v6096
    %v6533 = vunpack.c.l.b16 %v6097
    %v6534 = vunpack.c.h.b16 %v6097
    %v6535 = vunpack.c.l.b16 %v6098
    %v6536 = vunpack.c.h.b16 %v6098
    %v6537 = vunpack.c.l.b16 %v6099
    %v6538 = vunpack.c.h.b16 %v6099
    %v6539 = vunpack.c.l.b16 %v6100
    %v6540 = vunpack.c.l.b16 %v6101
    %v6541 = vunpack.c.h.b16 %v6101
    %v6542 = vunpack.c.l.b16 %v6102
    %v6543 = vunpack.c.h.b16 %v6102
    %v6544 = vunpack.c.l.b16 %v6103
    %v6545 = vunpack.c.h.b16 %v6103
    %v6546 = vunpack.c.l.b16 %v6104
    %v6547 = vunpack.c.l.b16 %v6105
    %v6548 = vunpack.c.h.b16 %v6105
    %v6549 = vunpack.c.l.b16 %v6106
    %v6550 = vunpack.c.h.b16 %v6106
    %v6551 = vunpack.c.l.b16 %v6107
    %v6552 = vunpack.c.h.b16 %v6107
    %v6553 = vunpack.c.l.b16 %v6108
    %v6554 = vunpack.c.l.b16 %v6109
    %v6555 = vunpack.c.h.b16 %v6109
    %v6556 = vunpack.c.l.b16 %v6110
    %v6557 = vunpack.c.h.b16 %v6110
    %v6558 = vunpack.c.l.b16 %v6111
    %v6559 = vunpack.c.h.b16 %v6111
    %v6560 = vunpack.c.l.b16 %v6112
    %v6561 = vunpack.c.l.b16 %v6113
    %v6562 = vunpack.c.h.b16 %v6113
    %v6563 = vunpack.c.l.b16 %v6114
    %v6564 = vunpack.c.h.b16 %v6114
    %v6565 = vunpack.c.l.b16 %v6115
    %v6566 = vunpack.c.h.b16 %v6115
    %v6567 = vunpack.c.l.b16 %v6116
    %v6568 = vunpack.c.l.b16 %v6117
    %v6569 = vunpack.c.h.b16 %v6117
    %v6570 = vunpack.c.l.b16 %v6118
    %v6571 = vunpack.c.h.b16 %v6118
    %v6572 = vunpack.c.l.b16 %v6119
    %v6573 = vunpack.c.h.b16 %v6119
    %v6574 = vunpack.c.l.b16 %v6120
    %v6575 = vunpack.c.l.b16 %v6121
    %v6576 = vunpack.c.h.b16 %v6121
    %v6577 = vunpack.c.l.b16 %v6122
    %v6578 = vunpack.c.h.b16 %v6122
    %v6579 = vunpack.c.l.b16 %v6123
    %v6580 = vunpack.c.h.b16 %v6123
    %v6581 = vunpack.c.l.b16 %v6124
    %v6582 = vunpack.c.l.b16 %v6125
    %v6583 = vunpack.c.h.b16 %v6125
    %v6584 = vunpack.c.l.b16 %v6126
    %v6585 = vunpack.c.h.b16 %v6126
    %v6586 = vunpack.c.l.b16 %v6127
    %v6587 = vunpack.c.h.b16 %v6127
    %v6588 = vunpack.c.l.b16 %v6128
    %v6589 = vunpack.c.l.b16 %v6129
    %v6590 = vunpack.c.h.b16 %v6129
    %v6591 = vunpack.c.l.b16 %v6130
    %v6592 = vunpack.c.h.b16 %v6130
    %v6593 = vunpack.c.l.b16 %v6131
    %v6594 = vunpack.c.h.b16 %v6131
    %v6595 = vunpack.c.l.b16 %v6132
    %v6596 = vunpack.c.l.b16 %v6133
    %v6597 = vunpack.c.h.b16 %v6133
    %v6598 = vunpack.c.l.b16 %v6134
    %v6599 = vunpack.c.h.b16 %v6134
    %v6600 = vunpack.c.l.b16 %v6135
    %v6601 = vunpack.c.h.b16 %v6135
    %v6602 = vunpack.c.l.b16 %v6136
    %v6603 = vunpack.c.l.b16 %v6137
    %v6604 = vunpack.c.h.b16 %v6137
    %v6605 = vunpack.c.l.b16 %v6138
    %v6606 = vunpack.c.h.b16 %v6138
    %v6607 = vunpack.c.l.b16 %v6139
    %v6608 = vunpack.c.h.b16 %v6139
    %v6609 = vunpack.c.l.b16 %v6140
    %v6610 = vunpack.c.l.b16 %v6141
    %v6611 = vunpack.c.h.b16 %v6141
    %v6612 = vunpack.c.l.b16 %v6142
    %v6613 = vunpack.c.h.b16 %v6142
    %v6614 = vunpack.c.l.b16 %v6143
    %v6615 = vunpack.c.h.b16 %v6143
    %v6616 = vunpack.c.l.b16 %v6144
    %v6617 = vunpack.c.l.b16 %v6145
    %v6618 = vunpack.c.h.b16 %v6145
    %v6619 = vunpack.c.l.b16 %v6146
    %v6620 = vunpack.c.h.b16 %v6146
    %v6621 = vunpack.c.l.b16 %v6147
    %v6622 = vunpack.c.h.b16 %v6147
    %v6623 = vunpack.c.l.b16 %v6148
    %v6624 = vunpack.c.l.b16 %v6149
    %v6625 = vunpack.c.h.b16 %v6149
    %v6626 = vunpack.c.l.b16 %v6150
    %v6627 = vunpack.c.h.b16 %v6150
    %v6628 = vunpack.c.l.b16 %v6151
    %v6629 = vunpack.c.h.b16 %v6151
    %v6630 = vunpack.c.l.b16 %v6152
    %v6631 = vunpack.c.l.b16 %v6153
    %v6632 = vunpack.c.h.b16 %v6153
    %v6633 = vunpack.c.l.b16 %v6154
    %v6634 = vunpack.c.h.b16 %v6154
    %v6635 = vunpack.c.l.b16 %v6155
    %v6636 = vunpack.c.h.b16 %v6155
    %v6637 = vunpack.c.l.b16 %v6156
    %v6638 = vunpack.c.l.b16 %v6157
    %v6639 = vunpack.c.h.b16 %v6157
    %v6640 = vunpack.c.l.b16 %v6158
    %v6641 = vunpack.c.h.b16 %v6158
    %v6642 = vunpack.c.l.b16 %v6159
    %v6643 = vunpack.c.h.b16 %v6159
    %v6644 = vunpack.c.l.b16 %v6160
    %v6645 = vunpack.c.l.b16 %v6161
    %v6646 = vunpack.c.h.b16 %v6161
    %v6647 = vunpack.c.l.b16 %v6162
    %v6648 = vunpack.c.h.b16 %v6162
    %v6649 = vunpack.c.l.b16 %v6163
    %v6650 = vunpack.c.h.b16 %v6163
    %v6651 = vunpack.c.l.b16 %v6164
    %v6652 = vunpack.c.l.b16 %v6165
    %v6653 = vunpack.c.h.b16 %v6165
    %v6654 = vunpack.c.l.b16 %v6166
    %v6655 = vunpack.c.h.b16 %v6166
    %v6656 = vunpack.c.l.b16 %v6167
    %v6657 = vunpack.c.h.b16 %v6167
    %v6658 = vunpack.c.l.b16 %v6168
    %v6659 = vunpack.c.l.b16 %v6169
    %v6660 = vunpack.c.h.b16 %v6169
    %v6661 = vunpack.c.l.b16 %v6170
    %v6662 = vunpack.c.h.b16 %v6170
    %v6663 = vunpack.c.l.b16 %v6171
    %v6664 = vunpack.c.h.b16 %v6171
    %v6665 = vunpack.c.l.b16 %v6172
    %v6666 = vunpack.c.l.b16 %v6173
    %v6667 = vunpack.c.h.b16 %v6173
    %v6668 = vunpack.c.l.b16 %v6174
    %v6669 = vunpack.c.h.b16 %v6174
    %v6670 = vunpack.c.l.b16 %v6175
    %v6671 = vunpack.c.h.b16 %v6175
    %v6672 = vunpack.c.l.b16 %v6176
    %v6673 = vunpack.c.l.b16 %v6177
    %v6674 = vunpack.c.h.b16 %v6177
    %v6675 = vunpack.c.l.b16 %v6178
    %v6676 = vunpack.c.h.b16 %v6178
    %v6677 = vunpack.c.l.b16 %v6179
    %v6678 = vunpack.c.h.b16 %v6179
    %v6679 = vunpack.c.l.b16 %v6180
    %v6680 = vunpack.c.l.b16 %v6181
    %v6681 = vunpack.c.h.b16 %v6181
    %v6682 = vunpack.c.l.b16 %v6182
    %v6683 = vunpack.c.h.b16 %v6182
    %v6684 = vunpack.c.l.b16 %v6183
    %v6685 = vunpack.c.h.b16 %v6183
    %v6686 = vunpack.c.l.b16 %v6184
    %v6687 = vunpack.c.l.b16 %v6185
    %v6688 = vunpack.c.h.b16 %v6185
    %v6689 = vunpack.c.l.b16 %v6186
    %v6690 = vunpack.c.h.b16 %v6186
    %v6691 = vunpack.c.l.b16 %v6187
    %v6692 = vunpack.c.h.b16 %v6187
    %v6693 = vunpack.c.l.b16 %v6188
    %v6694 = vunpack.c.l.b16 %v6189
    %v6695 = vunpack.c.h.b16 %v6189
    %v6696 = vunpack.c.l.b16 %v6190
    %v6697 = vunpack.c.h.b16 %v6190
    %v6698 = vunpack.c.l.b16 %v6191
    %v6699 = vunpack.c.h.b16 %v6191
    %v6700 = vunpack.c.l.b16 %v6192
    %v6701 = vunpack.c.l.b16 %v6193
    %v6702 = vunpack.c.h.b16 %v6193
    %v6703 = vunpack.c.l.b16 %v6194
    %v6704 = vunpack.c.h.b16 %v6194
    %v6705 = vunpack.c.l.b16 %v6195
    %v6706 = vunpack.c.h.b16 %v6195
    %v6707 = vunpack.c.l.b16 %v6196
    %v6708 = vunpack.c.l.b16 %v6197
    %v6709 = vunpack.c.h.b16 %v6197
    %v6710 = vunpack.c.l.b16 %v6198
    %v6711 = vunpack.c.h.b16 %v6198
    %v6712 = vunpack.c.l.b16 %v6199
    %v6713 = vunpack.c.h.b16 %v6199
    %v6714 = vunpack.c.l.b16 %v6200
    %v6715 = vunpack.c.l.b16 %v6201
    %v6716 = vunpack.c.h.b16 %v6201
    %v6717 = vunpack.c.l.b16 %v6202
    %v6718 = vunpack.c.h.b16 %v6202
    %v6719 = vunpack.c.l.b16 %v6203
    %v6720 = vunpack.c.h.b16 %v6203
    %v6721 = vunpack.c.l.b16 %v6204
    %v6722 = vunpack.c.l.b16 %v6205
    %v6723 = vunpack.c.h.b16 %v6205
    %v6724 = vunpack.c.l.b16 %v6206
    %v6725 = vunpack.c.h.b16 %v6206
    %v6726 = vunpack.c.l.b16 %v6207
    %v6727 = vunpack.c.h.b16 %v6207
    %v6728 = vunpack.c.l.b16 %v6208
    %v6729 = vunpack.c.l.b16 %v6209
    %v6730 = vunpack.c.h.b16 %v6209
    %v6731 = vunpack.c.l.b16 %v6210
    %v6732 = vunpack.c.h.b16 %v6210
    %v6733 = vunpack.c.l.b16 %v6211
    %v6734 = vunpack.c.h.b16 %v6211
    %v6735 = vunpack.c.l.b16 %v6212
    %v6736 = vunpack.c.l.b16 %v6213
    %v6737 = vunpack.c.h.b16 %v6213
    %v6738 = vunpack.c.l.b16 %v6214
    %v6739 = vunpack.c.h.b16 %v6214
    %v6740 = vunpack.c.l.b16 %v6215
    %v6741 = vunpack.c.h.b16 %v6215
    %v6742 = vunpack.c.l.b16 %v6216
    %v6743 = vunpack.c.l.b16 %v6217
    %v6744 = vunpack.c.h.b16 %v6217
    %v6745 = vunpack.c.l.b16 %v6218
    %v6746 = vunpack.c.h.b16 %v6218
    %v6747 = vunpack.c.l.b16 %v6219
    %v6748 = vunpack.c.h.b16 %v6219
    %v6749 = vunpack.c.l.b16 %v6220
    %v6750 = vunpack.c.l.b16 %v6221
    %v6751 = vunpack.c.h.b16 %v6221
    %v6752 = vunpack.c.l.b16 %v6222
    %v6753 = vunpack.c.h.b16 %v6222
    %v6754 = vunpack.c.l.b16 %v6223
    %v6755 = vunpack.c.h.b16 %v6223
    %v6756 = vunpack.c.l.b16 %v6224
    %v6757 = vunpack.c.l.b16 %v6225
    %v6758 = vunpack.c.h.b16 %v6225
    %v6759 = vunpack.c.l.b16 %v6226
    %v6760 = vunpack.c.h.b16 %v6226
    %v6761 = vunpack.c.l.b16 %v6227
    %v6762 = vunpack.c.h.b16 %v6227
    %v6763 = vunpack.c.l.b16 %v6228
    %v6764 = vunpack.c.l.b16 %v6229
    %v6765 = vunpack.c.h.b16 %v6229
    %v6766 = vunpack.c.l.b16 %v6230
    %v6767 = vunpack.c.h.b16 %v6230
    %v6768 = vunpack.c.l.b16 %v6231
    %v6769 = vunpack.c.h.b16 %v6231
    %v6770 = vunpack.c.l.b16 %v6232
    %v6771 = vunpack.c.l.b16 %v6233
    %v6772 = vunpack.c.h.b16 %v6233
    %v6773 = vunpack.c.l.b16 %v6234
    %v6774 = vunpack.c.h.b16 %v6234
    %v6775 = vunpack.c.l.b16 %v6235
    %v6776 = vunpack.c.h.b16 %v6235
    %v6777 = vunpack.c.l.b16 %v6236
    %v6778 = vunpack.c.l.b16 %v6237
    %v6779 = vunpack.c.h.b16 %v6237
    %v6780 = vunpack.c.l.b16 %v6238
    %v6781 = vunpack.c.h.b16 %v6238
    %v6782 = vunpack.c.l.b16 %v6239
    %v6783 = vunpack.c.h.b16 %v6239
    %v6784 = vunpack.c.l.b16 %v6240
    %v6785 = vunpack.c.l.b16 %v6241
    %v6786 = vunpack.c.h.b16 %v6241
    %v6787 = vunpack.c.l.b16 %v6242
    %v6788 = vunpack.c.h.b16 %v6242
    %v6789 = vunpack.c.l.b16 %v6243
    %v6790 = vunpack.c.h.b16 %v6243
    %v6791 = vunpack.c.l.b16 %v6244
    %v6792 = vunpack.c.l.b16 %v6245
    %v6793 = vunpack.c.h.b16 %v6245
    %v6794 = vunpack.c.l.b16 %v6246
    %v6795 = vunpack.c.h.b16 %v6246
    %v6796 = vunpack.c.l.b16 %v6247
    %v6797 = vunpack.c.h.b16 %v6247
    %v6798 = vunpack.c.l.b16 %v6248
    %v6799 = vunpack.c.l.b16 %v6249
    %v6800 = vunpack.c.h.b16 %v6249
    %v6801 = vunpack.c.l.b16 %v6250
    %v6802 = vunpack.c.h.b16 %v6250
    %v6803 = vunpack.c.l.b16 %v6251
    %v6804 = vunpack.c.h.b16 %v6251
    %v6805 = vunpack.c.l.b16 %v6252
    %v6806 = vunpack.c.l.b16 %v6253
    %v6807 = vunpack.c.h.b16 %v6253
    %v6808 = vunpack.c.l.b16 %v6254
    %v6809 = vunpack.c.h.b16 %v6254
    %v6810 = vunpack.c.l.b16 %v6255
    %v6811 = vunpack.c.h.b16 %v6255
    %v6812 = vunpack.c.l.b16 %v6256
    %v6813 = vunpack.c.l.b16 %v6257
    %v6814 = vunpack.c.h.b16 %v6257
    %v6815 = vunpack.c.l.b16 %v6258
    %v6816 = vunpack.c.h.b16 %v6258
    %v6817 = vunpack.c.l.b16 %v6259
    %v6818 = vunpack.c.h.b16 %v6259
    %v6819 = vunpack.c.l.b16 %v6260
    %v6820 = vunpack.c.l.b16 %v6261
    %v6821 = vunpack.c.h.b16 %v6261
    %v6822 = vunpack.c.l.b16 %v6262
    %v6823 = vunpack.c.h.b16 %v6262
    %v6824 = vunpack.c.l.b16 %v6263
    %v6825 = vunpack.c.h.b16 %v6263
    %v6826 = vunpack.c.l.b16 %v6264
    %v6827 = vunpack.c.l.b16 %v6265
    %v6828 = vunpack.c.h.b16 %v6265
    %v6829 = vunpack.c.l.b16 %v6266
    %v6830 = vunpack.c.h.b16 %v6266
    %v6831 = vunpack.c.l.b16 %v6267
    %v6832 = vunpack.c.h.b16 %v6267
    %v6833 = vunpack.c.l.b16 %v6268
    %v6834 = vpack.c.b16 %v6505, %v6498
    %v6835 = vpack.c.b16 %v6506, %v6499
    %v6836 = vpack.c.b16 %v6507, %v6500
    %v6837 = vpack.c.b16 %v6508, %v6501
    %v6838 = vpack.c.b16 %v6509, %v6502
    %v6839 = vpack.c.b16 %v6510, %v6503
    %v6840 = vpack.c.b16 %v6511, %v6504
    %v6841 = vpack.c.b16 %v6519, %v6512
    %v6842 = vpack.c.b16 %v6520, %v6513
    %v6843 = vpack.c.b16 %v6521, %v6514
    %v6844 = vpack.c.b16 %v6522, %v6515
    %v6845 = vpack.c.b16 %v6523, %v6516
    %v6846 = vpack.c.b16 %v6524, %v6517
    %v6847 = vpack.c.b16 %v6525, %v6518
    %v6848 = vpack.c.b16 %v6533, %v6526
    %v6849 = vpack.c.b16 %v6534, %v6527
    %v6850 = vpack.c.b16 %v6535, %v6528
    %v6851 = vpack.c.b16 %v6536, %v6529
    %v6852 = vpack.c.b16 %v6537, %v6530
    %v6853 = vpack.c.b16 %v6538, %v6531
    %v6854 = vpack.c.b16 %v6539, %v6532
    %v6855 = vpack.c.b16 %v6547, %v6540
    %v6856 = vpack.c.b16 %v6548, %v6541
    %v6857 = vpack.c.b16 %v6549, %v6542
    %v6858 = vpack.c.b16 %v6550, %v6543
    %v6859 = vpack.c.b16 %v6551, %v6544
    %v6860 = vpack.c.b16 %v6552, %v6545
    %v6861 = vpack.c.b16 %v6553, %v6546
    %v6862 = vpack.c.b16 %v6561, %v6554
    %v6863 = vpack.c.b16 %v6562, %v6555
    %v6864 = vpack.c.b16 %v6563, %v6556
    %v6865 = vpack.c.b16 %v6564, %v6557
    %v6866 = vpack.c.b16 %v6565, %v6558
    %v6867 = vpack.c.b16 %v6566, %v6559
    %v6868 = vpack.c.b16 %v6567, %v6560
    %v6869 = vpack.c.b16 %v6575, %v6568
    %v6870 = vpack.c.b16 %v6576, %v6569
    %v6871 = vpack.c.b16 %v6577, %v6570
    %v6872 = vpack.c.b16 %v6578, %v6571
    %v6873 = vpack.c.b16 %v6579, %v6572
    %v6874 = vpack.c.b16 %v6580, %v6573
    %v6875 = vpack.c.b16 %v6581, %v6574
    %v6876 = vpack.c.b16 %v6589, %v6582
    %v6877 = vpack.c.b16 %v6590, %v6583
    %v6878 = vpack.c.b16 %v6591, %v6584
    %v6879 = vpack.c.b16 %v6592, %v6585
    %v6880 = vpack.c.b16 %v6593, %v6586
    %v6881 = vpack.c.b16 %v6594, %v6587
    %v6882 = vpack.c.b16 %v6595, %v6588
    %v6883 = vpack.c.b16 %v6603, %v6596
    %v6884 = vpack.c.b16 %v6604, %v6597
    %v6885 = vpack.c.b16 %v6605, %v6598
    %v6886 = vpack.c.b16 %v6606, %v6599
    %v6887 = vpack.c.b16 %v6607, %v6600
    %v6888 = vpack.c.b16 %v6608, %v6601
    %v6889 = vpack.c.b16 %v6609, %v6602
    %v6890 = vpack.c.b16 %v6617, %v6610
    %v6891 = vpack.c.b16 %v6618, %v6611
    %v6892 = vpack.c.b16 %v6619, %v6612
    %v6893 = vpack.c.b16 %v6620, %v6613
    %v6894 = vpack.c.b16 %v6621, %v6614
    %v6895 = vpack.c.b16 %v6622, %v6615
    %v6896 = vpack.c.b16 %v6623, %v6616
    %v6897 = vpack.c.b16 %v6631, %v6624
    %v6898 = vpack.c.b16 %v6632, %v6625
    %v6899 = vpack.c.b16 %v6633, %v6626
    %v6900 = vpack.c.b16 %v6634, %v6627
    %v6901 = vpack.c.b16 %v6635, %v6628
    %v6902 = vpack.c.b16 %v6636, %v6629
    %v6903 = vpack.c.b16 %v6637, %v6630
    %v6904 = vpack.c.b16 %v6645, %v6638
    %v6905 = vpack.c.b16 %v6646, %v6639
    %v6906 = vpack.c.b16 %v6647, %v6640
    %v6907 = vpack.c.b16 %v6648, %v6641
    %v6908 = vpack.c.b16 %v6649, %v6642
    %v6909 = vpack.c.b16 %v6650, %v6643
    %v6910 = vpack.c.b16 %v6651, %v6644
    %v6911 = vpack.c.b16 %v6659, %v6652
    %v6912 = vpack.c.b16 %v6660, %v6653
    %v6913 = vpack.c.b16 %v6661, %v6654
    %v6914 = vpack.c.b16 %v6662, %v6655
    %v6915 = vpack.c.b16 %v6663, %v6656
    %v6916 = vpack.c.b16 %v6664, %v6657
    %v6917 = vpack.c.b16 %v6665, %v6658
    %v6918 = vpack.c.b16 %v6673, %v6666
    %v6919 = vpack.c.b16 %v6674, %v6667
    %v6920 = vpack.c.b16 %v6675, %v6668
    %v6921 = vpack.c.b16 %v6676, %v6669
    %v6922 = vpack.c.b16 %v6677, %v6670
    %v6923 = vpack.c.b16 %v6678, %v6671
    %v6924 = vpack.c.b16 %v6679, %v6672
    %v6925 = vpack.c.b16 %v6687, %v6680
    %v6926 = vpack.c.b16 %v6688, %v6681
    %v6927 = vpack.c.b16 %v6689, %v6682
    %v6928 = vpack.c.b16 %v6690, %v6683
    %v6929 = vpack.c.b16 %v6691, %v6684
    %v6930 = vpack.c.b16 %v6692, %v6685
    %v6931 = vpack.c.b16 %v6693, %v6686
    %v6932 = vpack.c.b16 %v6701, %v6694
    %v6933 = vpack.c.b16 %v6702, %v6695
    %v6934 = vpack.c.b16 %v6703, %v6696
    %v6935 = vpack.c.b16 %v6704, %v6697
    %v6936 = vpack.c.b16 %v6705, %v6698
    %v6937 = vpack.c.b16 %v6706, %v6699
    %v6938 = vpack.c.b16 %v6707, %v6700
    %v6939 = vpack.c.b16 %v6715, %v6708
    %v6940 = vpack.c.b16 %v6716, %v6709
    %v6941 = vpack.c.b16 %v6717, %v6710
    %v6942 = vpack.c.b16 %v6718, %v6711
    %v6943 = vpack.c.b16 %v6719, %v6712
    %v6944 = vpack.c.b16 %v6720, %v6713
    %v6945 = vpack.c.b16 %v6721, %v6714
    %v6946 = vpack.c.b16 %v6729, %v6722
    %v6947 = vpack.c.b16 %v6730, %v6723
    %v6948 = vpack.c.b16 %v6731, %v6724
    %v6949 = vpack.c.b16 %v6732, %v6725
    %v6950 = vpack.c.b16 %v6733, %v6726
    %v6951 = vpack.c.b16 %v6734, %v6727
    %v6952 = vpack.c.b16 %v6735, %v6728
    %v6953 = vpack.c.b16 %v6743, %v6736
    %v6954 = vpack.c.b16 %v6744, %v6737
    %v6955 = vpack.c.b16 %v6745, %v6738
    %v6956 = vpack.c.b16 %v6746, %v6739
    %v6957 = vpack.c.b16 %v6747, %v6740
    %v6958 = vpack.c.b16 %v6748, %v6741
    %v6959 = vpack.c.b16 %v6749, %v6742
    %v6960 = vpack.c.b16 %v6757, %v6750
    %v6961 = vpack.c.b16 %v6758, %v6751
    %v6962 = vpack.c.b16 %v6759, %v6752
    %v6963 = vpack.c.b16 %v6760, %v6753
    %v6964 = vpack.c.b16 %v6761, %v6754
    %v6965 = vpack.c.b16 %v6762, %v6755
    %v6966 = vpack.c.b16 %v6763, %v6756
    %v6967 = vpack.c.b16 %v6771, %v6764
    %v6968 = vpack.c.b16 %v6772, %v6765
    %v6969 = vpack.c.b16 %v6773, %v6766
    %v6970 = vpack.c.b16 %v6774, %v6767
    %v6971 = vpack.c.b16 %v6775, %v6768
    %v6972 = vpack.c.b16 %v6776, %v6769
    %v6973 = vpack.c.b16 %v6777, %v6770
    %v6974 = vpack.c.b16 %v6785, %v6778
    %v6975 = vpack.c.b16 %v6786, %v6779
    %v6976 = vpack.c.b16 %v6787, %v6780
    %v6977 = vpack.c.b16 %v6788, %v6781
    %v6978 = vpack.c.b16 %v6789, %v6782
    %v6979 = vpack.c.b16 %v6790, %v6783
    %v6980 = vpack.c.b16 %v6791, %v6784
    %v6981 = vpack.c.b16 %v6799, %v6792
    %v6982 = vpack.c.b16 %v6800, %v6793
    %v6983 = vpack.c.b16 %v6801, %v6794
    %v6984 = vpack.c.b16 %v6802, %v6795
    %v6985 = vpack.c.b16 %v6803, %v6796
    %v6986 = vpack.c.b16 %v6804, %v6797
    %v6987 = vpack.c.b16 %v6805, %v6798
    %v6988 = vpack.c.b16 %v6813, %v6806
    %v6989 = vpack.c.b16 %v6814, %v6807
    %v6990 = vpack.c.b16 %v6815, %v6808
    %v6991 = vpack.c.b16 %v6816, %v6809
    %v6992 = vpack.c.b16 %v6817, %v6810
    %v6993 = vpack.c.b16 %v6818, %v6811
    %v6994 = vpack.c.b16 %v6819, %v6812
    %v6995 = vpack.c.b16 %v6827, %v6820
    %v6996 = vpack.c.b16 %v6828, %v6821
    %v6997 = vpack.c.b16 %v6829, %v6822
    %v6998 = vpack.c.b16 %v6830, %v6823
    %v6999 = vpack.c.b16 %v6831, %v6824
    %v7000 = vpack.c.b16 %v6832, %v6825
    %v7001 = vpack.c.b16 %v6833, %v6826
    %7170 = vmatprep.subr.bf16.mxu0 %v6884
    %7171 = vmatpush1.bf16.msra.mxu0 %v6883
    %7172 = vmatprep.subr.bf16.mxu0 %v6877
    %7173 = vmatpush1.bf16.msra.mxu0 %v6876
    %7174 = vmatprep.subr.bf16.mxu0 %v6870
    %7175 = vmatpush1.bf16.msra.mxu0 %v6869
    %7176 = vmatprep.subr.bf16.mxu0 %v6863
    %7177 = vmatpush1.bf16.msra.mxu0 %v6862
    %7178 = vmatprep.subr.bf16.mxu0 %v6856
    %7179 = vmatpush1.bf16.msra.mxu0 %v6855
    %7180 = vmatprep.subr.bf16.mxu0 %v6849
    %7181 = vmatpush1.bf16.msra.mxu0 %v6848
    %7182 = vmatprep.subr.bf16.mxu0 %v6842
    %7183 = vmatpush1.bf16.msra.mxu0 %v6841
    %7184 = vmatprep.subr.bf16.mxu0 %v6835
    %7185 = vmatpush1.bf16.msra.mxu0 %v6834
    %7186 = vmatprep.subr.bf16.mxu0 %v6940
    %7187 = vmatpush2.bf16.msra.mxu0 %v6939
    %7188 = vmatprep.subr.bf16.mxu0 %v6933
    %7189 = vmatpush2.bf16.msra.mxu0 %v6932
    %7190 = vmatprep.subr.bf16.mxu0 %v6926
    %7191 = vmatpush2.bf16.msra.mxu0 %v6925
    %7192 = vmatprep.subr.bf16.mxu0 %v6919
    %7193 = vmatpush2.bf16.msra.mxu0 %v6918
    %7194 = vmatprep.subr.bf16.mxu0 %v6912
    %7195 = vmatpush2.bf16.msra.mxu0 %v6911
    %7196 = vmatprep.subr.bf16.mxu0 %v6905
    %7197 = vmatpush2.bf16.msra.mxu0 %v6904
    %7198 = vmatprep.subr.bf16.mxu0 %v6898
    %7199 = vmatpush2.bf16.msra.mxu0 %v6897
    %7200 = vmatprep.subr.bf16.mxu0 %v6891
    %7201 = vmatpush2.bf16.msra.mxu0 %v6890
    %7202 = vmatprep.mubr.bf16.mxu0 %v6054
    %7203 = vmatmul.mubr.bf16.gmra.mxu0 %v6053
    %v7204 = vpop.f32.mrf.mxu0
    %v7205 = vadd.f32 %v6274, %v7204
    %v7206 = vpop.f32.mrf.mxu0
    %v7207 = vadd.f32 %v6278, %v7206
    %v7208 = vpop.f32.mrf.mxu0
    %v7209 = vadd.f32 %v6274, %v7208
    %v7210 = vpop.f32.mrf.mxu0
    %v7211 = vadd.f32 %v6278, %v7210
    %7212 = vmatprep.mubr.bf16.mxu0 %v6057
    %7213 = vmatmul.mubr.bf16.gmra.mxu0 %v6056
    %v7214 = vpop.f32.mrf.mxu0
    %v7215 = vadd.f32 %v6274, %v7214
    %v7216 = vpop.f32.mrf.mxu0
    %v7217 = vadd.f32 %v6278, %v7216
    %v7218 = vpop.f32.mrf.mxu0
    %v7219 = vadd.f32 %v6274, %v7218
    %v7220 = vpop.f32.mrf.mxu0
    %v7221 = vadd.f32 %v6278, %v7220
    %7222 = vmatprep.mubr.bf16.mxu0 %v6060
    %7223 = vmatmul.mubr.bf16.gmra.mxu0 %v6059
    %v7224 = vpop.f32.mrf.mxu0
    %v7225 = vadd.f32 %v6274, %v7224
    %v7226 = vpop.f32.mrf.mxu0
    %v7227 = vadd.f32 %v6278, %v7226
    %v7228 = vpop.f32.mrf.mxu0
    %v7229 = vadd.f32 %v6274, %v7228
    %v7230 = vpop.f32.mrf.mxu0
    %v7231 = vadd.f32 %v6278, %v7230
    %7232 = vmatprep.mubr.bf16.mxu0 %v6063
    %7233 = vmatmul.mubr.bf16.gmra.mxu0 %v6062
    %v7234 = vpop.f32.mrf.mxu0
    %v7235 = vadd.f32 %v6274, %v7234
    %v7236 = vpop.f32.mrf.mxu0
    %v7237 = vadd.f32 %v6278, %v7236
    %v7238 = vpop.f32.mrf.mxu0
    %v7239 = vadd.f32 %v6274, %v7238
    %v7240 = vpop.f32.mrf.mxu0
    %v7241 = vadd.f32 %v6278, %v7240
    %7242 = vmatprep.mubr.bf16.mxu0 %v6066
    %7243 = vmatmul.mubr.bf16.gmra.mxu0 %v6065
    %v7244 = vpop.f32.mrf.mxu0
    %v7245 = vadd.f32 %v6274, %v7244
    %v7246 = vpop.f32.mrf.mxu0
    %v7247 = vadd.f32 %v6278, %v7246
    %v7248 = vpop.f32.mrf.mxu0
    %v7249 = vadd.f32 %v6274, %v7248
    %v7250 = vpop.f32.mrf.mxu0
    %v7251 = vadd.f32 %v6278, %v7250
    %7252 = vmatprep.mubr.bf16.mxu0 %v6069
    %7253 = vmatmul.mubr.bf16.gmra.mxu0 %v6068
    %v7254 = vpop.f32.mrf.mxu0
    %v7255 = vadd.f32 %v6274, %v7254
    %v7256 = vpop.f32.mrf.mxu0
    %v7257 = vadd.f32 %v6278, %v7256
    %v7258 = vpop.f32.mrf.mxu0
    %v7259 = vadd.f32 %v6274, %v7258
    %v7260 = vpop.f32.mrf.mxu0
    %v7261 = vadd.f32 %v6278, %v7260
    %7262 = vmatprep.mubr.bf16.mxu0 %v6072
    %7263 = vmatmul.mubr.bf16.gmra.mxu0 %v6071
    %v7264 = vpop.f32.mrf.mxu0
    %v7265 = vadd.f32 %v6274, %v7264
    %v7266 = vpop.f32.mrf.mxu0
    %v7267 = vadd.f32 %v6278, %v7266
    %v7268 = vpop.f32.mrf.mxu0
    %v7269 = vadd.f32 %v6274, %v7268
    %v7270 = vpop.f32.mrf.mxu0
    %v7271 = vadd.f32 %v6278, %v7270
    %7272 = vmatprep.mubr.bf16.mxu0 %v6075
    %7273 = vmatmul.mubr.bf16.gmra.mxu0 %v6074
    %v7274 = vpop.f32.mrf.mxu0
    %v7275 = vadd.f32 %v6274, %v7274
    %v7276 = vpop.f32.mrf.mxu0
    %v7277 = vadd.f32 %v6278, %v7276
    %v7278 = vpop.f32.mrf.mxu0
    %v7279 = vadd.f32 %v6274, %v7278
    %v7280 = vpop.f32.mrf.mxu0
    %v7281 = vadd.f32 %v6278, %v7280
    %7282 = vdwg.mxu0
    %7283 = vmatprep.subr.bf16.mxu0 %v6996
    %7284 = vmatpush1.bf16.msra.mxu0 %v6995
    %7285 = vmatprep.subr.bf16.mxu0 %v6989
    %7286 = vmatpush1.bf16.msra.mxu0 %v6988
    %7287 = vmatprep.subr.bf16.mxu0 %v6982
    %7288 = vmatpush1.bf16.msra.mxu0 %v6981
    %7289 = vmatprep.subr.bf16.mxu0 %v6975
    %7290 = vmatpush1.bf16.msra.mxu0 %v6974
    %7291 = vmatprep.subr.bf16.mxu0 %v6968
    %7292 = vmatpush1.bf16.msra.mxu0 %v6967
    %7293 = vmatprep.subr.bf16.mxu0 %v6961
    %7294 = vmatpush1.bf16.msra.mxu0 %v6960
    %7295 = vmatprep.subr.bf16.mxu0 %v6954
    %7296 = vmatpush1.bf16.msra.mxu0 %v6953
    %7297 = vmatprep.subr.bf16.mxu0 %v6947
    %7298 = vmatpush1.bf16.msra.mxu0 %v6946
    %7299 = vmatprep.subr.bf16.mxu0 0
    %7300 = vmatpush2.bf16.msra.mxu0 0
    %7301 = vmatprep.subr.bf16.mxu0 0
    %7302 = vmatpush2.bf16.msra.mxu0 0
    %7303 = vmatprep.subr.bf16.mxu0 0
    %7304 = vmatpush2.bf16.msra.mxu0 0
    %7305 = vmatprep.subr.bf16.mxu0 0
    %7306 = vmatpush2.bf16.msra.mxu0 0
    %7307 = vmatprep.subr.bf16.mxu0 0
    %7308 = vmatpush2.bf16.msra.mxu0 0
    %7309 = vmatprep.subr.bf16.mxu0 0
    %7310 = vmatpush2.bf16.msra.mxu0 0
    %7311 = vmatprep.subr.bf16.mxu0 0
    %7312 = vmatpush2.bf16.msra.mxu0 0
    %7313 = vmatprep.subr.bf16.mxu0 0
    %7314 = vmatpush2.bf16.msra.mxu0 0
    %7315 = vmatprep.mubr.bf16.mxu0 0
    %7316 = vmatmul.mubr.bf16.gmra.mxu0 %v6055
    %v7317 = vpop.f32.mrf.mxu0
    %v7318 = vadd.f32 %v7205, %v7317
    %v7319 = vpop.f32.mrf.mxu0
    %v7320 = vadd.f32 %v7207, %v7319
    %v7321 = vpop.f32.mrf.mxu0
    %v7322 = vadd.f32 %v7209, %v7321
    %v7323 = vpop.f32.mrf.mxu0
    %v7324 = vadd.f32 %v7211, %v7323
    %7325 = vmatprep.mubr.bf16.mxu0 0
    %7326 = vmatmul.mubr.bf16.gmra.mxu0 %v6058
    %v7327 = vpop.f32.mrf.mxu0
    %v7328 = vadd.f32 %v7215, %v7327
    %v7329 = vpop.f32.mrf.mxu0
    %v7330 = vadd.f32 %v7217, %v7329
    %v7331 = vpop.f32.mrf.mxu0
    %v7332 = vadd.f32 %v7219, %v7331
    %v7333 = vpop.f32.mrf.mxu0
    %v7334 = vadd.f32 %v7221, %v7333
    %7335 = vmatprep.mubr.bf16.mxu0 0
    %7336 = vmatmul.mubr.bf16.gmra.mxu0 %v6061
    %v7337 = vpop.f32.mrf.mxu0
    %v7338 = vadd.f32 %v7225, %v7337
    %v7339 = vpop.f32.mrf.mxu0
    %v7340 = vadd.f32 %v7227, %v7339
    %v7341 = vpop.f32.mrf.mxu0
    %v7342 = vadd.f32 %v7229, %v7341
    %v7343 = vpop.f32.mrf.mxu0
    %v7344 = vadd.f32 %v7231, %v7343
    %7345 = vmatprep.mubr.bf16.mxu0 0
    %7346 = vmatmul.mubr.bf16.gmra.mxu0 %v6064
    %v7347 = vpop.f32.mrf.mxu0
    %v7348 = vadd.f32 %v7235, %v7347
    %v7349 = vpop.f32.mrf.mxu0
    %v7350 = vadd.f32 %v7237, %v7349
    %v7351 = vpop.f32.mrf.mxu0
    %v7352 = vadd.f32 %v7239, %v7351
    %v7353 = vpop.f32.mrf.mxu0
    %v7354 = vadd.f32 %v7241, %v7353
    %7355 = vmatprep.mubr.bf16.mxu0 0
    %7356 = vmatmul.mubr.bf16.gmra.mxu0 %v6067
    %v7357 = vpop.f32.mrf.mxu0
    %v7358 = vadd.f32 %v7245, %v7357
    %v7359 = vpop.f32.mrf.mxu0
    %v7360 = vadd.f32 %v7247, %v7359
    %v7361 = vpop.f32.mrf.mxu0
    %v7362 = vadd.f32 %v7249, %v7361
    %v7363 = vpop.f32.mrf.mxu0
    %v7364 = vadd.f32 %v7251, %v7363
    %7365 = vmatprep.mubr.bf16.mxu0 0
    %7366 = vmatmul.mubr.bf16.gmra.mxu0 %v6070
    %v7367 = vpop.f32.mrf.mxu0
    %v7368 = vadd.f32 %v7255, %v7367
    %v7369 = vpop.f32.mrf.mxu0
    %v7370 = vadd.f32 %v7257, %v7369
    %v7371 = vpop.f32.mrf.mxu0
    %v7372 = vadd.f32 %v7259, %v7371
    %v7373 = vpop.f32.mrf.mxu0
    %v7374 = vadd.f32 %v7261, %v7373
    %7375 = vmatprep.mubr.bf16.mxu0 0
    %7376 = vmatmul.mubr.bf16.gmra.mxu0 %v6073
    %v7377 = vpop.f32.mrf.mxu0
    %v7378 = vadd.f32 %v7265, %v7377
    %v7379 = vpop.f32.mrf.mxu0
    %v7380 = vadd.f32 %v7267, %v7379
    %v7381 = vpop.f32.mrf.mxu0
    %v7382 = vadd.f32 %v7269, %v7381
    %v7383 = vpop.f32.mrf.mxu0
    %v7384 = vadd.f32 %v7271, %v7383
    %7385 = vmatprep.mubr.bf16.mxu0 0
    %7386 = vmatmul.mubr.bf16.gmra.mxu0 %v6076
    %v7387 = vpop.f32.mrf.mxu0
    %v7388 = vadd.f32 %v7275, %v7387
    %v7389 = vpop.f32.mrf.mxu0
    %v7390 = vadd.f32 %v7277, %v7389
    %v7391 = vpop.f32.mrf.mxu0
    %v7392 = vadd.f32 %v7279, %v7391
    %v7393 = vpop.f32.mrf.mxu0
    %v7394 = vadd.f32 %v7281, %v7393
    %7395 = vdwg.mxu0
    %7396 = vmatprep.subr.bf16.mxu0 %v6886
    %7397 = vmatpush1.bf16.msra.mxu0 %v6885
    %7398 = vmatprep.subr.bf16.mxu0 %v6879
    %7399 = vmatpush1.bf16.msra.mxu0 %v6878
    %7400 = vmatprep.subr.bf16.mxu0 %v6872
    %7401 = vmatpush1.bf16.msra.mxu0 %v6871
    %7402 = vmatprep.subr.bf16.mxu0 %v6865
    %7403 = vmatpush1.bf16.msra.mxu0 %v6864
    %7404 = vmatprep.subr.bf16.mxu0 %v6858
    %7405 = vmatpush1.bf16.msra.mxu0 %v6857
    %7406 = vmatprep.subr.bf16.mxu0 %v6851
    %7407 = vmatpush1.bf16.msra.mxu0 %v6850
    %7408 = vmatprep.subr.bf16.mxu0 %v6844
    %7409 = vmatpush1.bf16.msra.mxu0 %v6843
    %7410 = vmatprep.subr.bf16.mxu0 %v6837
    %7411 = vmatpush1.bf16.msra.mxu0 %v6836
    %7412 = vmatprep.subr.bf16.mxu0 %v6942
    %7413 = vmatpush2.bf16.msra.mxu0 %v6941
    %7414 = vmatprep.subr.bf16.mxu0 %v6935
    %7415 = vmatpush2.bf16.msra.mxu0 %v6934
    %7416 = vmatprep.subr.bf16.mxu0 %v6928
    %7417 = vmatpush2.bf16.msra.mxu0 %v6927
    %7418 = vmatprep.subr.bf16.mxu0 %v6921
    %7419 = vmatpush2.bf16.msra.mxu0 %v6920
    %7420 = vmatprep.subr.bf16.mxu0 %v6914
    %7421 = vmatpush2.bf16.msra.mxu0 %v6913
    %7422 = vmatprep.subr.bf16.mxu0 %v6907
    %7423 = vmatpush2.bf16.msra.mxu0 %v6906
    %7424 = vmatprep.subr.bf16.mxu0 %v6900
    %7425 = vmatpush2.bf16.msra.mxu0 %v6899
    %7426 = vmatprep.subr.bf16.mxu0 %v6893
    %7427 = vmatpush2.bf16.msra.mxu0 %v6892
    %7428 = vmatprep.mubr.bf16.mxu0 %v6054
    %7429 = vmatmul.mubr.bf16.gmra.mxu0 %v6053
    %v7430 = vpop.f32.mrf.mxu0
    %v7431 = vadd.f32 %v6282, %v7430
    %v7432 = vpop.f32.mrf.mxu0
    %v7433 = vadd.f32 %v6286, %v7432
    %v7434 = vpop.f32.mrf.mxu0
    %v7435 = vadd.f32 %v6282, %v7434
    %v7436 = vpop.f32.mrf.mxu0
    %v7437 = vadd.f32 %v6286, %v7436
    %7438 = vmatprep.mubr.bf16.mxu0 %v6057
    %7439 = vmatmul.mubr.bf16.gmra.mxu0 %v6056
    %v7440 = vpop.f32.mrf.mxu0
    %v7441 = vadd.f32 %v6282, %v7440
    %v7442 = vpop.f32.mrf.mxu0
    %v7443 = vadd.f32 %v6286, %v7442
    %v7444 = vpop.f32.mrf.mxu0
    %v7445 = vadd.f32 %v6282, %v7444
    %v7446 = vpop.f32.mrf.mxu0
    %v7447 = vadd.f32 %v6286, %v7446
    %7448 = vmatprep.mubr.bf16.mxu0 %v6060
    %7449 = vmatmul.mubr.bf16.gmra.mxu0 %v6059
    %v7450 = vpop.f32.mrf.mxu0
    %v7451 = vadd.f32 %v6282, %v7450
    %v7452 = vpop.f32.mrf.mxu0
    %v7453 = vadd.f32 %v6286, %v7452
    %v7454 = vpop.f32.mrf.mxu0
    %v7455 = vadd.f32 %v6282, %v7454
    %v7456 = vpop.f32.mrf.mxu0
    %v7457 = vadd.f32 %v6286, %v7456
    %7458 = vmatprep.mubr.bf16.mxu0 %v6063
    %7459 = vmatmul.mubr.bf16.gmra.mxu0 %v6062
    %v7460 = vpop.f32.mrf.mxu0
    %v7461 = vadd.f32 %v6282, %v7460
    %v7462 = vpop.f32.mrf.mxu0
    %v7463 = vadd.f32 %v6286, %v7462
    %v7464 = vpop.f32.mrf.mxu0
    %v7465 = vadd.f32 %v6282, %v7464
    %v7466 = vpop.f32.mrf.mxu0
    %v7467 = vadd.f32 %v6286, %v7466
    %7468 = vmatprep.mubr.bf16.mxu0 %v6066
    %7469 = vmatmul.mubr.bf16.gmra.mxu0 %v6065
    %v7470 = vpop.f32.mrf.mxu0
    %v7471 = vadd.f32 %v6282, %v7470
    %v7472 = vpop.f32.mrf.mxu0
    %v7473 = vadd.f32 %v6286, %v7472
    %v7474 = vpop.f32.mrf.mxu0
    %v7475 = vadd.f32 %v6282, %v7474
    %v7476 = vpop.f32.mrf.mxu0
    %v7477 = vadd.f32 %v6286, %v7476
    %7478 = vmatprep.mubr.bf16.mxu0 %v6069
    %7479 = vmatmul.mubr.bf16.gmra.mxu0 %v6068
    %v7480 = vpop.f32.mrf.mxu0
    %v7481 = vadd.f32 %v6282, %v7480
    %v7482 = vpop.f32.mrf.mxu0
    %v7483 = vadd.f32 %v6286, %v7482
    %v7484 = vpop.f32.mrf.mxu0
    %v7485 = vadd.f32 %v6282, %v7484
    %v7486 = vpop.f32.mrf.mxu0
    %v7487 = vadd.f32 %v6286, %v7486
    %7488 = vmatprep.mubr.bf16.mxu0 %v6072
    %7489 = vmatmul.mubr.bf16.gmra.mxu0 %v6071
    %v7490 = vpop.f32.mrf.mxu0
    %v7491 = vadd.f32 %v6282, %v7490
    %v7492 = vpop.f32.mrf.mxu0
    %v7493 = vadd.f32 %v6286, %v7492
    %v7494 = vpop.f32.mrf.mxu0
    %v7495 = vadd.f32 %v6282, %v7494
    %v7496 = vpop.f32.mrf.mxu0
    %v7497 = vadd.f32 %v6286, %v7496
    %7498 = vmatprep.mubr.bf16.mxu0 %v6075
    %7499 = vmatmul.mubr.bf16.gmra.mxu0 %v6074
    %v7500 = vpop.f32.mrf.mxu0
    %v7501 = vadd.f32 %v6282, %v7500
    %v7502 = vpop.f32.mrf.mxu0
    %v7503 = vadd.f32 %v6286, %v7502
    %v7504 = vpop.f32.mrf.mxu0
    %v7505 = vadd.f32 %v6282, %v7504
    %v7506 = vpop.f32.mrf.mxu0
    %v7507 = vadd.f32 %v6286, %v7506
    %7508 = vdwg.mxu0
    %7509 = vmatprep.subr.bf16.mxu0 %v6998
    %7510 = vmatpush1.bf16.msra.mxu0 %v6997
    %7511 = vmatprep.subr.bf16.mxu0 %v6991
    %7512 = vmatpush1.bf16.msra.mxu0 %v6990
    %7513 = vmatprep.subr.bf16.mxu0 %v6984
    %7514 = vmatpush1.bf16.msra.mxu0 %v6983
    %7515 = vmatprep.subr.bf16.mxu0 %v6977
    %7516 = vmatpush1.bf16.msra.mxu0 %v6976
    %7517 = vmatprep.subr.bf16.mxu0 %v6970
    %7518 = vmatpush1.bf16.msra.mxu0 %v6969
    %7519 = vmatprep.subr.bf16.mxu0 %v6963
    %7520 = vmatpush1.bf16.msra.mxu0 %v6962
    %7521 = vmatprep.subr.bf16.mxu0 %v6956
    %7522 = vmatpush1.bf16.msra.mxu0 %v6955
    %7523 = vmatprep.subr.bf16.mxu0 %v6949
    %7524 = vmatpush1.bf16.msra.mxu0 %v6948
    %7525 = vmatprep.subr.bf16.mxu0 0
    %7526 = vmatpush2.bf16.msra.mxu0 0
    %7527 = vmatprep.subr.bf16.mxu0 0
    %7528 = vmatpush2.bf16.msra.mxu0 0
    %7529 = vmatprep.subr.bf16.mxu0 0
    %7530 = vmatpush2.bf16.msra.mxu0 0
    %7531 = vmatprep.subr.bf16.mxu0 0
    %7532 = vmatpush2.bf16.msra.mxu0 0
    %7533 = vmatprep.subr.bf16.mxu0 0
    %7534 = vmatpush2.bf16.msra.mxu0 0
    %7535 = vmatprep.subr.bf16.mxu0 0
    %7536 = vmatpush2.bf16.msra.mxu0 0
    %7537 = vmatprep.subr.bf16.mxu0 0
    %7538 = vmatpush2.bf16.msra.mxu0 0
    %7539 = vmatprep.subr.bf16.mxu0 0
    %7540 = vmatpush2.bf16.msra.mxu0 0
    %7541 = vmatprep.mubr.bf16.mxu0 0
    %7542 = vmatmul.mubr.bf16.gmra.mxu0 %v6055
    %v7543 = vpop.f32.mrf.mxu0
    %v7544 = vadd.f32 %v7431, %v7543
    %v7545 = vpop.f32.mrf.mxu0
    %v7546 = vadd.f32 %v7433, %v7545
    %v7547 = vpop.f32.mrf.mxu0
    %v7548 = vadd.f32 %v7435, %v7547
    %v7549 = vpop.f32.mrf.mxu0
    %v7550 = vadd.f32 %v7437, %v7549
    %7551 = vmatprep.mubr.bf16.mxu0 0
    %7552 = vmatmul.mubr.bf16.gmra.mxu0 %v6058
    %v7553 = vpop.f32.mrf.mxu0
    %v7554 = vadd.f32 %v7441, %v7553
    %v7555 = vpop.f32.mrf.mxu0
    %v7556 = vadd.f32 %v7443, %v7555
    %v7557 = vpop.f32.mrf.mxu0
    %v7558 = vadd.f32 %v7445, %v7557
    %v7559 = vpop.f32.mrf.mxu0
    %v7560 = vadd.f32 %v7447, %v7559
    %7561 = vmatprep.mubr.bf16.mxu0 0
    %7562 = vmatmul.mubr.bf16.gmra.mxu0 %v6061
    %v7563 = vpop.f32.mrf.mxu0
    %v7564 = vadd.f32 %v7451, %v7563
    %v7565 = vpop.f32.mrf.mxu0
    %v7566 = vadd.f32 %v7453, %v7565
    %v7567 = vpop.f32.mrf.mxu0
    %v7568 = vadd.f32 %v7455, %v7567
    %v7569 = vpop.f32.mrf.mxu0
    %v7570 = vadd.f32 %v7457, %v7569
    %7571 = vmatprep.mubr.bf16.mxu0 0
    %7572 = vmatmul.mubr.bf16.gmra.mxu0 %v6064
    %v7573 = vpop.f32.mrf.mxu0
    %v7574 = vadd.f32 %v7461, %v7573
    %v7575 = vpop.f32.mrf.mxu0
    %v7576 = vadd.f32 %v7463, %v7575
    %v7577 = vpop.f32.mrf.mxu0
    %v7578 = vadd.f32 %v7465, %v7577
    %v7579 = vpop.f32.mrf.mxu0
    %v7580 = vadd.f32 %v7467, %v7579
    %7581 = vmatprep.mubr.bf16.mxu0 0
    %7582 = vmatmul.mubr.bf16.gmra.mxu0 %v6067
    %v7583 = vpop.f32.mrf.mxu0
    %v7584 = vadd.f32 %v7471, %v7583
    %v7585 = vpop.f32.mrf.mxu0
    %v7586 = vadd.f32 %v7473, %v7585
    %v7587 = vpop.f32.mrf.mxu0
    %v7588 = vadd.f32 %v7475, %v7587
    %v7589 = vpop.f32.mrf.mxu0
    %v7590 = vadd.f32 %v7477, %v7589
    %7591 = vmatprep.mubr.bf16.mxu0 0
    %7592 = vmatmul.mubr.bf16.gmra.mxu0 %v6070
    %v7593 = vpop.f32.mrf.mxu0
    %v7594 = vadd.f32 %v7481, %v7593
    %v7595 = vpop.f32.mrf.mxu0
    %v7596 = vadd.f32 %v7483, %v7595
    %v7597 = vpop.f32.mrf.mxu0
    %v7598 = vadd.f32 %v7485, %v7597
    %v7599 = vpop.f32.mrf.mxu0
    %v7600 = vadd.f32 %v7487, %v7599
    %7601 = vmatprep.mubr.bf16.mxu0 0
    %7602 = vmatmul.mubr.bf16.gmra.mxu0 %v6073
    %v7603 = vpop.f32.mrf.mxu0
    %v7604 = vadd.f32 %v7491, %v7603
    %v7605 = vpop.f32.mrf.mxu0
    %v7606 = vadd.f32 %v7493, %v7605
    %v7607 = vpop.f32.mrf.mxu0
    %v7608 = vadd.f32 %v7495, %v7607
    %v7609 = vpop.f32.mrf.mxu0
    %v7610 = vadd.f32 %v7497, %v7609
    %7611 = vmatprep.mubr.bf16.mxu0 0
    %7612 = vmatmul.mubr.bf16.gmra.mxu0 %v6076
    %v7613 = vpop.f32.mrf.mxu0
    %v7614 = vadd.f32 %v7501, %v7613
    %v7615 = vpop.f32.mrf.mxu0
    %v7616 = vadd.f32 %v7503, %v7615
    %v7617 = vpop.f32.mrf.mxu0
    %v7618 = vadd.f32 %v7505, %v7617
    %v7619 = vpop.f32.mrf.mxu0
    %v7620 = vadd.f32 %v7507, %v7619
    %7621 = vdwg.mxu0
    %7622 = vmatprep.subr.bf16.mxu0 %v6888
    %7623 = vmatpush1.bf16.msra.mxu0 %v6887
    %7624 = vmatprep.subr.bf16.mxu0 %v6881
    %7625 = vmatpush1.bf16.msra.mxu0 %v6880
    %7626 = vmatprep.subr.bf16.mxu0 %v6874
    %7627 = vmatpush1.bf16.msra.mxu0 %v6873
    %7628 = vmatprep.subr.bf16.mxu0 %v6867
    %7629 = vmatpush1.bf16.msra.mxu0 %v6866
    %7630 = vmatprep.subr.bf16.mxu0 %v6860
    %7631 = vmatpush1.bf16.msra.mxu0 %v6859
    %7632 = vmatprep.subr.bf16.mxu0 %v6853
    %7633 = vmatpush1.bf16.msra.mxu0 %v6852
    %7634 = vmatprep.subr.bf16.mxu0 %v6846
    %7635 = vmatpush1.bf16.msra.mxu0 %v6845
    %7636 = vmatprep.subr.bf16.mxu0 %v6839
    %7637 = vmatpush1.bf16.msra.mxu0 %v6838
    %7638 = vmatprep.subr.bf16.mxu0 %v6944
    %7639 = vmatpush2.bf16.msra.mxu0 %v6943
    %7640 = vmatprep.subr.bf16.mxu0 %v6937
    %7641 = vmatpush2.bf16.msra.mxu0 %v6936
    %7642 = vmatprep.subr.bf16.mxu0 %v6930
    %7643 = vmatpush2.bf16.msra.mxu0 %v6929
    %7644 = vmatprep.subr.bf16.mxu0 %v6923
    %7645 = vmatpush2.bf16.msra.mxu0 %v6922
    %7646 = vmatprep.subr.bf16.mxu0 %v6916
    %7647 = vmatpush2.bf16.msra.mxu0 %v6915
    %7648 = vmatprep.subr.bf16.mxu0 %v6909
    %7649 = vmatpush2.bf16.msra.mxu0 %v6908
    %7650 = vmatprep.subr.bf16.mxu0 %v6902
    %7651 = vmatpush2.bf16.msra.mxu0 %v6901
    %7652 = vmatprep.subr.bf16.mxu0 %v6895
    %7653 = vmatpush2.bf16.msra.mxu0 %v6894
    %7654 = vmatprep.mubr.bf16.mxu0 %v6054
    %7655 = vmatmul.mubr.bf16.gmra.mxu0 %v6053
    %v7656 = vpop.f32.mrf.mxu0
    %v7657 = vadd.f32 %v6290, %v7656
    %v7658 = vpop.f32.mrf.mxu0
    %v7659 = vadd.f32 %v6294, %v7658
    %v7660 = vpop.f32.mrf.mxu0
    %v7661 = vadd.f32 %v6290, %v7660
    %v7662 = vpop.f32.mrf.mxu0
    %v7663 = vadd.f32 %v6294, %v7662
    %7664 = vmatprep.mubr.bf16.mxu0 %v6057
    %7665 = vmatmul.mubr.bf16.gmra.mxu0 %v6056
    %v7666 = vpop.f32.mrf.mxu0
    %v7667 = vadd.f32 %v6290, %v7666
    %v7668 = vpop.f32.mrf.mxu0
    %v7669 = vadd.f32 %v6294, %v7668
    %v7670 = vpop.f32.mrf.mxu0
    %v7671 = vadd.f32 %v6290, %v7670
    %v7672 = vpop.f32.mrf.mxu0
    %v7673 = vadd.f32 %v6294, %v7672
    %7674 = vmatprep.mubr.bf16.mxu0 %v6060
    %7675 = vmatmul.mubr.bf16.gmra.mxu0 %v6059
    %v7676 = vpop.f32.mrf.mxu0
    %v7677 = vadd.f32 %v6290, %v7676
    %v7678 = vpop.f32.mrf.mxu0
    %v7679 = vadd.f32 %v6294, %v7678
    %v7680 = vpop.f32.mrf.mxu0
    %v7681 = vadd.f32 %v6290, %v7680
    %v7682 = vpop.f32.mrf.mxu0
    %v7683 = vadd.f32 %v6294, %v7682
    %7684 = vmatprep.mubr.bf16.mxu0 %v6063
    %7685 = vmatmul.mubr.bf16.gmra.mxu0 %v6062
    %v7686 = vpop.f32.mrf.mxu0
    %v7687 = vadd.f32 %v6290, %v7686
    %v7688 = vpop.f32.mrf.mxu0
    %v7689 = vadd.f32 %v6294, %v7688
    %v7690 = vpop.f32.mrf.mxu0
    %v7691 = vadd.f32 %v6290, %v7690
    %v7692 = vpop.f32.mrf.mxu0
    %v7693 = vadd.f32 %v6294, %v7692
    %7694 = vmatprep.mubr.bf16.mxu0 %v6066
    %7695 = vmatmul.mubr.bf16.gmra.mxu0 %v6065
    %v7696 = vpop.f32.mrf.mxu0
    %v7697 = vadd.f32 %v6290, %v7696
    %v7698 = vpop.f32.mrf.mxu0
    %v7699 = vadd.f32 %v6294, %v7698
    %v7700 = vpop.f32.mrf.mxu0
    %v7701 = vadd.f32 %v6290, %v7700
    %v7702 = vpop.f32.mrf.mxu0
    %v7703 = vadd.f32 %v6294, %v7702
    %7704 = vmatprep.mubr.bf16.mxu0 %v6069
    %7705 = vmatmul.mubr.bf16.gmra.mxu0 %v6068
    %v7706 = vpop.f32.mrf.mxu0
    %v7707 = vadd.f32 %v6290, %v7706
    %v7708 = vpop.f32.mrf.mxu0
    %v7709 = vadd.f32 %v6294, %v7708
    %v7710 = vpop.f32.mrf.mxu0
    %v7711 = vadd.f32 %v6290, %v7710
    %v7712 = vpop.f32.mrf.mxu0
    %v7713 = vadd.f32 %v6294, %v7712
    %7714 = vmatprep.mubr.bf16.mxu0 %v6072
    %7715 = vmatmul.mubr.bf16.gmra.mxu0 %v6071
    %v7716 = vpop.f32.mrf.mxu0
    %v7717 = vadd.f32 %v6290, %v7716
    %v7718 = vpop.f32.mrf.mxu0
    %v7719 = vadd.f32 %v6294, %v7718
    %v7720 = vpop.f32.mrf.mxu0
    %v7721 = vadd.f32 %v6290, %v7720
    %v7722 = vpop.f32.mrf.mxu0
    %v7723 = vadd.f32 %v6294, %v7722
    %7724 = vmatprep.mubr.bf16.mxu0 %v6075
    %7725 = vmatmul.mubr.bf16.gmra.mxu0 %v6074
    %v7726 = vpop.f32.mrf.mxu0
    %v7727 = vadd.f32 %v6290, %v7726
    %v7728 = vpop.f32.mrf.mxu0
    %v7729 = vadd.f32 %v6294, %v7728
    %v7730 = vpop.f32.mrf.mxu0
    %v7731 = vadd.f32 %v6290, %v7730
    %v7732 = vpop.f32.mrf.mxu0
    %v7733 = vadd.f32 %v6294, %v7732
    %7734 = vdwg.mxu0
    %7735 = vmatprep.subr.bf16.mxu0 %v7000
    %7736 = vmatpush1.bf16.msra.mxu0 %v6999
    %7737 = vmatprep.subr.bf16.mxu0 %v6993
    %7738 = vmatpush1.bf16.msra.mxu0 %v6992
    %7739 = vmatprep.subr.bf16.mxu0 %v6986
    %7740 = vmatpush1.bf16.msra.mxu0 %v6985
    %7741 = vmatprep.subr.bf16.mxu0 %v6979
    %7742 = vmatpush1.bf16.msra.mxu0 %v6978
    %7743 = vmatprep.subr.bf16.mxu0 %v6972
    %7744 = vmatpush1.bf16.msra.mxu0 %v6971
    %7745 = vmatprep.subr.bf16.mxu0 %v6965
    %7746 = vmatpush1.bf16.msra.mxu0 %v6964
    %7747 = vmatprep.subr.bf16.mxu0 %v6958
    %7748 = vmatpush1.bf16.msra.mxu0 %v6957
    %7749 = vmatprep.subr.bf16.mxu0 %v6951
    %7750 = vmatpush1.bf16.msra.mxu0 %v6950
    %7751 = vmatprep.subr.bf16.mxu0 0
    %7752 = vmatpush2.bf16.msra.mxu0 0
    %7753 = vmatprep.subr.bf16.mxu0 0
    %7754 = vmatpush2.bf16.msra.mxu0 0
    %7755 = vmatprep.subr.bf16.mxu0 0
    %7756 = vmatpush2.bf16.msra.mxu0 0
    %7757 = vmatprep.subr.bf16.mxu0 0
    %7758 = vmatpush2.bf16.msra.mxu0 0
    %7759 = vmatprep.subr.bf16.mxu0 0
    %7760 = vmatpush2.bf16.msra.mxu0 0
    %7761 = vmatprep.subr.bf16.mxu0 0
    %7762 = vmatpush2.bf16.msra.mxu0 0
    %7763 = vmatprep.subr.bf16.mxu0 0
    %7764 = vmatpush2.bf16.msra.mxu0 0
    %7765 = vmatprep.subr.bf16.mxu0 0
    %7766 = vmatpush2.bf16.msra.mxu0 0
    %7767 = vmatprep.mubr.bf16.mxu0 0
    %7768 = vmatmul.mubr.bf16.gmra.mxu0 %v6055
    %v7769 = vpop.f32.mrf.mxu0
    %v7770 = vadd.f32 %v7657, %v7769
    %v7771 = vpop.f32.mrf.mxu0
    %v7772 = vadd.f32 %v7659, %v7771
    %v7773 = vpop.f32.mrf.mxu0
    %v7774 = vadd.f32 %v7661, %v7773
    %v7775 = vpop.f32.mrf.mxu0
    %v7776 = vadd.f32 %v7663, %v7775
    %7777 = vmatprep.mubr.bf16.mxu0 0
    %7778 = vmatmul.mubr.bf16.gmra.mxu0 %v6058
    %v7779 = vpop.f32.mrf.mxu0
    %v7780 = vadd.f32 %v7667, %v7779
    %v7781 = vpop.f32.mrf.mxu0
    %v7782 = vadd.f32 %v7669, %v7781
    %v7783 = vpop.f32.mrf.mxu0
    %v7784 = vadd.f32 %v7671, %v7783
    %v7785 = vpop.f32.mrf.mxu0
    %v7786 = vadd.f32 %v7673, %v7785
    %7787 = vmatprep.mubr.bf16.mxu0 0
    %7788 = vmatmul.mubr.bf16.gmra.mxu0 %v6061
    %v7789 = vpop.f32.mrf.mxu0
    %v7790 = vadd.f32 %v7677, %v7789
    %v7791 = vpop.f32.mrf.mxu0
    %v7792 = vadd.f32 %v7679, %v7791
    %v7793 = vpop.f32.mrf.mxu0
    %v7794 = vadd.f32 %v7681, %v7793
    %v7795 = vpop.f32.mrf.mxu0
    %v7796 = vadd.f32 %v7683, %v7795
    %7797 = vmatprep.mubr.bf16.mxu0 0
    %7798 = vmatmul.mubr.bf16.gmra.mxu0 %v6064
    %v7799 = vpop.f32.mrf.mxu0
    %v7800 = vadd.f32 %v7687, %v7799
    %v7801 = vpop.f32.mrf.mxu0
    %v7802 = vadd.f32 %v7689, %v7801
    %v7803 = vpop.f32.mrf.mxu0
    %v7804 = vadd.f32 %v7691, %v7803
    %v7805 = vpop.f32.mrf.mxu0
    %v7806 = vadd.f32 %v7693, %v7805
    %7807 = vmatprep.mubr.bf16.mxu0 0
    %7808 = vmatmul.mubr.bf16.gmra.mxu0 %v6067
    %v7809 = vpop.f32.mrf.mxu0
    %v7810 = vadd.f32 %v7697, %v7809
    %v7811 = vpop.f32.mrf.mxu0
    %v7812 = vadd.f32 %v7699, %v7811
    %v7813 = vpop.f32.mrf.mxu0
    %v7814 = vadd.f32 %v7701, %v7813
    %v7815 = vpop.f32.mrf.mxu0
    %v7816 = vadd.f32 %v7703, %v7815
    %7817 = vmatprep.mubr.bf16.mxu0 0
    %7818 = vmatmul.mubr.bf16.gmra.mxu0 %v6070
    %v7819 = vpop.f32.mrf.mxu0
    %v7820 = vadd.f32 %v7707, %v7819
    %v7821 = vpop.f32.mrf.mxu0
    %v7822 = vadd.f32 %v7709, %v7821
    %v7823 = vpop.f32.mrf.mxu0
    %v7824 = vadd.f32 %v7711, %v7823
    %v7825 = vpop.f32.mrf.mxu0
    %v7826 = vadd.f32 %v7713, %v7825
    %7827 = vmatprep.mubr.bf16.mxu0 0
    %7828 = vmatmul.mubr.bf16.gmra.mxu0 %v6073
    %v7829 = vpop.f32.mrf.mxu0
    %v7830 = vadd.f32 %v7717, %v7829
    %v7831 = vpop.f32.mrf.mxu0
    %v7832 = vadd.f32 %v7719, %v7831
    %v7833 = vpop.f32.mrf.mxu0
    %v7834 = vadd.f32 %v7721, %v7833
    %v7835 = vpop.f32.mrf.mxu0
    %v7836 = vadd.f32 %v7723, %v7835
    %7837 = vmatprep.mubr.bf16.mxu0 0
    %7838 = vmatmul.mubr.bf16.gmra.mxu0 %v6076
    %v7839 = vpop.f32.mrf.mxu0
    %v7840 = vadd.f32 %v7727, %v7839
    %v7841 = vpop.f32.mrf.mxu0
    %v7842 = vadd.f32 %v7729, %v7841
    %v7843 = vpop.f32.mrf.mxu0
    %v7844 = vadd.f32 %v7731, %v7843
    %v7845 = vpop.f32.mrf.mxu0
    %v7846 = vadd.f32 %v7733, %v7845
    %7847 = vdwg.mxu0
    %7848 = vmatprep.subr.bf16.mxu0 0
    %7849 = vmatpush1.bf16.msra.mxu0 %v6889
    %7850 = vmatprep.subr.bf16.mxu0 0
    %7851 = vmatpush1.bf16.msra.mxu0 %v6882
    %7852 = vmatprep.subr.bf16.mxu0 0
    %7853 = vmatpush1.bf16.msra.mxu0 %v6875
    %7854 = vmatprep.subr.bf16.mxu0 0
    %7855 = vmatpush1.bf16.msra.mxu0 %v6868
    %7856 = vmatprep.subr.bf16.mxu0 0
    %7857 = vmatpush1.bf16.msra.mxu0 %v6861
    %7858 = vmatprep.subr.bf16.mxu0 0
    %7859 = vmatpush1.bf16.msra.mxu0 %v6854
    %7860 = vmatprep.subr.bf16.mxu0 0
    %7861 = vmatpush1.bf16.msra.mxu0 %v6847
    %7862 = vmatprep.subr.bf16.mxu0 0
    %7863 = vmatpush1.bf16.msra.mxu0 %v6840
    %7864 = vmatprep.subr.bf16.mxu0 0
    %7865 = vmatpush2.bf16.msra.mxu0 %v6945
    %7866 = vmatprep.subr.bf16.mxu0 0
    %7867 = vmatpush2.bf16.msra.mxu0 %v6938
    %7868 = vmatprep.subr.bf16.mxu0 0
    %7869 = vmatpush2.bf16.msra.mxu0 %v6931
    %7870 = vmatprep.subr.bf16.mxu0 0
    %7871 = vmatpush2.bf16.msra.mxu0 %v6924
    %7872 = vmatprep.subr.bf16.mxu0 0
    %7873 = vmatpush2.bf16.msra.mxu0 %v6917
    %7874 = vmatprep.subr.bf16.mxu0 0
    %7875 = vmatpush2.bf16.msra.mxu0 %v6910
    %7876 = vmatprep.subr.bf16.mxu0 0
    %7877 = vmatpush2.bf16.msra.mxu0 %v6903
    %7878 = vmatprep.subr.bf16.mxu0 0
    %7879 = vmatpush2.bf16.msra.mxu0 %v6896
    %7880 = vmatprep.mubr.bf16.mxu0 %v6054
    %7881 = vmatmul.mubr.bf16.gmra.mxu0 %v6053
    %v7882 = vpop.f32.mrf.mxu0
    %v7883 = vadd.f32 %v6298, %v7882
    %v7884 = vpop.f32.mrf.mxu0
    %v7885 = vpop.f32.mrf.mxu0
    %v7886 = vadd.f32 %v6298, %v7885
    %v7887 = vpop.f32.mrf.mxu0
    %7888 = vmatprep.mubr.bf16.mxu0 %v6057
    %7889 = vmatmul.mubr.bf16.gmra.mxu0 %v6056
    %v7890 = vpop.f32.mrf.mxu0
    %v7891 = vadd.f32 %v6298, %v7890
    %v7892 = vpop.f32.mrf.mxu0
    %v7893 = vpop.f32.mrf.mxu0
    %v7894 = vadd.f32 %v6298, %v7893
    %v7895 = vpop.f32.mrf.mxu0
    %7896 = vmatprep.mubr.bf16.mxu0 %v6060
    %7897 = vmatmul.mubr.bf16.gmra.mxu0 %v6059
    %v7898 = vpop.f32.mrf.mxu0
    %v7899 = vadd.f32 %v6298, %v7898
    %v7900 = vpop.f32.mrf.mxu0
    %v7901 = vpop.f32.mrf.mxu0
    %v7902 = vadd.f32 %v6298, %v7901
    %v7903 = vpop.f32.mrf.mxu0
    %7904 = vmatprep.mubr.bf16.mxu0 %v6063
    %7905 = vmatmul.mubr.bf16.gmra.mxu0 %v6062
    %v7906 = vpop.f32.mrf.mxu0
    %v7907 = vadd.f32 %v6298, %v7906
    %v7908 = vpop.f32.mrf.mxu0
    %v7909 = vpop.f32.mrf.mxu0
    %v7910 = vadd.f32 %v6298, %v7909
    %v7911 = vpop.f32.mrf.mxu0
    %7912 = vmatprep.mubr.bf16.mxu0 %v6066
    %7913 = vmatmul.mubr.bf16.gmra.mxu0 %v6065
    %v7914 = vpop.f32.mrf.mxu0
    %v7915 = vadd.f32 %v6298, %v7914
    %v7916 = vpop.f32.mrf.mxu0
    %v7917 = vpop.f32.mrf.mxu0
    %v7918 = vadd.f32 %v6298, %v7917
    %v7919 = vpop.f32.mrf.mxu0
    %7920 = vmatprep.mubr.bf16.mxu0 %v6069
    %7921 = vmatmul.mubr.bf16.gmra.mxu0 %v6068
    %v7922 = vpop.f32.mrf.mxu0
    %v7923 = vadd.f32 %v6298, %v7922
    %v7924 = vpop.f32.mrf.mxu0
    %v7925 = vpop.f32.mrf.mxu0
    %v7926 = vadd.f32 %v6298, %v7925
    %v7927 = vpop.f32.mrf.mxu0
    %7928 = vmatprep.mubr.bf16.mxu0 %v6072
    %7929 = vmatmul.mubr.bf16.gmra.mxu0 %v6071
    %v7930 = vpop.f32.mrf.mxu0
    %v7931 = vadd.f32 %v6298, %v7930
    %v7932 = vpop.f32.mrf.mxu0
    %v7933 = vpop.f32.mrf.mxu0
    %v7934 = vadd.f32 %v6298, %v7933
    %v7935 = vpop.f32.mrf.mxu0
    %7936 = vmatprep.mubr.bf16.mxu0 %v6075
    %7937 = vmatmul.mubr.bf16.gmra.mxu0 %v6074
    %v7938 = vpop.f32.mrf.mxu0
    %v7939 = vadd.f32 %v6298, %v7938
    %v7940 = vpop.f32.mrf.mxu0
    %v7941 = vpop.f32.mrf.mxu0
    %v7942 = vadd.f32 %v6298, %v7941
    %v7943 = vpop.f32.mrf.mxu0
    %7944 = vdwg.mxu0
    %7945 = vmatprep.subr.bf16.mxu0 0
    %7946 = vmatpush1.bf16.msra.mxu0 %v7001
    %7947 = vmatprep.subr.bf16.mxu0 0
    %7948 = vmatpush1.bf16.msra.mxu0 %v6994
    %7949 = vmatprep.subr.bf16.mxu0 0
    %7950 = vmatpush1.bf16.msra.mxu0 %v6987
    %7951 = vmatprep.subr.bf16.mxu0 0
    %7952 = vmatpush1.bf16.msra.mxu0 %v6980
    %7953 = vmatprep.subr.bf16.mxu0 0
    %7954 = vmatpush1.bf16.msra.mxu0 %v6973
    %7955 = vmatprep.subr.bf16.mxu0 0
    %7956 = vmatpush1.bf16.msra.mxu0 %v6966
    %7957 = vmatprep.subr.bf16.mxu0 0
    %7958 = vmatpush1.bf16.msra.mxu0 %v6959
    %7959 = vmatprep.subr.bf16.mxu0 0
    %7960 = vmatpush1.bf16.msra.mxu0 %v6952
    %7961 = vmatprep.subr.bf16.mxu0 0
    %7962 = vmatpush2.bf16.msra.mxu0 0
    %7963 = vmatprep.subr.bf16.mxu0 0
    %7964 = vmatpush2.bf16.msra.mxu0 0
    %7965 = vmatprep.subr.bf16.mxu0 0
    %7966 = vmatpush2.bf16.msra.mxu0 0
    %7967 = vmatprep.subr.bf16.mxu0 0
    %7968 = vmatpush2.bf16.msra.mxu0 0
    %7969 = vmatprep.subr.bf16.mxu0 0
    %7970 = vmatpush2.bf16.msra.mxu0 0
    %7971 = vmatprep.subr.bf16.mxu0 0
    %7972 = vmatpush2.bf16.msra.mxu0 0
    %7973 = vmatprep.subr.bf16.mxu0 0
    %7974 = vmatpush2.bf16.msra.mxu0 0
    %7975 = vmatprep.subr.bf16.mxu0 0
    %7976 = vmatpush2.bf16.msra.mxu0 0
    %7977 = vmatprep.mubr.bf16.mxu0 0
    %7978 = vmatmul.mubr.bf16.gmra.mxu0 %v6055
    %v7979 = vpop.f32.mrf.mxu0
    %v7980 = vadd.f32 %v7883, %v7979
    %v7981 = vpop.f32.mrf.mxu0
    %v7982 = vpop.f32.mrf.mxu0
    %v7983 = vadd.f32 %v7886, %v7982
    %v7984 = vpop.f32.mrf.mxu0
    %7985 = vmatprep.mubr.bf16.mxu0 0
    %7986 = vmatmul.mubr.bf16.gmra.mxu0 %v6058
    %v7987 = vpop.f32.mrf.mxu0
    %v7988 = vadd.f32 %v7891, %v7987
    %v7989 = vpop.f32.mrf.mxu0
    %v7990 = vpop.f32.mrf.mxu0
    %v7991 = vadd.f32 %v7894, %v7990
    %v7992 = vpop.f32.mrf.mxu0
    %7993 = vmatprep.mubr.bf16.mxu0 0
    %7994 = vmatmul.mubr.bf16.gmra.mxu0 %v6061
    %v7995 = vpop.f32.mrf.mxu0
    %v7996 = vadd.f32 %v7899, %v7995
    %v7997 = vpop.f32.mrf.mxu0
    %v7998 = vpop.f32.mrf.mxu0
    %v7999 = vadd.f32 %v7902, %v7998
    %v8000 = vpop.f32.mrf.mxu0
    %8001 = vmatprep.mubr.bf16.mxu0 0
    %8002 = vmatmul.mubr.bf16.gmra.mxu0 %v6064
    %v8003 = vpop.f32.mrf.mxu0
    %v8004 = vadd.f32 %v7907, %v8003
    %v8005 = vpop.f32.mrf.mxu0
    %v8006 = vpop.f32.mrf.mxu0
    %v8007 = vadd.f32 %v7910, %v8006
    %v8008 = vpop.f32.mrf.mxu0
    %8009 = vmatprep.mubr.bf16.mxu0 0
    %8010 = vmatmul.mubr.bf16.gmra.mxu0 %v6067
    %v8011 = vpop.f32.mrf.mxu0
    %v8012 = vadd.f32 %v7915, %v8011
    %v8013 = vpop.f32.mrf.mxu0
    %v8014 = vpop.f32.mrf.mxu0
    %v8015 = vadd.f32 %v7918, %v8014
    %v8016 = vpop.f32.mrf.mxu0
    %8017 = vmatprep.mubr.bf16.mxu0 0
    %8018 = vmatmul.mubr.bf16.gmra.mxu0 %v6070
    %v8019 = vpop.f32.mrf.mxu0
    %v8020 = vadd.f32 %v7923, %v8019
    %v8021 = vpop.f32.mrf.mxu0
    %v8022 = vpop.f32.mrf.mxu0
    %v8023 = vadd.f32 %v7926, %v8022
    %v8024 = vpop.f32.mrf.mxu0
    %8025 = vmatprep.mubr.bf16.mxu0 0
    %8026 = vmatmul.mubr.bf16.gmra.mxu0 %v6073
    %v8027 = vpop.f32.mrf.mxu0
    %v8028 = vadd.f32 %v7931, %v8027
    %v8029 = vpop.f32.mrf.mxu0
    %v8030 = vpop.f32.mrf.mxu0
    %v8031 = vadd.f32 %v7934, %v8030
    %v8032 = vpop.f32.mrf.mxu0
    %8033 = vmatprep.mubr.bf16.mxu0 0
    %8034 = vmatmul.mubr.bf16.gmra.mxu0 %v6076
    %v8035 = vpop.f32.mrf.mxu0
    %v8036 = vadd.f32 %v7939, %v8035
    %v8037 = vpop.f32.mrf.mxu0
    %v8038 = vpop.f32.mrf.mxu0
    %v8039 = vadd.f32 %v7942, %v8038
    %v8040 = vpop.f32.mrf.mxu0
    %8041 = vdwg.mxu0
    %v8042 = vxor.u32 %v7318, 2147483648
    %v8043 = vxor.u32 %v7320, 2147483648
    %v8044 = vxor.u32 %v7544, 2147483648
    %v8045 = vxor.u32 %v7546, 2147483648
    %v8046 = vxor.u32 %v7770, 2147483648
    %v8047 = vxor.u32 %v7772, 2147483648
    %v8048 = vxor.u32 %v7980, 2147483648
    %v8049 = vxor.u32 %v7322, 2147483648
    %v8050 = vxor.u32 %v7324, 2147483648
    %v8051 = vxor.u32 %v7548, 2147483648
    %v8052 = vxor.u32 %v7550, 2147483648
    %v8053 = vxor.u32 %v7774, 2147483648
    %v8054 = vxor.u32 %v7776, 2147483648
    %v8055 = vxor.u32 %v7983, 2147483648
    %v8056 = vxor.u32 %v7328, 2147483648
    %v8057 = vxor.u32 %v7330, 2147483648
    %v8058 = vxor.u32 %v7554, 2147483648
    %v8059 = vxor.u32 %v7556, 2147483648
    %v8060 = vxor.u32 %v7780, 2147483648
    %v8061 = vxor.u32 %v7782, 2147483648
    %v8062 = vxor.u32 %v7988, 2147483648
    %v8063 = vxor.u32 %v7332, 2147483648
    %v8064 = vxor.u32 %v7334, 2147483648
    %v8065 = vxor.u32 %v7558, 2147483648
    %v8066 = vxor.u32 %v7560, 2147483648
    %v8067 = vxor.u32 %v7784, 2147483648
    %v8068 = vxor.u32 %v7786, 2147483648
    %v8069 = vxor.u32 %v7991, 2147483648
    %v8070 = vxor.u32 %v7338, 2147483648
    %v8071 = vxor.u32 %v7340, 2147483648
    %v8072 = vxor.u32 %v7564, 2147483648
    %v8073 = vxor.u32 %v7566, 2147483648
    %v8074 = vxor.u32 %v7790, 2147483648
    %v8075 = vxor.u32 %v7792, 2147483648
    %v8076 = vxor.u32 %v7996, 2147483648
    %v8077 = vxor.u32 %v7342, 2147483648
    %v8078 = vxor.u32 %v7344, 2147483648
    %v8079 = vxor.u32 %v7568, 2147483648
    %v8080 = vxor.u32 %v7570, 2147483648
    %v8081 = vxor.u32 %v7794, 2147483648
    %v8082 = vxor.u32 %v7796, 2147483648
    %v8083 = vxor.u32 %v7999, 2147483648
    %v8084 = vxor.u32 %v7348, 2147483648
    %v8085 = vxor.u32 %v7350, 2147483648
    %v8086 = vxor.u32 %v7574, 2147483648
    %v8087 = vxor.u32 %v7576, 2147483648
    %v8088 = vxor.u32 %v7800, 2147483648
    %v8089 = vxor.u32 %v7802, 2147483648
    %v8090 = vxor.u32 %v8004, 2147483648
    %v8091 = vxor.u32 %v7352, 2147483648
    %v8092 = vxor.u32 %v7354, 2147483648
    %v8093 = vxor.u32 %v7578, 2147483648
    %v8094 = vxor.u32 %v7580, 2147483648
    %v8095 = vxor.u32 %v7804, 2147483648
    %v8096 = vxor.u32 %v7806, 2147483648
    %v8097 = vxor.u32 %v8007, 2147483648
    %v8098 = vxor.u32 %v7358, 2147483648
    %v8099 = vxor.u32 %v7360, 2147483648
    %v8100 = vxor.u32 %v7584, 2147483648
    %v8101 = vxor.u32 %v7586, 2147483648
    %v8102 = vxor.u32 %v7810, 2147483648
    %v8103 = vxor.u32 %v7812, 2147483648
    %v8104 = vxor.u32 %v8012, 2147483648
    %v8105 = vxor.u32 %v7362, 2147483648
    %v8106 = vxor.u32 %v7364, 2147483648
    %v8107 = vxor.u32 %v7588, 2147483648
    %v8108 = vxor.u32 %v7590, 2147483648
    %v8109 = vxor.u32 %v7814, 2147483648
    %v8110 = vxor.u32 %v7816, 2147483648
    %v8111 = vxor.u32 %v8015, 2147483648
    %v8112 = vxor.u32 %v7368, 2147483648
    %v8113 = vxor.u32 %v7370, 2147483648
    %v8114 = vxor.u32 %v7594, 2147483648
    %v8115 = vxor.u32 %v7596, 2147483648
    %v8116 = vxor.u32 %v7820, 2147483648
    %v8117 = vxor.u32 %v7822, 2147483648
    %v8118 = vxor.u32 %v8020, 2147483648
    %v8119 = vxor.u32 %v7372, 2147483648
    %v8120 = vxor.u32 %v7374, 2147483648
    %v8121 = vxor.u32 %v7598, 2147483648
    %v8122 = vxor.u32 %v7600, 2147483648
    %v8123 = vxor.u32 %v7824, 2147483648
    %v8124 = vxor.u32 %v7826, 2147483648
    %v8125 = vxor.u32 %v8023, 2147483648
    %v8126 = vxor.u32 %v7378, 2147483648
    %v8127 = vxor.u32 %v7380, 2147483648
    %v8128 = vxor.u32 %v7604, 2147483648
    %v8129 = vxor.u32 %v7606, 2147483648
    %v8130 = vxor.u32 %v7830, 2147483648
    %v8131 = vxor.u32 %v7832, 2147483648
    %v8132 = vxor.u32 %v8028, 2147483648
    %v8133 = vxor.u32 %v7382, 2147483648
    %v8134 = vxor.u32 %v7384, 2147483648
    %v8135 = vxor.u32 %v7608, 2147483648
    %v8136 = vxor.u32 %v7610, 2147483648
    %v8137 = vxor.u32 %v7834, 2147483648
    %v8138 = vxor.u32 %v7836, 2147483648
    %v8139 = vxor.u32 %v8031, 2147483648
    %v8140 = vxor.u32 %v7388, 2147483648
    %v8141 = vxor.u32 %v7390, 2147483648
    %v8142 = vxor.u32 %v7614, 2147483648
    %v8143 = vxor.u32 %v7616, 2147483648
    %v8144 = vxor.u32 %v7840, 2147483648
    %v8145 = vxor.u32 %v7842, 2147483648
    %v8146 = vxor.u32 %v8036, 2147483648
    %v8147 = vxor.u32 %v7392, 2147483648
    %v8148 = vxor.u32 %v7394, 2147483648
    %v8149 = vxor.u32 %v7618, 2147483648
    %v8150 = vxor.u32 %v7620, 2147483648
    %v8151 = vxor.u32 %v7844, 2147483648
    %v8152 = vxor.u32 %v7846, 2147483648
    %v8153 = vxor.u32 %v8039, 2147483648
    %v8154 = vmul.f32 %v8042, 1.442695
    %v8155 = vpow.pop %v8154
    %v8156 = vmul.f32 %v8043, 1.442695
    %v8157 = vpow.pop %v8156
    %v8158 = vmul.f32 %v8044, 1.442695
    %v8159 = vpow.pop %v8158
    %v8160 = vmul.f32 %v8045, 1.442695
    %v8161 = vpow.pop %v8160
    %v8162 = vmul.f32 %v8046, 1.442695
    %v8163 = vpow.pop %v8162
    %v8164 = vmul.f32 %v8047, 1.442695
    %v8165 = vpow.pop %v8164
    %v8166 = vmul.f32 %v8048, 1.442695
    %v8167 = vpow.pop %v8166
    %v8168 = vmul.f32 %v8049, 1.442695
    %v8169 = vpow.pop %v8168
    %v8170 = vmul.f32 %v8050, 1.442695
    %v8171 = vpow.pop %v8170
    %v8172 = vmul.f32 %v8051, 1.442695
    %v8173 = vpow.pop %v8172
    %v8174 = vmul.f32 %v8052, 1.442695
    %v8175 = vpow.pop %v8174
    %v8176 = vmul.f32 %v8053, 1.442695
    %v8177 = vpow.pop %v8176
    %v8178 = vmul.f32 %v8054, 1.442695
    %v8179 = vpow.pop %v8178
    %v8180 = vmul.f32 %v8055, 1.442695
    %v8181 = vpow.pop %v8180
    %v8182 = vmul.f32 %v8056, 1.442695
    %v8183 = vpow.pop %v8182
    %v8184 = vmul.f32 %v8057, 1.442695
    %v8185 = vpow.pop %v8184
    %v8186 = vmul.f32 %v8058, 1.442695
    %v8187 = vpow.pop %v8186
    %v8188 = vmul.f32 %v8059, 1.442695
    %v8189 = vpow.pop %v8188
    %v8190 = vmul.f32 %v8060, 1.442695
    %v8191 = vpow.pop %v8190
    %v8192 = vmul.f32 %v8061, 1.442695
    %v8193 = vpow.pop %v8192
    %v8194 = vmul.f32 %v8062, 1.442695
    %v8195 = vpow.pop %v8194
    %v8196 = vmul.f32 %v8063, 1.442695
    %v8197 = vpow.pop %v8196
    %v8198 = vmul.f32 %v8064, 1.442695
    %v8199 = vpow.pop %v8198
    %v8200 = vmul.f32 %v8065, 1.442695
    %v8201 = vpow.pop %v8200
    %v8202 = vmul.f32 %v8066, 1.442695
    %v8203 = vpow.pop %v8202
    %v8204 = vmul.f32 %v8067, 1.442695
    %v8205 = vpow.pop %v8204
    %v8206 = vmul.f32 %v8068, 1.442695
    %v8207 = vpow.pop %v8206
    %v8208 = vmul.f32 %v8069, 1.442695
    %v8209 = vpow.pop %v8208
    %v8210 = vmul.f32 %v8070, 1.442695
    %v8211 = vpow.pop %v8210
    %v8212 = vmul.f32 %v8071, 1.442695
    %v8213 = vpow.pop %v8212
    %v8214 = vmul.f32 %v8072, 1.442695
    %v8215 = vpow.pop %v8214
    %v8216 = vmul.f32 %v8073, 1.442695
    %v8217 = vpow.pop %v8216
    %v8218 = vmul.f32 %v8074, 1.442695
    %v8219 = vpow.pop %v8218
    %v8220 = vmul.f32 %v8075, 1.442695
    %v8221 = vpow.pop %v8220
    %v8222 = vmul.f32 %v8076, 1.442695
    %v8223 = vpow.pop %v8222
    %v8224 = vmul.f32 %v8077, 1.442695
    %v8225 = vpow.pop %v8224
    %v8226 = vmul.f32 %v8078, 1.442695
    %v8227 = vpow.pop %v8226
    %v8228 = vmul.f32 %v8079, 1.442695
    %v8229 = vpow.pop %v8228
    %v8230 = vmul.f32 %v8080, 1.442695
    %v8231 = vpow.pop %v8230
    %v8232 = vmul.f32 %v8081, 1.442695
    %v8233 = vpow.pop %v8232
    %v8234 = vmul.f32 %v8082, 1.442695
    %v8235 = vpow.pop %v8234
    %v8236 = vmul.f32 %v8083, 1.442695
    %v8237 = vpow.pop %v8236
    %v8238 = vmul.f32 %v8084, 1.442695
    %v8239 = vpow.pop %v8238
    %v8240 = vmul.f32 %v8085, 1.442695
    %v8241 = vpow.pop %v8240
    %v8242 = vmul.f32 %v8086, 1.442695
    %v8243 = vpow.pop %v8242
    %v8244 = vmul.f32 %v8087, 1.442695
    %v8245 = vpow.pop %v8244
    %v8246 = vmul.f32 %v8088, 1.442695
    %v8247 = vpow.pop %v8246
    %v8248 = vmul.f32 %v8089, 1.442695
    %v8249 = vpow.pop %v8248
    %v8250 = vmul.f32 %v8090, 1.442695
    %v8251 = vpow.pop %v8250
    %v8252 = vmul.f32 %v8091, 1.442695
    %v8253 = vpow.pop %v8252
    %v8254 = vmul.f32 %v8092, 1.442695
    %v8255 = vpow.pop %v8254
    %v8256 = vmul.f32 %v8093, 1.442695
    %v8257 = vpow.pop %v8256
    %v8258 = vmul.f32 %v8094, 1.442695
    %v8259 = vpow.pop %v8258
    %v8260 = vmul.f32 %v8095, 1.442695
    %v8261 = vpow.pop %v8260
    %v8262 = vmul.f32 %v8096, 1.442695
    %v8263 = vpow.pop %v8262
    %v8264 = vmul.f32 %v8097, 1.442695
    %v8265 = vpow.pop %v8264
    %v8266 = vmul.f32 %v8098, 1.442695
    %v8267 = vpow.pop %v8266
    %v8268 = vmul.f32 %v8099, 1.442695
    %v8269 = vpow.pop %v8268
    %v8270 = vmul.f32 %v8100, 1.442695
    %v8271 = vpow.pop %v8270
    %v8272 = vmul.f32 %v8101, 1.442695
    %v8273 = vpow.pop %v8272
    %v8274 = vmul.f32 %v8102, 1.442695
    %v8275 = vpow.pop %v8274
    %v8276 = vmul.f32 %v8103, 1.442695
    %v8277 = vpow.pop %v8276
    %v8278 = vmul.f32 %v8104, 1.442695
    %v8279 = vpow.pop %v8278
    %v8280 = vmul.f32 %v8105, 1.442695
    %v8281 = vpow.pop %v8280
    %v8282 = vmul.f32 %v8106, 1.442695
    %v8283 = vpow.pop %v8282
    %v8284 = vmul.f32 %v8107, 1.442695
    %v8285 = vpow.pop %v8284
    %v8286 = vmul.f32 %v8108, 1.442695
    %v8287 = vpow.pop %v8286
    %v8288 = vmul.f32 %v8109, 1.442695
    %v8289 = vpow.pop %v8288
    %v8290 = vmul.f32 %v8110, 1.442695
    %v8291 = vpow.pop %v8290
    %v8292 = vmul.f32 %v8111, 1.442695
    %v8293 = vpow.pop %v8292
    %v8294 = vmul.f32 %v8112, 1.442695
    %v8295 = vpow.pop %v8294
    %v8296 = vmul.f32 %v8113, 1.442695
    %v8297 = vpow.pop %v8296
    %v8298 = vmul.f32 %v8114, 1.442695
    %v8299 = vpow.pop %v8298
    %v8300 = vmul.f32 %v8115, 1.442695
    %v8301 = vpow.pop %v8300
    %v8302 = vmul.f32 %v8116, 1.442695
    %v8303 = vpow.pop %v8302
    %v8304 = vmul.f32 %v8117, 1.442695
    %v8305 = vpow.pop %v8304
    %v8306 = vmul.f32 %v8118, 1.442695
    %v8307 = vpow.pop %v8306
    %v8308 = vmul.f32 %v8119, 1.442695
    %v8309 = vpow.pop %v8308
    %v8310 = vmul.f32 %v8120, 1.442695
    %v8311 = vpow.pop %v8310
    %v8312 = vmul.f32 %v8121, 1.442695
    %v8313 = vpow.pop %v8312
    %v8314 = vmul.f32 %v8122, 1.442695
    %v8315 = vpow.pop %v8314
    %v8316 = vmul.f32 %v8123, 1.442695
    %v8317 = vpow.pop %v8316
    %v8318 = vmul.f32 %v8124, 1.442695
    %v8319 = vpow.pop %v8318
    %v8320 = vmul.f32 %v8125, 1.442695
    %v8321 = vpow.pop %v8320
    %v8322 = vmul.f32 %v8126, 1.442695
    %v8323 = vpow.pop %v8322
    %v8324 = vmul.f32 %v8127, 1.442695
    %v8325 = vpow.pop %v8324
    %v8326 = vmul.f32 %v8128, 1.442695
    %v8327 = vpow.pop %v8326
    %v8328 = vmul.f32 %v8129, 1.442695
    %v8329 = vpow.pop %v8328
    %v8330 = vmul.f32 %v8130, 1.442695
    %v8331 = vpow.pop %v8330
    %v8332 = vmul.f32 %v8131, 1.442695
    %v8333 = vpow.pop %v8332
    %v8334 = vmul.f32 %v8132, 1.442695
    %v8335 = vpow.pop %v8334
    %v8336 = vmul.f32 %v8133, 1.442695
    %v8337 = vpow.pop %v8336
    %v8338 = vmul.f32 %v8134, 1.442695
    %v8339 = vpow.pop %v8338
    %v8340 = vmul.f32 %v8135, 1.442695
    %v8341 = vpow.pop %v8340
    %v8342 = vmul.f32 %v8136, 1.442695
    %v8343 = vpow.pop %v8342
    %v8344 = vmul.f32 %v8137, 1.442695
    %v8345 = vpow.pop %v8344
    %v8346 = vmul.f32 %v8138, 1.442695
    %v8347 = vpow.pop %v8346
    %v8348 = vmul.f32 %v8139, 1.442695
    %v8349 = vpow.pop %v8348
    %v8350 = vmul.f32 %v8140, 1.442695
    %v8351 = vpow.pop %v8350
    %v8352 = vmul.f32 %v8141, 1.442695
    %v8353 = vpow.pop %v8352
    %v8354 = vmul.f32 %v8142, 1.442695
    %v8355 = vpow.pop %v8354
    %v8356 = vmul.f32 %v8143, 1.442695
    %v8357 = vpow.pop %v8356
    %v8358 = vmul.f32 %v8144, 1.442695
    %v8359 = vpow.pop %v8358
    %v8360 = vmul.f32 %v8145, 1.442695
    %v8361 = vpow.pop %v8360
    %v8362 = vmul.f32 %v8146, 1.442695
    %v8363 = vpow.pop %v8362
    %v8364 = vmul.f32 %v8147, 1.442695
    %v8365 = vpow.pop %v8364
    %v8366 = vmul.f32 %v8148, 1.442695
    %v8367 = vpow.pop %v8366
    %v8368 = vmul.f32 %v8149, 1.442695
    %v8369 = vpow.pop %v8368
    %v8370 = vmul.f32 %v8150, 1.442695
    %v8371 = vpow.pop %v8370
    %v8372 = vmul.f32 %v8151, 1.442695
    %v8373 = vpow.pop %v8372
    %v8374 = vmul.f32 %v8152, 1.442695
    %v8375 = vpow.pop %v8374
    %v8376 = vmul.f32 %v8153, 1.442695
    %v8377 = vpow.pop %v8376
    %v8378 = vadd.f32 %v8155, 1.0
    %v8379 = vadd.f32 %v8157, 1.0
    %v8380 = vadd.f32 %v8159, 1.0
    %v8381 = vadd.f32 %v8161, 1.0
    %v8382 = vadd.f32 %v8163, 1.0
    %v8383 = vadd.f32 %v8165, 1.0
    %v8384 = vadd.f32 %v8167, 1.0
    %v8385 = vadd.f32 %v8169, 1.0
    %v8386 = vadd.f32 %v8171, 1.0
    %v8387 = vadd.f32 %v8173, 1.0
    %v8388 = vadd.f32 %v8175, 1.0
    %v8389 = vadd.f32 %v8177, 1.0
    %v8390 = vadd.f32 %v8179, 1.0
    %v8391 = vadd.f32 %v8181, 1.0
    %v8392 = vadd.f32 %v8183, 1.0
    %v8393 = vadd.f32 %v8185, 1.0
    %v8394 = vadd.f32 %v8187, 1.0
    %v8395 = vadd.f32 %v8189, 1.0
    %v8396 = vadd.f32 %v8191, 1.0
    %v8397 = vadd.f32 %v8193, 1.0
    %v8398 = vadd.f32 %v8195, 1.0
    %v8399 = vadd.f32 %v8197, 1.0
    %v8400 = vadd.f32 %v8199, 1.0
    %v8401 = vadd.f32 %v8201, 1.0
    %v8402 = vadd.f32 %v8203, 1.0
    %v8403 = vadd.f32 %v8205, 1.0
    %v8404 = vadd.f32 %v8207, 1.0
    %v8405 = vadd.f32 %v8209, 1.0
    %v8406 = vadd.f32 %v8211, 1.0
    %v8407 = vadd.f32 %v8213, 1.0
    %v8408 = vadd.f32 %v8215, 1.0
    %v8409 = vadd.f32 %v8217, 1.0
    %v8410 = vadd.f32 %v8219, 1.0
    %v8411 = vadd.f32 %v8221, 1.0
    %v8412 = vadd.f32 %v8223, 1.0
    %v8413 = vadd.f32 %v8225, 1.0
    %v8414 = vadd.f32 %v8227, 1.0
    %v8415 = vadd.f32 %v8229, 1.0
    %v8416 = vadd.f32 %v8231, 1.0
    %v8417 = vadd.f32 %v8233, 1.0
    %v8418 = vadd.f32 %v8235, 1.0
    %v8419 = vadd.f32 %v8237, 1.0
    %v8420 = vadd.f32 %v8239, 1.0
    %v8421 = vadd.f32 %v8241, 1.0
    %v8422 = vadd.f32 %v8243, 1.0
    %v8423 = vadd.f32 %v8245, 1.0
    %v8424 = vadd.f32 %v8247, 1.0
    %v8425 = vadd.f32 %v8249, 1.0
    %v8426 = vadd.f32 %v8251, 1.0
    %v8427 = vadd.f32 %v8253, 1.0
    %v8428 = vadd.f32 %v8255, 1.0
    %v8429 = vadd.f32 %v8257, 1.0
    %v8430 = vadd.f32 %v8259, 1.0
    %v8431 = vadd.f32 %v8261, 1.0
    %v8432 = vadd.f32 %v8263, 1.0
    %v8433 = vadd.f32 %v8265, 1.0
    %v8434 = vadd.f32 %v8267, 1.0
    %v8435 = vadd.f32 %v8269, 1.0
    %v8436 = vadd.f32 %v8271, 1.0
    %v8437 = vadd.f32 %v8273, 1.0
    %v8438 = vadd.f32 %v8275, 1.0
    %v8439 = vadd.f32 %v8277, 1.0
    %v8440 = vadd.f32 %v8279, 1.0
    %v8441 = vadd.f32 %v8281, 1.0
    %v8442 = vadd.f32 %v8283, 1.0
    %v8443 = vadd.f32 %v8285, 1.0
    %v8444 = vadd.f32 %v8287, 1.0
    %v8445 = vadd.f32 %v8289, 1.0
    %v8446 = vadd.f32 %v8291, 1.0
    %v8447 = vadd.f32 %v8293, 1.0
    %v8448 = vadd.f32 %v8295, 1.0
    %v8449 = vadd.f32 %v8297, 1.0
    %v8450 = vadd.f32 %v8299, 1.0
    %v8451 = vadd.f32 %v8301, 1.0
    %v8452 = vadd.f32 %v8303, 1.0
    %v8453 = vadd.f32 %v8305, 1.0
    %v8454 = vadd.f32 %v8307, 1.0
    %v8455 = vadd.f32 %v8309, 1.0
    %v8456 = vadd.f32 %v8311, 1.0
    %v8457 = vadd.f32 %v8313, 1.0
    %v8458 = vadd.f32 %v8315, 1.0
    %v8459 = vadd.f32 %v8317, 1.0
    %v8460 = vadd.f32 %v8319, 1.0
    %v8461 = vadd.f32 %v8321, 1.0
    %v8462 = vadd.f32 %v8323, 1.0
    %v8463 = vadd.f32 %v8325, 1.0
    %v8464 = vadd.f32 %v8327, 1.0
    %v8465 = vadd.f32 %v8329, 1.0
    %v8466 = vadd.f32 %v8331, 1.0
    %v8467 = vadd.f32 %v8333, 1.0
    %v8468 = vadd.f32 %v8335, 1.0
    %v8469 = vadd.f32 %v8337, 1.0
    %v8470 = vadd.f32 %v8339, 1.0
    %v8471 = vadd.f32 %v8341, 1.0
    %v8472 = vadd.f32 %v8343, 1.0
    %v8473 = vadd.f32 %v8345, 1.0
    %v8474 = vadd.f32 %v8347, 1.0
    %v8475 = vadd.f32 %v8349, 1.0
    %v8476 = vadd.f32 %v8351, 1.0
    %v8477 = vadd.f32 %v8353, 1.0
    %v8478 = vadd.f32 %v8355, 1.0
    %v8479 = vadd.f32 %v8357, 1.0
    %v8480 = vadd.f32 %v8359, 1.0
    %v8481 = vadd.f32 %v8361, 1.0
    %v8482 = vadd.f32 %v8363, 1.0
    %v8483 = vadd.f32 %v8365, 1.0
    %v8484 = vadd.f32 %v8367, 1.0
    %v8485 = vadd.f32 %v8369, 1.0
    %v8486 = vadd.f32 %v8371, 1.0
    %v8487 = vadd.f32 %v8373, 1.0
    %v8488 = vadd.f32 %v8375, 1.0
    %v8489 = vadd.f32 %v8377, 1.0
    %v8490 = vrcp.pop %v8378
    %v8491 = vmul.f32 1.0, %v8490
    %v8492 = vrcp.pop %v8379
    %v8493 = vmul.f32 1.0, %v8492
    %v8494 = vrcp.pop %v8380
    %v8495 = vmul.f32 1.0, %v8494
    %v8496 = vrcp.pop %v8381
    %v8497 = vmul.f32 1.0, %v8496
    %v8498 = vrcp.pop %v8382
    %v8499 = vmul.f32 1.0, %v8498
    %v8500 = vrcp.pop %v8383
    %v8501 = vmul.f32 1.0, %v8500
    %v8502 = vrcp.pop %v8384
    %v8503 = vmul.f32 1.0, %v8502
    %v8504 = vrcp.pop %v8385
    %v8505 = vmul.f32 1.0, %v8504
    %v8506 = vrcp.pop %v8386
    %v8507 = vmul.f32 1.0, %v8506
    %v8508 = vrcp.pop %v8387
    %v8509 = vmul.f32 1.0, %v8508
    %v8510 = vrcp.pop %v8388
    %v8511 = vmul.f32 1.0, %v8510
    %v8512 = vrcp.pop %v8389
    %v8513 = vmul.f32 1.0, %v8512
    %v8514 = vrcp.pop %v8390
    %v8515 = vmul.f32 1.0, %v8514
    %v8516 = vrcp.pop %v8391
    %v8517 = vmul.f32 1.0, %v8516
    %v8518 = vrcp.pop %v8392
    %v8519 = vmul.f32 1.0, %v8518
    %v8520 = vrcp.pop %v8393
    %v8521 = vmul.f32 1.0, %v8520
    %v8522 = vrcp.pop %v8394
    %v8523 = vmul.f32 1.0, %v8522
    %v8524 = vrcp.pop %v8395
    %v8525 = vmul.f32 1.0, %v8524
    %v8526 = vrcp.pop %v8396
    %v8527 = vmul.f32 1.0, %v8526
    %v8528 = vrcp.pop %v8397
    %v8529 = vmul.f32 1.0, %v8528
    %v8530 = vrcp.pop %v8398
    %v8531 = vmul.f32 1.0, %v8530
    %v8532 = vrcp.pop %v8399
    %v8533 = vmul.f32 1.0, %v8532
    %v8534 = vrcp.pop %v8400
    %v8535 = vmul.f32 1.0, %v8534
    %v8536 = vrcp.pop %v8401
    %v8537 = vmul.f32 1.0, %v8536
    %v8538 = vrcp.pop %v8402
    %v8539 = vmul.f32 1.0, %v8538
    %v8540 = vrcp.pop %v8403
    %v8541 = vmul.f32 1.0, %v8540
    %v8542 = vrcp.pop %v8404
    %v8543 = vmul.f32 1.0, %v8542
    %v8544 = vrcp.pop %v8405
    %v8545 = vmul.f32 1.0, %v8544
    %v8546 = vrcp.pop %v8406
    %v8547 = vmul.f32 1.0, %v8546
    %v8548 = vrcp.pop %v8407
    %v8549 = vmul.f32 1.0, %v8548
    %v8550 = vrcp.pop %v8408
    %v8551 = vmul.f32 1.0, %v8550
    %v8552 = vrcp.pop %v8409
    %v8553 = vmul.f32 1.0, %v8552
    %v8554 = vrcp.pop %v8410
    %v8555 = vmul.f32 1.0, %v8554
    %v8556 = vrcp.pop %v8411
    %v8557 = vmul.f32 1.0, %v8556
    %v8558 = vrcp.pop %v8412
    %v8559 = vmul.f32 1.0, %v8558
    %v8560 = vrcp.pop %v8413
    %v8561 = vmul.f32 1.0, %v8560
    %v8562 = vrcp.pop %v8414
    %v8563 = vmul.f32 1.0, %v8562
    %v8564 = vrcp.pop %v8415
    %v8565 = vmul.f32 1.0, %v8564
    %v8566 = vrcp.pop %v8416
    %v8567 = vmul.f32 1.0, %v8566
    %v8568 = vrcp.pop %v8417
    %v8569 = vmul.f32 1.0, %v8568
    %v8570 = vrcp.pop %v8418
    %v8571 = vmul.f32 1.0, %v8570
    %v8572 = vrcp.pop %v8419
    %v8573 = vmul.f32 1.0, %v8572
    %v8574 = vrcp.pop %v8420
    %v8575 = vmul.f32 1.0, %v8574
    %v8576 = vrcp.pop %v8421
    %v8577 = vmul.f32 1.0, %v8576
    %v8578 = vrcp.pop %v8422
    %v8579 = vmul.f32 1.0, %v8578
    %v8580 = vrcp.pop %v8423
    %v8581 = vmul.f32 1.0, %v8580
    %v8582 = vrcp.pop %v8424
    %v8583 = vmul.f32 1.0, %v8582
    %v8584 = vrcp.pop %v8425
    %v8585 = vmul.f32 1.0, %v8584
    %v8586 = vrcp.pop %v8426
    %v8587 = vmul.f32 1.0, %v8586
    %v8588 = vrcp.pop %v8427
    %v8589 = vmul.f32 1.0, %v8588
    %v8590 = vrcp.pop %v8428
    %v8591 = vmul.f32 1.0, %v8590
    %v8592 = vrcp.pop %v8429
    %v8593 = vmul.f32 1.0, %v8592
    %v8594 = vrcp.pop %v8430
    %v8595 = vmul.f32 1.0, %v8594
    %v8596 = vrcp.pop %v8431
    %v8597 = vmul.f32 1.0, %v8596
    %v8598 = vrcp.pop %v8432
    %v8599 = vmul.f32 1.0, %v8598
    %v8600 = vrcp.pop %v8433
    %v8601 = vmul.f32 1.0, %v8600
    %v8602 = vrcp.pop %v8434
    %v8603 = vmul.f32 1.0, %v8602
    %v8604 = vrcp.pop %v8435
    %v8605 = vmul.f32 1.0, %v8604
    %v8606 = vrcp.pop %v8436
    %v8607 = vmul.f32 1.0, %v8606
    %v8608 = vrcp.pop %v8437
    %v8609 = vmul.f32 1.0, %v8608
    %v8610 = vrcp.pop %v8438
    %v8611 = vmul.f32 1.0, %v8610
    %v8612 = vrcp.pop %v8439
    %v8613 = vmul.f32 1.0, %v8612
    %v8614 = vrcp.pop %v8440
    %v8615 = vmul.f32 1.0, %v8614
    %v8616 = vrcp.pop %v8441
    %v8617 = vmul.f32 1.0, %v8616
    %v8618 = vrcp.pop %v8442
    %v8619 = vmul.f32 1.0, %v8618
    %v8620 = vrcp.pop %v8443
    %v8621 = vmul.f32 1.0, %v8620
    %v8622 = vrcp.pop %v8444
    %v8623 = vmul.f32 1.0, %v8622
    %v8624 = vrcp.pop %v8445
    %v8625 = vmul.f32 1.0, %v8624
    %v8626 = vrcp.pop %v8446
    %v8627 = vmul.f32 1.0, %v8626
    %v8628 = vrcp.pop %v8447
    %v8629 = vmul.f32 1.0, %v8628
    %v8630 = vrcp.pop %v8448
    %v8631 = vmul.f32 1.0, %v8630
    %v8632 = vrcp.pop %v8449
    %v8633 = vmul.f32 1.0, %v8632
    %v8634 = vrcp.pop %v8450
    %v8635 = vmul.f32 1.0, %v8634
    %v8636 = vrcp.pop %v8451
    %v8637 = vmul.f32 1.0, %v8636
    %v8638 = vrcp.pop %v8452
    %v8639 = vmul.f32 1.0, %v8638
    %v8640 = vrcp.pop %v8453
    %v8641 = vmul.f32 1.0, %v8640
    %v8642 = vrcp.pop %v8454
    %v8643 = vmul.f32 1.0, %v8642
    %v8644 = vrcp.pop %v8455
    %v8645 = vmul.f32 1.0, %v8644
    %v8646 = vrcp.pop %v8456
    %v8647 = vmul.f32 1.0, %v8646
    %v8648 = vrcp.pop %v8457
    %v8649 = vmul.f32 1.0, %v8648
    %v8650 = vrcp.pop %v8458
    %v8651 = vmul.f32 1.0, %v8650
    %v8652 = vrcp.pop %v8459
    %v8653 = vmul.f32 1.0, %v8652
    %v8654 = vrcp.pop %v8460
    %v8655 = vmul.f32 1.0, %v8654
    %v8656 = vrcp.pop %v8461
    %v8657 = vmul.f32 1.0, %v8656
    %v8658 = vrcp.pop %v8462
    %v8659 = vmul.f32 1.0, %v8658
    %v8660 = vrcp.pop %v8463
    %v8661 = vmul.f32 1.0, %v8660
    %v8662 = vrcp.pop %v8464
    %v8663 = vmul.f32 1.0, %v8662
    %v8664 = vrcp.pop %v8465
    %v8665 = vmul.f32 1.0, %v8664
    %v8666 = vrcp.pop %v8466
    %v8667 = vmul.f32 1.0, %v8666
    %v8668 = vrcp.pop %v8467
    %v8669 = vmul.f32 1.0, %v8668
    %v8670 = vrcp.pop %v8468
    %v8671 = vmul.f32 1.0, %v8670
    %v8672 = vrcp.pop %v8469
    %v8673 = vmul.f32 1.0, %v8672
    %v8674 = vrcp.pop %v8470
    %v8675 = vmul.f32 1.0, %v8674
    %v8676 = vrcp.pop %v8471
    %v8677 = vmul.f32 1.0, %v8676
    %v8678 = vrcp.pop %v8472
    %v8679 = vmul.f32 1.0, %v8678
    %v8680 = vrcp.pop %v8473
    %v8681 = vmul.f32 1.0, %v8680
    %v8682 = vrcp.pop %v8474
    %v8683 = vmul.f32 1.0, %v8682
    %v8684 = vrcp.pop %v8475
    %v8685 = vmul.f32 1.0, %v8684
    %v8686 = vrcp.pop %v8476
    %v8687 = vmul.f32 1.0, %v8686
    %v8688 = vrcp.pop %v8477
    %v8689 = vmul.f32 1.0, %v8688
    %v8690 = vrcp.pop %v8478
    %v8691 = vmul.f32 1.0, %v8690
    %v8692 = vrcp.pop %v8479
    %v8693 = vmul.f32 1.0, %v8692
    %v8694 = vrcp.pop %v8480
    %v8695 = vmul.f32 1.0, %v8694
    %v8696 = vrcp.pop %v8481
    %v8697 = vmul.f32 1.0, %v8696
    %v8698 = vrcp.pop %v8482
    %v8699 = vmul.f32 1.0, %v8698
    %v8700 = vrcp.pop %v8483
    %v8701 = vmul.f32 1.0, %v8700
    %v8702 = vrcp.pop %v8484
    %v8703 = vmul.f32 1.0, %v8702
    %v8704 = vrcp.pop %v8485
    %v8705 = vmul.f32 1.0, %v8704
    %v8706 = vrcp.pop %v8486
    %v8707 = vmul.f32 1.0, %v8706
    %v8708 = vrcp.pop %v8487
    %v8709 = vmul.f32 1.0, %v8708
    %v8710 = vrcp.pop %v8488
    %v8711 = vmul.f32 1.0, %v8710
    %v8712 = vrcp.pop %v8489
    %v8713 = vmul.f32 1.0, %v8712
    %8714 = vst [vmem:[%s18] sm:$0xff] %v8491
    %8715 = vst [vmem:[%s18 + $0x8] sm:$0xff] %v8493
    %8716 = vst [vmem:[%s18 + $0x10] sm:$0xff] %v8495
    %8717 = vst [vmem:[%s18 + $0x18] sm:$0xff] %v8497
    %8718 = vst [vmem:[%s18 + $0x20] sm:$0xff] %v8499
    %8719 = vst [vmem:[%s18 + $0x28] sm:$0xff] %v8501
    %8720 = vst.msk [vmem:[%s18 + $0x30] sm:$0xff] %vm1103, %v8503
    %8721 = vst [vmem:[%s18 + $0x38] sm:$0xff] %v8505
    %8722 = vst [vmem:[%s18 + $0x40] sm:$0xff] %v8507
    %8723 = vst [vmem:[%s18 + $0x48] sm:$0xff] %v8509
    %8724 = vst [vmem:[%s18 + $0x50] sm:$0xff] %v8511
    %8725 = vst [vmem:[%s18 + $0x58] sm:$0xff] %v8513
    %8726 = vst [vmem:[%s18 + $0x60] sm:$0xff] %v8515
    %8727 = vst.msk [vmem:[%s18 + $0x68] sm:$0xff] %vm1103, %v8517
    %8728 = vst [vmem:[%s18 + $0x70] sm:$0xff] %v8519
    %8729 = vst [vmem:[%s18 + $0x78] sm:$0xff] %v8521
    %8730 = vst [vmem:[%s18 + $0x80] sm:$0xff] %v8523
    %8731 = vst [vmem:[%s18 + $0x88] sm:$0xff] %v8525
    %8732 = vst [vmem:[%s18 + $0x90] sm:$0xff] %v8527
    %8733 = vst [vmem:[%s18 + $0x98] sm:$0xff] %v8529
    %8734 = vst.msk [vmem:[%s18 + $0xa0] sm:$0xff] %vm1103, %v8531
    %8735 = vst [vmem:[%s18 + $0xa8] sm:$0xff] %v8533
    %8736 = vst [vmem:[%s18 + $0xb0] sm:$0xff] %v8535
    %8737 = vst [vmem:[%s18 + $0xb8] sm:$0xff] %v8537
    %8738 = vst [vmem:[%s18 + $0xc0] sm:$0xff] %v8539
    %8739 = vst [vmem:[%s18 + $0xc8] sm:$0xff] %v8541
    %8740 = vst [vmem:[%s18 + $0xd0] sm:$0xff] %v8543
    %8741 = vst.msk [vmem:[%s18 + $0xd8] sm:$0xff] %vm1103, %v8545
    %8742 = vst [vmem:[%s18 + $0xe0] sm:$0xff] %v8547
    %8743 = vst [vmem:[%s18 + $0xe8] sm:$0xff] %v8549
    %8744 = vst [vmem:[%s18 + $0xf0] sm:$0xff] %v8551
    %8745 = vst [vmem:[%s18 + $0xf8] sm:$0xff] %v8553
    %8746 = vst [vmem:[%s18 + $0x100] sm:$0xff] %v8555
    %8747 = vst [vmem:[%s18 + $0x108] sm:$0xff] %v8557
    %8748 = vst.msk [vmem:[%s18 + $0x110] sm:$0xff] %vm1103, %v8559
    %8749 = vst [vmem:[%s18 + $0x118] sm:$0xff] %v8561
    %8750 = vst [vmem:[%s18 + $0x120] sm:$0xff] %v8563
    %8751 = vst [vmem:[%s18 + $0x128] sm:$0xff] %v8565
    %8752 = vst [vmem:[%s18 + $0x130] sm:$0xff] %v8567
    %8753 = vst [vmem:[%s18 + $0x138] sm:$0xff] %v8569
    %8754 = vst [vmem:[%s18 + $0x140] sm:$0xff] %v8571
    %8755 = vst.msk [vmem:[%s18 + $0x148] sm:$0xff] %vm1103, %v8573
    %8756 = vst [vmem:[%s18 + $0x150] sm:$0xff] %v8575
    %8757 = vst [vmem:[%s18 + $0x158] sm:$0xff] %v8577
    %8758 = vst [vmem:[%s18 + $0x160] sm:$0xff] %v8579
    %8759 = vst [vmem:[%s18 + $0x168] sm:$0xff] %v8581
    %8760 = vst [vmem:[%s18 + $0x170] sm:$0xff] %v8583
    %8761 = vst [vmem:[%s18 + $0x178] sm:$0xff] %v8585
    %8762 = vst.msk [vmem:[%s18 + $0x180] sm:$0xff] %vm1103, %v8587
    %8763 = vst [vmem:[%s18 + $0x188] sm:$0xff] %v8589
    %8764 = vst [vmem:[%s18 + $0x190] sm:$0xff] %v8591
    %8765 = vst [vmem:[%s18 + $0x198] sm:$0xff] %v8593
    %8766 = vst [vmem:[%s18 + $0x1a0] sm:$0xff] %v8595
    %8767 = vst [vmem:[%s18 + $0x1a8] sm:$0xff] %v8597
    %8768 = vst [vmem:[%s18 + $0x1b0] sm:$0xff] %v8599
    %8769 = vst.msk [vmem:[%s18 + $0x1b8] sm:$0xff] %vm1103, %v8601
    %8770 = vst [vmem:[%s18 + $0x1c0] sm:$0xff] %v8603
    %8771 = vst [vmem:[%s18 + $0x1c8] sm:$0xff] %v8605
    %8772 = vst [vmem:[%s18 + $0x1d0] sm:$0xff] %v8607
    %8773 = vst [vmem:[%s18 + $0x1d8] sm:$0xff] %v8609
    %8774 = vst [vmem:[%s18 + $0x1e0] sm:$0xff] %v8611
    %8775 = vst [vmem:[%s18 + $0x1e8] sm:$0xff] %v8613
    %8776 = vst.msk [vmem:[%s18 + $0x1f0] sm:$0xff] %vm1103, %v8615
    %8777 = vst [vmem:[%s18 + $0x1f8] sm:$0xff] %v8617
    %8778 = vst [vmem:[%s18 + $0x200] sm:$0xff] %v8619
    %8779 = vst [vmem:[%s18 + $0x208] sm:$0xff] %v8621
    %8780 = vst [vmem:[%s18 + $0x210] sm:$0xff] %v8623
    %8781 = vst [vmem:[%s18 + $0x218] sm:$0xff] %v8625
    %8782 = vst [vmem:[%s18 + $0x220] sm:$0xff] %v8627
    %8783 = vst.msk [vmem:[%s18 + $0x228] sm:$0xff] %vm1103, %v8629
    %8784 = vst [vmem:[%s18 + $0x230] sm:$0xff] %v8631
    %8785 = vst [vmem:[%s18 + $0x238] sm:$0xff] %v8633
    %8786 = vst [vmem:[%s18 + $0x240] sm:$0xff] %v8635
    %8787 = vst [vmem:[%s18 + $0x248] sm:$0xff] %v8637
    %8788 = vst [vmem:[%s18 + $0x250] sm:$0xff] %v8639
    %8789 = vst [vmem:[%s18 + $0x258] sm:$0xff] %v8641
    %8790 = vst.msk [vmem:[%s18 + $0x260] sm:$0xff] %vm1103, %v8643
    %8791 = vst [vmem:[%s18 + $0x268] sm:$0xff] %v8645
    %8792 = vst [vmem:[%s18 + $0x270] sm:$0xff] %v8647
    %8793 = vst [vmem:[%s18 + $0x278] sm:$0xff] %v8649
    %8794 = vst [vmem:[%s18 + $0x280] sm:$0xff] %v8651
    %8795 = vst [vmem:[%s18 + $0x288] sm:$0xff] %v8653
    %8796 = vst [vmem:[%s18 + $0x290] sm:$0xff] %v8655
    %8797 = vst.msk [vmem:[%s18 + $0x298] sm:$0xff] %vm1103, %v8657
    %8798 = vst [vmem:[%s18 + $0x2a0] sm:$0xff] %v8659
    %8799 = vst [vmem:[%s18 + $0x2a8] sm:$0xff] %v8661
    %8800 = vst [vmem:[%s18 + $0x2b0] sm:$0xff] %v8663
    %8801 = vst [vmem:[%s18 + $0x2b8] sm:$0xff] %v8665
    %8802 = vst [vmem:[%s18 + $0x2c0] sm:$0xff] %v8667
    %8803 = vst [vmem:[%s18 + $0x2c8] sm:$0xff] %v8669
    %8804 = vst.msk [vmem:[%s18 + $0x2d0] sm:$0xff] %vm1103, %v8671
    %8805 = vst [vmem:[%s18 + $0x2d8] sm:$0xff] %v8673
    %8806 = vst [vmem:[%s18 + $0x2e0] sm:$0xff] %v8675
    %8807 = vst [vmem:[%s18 + $0x2e8] sm:$0xff] %v8677
    %8808 = vst [vmem:[%s18 + $0x2f0] sm:$0xff] %v8679
    %8809 = vst [vmem:[%s18 + $0x2f8] sm:$0xff] %v8681
    %8810 = vst [vmem:[%s18 + $0x300] sm:$0xff] %v8683
    %8811 = vst.msk [vmem:[%s18 + $0x308] sm:$0xff] %vm1103, %v8685
    %8812 = vst [vmem:[%s18 + $0x310] sm:$0xff] %v8687
    %8813 = vst [vmem:[%s18 + $0x318] sm:$0xff] %v8689
    %8814 = vst [vmem:[%s18 + $0x320] sm:$0xff] %v8691
    %8815 = vst [vmem:[%s18 + $0x328] sm:$0xff] %v8693
    %8816 = vst [vmem:[%s18 + $0x330] sm:$0xff] %v8695
    %8817 = vst [vmem:[%s18 + $0x338] sm:$0xff] %v8697
    %8818 = vst.msk [vmem:[%s18 + $0x340] sm:$0xff] %vm1103, %v8699
    %8819 = vst [vmem:[%s18 + $0x348] sm:$0xff] %v8701
    %8820 = vst [vmem:[%s18 + $0x350] sm:$0xff] %v8703
    %8821 = vst [vmem:[%s18 + $0x358] sm:$0xff] %v8705
    %8822 = vst [vmem:[%s18 + $0x360] sm:$0xff] %v8707
    %8823 = vst [vmem:[%s18 + $0x368] sm:$0xff] %v8709
    %8824 = vst [vmem:[%s18 + $0x370] sm:$0xff] %v8711
    %8825 = vst.msk [vmem:[%s18 + $0x378] sm:$0xff] %vm1103, %v8713
    // Predicated region
    $region82: #{vae_forward.1} parent=1 // pred_check
      _
    $region83: #{vae_forward.1} parent=1 // pred_check_branch
      %8827 = sbr.rel (0) target = $region85
    $region84: #{vae_forward.1} parent=1 // pred_region
      _
    $region85: #{vae_forward.1} parent=1 // pred_fallthru
      _
    // Predicated region
    $region86: #{vae_forward.1} parent=1 // pred_check
      _
    $region87: #{vae_forward.1} parent=1 // pred_check_branch
      %8829 = sbr.rel (0) target = $region89
    $region88: #{vae_forward.1} parent=1 // pred_region
      _
    $region89: #{vae_forward.1} parent=1 // pred_fallthru
      _
    // Predicated region
    $region90: #{vae_forward.1} parent=1 // pred_check
      _
    $region91: #{vae_forward.1} parent=1 // pred_check_branch
      %8831 = sbr.rel (0) target = $region93
    $region92: #{vae_forward.1} parent=1 // pred_region
      _
    $region93: #{vae_forward.1} parent=1 // pred_fallthru
      _
    // Predicated region
    $region94: #{vae_forward.1} parent=1 // pred_check
      _
    $region95: #{vae_forward.1} parent=1 // pred_check_branch
      %8833 = sbr.rel (0) target = $region97
    $region96: #{vae_forward.1} parent=1 // pred_region
      _
    $region97: #{vae_forward.1} parent=1 // pred_fallthru
      _
    // Predicated region
    $region98: #{vae_forward.1} parent=1 // pred_check
      _
    $region99: #{vae_forward.1} parent=1 // pred_check_branch
      %8835 = sbr.rel (0) target = $region101
    $region100: #{vae_forward.1} parent=1 // pred_region
      _
    $region101: #{vae_forward.1} parent=1 // pred_fallthru
      _
    // Predicated region
    $region102: #{vae_forward.1} parent=1 // pred_check
      _
    $region103: #{vae_forward.1} parent=1 // pred_check_branch
      %8837 = sbr.rel (0) target = $region105
    $region104: #{vae_forward.1} parent=1 // pred_region
      _
    $region105: #{vae_forward.1} parent=1 // pred_fallthru
      _
    // Predicated region
    $region106: #{vae_forward.1} parent=1 // pred_check
      _
    $region107: #{vae_forward.1} parent=1 // pred_check_branch
      %8839 = sbr.rel (0) target = $region109
    $region108: #{vae_forward.1} parent=1 // pred_region
      _
    $region109: #{vae_forward.1} parent=1 // pred_fallthru
      _
    // Predicated region
    $region110: #{vae_forward.1} parent=1 // pred_check
      _
    $region111: #{vae_forward.1} parent=1 // pred_check_branch
      %8841 = sbr.rel (0) target = $region113
    $region112: #{vae_forward.1} parent=1 // pred_region
      _
    $region113: #{vae_forward.1} parent=1 // pred_fallthru
      _
    %8842 = vsyncpa [#allocation3], 1
    %8843 = vsyncpa [#allocation5], 1

</llo_original>
